<compile_context>
chip_gen: v6e
topology: v6e:2x2x1
jax: 0.10.0
libtpu: 0.0.40
codegen_flags: <defaults>
</compile_context>

<pallas_src>
import functools

import jax
import jax.numpy as jnp
from jax.experimental import pallas as pl
from jax.experimental.pallas import tpu as pltpu

_LANE = 128
_EPS = 1e-5  # PyTorch BatchNorm2d default


def _round_up(c, m=_LANE):
    return ((c + m - 1) // m) * m


def _double_conv_kernel(x_ref, w1_ref, g1_ref, be1_ref, w2_ref, g2_ref, be2_ref,
                        out_ref, y1_ref, *, H, W):
    N, HW, CINP = x_ref.shape
    CMIDP = w1_ref.shape[-1]
    COUTP = w2_ref.shape[-1]
    cnt = float(N * HW)  # BatchNorm statistics extent: N * H * W

    # ---- hoisted constants: traced once, reused across every image / pass ----
    # (JAX does not CSE broadcast_in_dim; building these inside the tap or
    #  per-image loops would regenerate them 2*N times per conv.)
    def _col_masks(cp):
        w_idx = jax.lax.broadcasted_iota(jnp.int32, (H, W, cp), 1).reshape(HW, cp)
        return w_idx >= 1, w_idx <= W - 2  # dx = -1 / dx = +1 validity

    col_masks = {CINP: _col_masks(CINP)}
    if CMIDP not in col_masks:
        col_masks[CMIDP] = _col_masks(CMIDP)

    zero_rows = {CMIDP: jnp.zeros((W, CMIDP), jnp.float32)}
    if COUTP not in zero_rows:
        zero_rows[COUTP] = jnp.zeros((W, COUTP), jnp.float32)

    def conv3x3(x2, w_ref, cout):
        """3x3 'same' conv of one flattened image x2: (H*W, cp) -> (H*W, cout).

        Column (dx) taps: f32 sublane roll (+/-1) + edge mask, lane-concat to
        K = 3*cp, ONE bf16 cast.  Row (dy) taps: sublane-aligned row-range
        matmuls (shift by W rows, W % 8 == 0), accumulated in f32.
        """
        cp = x2.shape[-1]
        m_left, m_right = col_masks[cp]
        zr = zero_rows[cout]
        left = jnp.where(m_left, pltpu.roll(x2, 1, axis=0), 0.0)          # x[r-1]
        right = jnp.where(m_right, pltpu.roll(x2, HW - 1, axis=0), 0.0)   # x[r+1]
        xcat = jnp.concatenate([left, x2, right], axis=-1).astype(jnp.bfloat16)

        # dy = 1 : all output rows read input rows in place
        # dy = 0 : output rows [W, HW) read input rows [0, HW-W)
        # dy = 2 : output rows [0, HW-W) read input rows [W, HW)
        acc = jnp.dot(xcat, w_ref[1], preferred_element_type=jnp.float32)
        d_up = jnp.dot(xcat[:HW - W], w_ref[0], preferred_element_type=jnp.float32)
        d_dn = jnp.dot(xcat[W:], w_ref[2], preferred_element_type=jnp.float32)
        acc = acc + jnp.concatenate([zr, d_up], axis=0)
        acc = acc + jnp.concatenate([d_dn, zr], axis=0)
        return acc

    def bn_scale_shift(s, ss, gamma, beta):
        # Training-mode BatchNorm2d folded to y * scale + shift (one-pass stats).
        # TODO(synk): at UNet-scale N*H*W switch to shifted / Welford-style
        # accumulation; one-pass E[x^2]-E[x]^2 in f32 can cancel badly.
        mean = s * (1.0 / cnt)
        var = jnp.maximum(ss * (1.0 / cnt) - mean * mean, 0.0)
        scale = gamma * jax.lax.rsqrt(var + _EPS)
        return scale, beta - mean * scale

    # ---- pass 1: conv1 on every image, accumulate BN1 batch statistics ----
    s1 = jnp.zeros((1, CMIDP), jnp.float32)
    ss1 = jnp.zeros((1, CMIDP), jnp.float32)
    for n in range(N):
        y1 = conv3x3(x_ref[n], w1_ref, CMIDP)
        s1 = s1 + jnp.sum(y1, axis=0, keepdims=True)
        ss1 = ss1 + jnp.sum(y1 * y1, axis=0, keepdims=True)
        y1_ref[n] = y1.astype(jnp.bfloat16)  # bf16 scratch; stats taken from f32 y1
    scale1, shift1 = bn_scale_shift(s1, ss1, g1_ref[...], be1_ref[...])

    # ---- pass 2: BN1 + ReLU, conv2, accumulate BN2 statistics ----
    s2 = jnp.zeros((1, COUTP), jnp.float32)
    ss2 = jnp.zeros((1, COUTP), jnp.float32)
    for n in range(N):
        h1 = jnp.maximum(y1_ref[n].astype(jnp.float32) * scale1 + shift1, 0.0)
        y2 = conv3x3(h1, w2_ref, COUTP)
        out_ref[n] = y2  # raw conv2 result; finalized in pass 3
        s2 = s2 + jnp.sum(y2, axis=0, keepdims=True)
        ss2 = ss2 + jnp.sum(y2 * y2, axis=0, keepdims=True)
    scale2, shift2 = bn_scale_shift(s2, ss2, g2_ref[...], be2_ref[...])

    # ---- pass 3: BN2 + ReLU in place on the lane-dense output ----
    for n in range(N):
        out_ref[n] = jnp.maximum(out_ref[n] * scale2 + shift2, 0.0)


def double_conv(x_nchw, params):
    """Pallas DoubleConv. x_nchw: (N, Cin, H, W) -> (N, Cout, H, W).

    Conv biases b1/b2 are accepted but unused: a per-channel conv bias is
    cancelled exactly by the mean subtraction of the following training-mode
    BatchNorm (the f32 reference keeps the bias to demonstrate this).
    """
    w1, b1, g1, be1, w2, b2, g2, be2 = params
    del b1, b2  # cancelled by BatchNorm
    N, Cin, H, W = x_nchw.shape
    Cmid, Cout = w1.shape[-1], w2.shape[-1]
    CINP, CMIDP, COUTP = _round_up(Cin), _round_up(Cmid), _round_up(Cout)
    assert W % 8 == 0, "W must be a multiple of 8 for the tile-aligned flatten"

    # NCHW -> NHWC, pad channels to the lane width, flatten (H, W) -> rows.
    x = jnp.transpose(x_nchw, (0, 2, 3, 1)).astype(jnp.float32)
    x = jnp.pad(x, ((0, 0), (0, 0), (0, 0), (0, CINP - Cin)))
    x = x.reshape(N, H * W, CINP)

    # HWIO weights, channel-padded, bf16, dx-packed: (3, 3*Cinp, Coutp) so each
    # dy tap is a single K = 3*Cinp matmul (row order dx=-1, 0, +1 matches the
    # lane-concatenation order of the activations in the kernel).
    w1p = jnp.pad(w1, ((0, 0), (0, 0), (0, CINP - Cin), (0, CMIDP - Cmid)))
    w1p = w1p.astype(jnp.bfloat16).reshape(3, 3 * CINP, CMIDP)
    w2p = jnp.pad(w2, ((0, 0), (0, 0), (0, CMIDP - Cmid), (0, COUTP - Cout)))
    w2p = w2p.astype(jnp.bfloat16).reshape(3, 3 * CMIDP, COUTP)

    def pad_c(v, cp):  # per-channel BN params -> (1, cp), zero padded
        return jnp.pad(v.reshape(1, -1).astype(jnp.float32),
                       ((0, 0), (0, cp - v.shape[0])))

    g1p, be1p = pad_c(g1, CMIDP), pad_c(be1, CMIDP)
    g2p, be2p = pad_c(g2, COUTP), pad_c(be2, COUTP)

    # Explicit VMEM budget (default scoped limit is 16/32 MiB) + cost estimate.
    buf_bytes = (x.size * 4 + N * H * W * COUTP * 4       # f32 input + output
                 + N * H * W * CMIDP * 2                   # bf16 y1 scratch
                 + (w1p.size + w2p.size) * 2               # bf16 packed weights
                 + 4 * (CMIDP + COUTP) * 4)                # BN params
    vmem_limit = int(max(32 * 1024 * 1024, 2 * buf_bytes))
    flops = 2 * N * H * W * 9 * (CINP * CMIDP + CMIDP * COUTP)
    cost = pl.CostEstimate(flops=flops,
                           transcendentals=CMIDP + COUTP,
                           bytes_accessed=int(buf_bytes))

    vmem = pl.BlockSpec(memory_space=pltpu.MemorySpace.VMEM)
    out = pl.pallas_call(
        functools.partial(_double_conv_kernel, H=H, W=W),
        out_shape=jax.ShapeDtypeStruct((N, H * W, COUTP), jnp.float32),
        in_specs=[vmem] * 7,
        out_specs=vmem,
        scratch_shapes=[pltpu.VMEM((N, H * W, CMIDP), jnp.bfloat16)],
        compiler_params=pltpu.CompilerParams(vmem_limit_bytes=vmem_limit),
        cost_estimate=cost,
    )(x, w1p, g1p, be1p, w2p, g2p, be2p)

    out = out.reshape(N, H, W, COUTP)[..., :Cout]
    return jnp.transpose(out, (0, 3, 1, 2))


def double_conv_ref(x_nchw, params):
    """Pure-JAX f32 reference (keeps the conv bias; BN cancels it)."""
    w1, b1, g1, be1, w2, b2, g2, be2 = params
    x = jnp.transpose(x_nchw, (0, 2, 3, 1)).astype(jnp.float32)

    def conv(x, w, b):
        y = jax.lax.conv_general_dilated(
            x, w, window_strides=(1, 1), padding="SAME",
            dimension_numbers=("NHWC", "HWIO", "NHWC"))
        return y + b

    def bn_relu(y, g, be):
        mean = jnp.mean(y, axis=(0, 1, 2), keepdims=True)
        var = jnp.mean((y - mean) ** 2, axis=(0, 1, 2), keepdims=True)
        return jnp.maximum((y - mean) / jnp.sqrt(var + _EPS) * g + be, 0.0)

    h = bn_relu(conv(x, w1, b1), g1, be1)
    o = bn_relu(conv(h, w2, b2), g2, be2)
    return jnp.transpose(o, (0, 3, 1, 2))


def make_params(key, cin, cmid, cout):
    ks = jax.random.split(key, 8)
    w1 = 0.1 * jax.random.normal(ks[0], (3, 3, cin, cmid), jnp.float32)
    b1 = 0.1 * jax.random.normal(ks[1], (cmid,), jnp.float32)
    g1 = 1.0 + 0.1 * jax.random.normal(ks[2], (cmid,), jnp.float32)
    be1 = 0.1 * jax.random.normal(ks[3], (cmid,), jnp.float32)
    w2 = 0.1 * jax.random.normal(ks[4], (3, 3, cmid, cout), jnp.float32)
    b2 = 0.1 * jax.random.normal(ks[5], (cout,), jnp.float32)
    g2 = 1.0 + 0.1 * jax.random.normal(ks[6], (cout,), jnp.float32)
    be2 = 0.1 * jax.random.normal(ks[7], (cout,), jnp.float32)
    return (w1, b1, g1, be1, w2, b2, g2, be2)


if __name__ == "__main__":
    key = jax.random.PRNGKey(0)
    kx, kp = jax.random.split(key)

    N, Cin, H, W = 2, 4, 16, 16
    Cout = 8
    Cmid = Cout  # mid_channels defaults to out_channels

    x = jax.random.normal(kx, (N, Cin, H, W), jnp.float32)
    params = make_params(kp, Cin, Cmid, Cout)

    out = jax.block_until_ready(double_conv(x, params))
    ref = double_conv_ref(x, params)

    assert out.shape == (N, Cout, H, W)
    max_diff = float(jnp.max(jnp.abs(out - ref)))
    # Tolerance sized for bf16 MXU operands + bf16 y1 scratch (f32 accumulation
    # and f32 BN statistics) vs the pure-f32 reference.
    assert jnp.allclose(out, ref, rtol=2e-2, atol=3e-2), (
        "mismatch vs reference: max abs diff = %g" % max_diff)

    print("KERNEL_OK")
</pallas_src>

<mosaic_0001>
module attributes {stable_mosaic.version = 11 : i64} {
  func.func @_double_conv_kernel(%arg0: memref<2x256x128xf32, #tpu.memory_space<vmem>>, %arg1: memref<3x384x128xbf16, #tpu.memory_space<vmem>>, %arg2: memref<1x128xf32, #tpu.memory_space<vmem>>, %arg3: memref<1x128xf32, #tpu.memory_space<vmem>>, %arg4: memref<3x384x128xbf16, #tpu.memory_space<vmem>>, %arg5: memref<1x128xf32, #tpu.memory_space<vmem>>, %arg6: memref<1x128xf32, #tpu.memory_space<vmem>>, %arg7: memref<2x256x128xf32, #tpu.memory_space<vmem>>, %arg8: memref<2x256x128xbf16, #tpu.memory_space<vmem>>) attributes {dimension_semantics = [], scalar_prefetch = 0 : i64, scratch_operands = 1 : i64, tpu.core_type = #tpu.core_type<tc>} {
    %0 = tpu.iota {dimensions = array<i32: 1>} : vector<16x16x128xi32>
    %1 = vector.shape_cast %0 : vector<16x16x128xi32> to vector<256x128xi32>
    %c1_i32 = arith.constant 1 : i32
    %2 = vector.broadcast %c1_i32 : i32 to vector<256x128xi32>
    %3 = arith.cmpi sge, %1, %2 : vector<256x128xi32>
    %c14_i32 = arith.constant 14 : i32
    %4 = vector.broadcast %c14_i32 : i32 to vector<256x128xi32>
    %5 = arith.cmpi sle, %1, %4 : vector<256x128xi32>
    %cst = arith.constant 0.000000e+00 : f32
    %6 = vector.broadcast %cst : f32 to vector<16x128xf32>
    %cst_0 = arith.constant 0.000000e+00 : f32
    %7 = vector.broadcast %cst_0 : f32 to vector<1x128xf32>
    %cst_1 = arith.constant 0.000000e+00 : f32
    %8 = vector.broadcast %cst_1 : f32 to vector<1x128xf32>
    %c0 = arith.constant 0 : index
    %c0_2 = arith.constant 0 : index
    %c0_3 = arith.constant 0 : index
    %9 = vector.load %arg0[%c0, %c0_2, %c0_3] : memref<2x256x128xf32, #tpu.memory_space<vmem>>, vector<1x256x128xf32>
    %10 = vector.shape_cast %9 : vector<1x256x128xf32> to vector<256x128xf32>
    %c1_i32_4 = arith.constant 1 : i32
    %11 = tpu.dynamic_rotate %10 by %c1_i32_4 dim 0 : vector<256x128xf32>, i32 -> vector<256x128xf32>
    %cst_5 = arith.constant 0.000000e+00 : f32
    %12 = vector.broadcast %cst_5 : f32 to vector<256x128xf32>
    %13 = arith.select %3, %11, %12 : vector<256x128xi1>, vector<256x128xf32>
    %c255_i32 = arith.constant 255 : i32
    %14 = tpu.dynamic_rotate %10 by %c255_i32 dim 0 : vector<256x128xf32>, i32 -> vector<256x128xf32>
    %cst_6 = arith.constant 0.000000e+00 : f32
    %15 = vector.broadcast %cst_6 : f32 to vector<256x128xf32>
    %16 = arith.select %5, %14, %15 : vector<256x128xi1>, vector<256x128xf32>
    %17 = tpu.concatenate %13, %10, %16 in 1 : vector<256x128xf32>, vector<256x128xf32>, vector<256x128xf32> -> vector<256x384xf32>
    %18 = arith.truncf %17 : vector<256x384xf32> to vector<256x384xbf16>
    %c1 = arith.constant 1 : index
    %c0_7 = arith.constant 0 : index
    %c0_8 = arith.constant 0 : index
    %19 = vector.load %arg1[%c1, %c0_7, %c0_8] : memref<3x384x128xbf16, #tpu.memory_space<vmem>>, vector<1x384x128xbf16>
    %20 = vector.shape_cast %19 : vector<1x384x128xbf16> to vector<384x128xbf16>
    %cst_9 = arith.constant dense<0.000000e+00> : vector<256x128xf32>
    %21 = tpu.matmul %18, %20, %cst_9 {dimension_numbers = #tpu.dot_dimension_numbers<[1], [0], [0], [1], [0, 0, 1, 1], [], []>} : vector<256x384xbf16>, vector<384x128xbf16>, vector<256x128xf32> -> vector<256x128xf32>
    %22 = vector.extract_strided_slice %18 {offsets = [0, 0], sizes = [240, 384], strides = [1, 1]} : vector<256x384xbf16> to vector<240x384xbf16>
    %c0_10 = arith.constant 0 : index
    %c0_11 = arith.constant 0 : index
    %c0_12 = arith.constant 0 : index
    %23 = vector.load %arg1[%c0_10, %c0_11, %c0_12] : memref<3x384x128xbf16, #tpu.memory_space<vmem>>, vector<1x384x128xbf16>
    %24 = vector.shape_cast %23 : vector<1x384x128xbf16> to vector<384x128xbf16>
    %cst_13 = arith.constant dense<0.000000e+00> : vector<240x128xf32>
    %25 = tpu.matmul %22, %24, %cst_13 {dimension_numbers = #tpu.dot_dimension_numbers<[1], [0], [0], [1], [0, 0, 1, 1], [], []>} : vector<240x384xbf16>, vector<384x128xbf16>, vector<240x128xf32> -> vector<240x128xf32>
    %26 = vector.extract_strided_slice %18 {offsets = [16, 0], sizes = [240, 384], strides = [1, 1]} : vector<256x384xbf16> to vector<240x384xbf16>
    %c2 = arith.constant 2 : index
    %c0_14 = arith.constant 0 : index
    %c0_15 = arith.constant 0 : index
    %27 = vector.load %arg1[%c2, %c0_14, %c0_15] : memref<3x384x128xbf16, #tpu.memory_space<vmem>>, vector<1x384x128xbf16>
    %28 = vector.shape_cast %27 : vector<1x384x128xbf16> to vector<384x128xbf16>
    %cst_16 = arith.constant dense<0.000000e+00> : vector<240x128xf32>
    %29 = tpu.matmul %26, %28, %cst_16 {dimension_numbers = #tpu.dot_dimension_numbers<[1], [0], [0], [1], [0, 0, 1, 1], [], []>} : vector<240x384xbf16>, vector<384x128xbf16>, vector<240x128xf32> -> vector<240x128xf32>
    %30 = tpu.concatenate %6, %25 in 0 : vector<16x128xf32>, vector<240x128xf32> -> vector<256x128xf32>
    %31 = arith.addf %21, %30 : vector<256x128xf32>
    %32 = tpu.concatenate %29, %6 in 0 : vector<240x128xf32>, vector<16x128xf32> -> vector<256x128xf32>
    %33 = arith.addf %31, %32 : vector<256x128xf32>
    %cst_17 = arith.constant dense<0.000000e+00> : vector<128xf32>
    %34 = vector.multi_reduction <add>, %33, %cst_17 [0] : vector<256x128xf32> to vector<128xf32>
    %35 = vector.shape_cast %34 : vector<128xf32> to vector<1x128xf32>
    %36 = arith.addf %7, %35 : vector<1x128xf32>
    %37 = arith.mulf %33, %33 : vector<256x128xf32>
    %cst_18 = arith.constant dense<0.000000e+00> : vector<128xf32>
    %38 = vector.multi_reduction <add>, %37, %cst_18 [0] : vector<256x128xf32> to vector<128xf32>
    %39 = vector.shape_cast %38 : vector<128xf32> to vector<1x128xf32>
    %40 = arith.addf %8, %39 : vector<1x128xf32>
    %41 = arith.truncf %33 : vector<256x128xf32> to vector<256x128xbf16>
    %c0_19 = arith.constant 0 : index
    %c0_20 = arith.constant 0 : index
    %c0_21 = arith.constant 0 : index
    %42 = vector.load %arg8[%c0_19, %c0_20, %c0_21] : memref<2x256x128xbf16, #tpu.memory_space<vmem>>, vector<1x256x128xbf16>
    %43 = vector.shape_cast %42 : vector<1x256x128xbf16> to vector<256x128xbf16>
    %44 = vector.shape_cast %41 : vector<256x128xbf16> to vector<1x256x128xbf16>
    tpu.vector_store %arg8[%c0_19, %c0_20, %c0_21], %44 {strides = array<i32>} : memref<2x256x128xbf16, #tpu.memory_space<vmem>>, vector<1x256x128xbf16>,
    %c1_22 = arith.constant 1 : index
    %c0_23 = arith.constant 0 : index
    %c0_24 = arith.constant 0 : index
    %45 = vector.load %arg0[%c1_22, %c0_23, %c0_24] : memref<2x256x128xf32, #tpu.memory_space<vmem>>, vector<1x256x128xf32>
    %46 = vector.shape_cast %45 : vector<1x256x128xf32> to vector<256x128xf32>
    %c1_i32_25 = arith.constant 1 : i32
    %47 = tpu.dynamic_rotate %46 by %c1_i32_25 dim 0 : vector<256x128xf32>, i32 -> vector<256x128xf32>
    %cst_26 = arith.constant 0.000000e+00 : f32
    %48 = vector.broadcast %cst_26 : f32 to vector<256x128xf32>
    %49 = arith.select %3, %47, %48 : vector<256x128xi1>, vector<256x128xf32>
    %c255_i32_27 = arith.constant 255 : i32
    %50 = tpu.dynamic_rotate %46 by %c255_i32_27 dim 0 : vector<256x128xf32>, i32 -> vector<256x128xf32>
    %cst_28 = arith.constant 0.000000e+00 : f32
    %51 = vector.broadcast %cst_28 : f32 to vector<256x128xf32>
    %52 = arith.select %5, %50, %51 : vector<256x128xi1>, vector<256x128xf32>
    %53 = tpu.concatenate %49, %46, %52 in 1 : vector<256x128xf32>, vector<256x128xf32>, vector<256x128xf32> -> vector<256x384xf32>
    %54 = arith.truncf %53 : vector<256x384xf32> to vector<256x384xbf16>
    %c1_29 = arith.constant 1 : index
    %c0_30 = arith.constant 0 : index
    %c0_31 = arith.constant 0 : index
    %55 = vector.load %arg1[%c1_29, %c0_30, %c0_31] : memref<3x384x128xbf16, #tpu.memory_space<vmem>>, vector<1x384x128xbf16>
    %56 = vector.shape_cast %55 : vector<1x384x128xbf16> to vector<384x128xbf16>
    %cst_32 = arith.constant dense<0.000000e+00> : vector<256x128xf32>
    %57 = tpu.matmul %54, %56, %cst_32 {dimension_numbers = #tpu.dot_dimension_numbers<[1], [0], [0], [1], [0, 0, 1, 1], [], []>} : vector<256x384xbf16>, vector<384x128xbf16>, vector<256x128xf32> -> vector<256x128xf32>
    %58 = vector.extract_strided_slice %54 {offsets = [0, 0], sizes = [240, 384], strides = [1, 1]} : vector<256x384xbf16> to vector<240x384xbf16>
    %c0_33 = arith.constant 0 : index
    %c0_34 = arith.constant 0 : index
    %c0_35 = arith.constant 0 : index
    %59 = vector.load %arg1[%c0_33, %c0_34, %c0_35] : memref<3x384x128xbf16, #tpu.memory_space<vmem>>, vector<1x384x128xbf16>
    %60 = vector.shape_cast %59 : vector<1x384x128xbf16> to vector<384x128xbf16>
    %cst_36 = arith.constant dense<0.000000e+00> : vector<240x128xf32>
    %61 = tpu.matmul %58, %60, %cst_36 {dimension_numbers = #tpu.dot_dimension_numbers<[1], [0], [0], [1], [0, 0, 1, 1], [], []>} : vector<240x384xbf16>, vector<384x128xbf16>, vector<240x128xf32> -> vector<240x128xf32>
    %62 = vector.extract_strided_slice %54 {offsets = [16, 0], sizes = [240, 384], strides = [1, 1]} : vector<256x384xbf16> to vector<240x384xbf16>
    %c2_37 = arith.constant 2 : index
    %c0_38 = arith.constant 0 : index
    %c0_39 = arith.constant 0 : index
    %63 = vector.load %arg1[%c2_37, %c0_38, %c0_39] : memref<3x384x128xbf16, #tpu.memory_space<vmem>>, vector<1x384x128xbf16>
    %64 = vector.shape_cast %63 : vector<1x384x128xbf16> to vector<384x128xbf16>
    %cst_40 = arith.constant dense<0.000000e+00> : vector<240x128xf32>
    %65 = tpu.matmul %62, %64, %cst_40 {dimension_numbers = #tpu.dot_dimension_numbers<[1], [0], [0], [1], [0, 0, 1, 1], [], []>} : vector<240x384xbf16>, vector<384x128xbf16>, vector<240x128xf32> -> vector<240x128xf32>
    %66 = tpu.concatenate %6, %61 in 0 : vector<16x128xf32>, vector<240x128xf32> -> vector<256x128xf32>
    %67 = arith.addf %57, %66 : vector<256x128xf32>
    %68 = tpu.concatenate %65, %6 in 0 : vector<240x128xf32>, vector<16x128xf32> -> vector<256x128xf32>
    %69 = arith.addf %67, %68 : vector<256x128xf32>
    %cst_41 = arith.constant dense<0.000000e+00> : vector<128xf32>
    %70 = vector.multi_reduction <add>, %69, %cst_41 [0] : vector<256x128xf32> to vector<128xf32>
    %71 = vector.shape_cast %70 : vector<128xf32> to vector<1x128xf32>
    %72 = arith.addf %36, %71 : vector<1x128xf32>
    %73 = arith.mulf %69, %69 : vector<256x128xf32>
    %cst_42 = arith.constant dense<0.000000e+00> : vector<128xf32>
    %74 = vector.multi_reduction <add>, %73, %cst_42 [0] : vector<256x128xf32> to vector<128xf32>
    %75 = vector.shape_cast %74 : vector<128xf32> to vector<1x128xf32>
    %76 = arith.addf %40, %75 : vector<1x128xf32>
    %77 = arith.truncf %69 : vector<256x128xf32> to vector<256x128xbf16>
    %c1_43 = arith.constant 1 : index
    %c0_44 = arith.constant 0 : index
    %c0_45 = arith.constant 0 : index
    %78 = vector.load %arg8[%c1_43, %c0_44, %c0_45] : memref<2x256x128xbf16, #tpu.memory_space<vmem>>, vector<1x256x128xbf16>
    %79 = vector.shape_cast %78 : vector<1x256x128xbf16> to vector<256x128xbf16>
    %80 = vector.shape_cast %77 : vector<256x128xbf16> to vector<1x256x128xbf16>
    tpu.vector_store %arg8[%c1_43, %c0_44, %c0_45], %80 {strides = array<i32>} : memref<2x256x128xbf16, #tpu.memory_space<vmem>>, vector<1x256x128xbf16>,
    %c0_46 = arith.constant 0 : index
    %c0_47 = arith.constant 0 : index
    %81 = vector.load %arg2[%c0_46, %c0_47] : memref<1x128xf32, #tpu.memory_space<vmem>>, vector<1x128xf32>
    %c0_48 = arith.constant 0 : index
    %c0_49 = arith.constant 0 : index
    %82 = vector.load %arg3[%c0_48, %c0_49] : memref<1x128xf32, #tpu.memory_space<vmem>>, vector<1x128xf32>
    %cst_50 = arith.constant 0.001953125 : f32
    %83 = vector.broadcast %cst_50 : f32 to vector<1x128xf32>
    %84 = arith.mulf %72, %83 : vector<1x128xf32>
    %cst_51 = arith.constant 0.001953125 : f32
    %85 = vector.broadcast %cst_51 : f32 to vector<1x128xf32>
    %86 = arith.mulf %76, %85 : vector<1x128xf32>
    %87 = arith.mulf %84, %84 : vector<1x128xf32>
    %88 = arith.subf %86, %87 : vector<1x128xf32>
    %cst_52 = arith.constant 0.000000e+00 : f32
    %89 = vector.broadcast %cst_52 : f32 to vector<1x128xf32>
    %90 = arith.maximumf %88, %89 : vector<1x128xf32>
    %cst_53 = arith.constant 9.99999974E-6 : f32
    %91 = vector.broadcast %cst_53 : f32 to vector<1x128xf32>
    %92 = arith.addf %90, %91 : vector<1x128xf32>
    %93 = math.rsqrt %92 : vector<1x128xf32>
    %94 = arith.mulf %81, %93 : vector<1x128xf32>
    %95 = arith.mulf %84, %94 : vector<1x128xf32>
    %96 = arith.subf %82, %95 : vector<1x128xf32>
    %cst_54 = arith.constant 0.000000e+00 : f32
    %97 = vector.broadcast %cst_54 : f32 to vector<1x128xf32>
    %cst_55 = arith.constant 0.000000e+00 : f32
    %98 = vector.broadcast %cst_55 : f32 to vector<1x128xf32>
    %c0_56 = arith.constant 0 : index
    %c0_57 = arith.constant 0 : index
    %c0_58 = arith.constant 0 : index
    %99 = vector.load %arg8[%c0_56, %c0_57, %c0_58] : memref<2x256x128xbf16, #tpu.memory_space<vmem>>, vector<1x256x128xbf16>
    %100 = vector.shape_cast %99 : vector<1x256x128xbf16> to vector<256x128xbf16>
    %101 = arith.extf %100 : vector<256x128xbf16> to vector<256x128xf32>
    %102 = vector.broadcast %94 : vector<1x128xf32> to vector<256x128xf32>
    %103 = arith.mulf %101, %102 : vector<256x128xf32>
    %104 = vector.broadcast %96 : vector<1x128xf32> to vector<256x128xf32>
    %105 = arith.addf %103, %104 : vector<256x128xf32>
    %cst_59 = arith.constant 0.000000e+00 : f32
    %106 = vector.broadcast %cst_59 : f32 to vector<256x128xf32>
    %107 = arith.maximumf %105, %106 : vector<256x128xf32>
    %c1_i32_60 = arith.constant 1 : i32
    %108 = tpu.dynamic_rotate %107 by %c1_i32_60 dim 0 : vector<256x128xf32>, i32 -> vector<256x128xf32>
    %cst_61 = arith.constant 0.000000e+00 : f32
    %109 = vector.broadcast %cst_61 : f32 to vector<256x128xf32>
    %110 = arith.select %3, %108, %109 : vector<256x128xi1>, vector<256x128xf32>
    %c255_i32_62 = arith.constant 255 : i32
    %111 = tpu.dynamic_rotate %107 by %c255_i32_62 dim 0 : vector<256x128xf32>, i32 -> vector<256x128xf32>
    %cst_63 = arith.constant 0.000000e+00 : f32
    %112 = vector.broadcast %cst_63 : f32 to vector<256x128xf32>
    %113 = arith.select %5, %111, %112 : vector<256x128xi1>, vector<256x128xf32>
    %114 = tpu.concatenate %110, %107, %113 in 1 : vector<256x128xf32>, vector<256x128xf32>, vector<256x128xf32> -> vector<256x384xf32>
    %115 = arith.truncf %114 : vector<256x384xf32> to vector<256x384xbf16>
    %c1_64 = arith.constant 1 : index
    %c0_65 = arith.constant 0 : index
    %c0_66 = arith.constant 0 : index
    %116 = vector.load %arg4[%c1_64, %c0_65, %c0_66] : memref<3x384x128xbf16, #tpu.memory_space<vmem>>, vector<1x384x128xbf16>
    %117 = vector.shape_cast %116 : vector<1x384x128xbf16> to vector<384x128xbf16>
    %cst_67 = arith.constant dense<0.000000e+00> : vector<256x128xf32>
    %118 = tpu.matmul %115, %117, %cst_67 {dimension_numbers = #tpu.dot_dimension_numbers<[1], [0], [0], [1], [0, 0, 1, 1], [], []>} : vector<256x384xbf16>, vector<384x128xbf16>, vector<256x128xf32> -> vector<256x128xf32>
    %119 = vector.extract_strided_slice %115 {offsets = [0, 0], sizes = [240, 384], strides = [1, 1]} : vector<256x384xbf16> to vector<240x384xbf16>
    %c0_68 = arith.constant 0 : index
    %c0_69 = arith.constant 0 : index
    %c0_70 = arith.constant 0 : index
    %120 = vector.load %arg4[%c0_68, %c0_69, %c0_70] : memref<3x384x128xbf16, #tpu.memory_space<vmem>>, vector<1x384x128xbf16>
    %121 = vector.shape_cast %120 : vector<1x384x128xbf16> to vector<384x128xbf16>
    %cst_71 = arith.constant dense<0.000000e+00> : vector<240x128xf32>
    %122 = tpu.matmul %119, %121, %cst_71 {dimension_numbers = #tpu.dot_dimension_numbers<[1], [0], [0], [1], [0, 0, 1, 1], [], []>} : vector<240x384xbf16>, vector<384x128xbf16>, vector<240x128xf32> -> vector<240x128xf32>
    %123 = vector.extract_strided_slice %115 {offsets = [16, 0], sizes = [240, 384], strides = [1, 1]} : vector<256x384xbf16> to vector<240x384xbf16>
    %c2_72 = arith.constant 2 : index
    %c0_73 = arith.constant 0 : index
    %c0_74 = arith.constant 0 : index
    %124 = vector.load %arg4[%c2_72, %c0_73, %c0_74] : memref<3x384x128xbf16, #tpu.memory_space<vmem>>, vector<1x384x128xbf16>
    %125 = vector.shape_cast %124 : vector<1x384x128xbf16> to vector<384x128xbf16>
    %cst_75 = arith.constant dense<0.000000e+00> : vector<240x128xf32>
    %126 = tpu.matmul %123, %125, %cst_75 {dimension_numbers = #tpu.dot_dimension_numbers<[1], [0], [0], [1], [0, 0, 1, 1], [], []>} : vector<240x384xbf16>, vector<384x128xbf16>, vector<240x128xf32> -> vector<240x128xf32>
    %127 = tpu.concatenate %6, %122 in 0 : vector<16x128xf32>, vector<240x128xf32> -> vector<256x128xf32>
    %128 = arith.addf %118, %127 : vector<256x128xf32>
    %129 = tpu.concatenate %126, %6 in 0 : vector<240x128xf32>, vector<16x128xf32> -> vector<256x128xf32>
    %130 = arith.addf %128, %129 : vector<256x128xf32>
    %c0_76 = arith.constant 0 : index
    %c0_77 = arith.constant 0 : index
    %c0_78 = arith.constant 0 : index
    %131 = vector.load %arg7[%c0_76, %c0_77, %c0_78] : memref<2x256x128xf32, #tpu.memory_space<vmem>>, vector<1x256x128xf32>
    %132 = vector.shape_cast %131 : vector<1x256x128xf32> to vector<256x128xf32>
    %133 = vector.shape_cast %130 : vector<256x128xf32> to vector<1x256x128xf32>
    tpu.vector_store %arg7[%c0_76, %c0_77, %c0_78], %133 {strides = array<i32>} : memref<2x256x128xf32, #tpu.memory_space<vmem>>, vector<1x256x128xf32>,
    %cst_79 = arith.constant dense<0.000000e+00> : vector<128xf32>
    %134 = vector.multi_reduction <add>, %130, %cst_79 [0] : vector<256x128xf32> to vector<128xf32>
    %135 = vector.shape_cast %134 : vector<128xf32> to vector<1x128xf32>
    %136 = arith.addf %97, %135 : vector<1x128xf32>
    %137 = arith.mulf %130, %130 : vector<256x128xf32>
    %cst_80 = arith.constant dense<0.000000e+00> : vector<128xf32>
    %138 = vector.multi_reduction <add>, %137, %cst_80 [0] : vector<256x128xf32> to vector<128xf32>
    %139 = vector.shape_cast %138 : vector<128xf32> to vector<1x128xf32>
    %140 = arith.addf %98, %139 : vector<1x128xf32>
    %c1_81 = arith.constant 1 : index
    %c0_82 = arith.constant 0 : index
    %c0_83 = arith.constant 0 : index
    %141 = vector.load %arg8[%c1_81, %c0_82, %c0_83] : memref<2x256x128xbf16, #tpu.memory_space<vmem>>, vector<1x256x128xbf16>
    %142 = vector.shape_cast %141 : vector<1x256x128xbf16> to vector<256x128xbf16>
    %143 = arith.extf %142 : vector<256x128xbf16> to vector<256x128xf32>
    %144 = vector.broadcast %94 : vector<1x128xf32> to vector<256x128xf32>
    %145 = arith.mulf %143, %144 : vector<256x128xf32>
    %146 = vector.broadcast %96 : vector<1x128xf32> to vector<256x128xf32>
    %147 = arith.addf %145, %146 : vector<256x128xf32>
    %cst_84 = arith.constant 0.000000e+00 : f32
    %148 = vector.broadcast %cst_84 : f32 to vector<256x128xf32>
    %149 = arith.maximumf %147, %148 : vector<256x128xf32>
    %c1_i32_85 = arith.constant 1 : i32
    %150 = tpu.dynamic_rotate %149 by %c1_i32_85 dim 0 : vector<256x128xf32>, i32 -> vector<256x128xf32>
    %cst_86 = arith.constant 0.000000e+00 : f32
    %151 = vector.broadcast %cst_86 : f32 to vector<256x128xf32>
    %152 = arith.select %3, %150, %151 : vector<256x128xi1>, vector<256x128xf32>
    %c255_i32_87 = arith.constant 255 : i32
    %153 = tpu.dynamic_rotate %149 by %c255_i32_87 dim 0 : vector<256x128xf32>, i32 -> vector<256x128xf32>
    %cst_88 = arith.constant 0.000000e+00 : f32
    %154 = vector.broadcast %cst_88 : f32 to vector<256x128xf32>
    %155 = arith.select %5, %153, %154 : vector<256x128xi1>, vector<256x128xf32>
    %156 = tpu.concatenate %152, %149, %155 in 1 : vector<256x128xf32>, vector<256x128xf32>, vector<256x128xf32> -> vector<256x384xf32>
    %157 = arith.truncf %156 : vector<256x384xf32> to vector<256x384xbf16>
    %c1_89 = arith.constant 1 : index
    %c0_90 = arith.constant 0 : index
    %c0_91 = arith.constant 0 : index
    %158 = vector.load %arg4[%c1_89, %c0_90, %c0_91] : memref<3x384x128xbf16, #tpu.memory_space<vmem>>, vector<1x384x128xbf16>
    %159 = vector.shape_cast %158 : vector<1x384x128xbf16> to vector<384x128xbf16>
    %cst_92 = arith.constant dense<0.000000e+00> : vector<256x128xf32>
    %160 = tpu.matmul %157, %159, %cst_92 {dimension_numbers = #tpu.dot_dimension_numbers<[1], [0], [0], [1], [0, 0, 1, 1], [], []>} : vector<256x384xbf16>, vector<384x128xbf16>, vector<256x128xf32> -> vector<256x128xf32>
    %161 = vector.extract_strided_slice %157 {offsets = [0, 0], sizes = [240, 384], strides = [1, 1]} : vector<256x384xbf16> to vector<240x384xbf16>
    %c0_93 = arith.constant 0 : index
    %c0_94 = arith.constant 0 : index
    %c0_95 = arith.constant 0 : index
    %162 = vector.load %arg4[%c0_93, %c0_94, %c0_95] : memref<3x384x128xbf16, #tpu.memory_space<vmem>>, vector<1x384x128xbf16>
    %163 = vector.shape_cast %162 : vector<1x384x128xbf16> to vector<384x128xbf16>
    %cst_96 = arith.constant dense<0.000000e+00> : vector<240x128xf32>
    %164 = tpu.matmul %161, %163, %cst_96 {dimension_numbers = #tpu.dot_dimension_numbers<[1], [0], [0], [1], [0, 0, 1, 1], [], []>} : vector<240x384xbf16>, vector<384x128xbf16>, vector<240x128xf32> -> vector<240x128xf32>
    %165 = vector.extract_strided_slice %157 {offsets = [16, 0], sizes = [240, 384], strides = [1, 1]} : vector<256x384xbf16> to vector<240x384xbf16>
    %c2_97 = arith.constant 2 : index
    %c0_98 = arith.constant 0 : index
    %c0_99 = arith.constant 0 : index
    %166 = vector.load %arg4[%c2_97, %c0_98, %c0_99] : memref<3x384x128xbf16, #tpu.memory_space<vmem>>, vector<1x384x128xbf16>
    %167 = vector.shape_cast %166 : vector<1x384x128xbf16> to vector<384x128xbf16>
    %cst_100 = arith.constant dense<0.000000e+00> : vector<240x128xf32>
    %168 = tpu.matmul %165, %167, %cst_100 {dimension_numbers = #tpu.dot_dimension_numbers<[1], [0], [0], [1], [0, 0, 1, 1], [], []>} : vector<240x384xbf16>, vector<384x128xbf16>, vector<240x128xf32> -> vector<240x128xf32>
    %169 = tpu.concatenate %6, %164 in 0 : vector<16x128xf32>, vector<240x128xf32> -> vector<256x128xf32>
    %170 = arith.addf %160, %169 : vector<256x128xf32>
    %171 = tpu.concatenate %168, %6 in 0 : vector<240x128xf32>, vector<16x128xf32> -> vector<256x128xf32>
    %172 = arith.addf %170, %171 : vector<256x128xf32>
    %c1_101 = arith.constant 1 : index
    %c0_102 = arith.constant 0 : index
    %c0_103 = arith.constant 0 : index
    %173 = vector.load %arg7[%c1_101, %c0_102, %c0_103] : memref<2x256x128xf32, #tpu.memory_space<vmem>>, vector<1x256x128xf32>
    %174 = vector.shape_cast %173 : vector<1x256x128xf32> to vector<256x128xf32>
    %175 = vector.shape_cast %172 : vector<256x128xf32> to vector<1x256x128xf32>
    tpu.vector_store %arg7[%c1_101, %c0_102, %c0_103], %175 {strides = array<i32>} : memref<2x256x128xf32, #tpu.memory_space<vmem>>, vector<1x256x128xf32>,
    %cst_104 = arith.constant dense<0.000000e+00> : vector<128xf32>
    %176 = vector.multi_reduction <add>, %172, %cst_104 [0] : vector<256x128xf32> to vector<128xf32>
    %177 = vector.shape_cast %176 : vector<128xf32> to vector<1x128xf32>
    %178 = arith.addf %136, %177 : vector<1x128xf32>
    %179 = arith.mulf %172, %172 : vector<256x128xf32>
    %cst_105 = arith.constant dense<0.000000e+00> : vector<128xf32>
    %180 = vector.multi_reduction <add>, %179, %cst_105 [0] : vector<256x128xf32> to vector<128xf32>
    %181 = vector.shape_cast %180 : vector<128xf32> to vector<1x128xf32>
    %182 = arith.addf %140, %181 : vector<1x128xf32>
    %c0_106 = arith.constant 0 : index
    %c0_107 = arith.constant 0 : index
    %183 = vector.load %arg5[%c0_106, %c0_107] : memref<1x128xf32, #tpu.memory_space<vmem>>, vector<1x128xf32>
    %c0_108 = arith.constant 0 : index
    %c0_109 = arith.constant 0 : index
    %184 = vector.load %arg6[%c0_108, %c0_109] : memref<1x128xf32, #tpu.memory_space<vmem>>, vector<1x128xf32>
    %cst_110 = arith.constant 0.001953125 : f32
    %185 = vector.broadcast %cst_110 : f32 to vector<1x128xf32>
    %186 = arith.mulf %178, %185 : vector<1x128xf32>
    %cst_111 = arith.constant 0.001953125 : f32
    %187 = vector.broadcast %cst_111 : f32 to vector<1x128xf32>
    %188 = arith.mulf %182, %187 : vector<1x128xf32>
    %189 = arith.mulf %186, %186 : vector<1x128xf32>
    %190 = arith.subf %188, %189 : vector<1x128xf32>
    %cst_112 = arith.constant 0.000000e+00 : f32
    %191 = vector.broadcast %cst_112 : f32 to vector<1x128xf32>
    %192 = arith.maximumf %190, %191 : vector<1x128xf32>
    %cst_113 = arith.constant 9.99999974E-6 : f32
    %193 = vector.broadcast %cst_113 : f32 to vector<1x128xf32>
    %194 = arith.addf %192, %193 : vector<1x128xf32>
    %195 = math.rsqrt %194 : vector<1x128xf32>
    %196 = arith.mulf %183, %195 : vector<1x128xf32>
    %197 = arith.mulf %186, %196 : vector<1x128xf32>
    %198 = arith.subf %184, %197 : vector<1x128xf32>
    %c0_114 = arith.constant 0 : index
    %c0_115 = arith.constant 0 : index
    %c0_116 = arith.constant 0 : index
    %199 = vector.load %arg7[%c0_114, %c0_115, %c0_116] : memref<2x256x128xf32, #tpu.memory_space<vmem>>, vector<1x256x128xf32>
    %200 = vector.shape_cast %199 : vector<1x256x128xf32> to vector<256x128xf32>
    %201 = vector.broadcast %196 : vector<1x128xf32> to vector<256x128xf32>
    %202 = arith.mulf %200, %201 : vector<256x128xf32>
    %203 = vector.broadcast %198 : vector<1x128xf32> to vector<256x128xf32>
    %204 = arith.addf %202, %203 : vector<256x128xf32>
    %cst_117 = arith.constant 0.000000e+00 : f32
    %205 = vector.broadcast %cst_117 : f32 to vector<256x128xf32>
    %206 = arith.maximumf %204, %205 : vector<256x128xf32>
    %c0_118 = arith.constant 0 : index
    %c0_119 = arith.constant 0 : index
    %c0_120 = arith.constant 0 : index
    %207 = vector.load %arg7[%c0_118, %c0_119, %c0_120] : memref<2x256x128xf32, #tpu.memory_space<vmem>>, vector<1x256x128xf32>
    %208 = vector.shape_cast %207 : vector<1x256x128xf32> to vector<256x128xf32>
    %209 = vector.shape_cast %206 : vector<256x128xf32> to vector<1x256x128xf32>
    tpu.vector_store %arg7[%c0_118, %c0_119, %c0_120], %209 {strides = array<i32>} : memref<2x256x128xf32, #tpu.memory_space<vmem>>, vector<1x256x128xf32>,
    %c1_121 = arith.constant 1 : index
    %c0_122 = arith.constant 0 : index
    %c0_123 = arith.constant 0 : index
    %210 = vector.load %arg7[%c1_121, %c0_122, %c0_123] : memref<2x256x128xf32, #tpu.memory_space<vmem>>, vector<1x256x128xf32>
    %211 = vector.shape_cast %210 : vector<1x256x128xf32> to vector<256x128xf32>
    %212 = vector.broadcast %196 : vector<1x128xf32> to vector<256x128xf32>
    %213 = arith.mulf %211, %212 : vector<256x128xf32>
    %214 = vector.broadcast %198 : vector<1x128xf32> to vector<256x128xf32>
    %215 = arith.addf %213, %214 : vector<256x128xf32>
    %cst_124 = arith.constant 0.000000e+00 : f32
    %216 = vector.broadcast %cst_124 : f32 to vector<256x128xf32>
    %217 = arith.maximumf %215, %216 : vector<256x128xf32>
    %c1_125 = arith.constant 1 : index
    %c0_126 = arith.constant 0 : index
    %c0_127 = arith.constant 0 : index
    %218 = vector.load %arg7[%c1_125, %c0_126, %c0_127] : memref<2x256x128xf32, #tpu.memory_space<vmem>>, vector<1x256x128xf32>
    %219 = vector.shape_cast %218 : vector<1x256x128xf32> to vector<256x128xf32>
    %220 = vector.shape_cast %217 : vector<256x128xf32> to vector<1x256x128xf32>
    tpu.vector_store %arg7[%c1_125, %c0_126, %c0_127], %220 {strides = array<i32>} : memref<2x256x128xf32, #tpu.memory_space<vmem>>, vector<1x256x128xf32>,
    return
  }
}

</mosaic_0001>

<llo_original>
// kernel: tpu_custom_call.1
$region0: #{tpu_custom_call.1}
  #allocation0 [shape = 'u32[]', space=smem, size = 0x4, offset = 0x4, fixed_abs, tag = 'smem constant byte address 0x4 - core index']
  #allocation1 [shape = 'u32[144,128]{1,0:T(1,128)}', space=vmem, size = 0x12000, scoped, tag = 'internal scratch']
  #allocation2 [shape = 'bf16[2,256,128]{2,1,0:T(8,128)(2,1)}', space=vmem, size = 0x20000, scoped, tag = 'scratch operand']
  %s0 = inlined_call_operand.hbm [shape: f32[2,256,128], index: 0, kind: input, shape index: {}]
  %s1 = inlined_call_operand.hbm [shape: bf16[3,384,128], index: 1, kind: input, shape index: {}]
  %s2 = inlined_call_operand.vmem [shape: f32[1,128], index: 2, kind: input, shape index: {}]
  %s3 = inlined_call_operand.vmem [shape: f32[1,128], index: 3, kind: input, shape index: {}]
  %s4 = inlined_call_operand.hbm [shape: bf16[3,384,128], index: 4, kind: input, shape index: {}]
  %s5 = inlined_call_operand.vmem [shape: f32[1,128], index: 5, kind: input, shape index: {}]
  %s6 = inlined_call_operand.vmem [shape: f32[1,128], index: 6, kind: input, shape index: {}]
  %s7 = inlined_call_operand.hbm [shape: f32[2,256,128], index: 7, kind: output, shape index: {}]
  %s8 = sld [smem:[#allocation0]]
  $region50: #{tpu_custom_call.1} parent=0
    _
  %s10 = ssub.s32 1, %s8
  %s11 = scalar_select 0, %s10, %s8
  $region1: #{tpu_custom_call.1} parent=0
    #allocation3 [shape = 'u8[262144]{0}', space=vmem, size = 0x40000, scoped, tag = 'input window, operand 0, single buffered']
    #allocation4 [shape = 's32[1]{0}', space=sflag, size = 0x4, scoped, tag = 'scoped memory for tpu_custom_call.1']
    #allocation5 [shape = 's32[1]{0}', space=sflag, size = 0x4, scoped, tag = 'scoped memory for tpu_custom_call.1']
    #allocation6 [shape = 'u8[294912]{0}', space=vmem, size = 0x48000, scoped, tag = 'input window, operand 1, single buffered']
    #allocation7 [shape = 's32[1]{0}', space=sflag, size = 0x4, scoped, tag = 'scoped memory for tpu_custom_call.1']
    #allocation8 [shape = 'u8[294912]{0}', space=vmem, size = 0x48000, scoped, tag = 'input window, operand 4, single buffered']
    #allocation9 [shape = 'u8[262144]{0}', space=vmem, size = 0x40000, scoped, tag = 'output window, operand 0, single buffered']
    %12 = vsyncpa [#allocation4], 0
    %13 = vsyncpa [#allocation7], 0
    %14 = vsyncpa [#allocation5], 0
    // Predicated region
    $region2: #{tpu_custom_call.1} parent=1 // pred_check
      _
    $region3: #{tpu_custom_call.1} parent=1 // pred_check_branch
      %16 = sbr.rel (0) target = $region5
    $region4: #{tpu_custom_call.1} parent=1 // pred_region
      %s18 = ssub.s32 8192, 8192
      %19 = vsyncadd [#allocation4], %s18
      %s20 = sshll.u32 [#allocation3], 4
      %s21 = int_to_ptr.vmem [resolvable:$true] %s20
      %26 = dma.hbm_to_vmem [thread:$0]  %s0, 8192, %s21, [#allocation4], 128, 128, 8
    $region5: #{tpu_custom_call.1} parent=1 // pred_fallthru
      _
    // Predicated region
    $region6: #{tpu_custom_call.1} parent=1 // pred_check
      _
    $region7: #{tpu_custom_call.1} parent=1 // pred_check_branch
      %28 = sbr.rel (0) target = $region9
    $region8: #{tpu_custom_call.1} parent=1 // pred_region
      %s30 = ssub.s32 9216, 9216
      %31 = vsyncadd [#allocation7], %s30
      %s32 = sshll.u32 [#allocation6], 4
      %s33 = int_to_ptr.vmem [resolvable:$true] %s32
      %38 = dma.hbm_to_vmem [thread:$0]  %s1, 9216, %s33, [#allocation7], 64, 64, 4
    $region9: #{tpu_custom_call.1} parent=1 // pred_fallthru
      _
    // Predicated region
    $region10: #{tpu_custom_call.1} parent=1 // pred_check
      _
    $region11: #{tpu_custom_call.1} parent=1 // pred_check_branch
      %40 = sbr.rel (0) target = $region13
    $region12: #{tpu_custom_call.1} parent=1 // pred_region
      _
    $region13: #{tpu_custom_call.1} parent=1 // pred_fallthru
      _
    // Predicated region
    $region14: #{tpu_custom_call.1} parent=1 // pred_check
      _
    $region15: #{tpu_custom_call.1} parent=1 // pred_check_branch
      %42 = sbr.rel (0) target = $region17
    $region16: #{tpu_custom_call.1} parent=1 // pred_region
      _
    $region17: #{tpu_custom_call.1} parent=1 // pred_fallthru
      _
    // Predicated region
    $region18: #{tpu_custom_call.1} parent=1 // pred_check
      _
    $region19: #{tpu_custom_call.1} parent=1 // pred_check_branch
      %44 = sbr.rel (0) target = $region21
    $region20: #{tpu_custom_call.1} parent=1 // pred_region
      %s46 = ssub.s32 9216, 9216
      %47 = vsyncadd [#allocation7], %s46
      %s48 = sshll.u32 [#allocation8], 4
      %s49 = int_to_ptr.vmem [resolvable:$true] %s48
      %54 = dma.hbm_to_vmem [thread:$0]  %s4, 9216, %s49, [#allocation7], 64, 64, 4
    $region21: #{tpu_custom_call.1} parent=1 // pred_fallthru
      _
    // Predicated region
    $region22: #{tpu_custom_call.1} parent=1 // pred_check
      _
    $region23: #{tpu_custom_call.1} parent=1 // pred_check_branch
      %56 = sbr.rel (0) target = $region25
    $region24: #{tpu_custom_call.1} parent=1 // pred_region
      _
    $region25: #{tpu_custom_call.1} parent=1 // pred_fallthru
      _
    // Predicated region
    $region26: #{tpu_custom_call.1} parent=1 // pred_check
      _
    $region27: #{tpu_custom_call.1} parent=1 // pred_check_branch
      %58 = sbr.rel (0) target = $region29
    $region28: #{tpu_custom_call.1} parent=1 // pred_region
      _
    $region29: #{tpu_custom_call.1} parent=1 // pred_fallthru
      _
    // Predicated region
    $region30: #{tpu_custom_call.1} parent=1 // pred_check
      _
    $region31: #{tpu_custom_call.1} parent=1 // pred_check_branch
      %60 = sbr.rel (0) target = $region33
    $region32: #{tpu_custom_call.1} parent=1 // pred_region
      %61 = dma.done [#allocation4], 8192
    $region33: #{tpu_custom_call.1} parent=1 // pred_fallthru
      _
    // Predicated region
    $region34: #{tpu_custom_call.1} parent=1 // pred_check
      _
    $region35: #{tpu_custom_call.1} parent=1 // pred_check_branch
      %63 = sbr.rel (0) target = $region37
    $region36: #{tpu_custom_call.1} parent=1 // pred_region
      %64 = dma.done [#allocation7], 9216
    $region37: #{tpu_custom_call.1} parent=1 // pred_fallthru
      _
    // Predicated region
    $region38: #{tpu_custom_call.1} parent=1 // pred_check
      _
    $region39: #{tpu_custom_call.1} parent=1 // pred_check_branch
      %66 = sbr.rel (0) target = $region41
    $region40: #{tpu_custom_call.1} parent=1 // pred_region
      %67 = dma.done [#allocation7], 9216
    $region41: #{tpu_custom_call.1} parent=1 // pred_fallthru
      _
    %v69 = vlaneseq
    %v70 = vshrl.u32 %v69, 7
    %v71 = vadd.s32 %v70, 8
    %vm72 = vcmp.ge.s32.totalorder %v70, 1
    %vm73 = vcmp.ge.s32.totalorder %v71, 1
    %vm74 = vcmp.le.s32.totalorder %v70, 14
    %vm75 = vcmp.le.s32.totalorder %v71, 14
    %v76 = vld [vmem:[#allocation3] sm:$0xff]
    %v77 = vld [vmem:[#allocation3 + $0x8] sm:$0xff]
    %v78 = vld [vmem:[#allocation3 + $0x10] sm:$0xff]
    %v79 = vld [vmem:[#allocation3 + $0x18] sm:$0xff]
    %v80 = vld [vmem:[#allocation3 + $0x20] sm:$0xff]
    %v81 = vld [vmem:[#allocation3 + $0x28] sm:$0xff]
    %v82 = vld [vmem:[#allocation3 + $0x30] sm:$0xff]
    %v83 = vld [vmem:[#allocation3 + $0x38] sm:$0xff]
    %v84 = vld [vmem:[#allocation3 + $0x40] sm:$0xff]
    %v85 = vld [vmem:[#allocation3 + $0x48] sm:$0xff]
    %v86 = vld [vmem:[#allocation3 + $0x50] sm:$0xff]
    %v87 = vld [vmem:[#allocation3 + $0x58] sm:$0xff]
    %v88 = vld [vmem:[#allocation3 + $0x60] sm:$0xff]
    %v89 = vld [vmem:[#allocation3 + $0x68] sm:$0xff]
    %v90 = vld [vmem:[#allocation3 + $0x70] sm:$0xff]
    %v91 = vld [vmem:[#allocation3 + $0x78] sm:$0xff]
    %v92 = vld [vmem:[#allocation3 + $0x80] sm:$0xff]
    %v93 = vld [vmem:[#allocation3 + $0x88] sm:$0xff]
    %v94 = vld [vmem:[#allocation3 + $0x90] sm:$0xff]
    %v95 = vld [vmem:[#allocation3 + $0x98] sm:$0xff]
    %v96 = vld [vmem:[#allocation3 + $0xa0] sm:$0xff]
    %v97 = vld [vmem:[#allocation3 + $0xa8] sm:$0xff]
    %v98 = vld [vmem:[#allocation3 + $0xb0] sm:$0xff]
    %v99 = vld [vmem:[#allocation3 + $0xb8] sm:$0xff]
    %v100 = vld [vmem:[#allocation3 + $0xc0] sm:$0xff]
    %v101 = vld [vmem:[#allocation3 + $0xc8] sm:$0xff]
    %v102 = vld [vmem:[#allocation3 + $0xd0] sm:$0xff]
    %v103 = vld [vmem:[#allocation3 + $0xd8] sm:$0xff]
    %v104 = vld [vmem:[#allocation3 + $0xe0] sm:$0xff]
    %v105 = vld [vmem:[#allocation3 + $0xe8] sm:$0xff]
    %v106 = vld [vmem:[#allocation3 + $0xf0] sm:$0xff]
    %v107 = vld [vmem:[#allocation3 + $0xf8] sm:$0xff]
    %v108 = vrot.slane %v76, 7
    %v109 = vrot.slane %v77, 7
    %v110 = vrot.slane %v78, 7
    %v111 = vrot.slane %v79, 7
    %v112 = vrot.slane %v80, 7
    %v113 = vrot.slane %v81, 7
    %v114 = vrot.slane %v82, 7
    %v115 = vrot.slane %v83, 7
    %v116 = vrot.slane %v84, 7
    %v117 = vrot.slane %v85, 7
    %v118 = vrot.slane %v86, 7
    %v119 = vrot.slane %v87, 7
    %v120 = vrot.slane %v88, 7
    %v121 = vrot.slane %v89, 7
    %v122 = vrot.slane %v90, 7
    %v123 = vrot.slane %v91, 7
    %v124 = vrot.slane %v92, 7
    %v125 = vrot.slane %v93, 7
    %v126 = vrot.slane %v94, 7
    %v127 = vrot.slane %v95, 7
    %v128 = vrot.slane %v96, 7
    %v129 = vrot.slane %v97, 7
    %v130 = vrot.slane %v98, 7
    %v131 = vrot.slane %v99, 7
    %v132 = vrot.slane %v100, 7
    %v133 = vrot.slane %v101, 7
    %v134 = vrot.slane %v102, 7
    %v135 = vrot.slane %v103, 7
    %v136 = vrot.slane %v104, 7
    %v137 = vrot.slane %v105, 7
    %v138 = vrot.slane %v106, 7
    %v139 = vrot.slane %v107, 7
    %vm140 = vcmp.lt.s32.totalorder %v70, 1
    %v141 = vsel %vm140, %v138, %v139
    %v142 = vsel %vm140, %v137, %v138
    %v143 = vsel %vm140, %v136, %v137
    %v144 = vsel %vm140, %v135, %v136
    %v145 = vsel %vm140, %v134, %v135
    %v146 = vsel %vm140, %v133, %v134
    %v147 = vsel %vm140, %v132, %v133
    %v148 = vsel %vm140, %v131, %v132
    %v149 = vsel %vm140, %v130, %v131
    %v150 = vsel %vm140, %v129, %v130
    %v151 = vsel %vm140, %v128, %v129
    %v152 = vsel %vm140, %v127, %v128
    %v153 = vsel %vm140, %v126, %v127
    %v154 = vsel %vm140, %v125, %v126
    %v155 = vsel %vm140, %v124, %v125
    %v156 = vsel %vm140, %v123, %v124
    %v157 = vsel %vm140, %v122, %v123
    %v158 = vsel %vm140, %v121, %v122
    %v159 = vsel %vm140, %v120, %v121
    %v160 = vsel %vm140, %v119, %v120
    %v161 = vsel %vm140, %v118, %v119
    %v162 = vsel %vm140, %v117, %v118
    %v163 = vsel %vm140, %v116, %v117
    %v164 = vsel %vm140, %v115, %v116
    %v165 = vsel %vm140, %v114, %v115
    %v166 = vsel %vm140, %v113, %v114
    %v167 = vsel %vm140, %v112, %v113
    %v168 = vsel %vm140, %v111, %v112
    %v169 = vsel %vm140, %v110, %v111
    %v170 = vsel %vm140, %v109, %v110
    %v171 = vsel %vm140, %v108, %v109
    %v172 = vsel %vm140, %v139, %v108
    %v173 = vsel %vm72, %v172, 0.0
    %v174 = vsel %vm73, %v171, 0.0
    %v175 = vsel %vm72, %v170, 0.0
    %v176 = vsel %vm73, %v169, 0.0
    %v177 = vsel %vm72, %v168, 0.0
    %v178 = vsel %vm73, %v167, 0.0
    %v179 = vsel %vm72, %v166, 0.0
    %v180 = vsel %vm73, %v165, 0.0
    %v181 = vsel %vm72, %v164, 0.0
    %v182 = vsel %vm73, %v163, 0.0
    %v183 = vsel %vm72, %v162, 0.0
    %v184 = vsel %vm73, %v161, 0.0
    %v185 = vsel %vm72, %v160, 0.0
    %v186 = vsel %vm73, %v159, 0.0
    %v187 = vsel %vm72, %v158, 0.0
    %v188 = vsel %vm73, %v157, 0.0
    %v189 = vsel %vm72, %v156, 0.0
    %v190 = vsel %vm73, %v155, 0.0
    %v191 = vsel %vm72, %v154, 0.0
    %v192 = vsel %vm73, %v153, 0.0
    %v193 = vsel %vm72, %v152, 0.0
    %v194 = vsel %vm73, %v151, 0.0
    %v195 = vsel %vm72, %v150, 0.0
    %v196 = vsel %vm73, %v149, 0.0
    %v197 = vsel %vm72, %v148, 0.0
    %v198 = vsel %vm73, %v147, 0.0
    %v199 = vsel %vm72, %v146, 0.0
    %v200 = vsel %vm73, %v145, 0.0
    %v201 = vsel %vm72, %v144, 0.0
    %v202 = vsel %vm73, %v143, 0.0
    %v203 = vsel %vm72, %v142, 0.0
    %v204 = vsel %vm73, %v141, 0.0
    %v205 = vrot.slane %v76, 1
    %v206 = vrot.slane %v77, 1
    %v207 = vrot.slane %v78, 1
    %v208 = vrot.slane %v79, 1
    %v209 = vrot.slane %v80, 1
    %v210 = vrot.slane %v81, 1
    %v211 = vrot.slane %v82, 1
    %v212 = vrot.slane %v83, 1
    %v213 = vrot.slane %v84, 1
    %v214 = vrot.slane %v85, 1
    %v215 = vrot.slane %v86, 1
    %v216 = vrot.slane %v87, 1
    %v217 = vrot.slane %v88, 1
    %v218 = vrot.slane %v89, 1
    %v219 = vrot.slane %v90, 1
    %v220 = vrot.slane %v91, 1
    %v221 = vrot.slane %v92, 1
    %v222 = vrot.slane %v93, 1
    %v223 = vrot.slane %v94, 1
    %v224 = vrot.slane %v95, 1
    %v225 = vrot.slane %v96, 1
    %v226 = vrot.slane %v97, 1
    %v227 = vrot.slane %v98, 1
    %v228 = vrot.slane %v99, 1
    %v229 = vrot.slane %v100, 1
    %v230 = vrot.slane %v101, 1
    %v231 = vrot.slane %v102, 1
    %v232 = vrot.slane %v103, 1
    %v233 = vrot.slane %v104, 1
    %v234 = vrot.slane %v105, 1
    %v235 = vrot.slane %v106, 1
    %v236 = vrot.slane %v107, 1
    %vm237 = vcmp.lt.s32.totalorder %v70, 7
    %v238 = vsel %vm237, %v235, %v236
    %v239 = vsel %vm237, %v234, %v235
    %v240 = vsel %vm237, %v233, %v234
    %v241 = vsel %vm237, %v232, %v233
    %v242 = vsel %vm237, %v231, %v232
    %v243 = vsel %vm237, %v230, %v231
    %v244 = vsel %vm237, %v229, %v230
    %v245 = vsel %vm237, %v228, %v229
    %v246 = vsel %vm237, %v227, %v228
    %v247 = vsel %vm237, %v226, %v227
    %v248 = vsel %vm237, %v225, %v226
    %v249 = vsel %vm237, %v224, %v225
    %v250 = vsel %vm237, %v223, %v224
    %v251 = vsel %vm237, %v222, %v223
    %v252 = vsel %vm237, %v221, %v222
    %v253 = vsel %vm237, %v220, %v221
    %v254 = vsel %vm237, %v219, %v220
    %v255 = vsel %vm237, %v218, %v219
    %v256 = vsel %vm237, %v217, %v218
    %v257 = vsel %vm237, %v216, %v217
    %v258 = vsel %vm237, %v215, %v216
    %v259 = vsel %vm237, %v214, %v215
    %v260 = vsel %vm237, %v213, %v214
    %v261 = vsel %vm237, %v212, %v213
    %v262 = vsel %vm237, %v211, %v212
    %v263 = vsel %vm237, %v210, %v211
    %v264 = vsel %vm237, %v209, %v210
    %v265 = vsel %vm237, %v208, %v209
    %v266 = vsel %vm237, %v207, %v208
    %v267 = vsel %vm237, %v206, %v207
    %v268 = vsel %vm237, %v205, %v206
    %v269 = vsel %vm237, %v236, %v205
    %v270 = vsel %vm74, %v268, 0.0
    %v271 = vsel %vm75, %v267, 0.0
    %v272 = vsel %vm74, %v266, 0.0
    %v273 = vsel %vm75, %v265, 0.0
    %v274 = vsel %vm74, %v264, 0.0
    %v275 = vsel %vm75, %v263, 0.0
    %v276 = vsel %vm74, %v262, 0.0
    %v277 = vsel %vm75, %v261, 0.0
    %v278 = vsel %vm74, %v260, 0.0
    %v279 = vsel %vm75, %v259, 0.0
    %v280 = vsel %vm74, %v258, 0.0
    %v281 = vsel %vm75, %v257, 0.0
    %v282 = vsel %vm74, %v256, 0.0
    %v283 = vsel %vm75, %v255, 0.0
    %v284 = vsel %vm74, %v254, 0.0
    %v285 = vsel %vm75, %v253, 0.0
    %v286 = vsel %vm74, %v252, 0.0
    %v287 = vsel %vm75, %v251, 0.0
    %v288 = vsel %vm74, %v250, 0.0
    %v289 = vsel %vm75, %v249, 0.0
    %v290 = vsel %vm74, %v248, 0.0
    %v291 = vsel %vm75, %v247, 0.0
    %v292 = vsel %vm74, %v246, 0.0
    %v293 = vsel %vm75, %v245, 0.0
    %v294 = vsel %vm74, %v244, 0.0
    %v295 = vsel %vm75, %v243, 0.0
    %v296 = vsel %vm74, %v242, 0.0
    %v297 = vsel %vm75, %v241, 0.0
    %v298 = vsel %vm74, %v240, 0.0
    %v299 = vsel %vm75, %v239, 0.0
    %v300 = vsel %vm74, %v238, 0.0
    %v301 = vsel %vm75, %v269, 0.0
    %v302 = vpack.c.bf16 %v174, %v173
    %v303 = vpack.c.bf16 %v77, %v76
    %v304 = vpack.c.bf16 %v271, %v270
    %v305 = vpack.c.bf16 %v176, %v175
    %v306 = vpack.c.bf16 %v79, %v78
    %v307 = vpack.c.bf16 %v273, %v272
    %v308 = vpack.c.bf16 %v178, %v177
    %v309 = vpack.c.bf16 %v81, %v80
    %v310 = vpack.c.bf16 %v275, %v274
    %v311 = vpack.c.bf16 %v180, %v179
    %v312 = vpack.c.bf16 %v83, %v82
    %v313 = vpack.c.bf16 %v277, %v276
    %v314 = vpack.c.bf16 %v182, %v181
    %v315 = vpack.c.bf16 %v85, %v84
    %v316 = vpack.c.bf16 %v279, %v278
    %v317 = vpack.c.bf16 %v184, %v183
    %v318 = vpack.c.bf16 %v87, %v86
    %v319 = vpack.c.bf16 %v281, %v280
    %v320 = vpack.c.bf16 %v186, %v185
    %v321 = vpack.c.bf16 %v89, %v88
    %v322 = vpack.c.bf16 %v283, %v282
    %v323 = vpack.c.bf16 %v188, %v187
    %v324 = vpack.c.bf16 %v91, %v90
    %v325 = vpack.c.bf16 %v285, %v284
    %v326 = vpack.c.bf16 %v190, %v189
    %v327 = vpack.c.bf16 %v93, %v92
    %v328 = vpack.c.bf16 %v287, %v286
    %v329 = vpack.c.bf16 %v192, %v191
    %v330 = vpack.c.bf16 %v95, %v94
    %v331 = vpack.c.bf16 %v289, %v288
    %v332 = vpack.c.bf16 %v194, %v193
    %v333 = vpack.c.bf16 %v97, %v96
    %v334 = vpack.c.bf16 %v291, %v290
    %v335 = vpack.c.bf16 %v196, %v195
    %v336 = vpack.c.bf16 %v99, %v98
    %v337 = vpack.c.bf16 %v293, %v292
    %v338 = vpack.c.bf16 %v198, %v197
    %v339 = vpack.c.bf16 %v101, %v100
    %v340 = vpack.c.bf16 %v295, %v294
    %v341 = vpack.c.bf16 %v200, %v199
    %v342 = vpack.c.bf16 %v103, %v102
    %v343 = vpack.c.bf16 %v297, %v296
    %v344 = vpack.c.bf16 %v202, %v201
    %v345 = vpack.c.bf16 %v105, %v104
    %v346 = vpack.c.bf16 %v299, %v298
    %v347 = vpack.c.bf16 %v204, %v203
    %v348 = vpack.c.bf16 %v107, %v106
    %v349 = vpack.c.bf16 %v301, %v300
    %s350 = scalar_lea.vmem [#allocation6], 192
    %v351 = vld [vmem:[%s350] sm:$0xf]
    %v352 = vld [vmem:[%s350 + $0x4] sm:$0xf]
    %v353 = vld [vmem:[%s350 + $0x8] sm:$0xf]
    %v354 = vld [vmem:[%s350 + $0xc] sm:$0xf]
    %v355 = vld [vmem:[%s350 + $0x10] sm:$0xf]
    %v356 = vld [vmem:[%s350 + $0x14] sm:$0xf]
    %v357 = vld [vmem:[%s350 + $0x18] sm:$0xf]
    %v358 = vld [vmem:[%s350 + $0x1c] sm:$0xf]
    %v359 = vld [vmem:[%s350 + $0x20] sm:$0xf]
    %v360 = vld [vmem:[%s350 + $0x24] sm:$0xf]
    %v361 = vld [vmem:[%s350 + $0x28] sm:$0xf]
    %v362 = vld [vmem:[%s350 + $0x2c] sm:$0xf]
    %v363 = vld [vmem:[%s350 + $0x30] sm:$0xf]
    %v364 = vld [vmem:[%s350 + $0x34] sm:$0xf]
    %v365 = vld [vmem:[%s350 + $0x38] sm:$0xf]
    %v366 = vld [vmem:[%s350 + $0x3c] sm:$0xf]
    %v367 = vld [vmem:[%s350 + $0x40] sm:$0xf]
    %v368 = vld [vmem:[%s350 + $0x44] sm:$0xf]
    %v369 = vld [vmem:[%s350 + $0x48] sm:$0xf]
    %v370 = vld [vmem:[%s350 + $0x4c] sm:$0xf]
    %v371 = vld [vmem:[%s350 + $0x50] sm:$0xf]
    %v372 = vld [vmem:[%s350 + $0x54] sm:$0xf]
    %v373 = vld [vmem:[%s350 + $0x58] sm:$0xf]
    %v374 = vld [vmem:[%s350 + $0x5c] sm:$0xf]
    %v375 = vld [vmem:[%s350 + $0x60] sm:$0xf]
    %v376 = vld [vmem:[%s350 + $0x64] sm:$0xf]
    %v377 = vld [vmem:[%s350 + $0x68] sm:$0xf]
    %v378 = vld [vmem:[%s350 + $0x6c] sm:$0xf]
    %v379 = vld [vmem:[%s350 + $0x70] sm:$0xf]
    %v380 = vld [vmem:[%s350 + $0x74] sm:$0xf]
    %v381 = vld [vmem:[%s350 + $0x78] sm:$0xf]
    %v382 = vld [vmem:[%s350 + $0x7c] sm:$0xf]
    %v383 = vld [vmem:[%s350 + $0x80] sm:$0xf]
    %v384 = vld [vmem:[%s350 + $0x84] sm:$0xf]
    %v385 = vld [vmem:[%s350 + $0x88] sm:$0xf]
    %v386 = vld [vmem:[%s350 + $0x8c] sm:$0xf]
    %v387 = vld [vmem:[%s350 + $0x90] sm:$0xf]
    %v388 = vld [vmem:[%s350 + $0x94] sm:$0xf]
    %v389 = vld [vmem:[%s350 + $0x98] sm:$0xf]
    %v390 = vld [vmem:[%s350 + $0x9c] sm:$0xf]
    %v391 = vld [vmem:[%s350 + $0xa0] sm:$0xf]
    %v392 = vld [vmem:[%s350 + $0xa4] sm:$0xf]
    %v393 = vld [vmem:[%s350 + $0xa8] sm:$0xf]
    %v394 = vld [vmem:[%s350 + $0xac] sm:$0xf]
    %v395 = vld [vmem:[%s350 + $0xb0] sm:$0xf]
    %v396 = vld [vmem:[%s350 + $0xb4] sm:$0xf]
    %v397 = vld [vmem:[%s350 + $0xb8] sm:$0xf]
    %v398 = vld [vmem:[%s350 + $0xbc] sm:$0xf]
    %v399 = vld [vmem:[#allocation6] sm:$0xf]
    %v400 = vld [vmem:[#allocation6 + $0x4] sm:$0xf]
    %v401 = vld [vmem:[#allocation6 + $0x8] sm:$0xf]
    %v402 = vld [vmem:[#allocation6 + $0xc] sm:$0xf]
    %v403 = vld [vmem:[#allocation6 + $0x10] sm:$0xf]
    %v404 = vld [vmem:[#allocation6 + $0x14] sm:$0xf]
    %v405 = vld [vmem:[#allocation6 + $0x18] sm:$0xf]
    %v406 = vld [vmem:[#allocation6 + $0x1c] sm:$0xf]
    %v407 = vld [vmem:[#allocation6 + $0x20] sm:$0xf]
    %v408 = vld [vmem:[#allocation6 + $0x24] sm:$0xf]
    %v409 = vld [vmem:[#allocation6 + $0x28] sm:$0xf]
    %v410 = vld [vmem:[#allocation6 + $0x2c] sm:$0xf]
    %v411 = vld [vmem:[#allocation6 + $0x30] sm:$0xf]
    %v412 = vld [vmem:[#allocation6 + $0x34] sm:$0xf]
    %v413 = vld [vmem:[#allocation6 + $0x38] sm:$0xf]
    %v414 = vld [vmem:[#allocation6 + $0x3c] sm:$0xf]
    %v415 = vld [vmem:[#allocation6 + $0x40] sm:$0xf]
    %v416 = vld [vmem:[#allocation6 + $0x44] sm:$0xf]
    %v417 = vld [vmem:[#allocation6 + $0x48] sm:$0xf]
    %v418 = vld [vmem:[#allocation6 + $0x4c] sm:$0xf]
    %v419 = vld [vmem:[#allocation6 + $0x50] sm:$0xf]
    %v420 = vld [vmem:[#allocation6 + $0x54] sm:$0xf]
    %v421 = vld [vmem:[#allocation6 + $0x58] sm:$0xf]
    %v422 = vld [vmem:[#allocation6 + $0x5c] sm:$0xf]
    %v423 = vld [vmem:[#allocation6 + $0x60] sm:$0xf]
    %v424 = vld [vmem:[#allocation6 + $0x64] sm:$0xf]
    %v425 = vld [vmem:[#allocation6 + $0x68] sm:$0xf]
    %v426 = vld [vmem:[#allocation6 + $0x6c] sm:$0xf]
    %v427 = vld [vmem:[#allocation6 + $0x70] sm:$0xf]
    %v428 = vld [vmem:[#allocation6 + $0x74] sm:$0xf]
    %v429 = vld [vmem:[#allocation6 + $0x78] sm:$0xf]
    %v430 = vld [vmem:[#allocation6 + $0x7c] sm:$0xf]
    %v431 = vld [vmem:[#allocation6 + $0x80] sm:$0xf]
    %v432 = vld [vmem:[#allocation6 + $0x84] sm:$0xf]
    %v433 = vld [vmem:[#allocation6 + $0x88] sm:$0xf]
    %v434 = vld [vmem:[#allocation6 + $0x8c] sm:$0xf]
    %v435 = vld [vmem:[#allocation6 + $0x90] sm:$0xf]
    %v436 = vld [vmem:[#allocation6 + $0x94] sm:$0xf]
    %v437 = vld [vmem:[#allocation6 + $0x98] sm:$0xf]
    %v438 = vld [vmem:[#allocation6 + $0x9c] sm:$0xf]
    %v439 = vld [vmem:[#allocation6 + $0xa0] sm:$0xf]
    %v440 = vld [vmem:[#allocation6 + $0xa4] sm:$0xf]
    %v441 = vld [vmem:[#allocation6 + $0xa8] sm:$0xf]
    %v442 = vld [vmem:[#allocation6 + $0xac] sm:$0xf]
    %v443 = vld [vmem:[#allocation6 + $0xb0] sm:$0xf]
    %v444 = vld [vmem:[#allocation6 + $0xb4] sm:$0xf]
    %v445 = vld [vmem:[#allocation6 + $0xb8] sm:$0xf]
    %v446 = vld [vmem:[#allocation6 + $0xbc] sm:$0xf]
    %v495 = vunpack.c.l.b16 %v399
    %v496 = vunpack.c.l.b16 %v400
    %v497 = vunpack.c.l.b16 %v401
    %v498 = vunpack.c.l.b16 %v402
    %v499 = vunpack.c.l.b16 %v403
    %v500 = vunpack.c.l.b16 %v404
    %v501 = vunpack.c.l.b16 %v405
    %v502 = vunpack.c.l.b16 %v406
    %v503 = vunpack.c.l.b16 %v407
    %v504 = vunpack.c.l.b16 %v408
    %v505 = vunpack.c.l.b16 %v409
    %v506 = vunpack.c.l.b16 %v410
    %v507 = vunpack.c.l.b16 %v411
    %v508 = vunpack.c.l.b16 %v412
    %v509 = vunpack.c.l.b16 %v413
    %v510 = vunpack.c.l.b16 %v414
    %v511 = vunpack.c.l.b16 %v415
    %v512 = vunpack.c.l.b16 %v416
    %v513 = vunpack.c.l.b16 %v417
    %v514 = vunpack.c.l.b16 %v418
    %v515 = vunpack.c.l.b16 %v419
    %v516 = vunpack.c.l.b16 %v420
    %v517 = vunpack.c.l.b16 %v421
    %v518 = vunpack.c.l.b16 %v422
    %v519 = vunpack.c.l.b16 %v423
    %v520 = vunpack.c.l.b16 %v424
    %v521 = vunpack.c.l.b16 %v425
    %v522 = vunpack.c.l.b16 %v426
    %v523 = vunpack.c.l.b16 %v427
    %v524 = vunpack.c.l.b16 %v428
    %v525 = vunpack.c.l.b16 %v429
    %v526 = vunpack.c.l.b16 %v430
    %v527 = vunpack.c.l.b16 %v431
    %v528 = vunpack.c.l.b16 %v432
    %v529 = vunpack.c.l.b16 %v433
    %v530 = vunpack.c.l.b16 %v434
    %v531 = vunpack.c.l.b16 %v435
    %v532 = vunpack.c.l.b16 %v436
    %v533 = vunpack.c.l.b16 %v437
    %v534 = vunpack.c.l.b16 %v438
    %v535 = vunpack.c.l.b16 %v439
    %v536 = vunpack.c.l.b16 %v440
    %v537 = vunpack.c.l.b16 %v441
    %v538 = vunpack.c.l.b16 %v442
    %v539 = vunpack.c.l.b16 %v443
    %v540 = vunpack.c.l.b16 %v444
    %v541 = vunpack.c.l.b16 %v445
    %v542 = vunpack.c.l.b16 %v446
    %v543 = vpack.c.b16 %v496, %v495
    %v544 = vpack.c.b16 %v498, %v497
    %v545 = vpack.c.b16 %v500, %v499
    %v546 = vpack.c.b16 %v502, %v501
    %v547 = vpack.c.b16 %v504, %v503
    %v548 = vpack.c.b16 %v506, %v505
    %v549 = vpack.c.b16 %v508, %v507
    %v550 = vpack.c.b16 %v510, %v509
    %v551 = vpack.c.b16 %v512, %v511
    %v552 = vpack.c.b16 %v514, %v513
    %v553 = vpack.c.b16 %v516, %v515
    %v554 = vpack.c.b16 %v518, %v517
    %v555 = vpack.c.b16 %v520, %v519
    %v556 = vpack.c.b16 %v522, %v521
    %v557 = vpack.c.b16 %v524, %v523
    %v558 = vpack.c.b16 %v526, %v525
    %v559 = vpack.c.b16 %v528, %v527
    %v560 = vpack.c.b16 %v530, %v529
    %v561 = vpack.c.b16 %v532, %v531
    %v562 = vpack.c.b16 %v534, %v533
    %v563 = vpack.c.b16 %v536, %v535
    %v564 = vpack.c.b16 %v538, %v537
    %v565 = vpack.c.b16 %v540, %v539
    %v566 = vpack.c.b16 %v542, %v541
    %591 = vmatprep.subr.bf16.mxu0 0
    %592 = vmatpush1.bf16.msra.mxu0 %v550
    %593 = vmatprep.subr.bf16.mxu0 0
    %594 = vmatpush1.bf16.msra.mxu0 %v549
    %595 = vmatprep.subr.bf16.mxu0 0
    %596 = vmatpush1.bf16.msra.mxu0 %v548
    %597 = vmatprep.subr.bf16.mxu0 0
    %598 = vmatpush1.bf16.msra.mxu0 %v547
    %599 = vmatprep.subr.bf16.mxu0 0
    %600 = vmatpush1.bf16.msra.mxu0 %v546
    %601 = vmatprep.subr.bf16.mxu0 0
    %602 = vmatpush1.bf16.msra.mxu0 %v545
    %603 = vmatprep.subr.bf16.mxu0 0
    %604 = vmatpush1.bf16.msra.mxu0 %v544
    %605 = vmatprep.subr.bf16.mxu0 0
    %606 = vmatpush1.bf16.msra.mxu0 %v543
    %607 = vmatprep.subr.bf16.mxu0 0
    %608 = vmatpush2.bf16.msra.mxu0 %v558
    %609 = vmatprep.subr.bf16.mxu0 0
    %610 = vmatpush2.bf16.msra.mxu0 %v557
    %611 = vmatprep.subr.bf16.mxu0 0
    %612 = vmatpush2.bf16.msra.mxu0 %v556
    %613 = vmatprep.subr.bf16.mxu0 0
    %614 = vmatpush2.bf16.msra.mxu0 %v555
    %615 = vmatprep.subr.bf16.mxu0 0
    %616 = vmatpush2.bf16.msra.mxu0 %v554
    %617 = vmatprep.subr.bf16.mxu0 0
    %618 = vmatpush2.bf16.msra.mxu0 %v553
    %619 = vmatprep.subr.bf16.mxu0 0
    %620 = vmatpush2.bf16.msra.mxu0 %v552
    %621 = vmatprep.subr.bf16.mxu0 0
    %622 = vmatpush2.bf16.msra.mxu0 %v551
    %623 = vmatprep.mubr.bf16.mxu0 %v303
    %624 = vmatmul.mubr.bf16.gmra.mxu0 %v302
    %v625 = vpop.f32.mrf.mxu0
    %v626 = vadd.f32 0.0, %v625
    %v627 = vpop.f32.mrf.mxu0
    %v628 = vpop.f32.mrf.mxu0
    %v629 = vadd.f32 0.0, %v628
    %v630 = vpop.f32.mrf.mxu0
    %631 = vmatprep.mubr.bf16.mxu0 %v306
    %632 = vmatmul.mubr.bf16.gmra.mxu0 %v305
    %v633 = vpop.f32.mrf.mxu0
    %v634 = vadd.f32 0.0, %v633
    %v635 = vpop.f32.mrf.mxu0
    %v636 = vpop.f32.mrf.mxu0
    %v637 = vadd.f32 0.0, %v636
    %v638 = vpop.f32.mrf.mxu0
    %639 = vmatprep.mubr.bf16.mxu0 %v309
    %640 = vmatmul.mubr.bf16.gmra.mxu0 %v308
    %v641 = vpop.f32.mrf.mxu0
    %v642 = vadd.f32 0.0, %v641
    %v643 = vpop.f32.mrf.mxu0
    %v644 = vpop.f32.mrf.mxu0
    %v645 = vadd.f32 0.0, %v644
    %v646 = vpop.f32.mrf.mxu0
    %647 = vmatprep.mubr.bf16.mxu0 %v312
    %648 = vmatmul.mubr.bf16.gmra.mxu0 %v311
    %v649 = vpop.f32.mrf.mxu0
    %v650 = vadd.f32 0.0, %v649
    %v651 = vpop.f32.mrf.mxu0
    %v652 = vpop.f32.mrf.mxu0
    %v653 = vadd.f32 0.0, %v652
    %v654 = vpop.f32.mrf.mxu0
    %655 = vmatprep.mubr.bf16.mxu0 %v315
    %656 = vmatmul.mubr.bf16.gmra.mxu0 %v314
    %v657 = vpop.f32.mrf.mxu0
    %v658 = vadd.f32 0.0, %v657
    %v659 = vpop.f32.mrf.mxu0
    %v660 = vpop.f32.mrf.mxu0
    %v661 = vadd.f32 0.0, %v660
    %v662 = vpop.f32.mrf.mxu0
    %663 = vmatprep.mubr.bf16.mxu0 %v318
    %664 = vmatmul.mubr.bf16.gmra.mxu0 %v317
    %v665 = vpop.f32.mrf.mxu0
    %v666 = vadd.f32 0.0, %v665
    %v667 = vpop.f32.mrf.mxu0
    %v668 = vpop.f32.mrf.mxu0
    %v669 = vadd.f32 0.0, %v668
    %v670 = vpop.f32.mrf.mxu0
    %671 = vmatprep.mubr.bf16.mxu0 %v321
    %672 = vmatmul.mubr.bf16.gmra.mxu0 %v320
    %v673 = vpop.f32.mrf.mxu0
    %v674 = vadd.f32 0.0, %v673
    %v675 = vpop.f32.mrf.mxu0
    %v676 = vpop.f32.mrf.mxu0
    %v677 = vadd.f32 0.0, %v676
    %v678 = vpop.f32.mrf.mxu0
    %679 = vmatprep.mubr.bf16.mxu0 %v324
    %680 = vmatmul.mubr.bf16.gmra.mxu0 %v323
    %v681 = vpop.f32.mrf.mxu0
    %v682 = vadd.f32 0.0, %v681
    %v683 = vpop.f32.mrf.mxu0
    %v684 = vpop.f32.mrf.mxu0
    %v685 = vadd.f32 0.0, %v684
    %v686 = vpop.f32.mrf.mxu0
    %687 = vmatprep.mubr.bf16.mxu0 %v327
    %688 = vmatmul.mubr.bf16.gmra.mxu0 %v326
    %v689 = vpop.f32.mrf.mxu0
    %v690 = vadd.f32 0.0, %v689
    %v691 = vpop.f32.mrf.mxu0
    %v692 = vpop.f32.mrf.mxu0
    %v693 = vadd.f32 0.0, %v692
    %v694 = vpop.f32.mrf.mxu0
    %695 = vmatprep.mubr.bf16.mxu0 %v330
    %696 = vmatmul.mubr.bf16.gmra.mxu0 %v329
    %v697 = vpop.f32.mrf.mxu0
    %v698 = vadd.f32 0.0, %v697
    %v699 = vpop.f32.mrf.mxu0
    %v700 = vpop.f32.mrf.mxu0
    %v701 = vadd.f32 0.0, %v700
    %v702 = vpop.f32.mrf.mxu0
    %703 = vmatprep.mubr.bf16.mxu0 %v333
    %704 = vmatmul.mubr.bf16.gmra.mxu0 %v332
    %v705 = vpop.f32.mrf.mxu0
    %v706 = vadd.f32 0.0, %v705
    %v707 = vpop.f32.mrf.mxu0
    %v708 = vpop.f32.mrf.mxu0
    %v709 = vadd.f32 0.0, %v708
    %v710 = vpop.f32.mrf.mxu0
    %711 = vmatprep.mubr.bf16.mxu0 %v336
    %712 = vmatmul.mubr.bf16.gmra.mxu0 %v335
    %v713 = vpop.f32.mrf.mxu0
    %v714 = vadd.f32 0.0, %v713
    %v715 = vpop.f32.mrf.mxu0
    %v716 = vpop.f32.mrf.mxu0
    %v717 = vadd.f32 0.0, %v716
    %v718 = vpop.f32.mrf.mxu0
    %719 = vmatprep.mubr.bf16.mxu0 %v339
    %720 = vmatmul.mubr.bf16.gmra.mxu0 %v338
    %v721 = vpop.f32.mrf.mxu0
    %v722 = vadd.f32 0.0, %v721
    %v723 = vpop.f32.mrf.mxu0
    %v724 = vpop.f32.mrf.mxu0
    %v725 = vadd.f32 0.0, %v724
    %v726 = vpop.f32.mrf.mxu0
    %727 = vmatprep.mubr.bf16.mxu0 %v342
    %728 = vmatmul.mubr.bf16.gmra.mxu0 %v341
    %v729 = vpop.f32.mrf.mxu0
    %v730 = vadd.f32 0.0, %v729
    %v731 = vpop.f32.mrf.mxu0
    %v732 = vpop.f32.mrf.mxu0
    %v733 = vadd.f32 0.0, %v732
    %v734 = vpop.f32.mrf.mxu0
    %735 = vmatprep.mubr.bf16.mxu0 %v345
    %736 = vmatmul.mubr.bf16.gmra.mxu0 %v344
    %v737 = vpop.f32.mrf.mxu0
    %v738 = vadd.f32 0.0, %v737
    %v739 = vpop.f32.mrf.mxu0
    %v740 = vpop.f32.mrf.mxu0
    %v741 = vadd.f32 0.0, %v740
    %v742 = vpop.f32.mrf.mxu0
    %743 = vdwg.mxu0
    %744 = vmatprep.subr.bf16.mxu0 0
    %745 = vmatpush1.bf16.msra.mxu0 %v566
    %746 = vmatprep.subr.bf16.mxu0 0
    %747 = vmatpush1.bf16.msra.mxu0 %v565
    %748 = vmatprep.subr.bf16.mxu0 0
    %749 = vmatpush1.bf16.msra.mxu0 %v564
    %750 = vmatprep.subr.bf16.mxu0 0
    %751 = vmatpush1.bf16.msra.mxu0 %v563
    %752 = vmatprep.subr.bf16.mxu0 0
    %753 = vmatpush1.bf16.msra.mxu0 %v562
    %754 = vmatprep.subr.bf16.mxu0 0
    %755 = vmatpush1.bf16.msra.mxu0 %v561
    %756 = vmatprep.subr.bf16.mxu0 0
    %757 = vmatpush1.bf16.msra.mxu0 %v560
    %758 = vmatprep.subr.bf16.mxu0 0
    %759 = vmatpush1.bf16.msra.mxu0 %v559
    %760 = vmatprep.subr.bf16.mxu0 0
    %761 = vmatpush2.bf16.msra.mxu0 0
    %762 = vmatprep.subr.bf16.mxu0 0
    %763 = vmatpush2.bf16.msra.mxu0 0
    %764 = vmatprep.subr.bf16.mxu0 0
    %765 = vmatpush2.bf16.msra.mxu0 0
    %766 = vmatprep.subr.bf16.mxu0 0
    %767 = vmatpush2.bf16.msra.mxu0 0
    %768 = vmatprep.subr.bf16.mxu0 0
    %769 = vmatpush2.bf16.msra.mxu0 0
    %770 = vmatprep.subr.bf16.mxu0 0
    %771 = vmatpush2.bf16.msra.mxu0 0
    %772 = vmatprep.subr.bf16.mxu0 0
    %773 = vmatpush2.bf16.msra.mxu0 0
    %774 = vmatprep.subr.bf16.mxu0 0
    %775 = vmatpush2.bf16.msra.mxu0 0
    %776 = vmatprep.mubr.bf16.mxu0 0
    %777 = vmatmul.mubr.bf16.gmra.mxu0 %v304
    %v778 = vpop.f32.mrf.mxu0
    %v779 = vadd.f32 %v626, %v778
    %v780 = vpop.f32.mrf.mxu0
    %v781 = vpop.f32.mrf.mxu0
    %v782 = vadd.f32 %v629, %v781
    %v783 = vpop.f32.mrf.mxu0
    %784 = vmatprep.mubr.bf16.mxu0 0
    %785 = vmatmul.mubr.bf16.gmra.mxu0 %v307
    %v786 = vpop.f32.mrf.mxu0
    %v787 = vadd.f32 %v634, %v786
    %v788 = vpop.f32.mrf.mxu0
    %v789 = vpop.f32.mrf.mxu0
    %v790 = vadd.f32 %v637, %v789
    %v791 = vpop.f32.mrf.mxu0
    %792 = vmatprep.mubr.bf16.mxu0 0
    %793 = vmatmul.mubr.bf16.gmra.mxu0 %v310
    %v794 = vpop.f32.mrf.mxu0
    %v795 = vadd.f32 %v642, %v794
    %v796 = vpop.f32.mrf.mxu0
    %v797 = vpop.f32.mrf.mxu0
    %v798 = vadd.f32 %v645, %v797
    %v799 = vpop.f32.mrf.mxu0
    %800 = vmatprep.mubr.bf16.mxu0 0
    %801 = vmatmul.mubr.bf16.gmra.mxu0 %v313
    %v802 = vpop.f32.mrf.mxu0
    %v803 = vadd.f32 %v650, %v802
    %v804 = vpop.f32.mrf.mxu0
    %v805 = vpop.f32.mrf.mxu0
    %v806 = vadd.f32 %v653, %v805
    %v807 = vpop.f32.mrf.mxu0
    %808 = vmatprep.mubr.bf16.mxu0 0
    %809 = vmatmul.mubr.bf16.gmra.mxu0 %v316
    %v810 = vpop.f32.mrf.mxu0
    %v811 = vadd.f32 %v658, %v810
    %v812 = vpop.f32.mrf.mxu0
    %v813 = vpop.f32.mrf.mxu0
    %v814 = vadd.f32 %v661, %v813
    %v815 = vpop.f32.mrf.mxu0
    %816 = vmatprep.mubr.bf16.mxu0 0
    %817 = vmatmul.mubr.bf16.gmra.mxu0 %v319
    %v818 = vpop.f32.mrf.mxu0
    %v819 = vadd.f32 %v666, %v818
    %v820 = vpop.f32.mrf.mxu0
    %v821 = vpop.f32.mrf.mxu0
    %v822 = vadd.f32 %v669, %v821
    %v823 = vpop.f32.mrf.mxu0
    %824 = vmatprep.mubr.bf16.mxu0 0
    %825 = vmatmul.mubr.bf16.gmra.mxu0 %v322
    %v826 = vpop.f32.mrf.mxu0
    %v827 = vadd.f32 %v674, %v826
    %v828 = vpop.f32.mrf.mxu0
    %v829 = vpop.f32.mrf.mxu0
    %v830 = vadd.f32 %v677, %v829
    %v831 = vpop.f32.mrf.mxu0
    %832 = vmatprep.mubr.bf16.mxu0 0
    %833 = vmatmul.mubr.bf16.gmra.mxu0 %v325
    %v834 = vpop.f32.mrf.mxu0
    %v835 = vadd.f32 %v682, %v834
    %v836 = vpop.f32.mrf.mxu0
    %v837 = vpop.f32.mrf.mxu0
    %v838 = vadd.f32 %v685, %v837
    %v839 = vpop.f32.mrf.mxu0
    %840 = vmatprep.mubr.bf16.mxu0 0
    %841 = vmatmul.mubr.bf16.gmra.mxu0 %v328
    %v842 = vpop.f32.mrf.mxu0
    %v843 = vadd.f32 %v690, %v842
    %v844 = vpop.f32.mrf.mxu0
    %v845 = vpop.f32.mrf.mxu0
    %v846 = vadd.f32 %v693, %v845
    %v847 = vpop.f32.mrf.mxu0
    %848 = vmatprep.mubr.bf16.mxu0 0
    %849 = vmatmul.mubr.bf16.gmra.mxu0 %v331
    %v850 = vpop.f32.mrf.mxu0
    %v851 = vadd.f32 %v698, %v850
    %v852 = vpop.f32.mrf.mxu0
    %v853 = vpop.f32.mrf.mxu0
    %v854 = vadd.f32 %v701, %v853
    %v855 = vpop.f32.mrf.mxu0
    %856 = vmatprep.mubr.bf16.mxu0 0
    %857 = vmatmul.mubr.bf16.gmra.mxu0 %v334
    %v858 = vpop.f32.mrf.mxu0
    %v859 = vadd.f32 %v706, %v858
    %v860 = vpop.f32.mrf.mxu0
    %v861 = vpop.f32.mrf.mxu0
    %v862 = vadd.f32 %v709, %v861
    %v863 = vpop.f32.mrf.mxu0
    %864 = vmatprep.mubr.bf16.mxu0 0
    %865 = vmatmul.mubr.bf16.gmra.mxu0 %v337
    %v866 = vpop.f32.mrf.mxu0
    %v867 = vadd.f32 %v714, %v866
    %v868 = vpop.f32.mrf.mxu0
    %v869 = vpop.f32.mrf.mxu0
    %v870 = vadd.f32 %v717, %v869
    %v871 = vpop.f32.mrf.mxu0
    %872 = vmatprep.mubr.bf16.mxu0 0
    %873 = vmatmul.mubr.bf16.gmra.mxu0 %v340
    %v874 = vpop.f32.mrf.mxu0
    %v875 = vadd.f32 %v722, %v874
    %v876 = vpop.f32.mrf.mxu0
    %v877 = vpop.f32.mrf.mxu0
    %v878 = vadd.f32 %v725, %v877
    %v879 = vpop.f32.mrf.mxu0
    %880 = vmatprep.mubr.bf16.mxu0 0
    %881 = vmatmul.mubr.bf16.gmra.mxu0 %v343
    %v882 = vpop.f32.mrf.mxu0
    %v883 = vadd.f32 %v730, %v882
    %v884 = vpop.f32.mrf.mxu0
    %v885 = vpop.f32.mrf.mxu0
    %v886 = vadd.f32 %v733, %v885
    %v887 = vpop.f32.mrf.mxu0
    %888 = vmatprep.mubr.bf16.mxu0 0
    %889 = vmatmul.mubr.bf16.gmra.mxu0 %v346
    %v890 = vpop.f32.mrf.mxu0
    %v891 = vadd.f32 %v738, %v890
    %v892 = vpop.f32.mrf.mxu0
    %v893 = vpop.f32.mrf.mxu0
    %v894 = vadd.f32 %v741, %v893
    %v895 = vpop.f32.mrf.mxu0
    %896 = vdwg.mxu0
    %s897 = scalar_lea.vmem [#allocation6], 384
    %v898 = vld [vmem:[%s897] sm:$0xf]
    %v899 = vld [vmem:[%s897 + $0x4] sm:$0xf]
    %v900 = vld [vmem:[%s897 + $0x8] sm:$0xf]
    %v901 = vld [vmem:[%s897 + $0xc] sm:$0xf]
    %v902 = vld [vmem:[%s897 + $0x10] sm:$0xf]
    %v903 = vld [vmem:[%s897 + $0x14] sm:$0xf]
    %v904 = vld [vmem:[%s897 + $0x18] sm:$0xf]
    %v905 = vld [vmem:[%s897 + $0x1c] sm:$0xf]
    %v906 = vld [vmem:[%s897 + $0x20] sm:$0xf]
    %v907 = vld [vmem:[%s897 + $0x24] sm:$0xf]
    %v908 = vld [vmem:[%s897 + $0x28] sm:$0xf]
    %v909 = vld [vmem:[%s897 + $0x2c] sm:$0xf]
    %v910 = vld [vmem:[%s897 + $0x30] sm:$0xf]
    %v911 = vld [vmem:[%s897 + $0x34] sm:$0xf]
    %v912 = vld [vmem:[%s897 + $0x38] sm:$0xf]
    %v913 = vld [vmem:[%s897 + $0x3c] sm:$0xf]
    %v914 = vld [vmem:[%s897 + $0x40] sm:$0xf]
    %v915 = vld [vmem:[%s897 + $0x44] sm:$0xf]
    %v916 = vld [vmem:[%s897 + $0x48] sm:$0xf]
    %v917 = vld [vmem:[%s897 + $0x4c] sm:$0xf]
    %v918 = vld [vmem:[%s897 + $0x50] sm:$0xf]
    %v919 = vld [vmem:[%s897 + $0x54] sm:$0xf]
    %v920 = vld [vmem:[%s897 + $0x58] sm:$0xf]
    %v921 = vld [vmem:[%s897 + $0x5c] sm:$0xf]
    %v922 = vld [vmem:[%s897 + $0x60] sm:$0xf]
    %v923 = vld [vmem:[%s897 + $0x64] sm:$0xf]
    %v924 = vld [vmem:[%s897 + $0x68] sm:$0xf]
    %v925 = vld [vmem:[%s897 + $0x6c] sm:$0xf]
    %v926 = vld [vmem:[%s897 + $0x70] sm:$0xf]
    %v927 = vld [vmem:[%s897 + $0x74] sm:$0xf]
    %v928 = vld [vmem:[%s897 + $0x78] sm:$0xf]
    %v929 = vld [vmem:[%s897 + $0x7c] sm:$0xf]
    %v930 = vld [vmem:[%s897 + $0x80] sm:$0xf]
    %v931 = vld [vmem:[%s897 + $0x84] sm:$0xf]
    %v932 = vld [vmem:[%s897 + $0x88] sm:$0xf]
    %v933 = vld [vmem:[%s897 + $0x8c] sm:$0xf]
    %v934 = vld [vmem:[%s897 + $0x90] sm:$0xf]
    %v935 = vld [vmem:[%s897 + $0x94] sm:$0xf]
    %v936 = vld [vmem:[%s897 + $0x98] sm:$0xf]
    %v937 = vld [vmem:[%s897 + $0x9c] sm:$0xf]
    %v938 = vld [vmem:[%s897 + $0xa0] sm:$0xf]
    %v939 = vld [vmem:[%s897 + $0xa4] sm:$0xf]
    %v940 = vld [vmem:[%s897 + $0xa8] sm:$0xf]
    %v941 = vld [vmem:[%s897 + $0xac] sm:$0xf]
    %v942 = vld [vmem:[%s897 + $0xb0] sm:$0xf]
    %v943 = vld [vmem:[%s897 + $0xb4] sm:$0xf]
    %v944 = vld [vmem:[%s897 + $0xb8] sm:$0xf]
    %v945 = vld [vmem:[%s897 + $0xbc] sm:$0xf]
    %v994 = vunpack.c.l.b16 %v898
    %v995 = vunpack.c.l.b16 %v899
    %v996 = vunpack.c.l.b16 %v900
    %v997 = vunpack.c.l.b16 %v901
    %v998 = vunpack.c.l.b16 %v902
    %v999 = vunpack.c.l.b16 %v903
    %v1000 = vunpack.c.l.b16 %v904
    %v1001 = vunpack.c.l.b16 %v905
    %v1002 = vunpack.c.l.b16 %v906
    %v1003 = vunpack.c.l.b16 %v907
    %v1004 = vunpack.c.l.b16 %v908
    %v1005 = vunpack.c.l.b16 %v909
    %v1006 = vunpack.c.l.b16 %v910
    %v1007 = vunpack.c.l.b16 %v911
    %v1008 = vunpack.c.l.b16 %v912
    %v1009 = vunpack.c.l.b16 %v913
    %v1010 = vunpack.c.l.b16 %v914
    %v1011 = vunpack.c.l.b16 %v915
    %v1012 = vunpack.c.l.b16 %v916
    %v1013 = vunpack.c.l.b16 %v917
    %v1014 = vunpack.c.l.b16 %v918
    %v1015 = vunpack.c.l.b16 %v919
    %v1016 = vunpack.c.l.b16 %v920
    %v1017 = vunpack.c.l.b16 %v921
    %v1018 = vunpack.c.l.b16 %v922
    %v1019 = vunpack.c.l.b16 %v923
    %v1020 = vunpack.c.l.b16 %v924
    %v1021 = vunpack.c.l.b16 %v925
    %v1022 = vunpack.c.l.b16 %v926
    %v1023 = vunpack.c.l.b16 %v927
    %v1024 = vunpack.c.l.b16 %v928
    %v1025 = vunpack.c.l.b16 %v929
    %v1026 = vunpack.c.l.b16 %v930
    %v1027 = vunpack.c.l.b16 %v931
    %v1028 = vunpack.c.l.b16 %v932
    %v1029 = vunpack.c.l.b16 %v933
    %v1030 = vunpack.c.l.b16 %v934
    %v1031 = vunpack.c.l.b16 %v935
    %v1032 = vunpack.c.l.b16 %v936
    %v1033 = vunpack.c.l.b16 %v937
    %v1034 = vunpack.c.l.b16 %v938
    %v1035 = vunpack.c.l.b16 %v939
    %v1036 = vunpack.c.l.b16 %v940
    %v1037 = vunpack.c.l.b16 %v941
    %v1038 = vunpack.c.l.b16 %v942
    %v1039 = vunpack.c.l.b16 %v943
    %v1040 = vunpack.c.l.b16 %v944
    %v1041 = vunpack.c.l.b16 %v945
    %v1042 = vpack.c.b16 %v995, %v994
    %v1043 = vpack.c.b16 %v997, %v996
    %v1044 = vpack.c.b16 %v999, %v998
    %v1045 = vpack.c.b16 %v1001, %v1000
    %v1046 = vpack.c.b16 %v1003, %v1002
    %v1047 = vpack.c.b16 %v1005, %v1004
    %v1048 = vpack.c.b16 %v1007, %v1006
    %v1049 = vpack.c.b16 %v1009, %v1008
    %v1050 = vpack.c.b16 %v1011, %v1010
    %v1051 = vpack.c.b16 %v1013, %v1012
    %v1052 = vpack.c.b16 %v1015, %v1014
    %v1053 = vpack.c.b16 %v1017, %v1016
    %v1054 = vpack.c.b16 %v1019, %v1018
    %v1055 = vpack.c.b16 %v1021, %v1020
    %v1056 = vpack.c.b16 %v1023, %v1022
    %v1057 = vpack.c.b16 %v1025, %v1024
    %v1058 = vpack.c.b16 %v1027, %v1026
    %v1059 = vpack.c.b16 %v1029, %v1028
    %v1060 = vpack.c.b16 %v1031, %v1030
    %v1061 = vpack.c.b16 %v1033, %v1032
    %v1062 = vpack.c.b16 %v1035, %v1034
    %v1063 = vpack.c.b16 %v1037, %v1036
    %v1064 = vpack.c.b16 %v1039, %v1038
    %v1065 = vpack.c.b16 %v1041, %v1040
    %1090 = vmatprep.subr.bf16.mxu0 0
    %1091 = vmatpush1.bf16.msra.mxu0 %v1049
    %1092 = vmatprep.subr.bf16.mxu0 0
    %1093 = vmatpush1.bf16.msra.mxu0 %v1048
    %1094 = vmatprep.subr.bf16.mxu0 0
    %1095 = vmatpush1.bf16.msra.mxu0 %v1047
    %1096 = vmatprep.subr.bf16.mxu0 0
    %1097 = vmatpush1.bf16.msra.mxu0 %v1046
    %1098 = vmatprep.subr.bf16.mxu0 0
    %1099 = vmatpush1.bf16.msra.mxu0 %v1045
    %1100 = vmatprep.subr.bf16.mxu0 0
    %1101 = vmatpush1.bf16.msra.mxu0 %v1044
    %1102 = vmatprep.subr.bf16.mxu0 0
    %1103 = vmatpush1.bf16.msra.mxu0 %v1043
    %1104 = vmatprep.subr.bf16.mxu0 0
    %1105 = vmatpush1.bf16.msra.mxu0 %v1042
    %1106 = vmatprep.subr.bf16.mxu0 0
    %1107 = vmatpush2.bf16.msra.mxu0 %v1057
    %1108 = vmatprep.subr.bf16.mxu0 0
    %1109 = vmatpush2.bf16.msra.mxu0 %v1056
    %1110 = vmatprep.subr.bf16.mxu0 0
    %1111 = vmatpush2.bf16.msra.mxu0 %v1055
    %1112 = vmatprep.subr.bf16.mxu0 0
    %1113 = vmatpush2.bf16.msra.mxu0 %v1054
    %1114 = vmatprep.subr.bf16.mxu0 0
    %1115 = vmatpush2.bf16.msra.mxu0 %v1053
    %1116 = vmatprep.subr.bf16.mxu0 0
    %1117 = vmatpush2.bf16.msra.mxu0 %v1052
    %1118 = vmatprep.subr.bf16.mxu0 0
    %1119 = vmatpush2.bf16.msra.mxu0 %v1051
    %1120 = vmatprep.subr.bf16.mxu0 0
    %1121 = vmatpush2.bf16.msra.mxu0 %v1050
    %1122 = vmatprep.mubr.bf16.mxu0 %v306
    %1123 = vmatmul.mubr.bf16.gmra.mxu0 %v305
    %v1124 = vpop.f32.mrf.mxu0
    %v1125 = vadd.f32 0.0, %v1124
    %v1126 = vpop.f32.mrf.mxu0
    %v1127 = vpop.f32.mrf.mxu0
    %v1128 = vadd.f32 0.0, %v1127
    %v1129 = vpop.f32.mrf.mxu0
    %1130 = vmatprep.mubr.bf16.mxu0 %v309
    %1131 = vmatmul.mubr.bf16.gmra.mxu0 %v308
    %v1132 = vpop.f32.mrf.mxu0
    %v1133 = vadd.f32 0.0, %v1132
    %v1134 = vpop.f32.mrf.mxu0
    %v1135 = vpop.f32.mrf.mxu0
    %v1136 = vadd.f32 0.0, %v1135
    %v1137 = vpop.f32.mrf.mxu0
    %1138 = vmatprep.mubr.bf16.mxu0 %v312
    %1139 = vmatmul.mubr.bf16.gmra.mxu0 %v311
    %v1140 = vpop.f32.mrf.mxu0
    %v1141 = vadd.f32 0.0, %v1140
    %v1142 = vpop.f32.mrf.mxu0
    %v1143 = vpop.f32.mrf.mxu0
    %v1144 = vadd.f32 0.0, %v1143
    %v1145 = vpop.f32.mrf.mxu0
    %1146 = vmatprep.mubr.bf16.mxu0 %v315
    %1147 = vmatmul.mubr.bf16.gmra.mxu0 %v314
    %v1148 = vpop.f32.mrf.mxu0
    %v1149 = vadd.f32 0.0, %v1148
    %v1150 = vpop.f32.mrf.mxu0
    %v1151 = vpop.f32.mrf.mxu0
    %v1152 = vadd.f32 0.0, %v1151
    %v1153 = vpop.f32.mrf.mxu0
    %1154 = vmatprep.mubr.bf16.mxu0 %v318
    %1155 = vmatmul.mubr.bf16.gmra.mxu0 %v317
    %v1156 = vpop.f32.mrf.mxu0
    %v1157 = vadd.f32 0.0, %v1156
    %v1158 = vpop.f32.mrf.mxu0
    %v1159 = vpop.f32.mrf.mxu0
    %v1160 = vadd.f32 0.0, %v1159
    %v1161 = vpop.f32.mrf.mxu0
    %1162 = vmatprep.mubr.bf16.mxu0 %v321
    %1163 = vmatmul.mubr.bf16.gmra.mxu0 %v320
    %v1164 = vpop.f32.mrf.mxu0
    %v1165 = vadd.f32 0.0, %v1164
    %v1166 = vpop.f32.mrf.mxu0
    %v1167 = vpop.f32.mrf.mxu0
    %v1168 = vadd.f32 0.0, %v1167
    %v1169 = vpop.f32.mrf.mxu0
    %1170 = vmatprep.mubr.bf16.mxu0 %v324
    %1171 = vmatmul.mubr.bf16.gmra.mxu0 %v323
    %v1172 = vpop.f32.mrf.mxu0
    %v1173 = vadd.f32 0.0, %v1172
    %v1174 = vpop.f32.mrf.mxu0
    %v1175 = vpop.f32.mrf.mxu0
    %v1176 = vadd.f32 0.0, %v1175
    %v1177 = vpop.f32.mrf.mxu0
    %1178 = vmatprep.mubr.bf16.mxu0 %v327
    %1179 = vmatmul.mubr.bf16.gmra.mxu0 %v326
    %v1180 = vpop.f32.mrf.mxu0
    %v1181 = vadd.f32 0.0, %v1180
    %v1182 = vpop.f32.mrf.mxu0
    %v1183 = vpop.f32.mrf.mxu0
    %v1184 = vadd.f32 0.0, %v1183
    %v1185 = vpop.f32.mrf.mxu0
    %1186 = vmatprep.mubr.bf16.mxu0 %v330
    %1187 = vmatmul.mubr.bf16.gmra.mxu0 %v329
    %v1188 = vpop.f32.mrf.mxu0
    %v1189 = vadd.f32 0.0, %v1188
    %v1190 = vpop.f32.mrf.mxu0
    %v1191 = vpop.f32.mrf.mxu0
    %v1192 = vadd.f32 0.0, %v1191
    %v1193 = vpop.f32.mrf.mxu0
    %1194 = vmatprep.mubr.bf16.mxu0 %v333
    %1195 = vmatmul.mubr.bf16.gmra.mxu0 %v332
    %v1196 = vpop.f32.mrf.mxu0
    %v1197 = vadd.f32 0.0, %v1196
    %v1198 = vpop.f32.mrf.mxu0
    %v1199 = vpop.f32.mrf.mxu0
    %v1200 = vadd.f32 0.0, %v1199
    %v1201 = vpop.f32.mrf.mxu0
    %1202 = vmatprep.mubr.bf16.mxu0 %v336
    %1203 = vmatmul.mubr.bf16.gmra.mxu0 %v335
    %v1204 = vpop.f32.mrf.mxu0
    %v1205 = vadd.f32 0.0, %v1204
    %v1206 = vpop.f32.mrf.mxu0
    %v1207 = vpop.f32.mrf.mxu0
    %v1208 = vadd.f32 0.0, %v1207
    %v1209 = vpop.f32.mrf.mxu0
    %1210 = vmatprep.mubr.bf16.mxu0 %v339
    %1211 = vmatmul.mubr.bf16.gmra.mxu0 %v338
    %v1212 = vpop.f32.mrf.mxu0
    %v1213 = vadd.f32 0.0, %v1212
    %v1214 = vpop.f32.mrf.mxu0
    %v1215 = vpop.f32.mrf.mxu0
    %v1216 = vadd.f32 0.0, %v1215
    %v1217 = vpop.f32.mrf.mxu0
    %1218 = vmatprep.mubr.bf16.mxu0 %v342
    %1219 = vmatmul.mubr.bf16.gmra.mxu0 %v341
    %v1220 = vpop.f32.mrf.mxu0
    %v1221 = vadd.f32 0.0, %v1220
    %v1222 = vpop.f32.mrf.mxu0
    %v1223 = vpop.f32.mrf.mxu0
    %v1224 = vadd.f32 0.0, %v1223
    %v1225 = vpop.f32.mrf.mxu0
    %1226 = vmatprep.mubr.bf16.mxu0 %v345
    %1227 = vmatmul.mubr.bf16.gmra.mxu0 %v344
    %v1228 = vpop.f32.mrf.mxu0
    %v1229 = vadd.f32 0.0, %v1228
    %v1230 = vpop.f32.mrf.mxu0
    %v1231 = vpop.f32.mrf.mxu0
    %v1232 = vadd.f32 0.0, %v1231
    %v1233 = vpop.f32.mrf.mxu0
    %1234 = vmatprep.mubr.bf16.mxu0 %v348
    %1235 = vmatmul.mubr.bf16.gmra.mxu0 %v347
    %v1236 = vpop.f32.mrf.mxu0
    %v1237 = vadd.f32 0.0, %v1236
    %v1238 = vpop.f32.mrf.mxu0
    %v1239 = vpop.f32.mrf.mxu0
    %v1240 = vadd.f32 0.0, %v1239
    %v1241 = vpop.f32.mrf.mxu0
    %1242 = vdwg.mxu0
    %1243 = vmatprep.subr.bf16.mxu0 0
    %1244 = vmatpush1.bf16.msra.mxu0 %v1065
    %1245 = vmatprep.subr.bf16.mxu0 0
    %1246 = vmatpush1.bf16.msra.mxu0 %v1064
    %1247 = vmatprep.subr.bf16.mxu0 0
    %1248 = vmatpush1.bf16.msra.mxu0 %v1063
    %1249 = vmatprep.subr.bf16.mxu0 0
    %1250 = vmatpush1.bf16.msra.mxu0 %v1062
    %1251 = vmatprep.subr.bf16.mxu0 0
    %1252 = vmatpush1.bf16.msra.mxu0 %v1061
    %1253 = vmatprep.subr.bf16.mxu0 0
    %1254 = vmatpush1.bf16.msra.mxu0 %v1060
    %1255 = vmatprep.subr.bf16.mxu0 0
    %1256 = vmatpush1.bf16.msra.mxu0 %v1059
    %1257 = vmatprep.subr.bf16.mxu0 0
    %1258 = vmatpush1.bf16.msra.mxu0 %v1058
    %1259 = vmatprep.subr.bf16.mxu0 0
    %1260 = vmatpush2.bf16.msra.mxu0 0
    %1261 = vmatprep.subr.bf16.mxu0 0
    %1262 = vmatpush2.bf16.msra.mxu0 0
    %1263 = vmatprep.subr.bf16.mxu0 0
    %1264 = vmatpush2.bf16.msra.mxu0 0
    %1265 = vmatprep.subr.bf16.mxu0 0
    %1266 = vmatpush2.bf16.msra.mxu0 0
    %1267 = vmatprep.subr.bf16.mxu0 0
    %1268 = vmatpush2.bf16.msra.mxu0 0
    %1269 = vmatprep.subr.bf16.mxu0 0
    %1270 = vmatpush2.bf16.msra.mxu0 0
    %1271 = vmatprep.subr.bf16.mxu0 0
    %1272 = vmatpush2.bf16.msra.mxu0 0
    %1273 = vmatprep.subr.bf16.mxu0 0
    %1274 = vmatpush2.bf16.msra.mxu0 0
    %1275 = vmatprep.mubr.bf16.mxu0 0
    %1276 = vmatmul.mubr.bf16.gmra.mxu0 %v307
    %v1277 = vpop.f32.mrf.mxu0
    %v1278 = vadd.f32 %v1125, %v1277
    %v1279 = vpop.f32.mrf.mxu0
    %v1280 = vpop.f32.mrf.mxu0
    %v1281 = vadd.f32 %v1128, %v1280
    %v1282 = vpop.f32.mrf.mxu0
    %1283 = vmatprep.mubr.bf16.mxu0 0
    %1284 = vmatmul.mubr.bf16.gmra.mxu0 %v310
    %v1285 = vpop.f32.mrf.mxu0
    %v1286 = vadd.f32 %v1133, %v1285
    %v1287 = vpop.f32.mrf.mxu0
    %v1288 = vpop.f32.mrf.mxu0
    %v1289 = vadd.f32 %v1136, %v1288
    %v1290 = vpop.f32.mrf.mxu0
    %1291 = vmatprep.mubr.bf16.mxu0 0
    %1292 = vmatmul.mubr.bf16.gmra.mxu0 %v313
    %v1293 = vpop.f32.mrf.mxu0
    %v1294 = vadd.f32 %v1141, %v1293
    %v1295 = vpop.f32.mrf.mxu0
    %v1296 = vpop.f32.mrf.mxu0
    %v1297 = vadd.f32 %v1144, %v1296
    %v1298 = vpop.f32.mrf.mxu0
    %1299 = vmatprep.mubr.bf16.mxu0 0
    %1300 = vmatmul.mubr.bf16.gmra.mxu0 %v316
    %v1301 = vpop.f32.mrf.mxu0
    %v1302 = vadd.f32 %v1149, %v1301
    %v1303 = vpop.f32.mrf.mxu0
    %v1304 = vpop.f32.mrf.mxu0
    %v1305 = vadd.f32 %v1152, %v1304
    %v1306 = vpop.f32.mrf.mxu0
    %1307 = vmatprep.mubr.bf16.mxu0 0
    %1308 = vmatmul.mubr.bf16.gmra.mxu0 %v319
    %v1309 = vpop.f32.mrf.mxu0
    %v1310 = vadd.f32 %v1157, %v1309
    %v1311 = vpop.f32.mrf.mxu0
    %v1312 = vpop.f32.mrf.mxu0
    %v1313 = vadd.f32 %v1160, %v1312
    %v1314 = vpop.f32.mrf.mxu0
    %1315 = vmatprep.mubr.bf16.mxu0 0
    %1316 = vmatmul.mubr.bf16.gmra.mxu0 %v322
    %v1317 = vpop.f32.mrf.mxu0
    %v1318 = vadd.f32 %v1165, %v1317
    %v1319 = vpop.f32.mrf.mxu0
    %v1320 = vpop.f32.mrf.mxu0
    %v1321 = vadd.f32 %v1168, %v1320
    %v1322 = vpop.f32.mrf.mxu0
    %1323 = vmatprep.mubr.bf16.mxu0 0
    %1324 = vmatmul.mubr.bf16.gmra.mxu0 %v325
    %v1325 = vpop.f32.mrf.mxu0
    %v1326 = vadd.f32 %v1173, %v1325
    %v1327 = vpop.f32.mrf.mxu0
    %v1328 = vpop.f32.mrf.mxu0
    %v1329 = vadd.f32 %v1176, %v1328
    %v1330 = vpop.f32.mrf.mxu0
    %1331 = vmatprep.mubr.bf16.mxu0 0
    %1332 = vmatmul.mubr.bf16.gmra.mxu0 %v328
    %v1333 = vpop.f32.mrf.mxu0
    %v1334 = vadd.f32 %v1181, %v1333
    %v1335 = vpop.f32.mrf.mxu0
    %v1336 = vpop.f32.mrf.mxu0
    %v1337 = vadd.f32 %v1184, %v1336
    %v1338 = vpop.f32.mrf.mxu0
    %1339 = vmatprep.mubr.bf16.mxu0 0
    %1340 = vmatmul.mubr.bf16.gmra.mxu0 %v331
    %v1341 = vpop.f32.mrf.mxu0
    %v1342 = vadd.f32 %v1189, %v1341
    %v1343 = vpop.f32.mrf.mxu0
    %v1344 = vpop.f32.mrf.mxu0
    %v1345 = vadd.f32 %v1192, %v1344
    %v1346 = vpop.f32.mrf.mxu0
    %1347 = vmatprep.mubr.bf16.mxu0 0
    %1348 = vmatmul.mubr.bf16.gmra.mxu0 %v334
    %v1349 = vpop.f32.mrf.mxu0
    %v1350 = vadd.f32 %v1197, %v1349
    %v1351 = vpop.f32.mrf.mxu0
    %v1352 = vpop.f32.mrf.mxu0
    %v1353 = vadd.f32 %v1200, %v1352
    %v1354 = vpop.f32.mrf.mxu0
    %1355 = vmatprep.mubr.bf16.mxu0 0
    %1356 = vmatmul.mubr.bf16.gmra.mxu0 %v337
    %v1357 = vpop.f32.mrf.mxu0
    %v1358 = vadd.f32 %v1205, %v1357
    %v1359 = vpop.f32.mrf.mxu0
    %v1360 = vpop.f32.mrf.mxu0
    %v1361 = vadd.f32 %v1208, %v1360
    %v1362 = vpop.f32.mrf.mxu0
    %1363 = vmatprep.mubr.bf16.mxu0 0
    %1364 = vmatmul.mubr.bf16.gmra.mxu0 %v340
    %v1365 = vpop.f32.mrf.mxu0
    %v1366 = vadd.f32 %v1213, %v1365
    %v1367 = vpop.f32.mrf.mxu0
    %v1368 = vpop.f32.mrf.mxu0
    %v1369 = vadd.f32 %v1216, %v1368
    %v1370 = vpop.f32.mrf.mxu0
    %1371 = vmatprep.mubr.bf16.mxu0 0
    %1372 = vmatmul.mubr.bf16.gmra.mxu0 %v343
    %v1373 = vpop.f32.mrf.mxu0
    %v1374 = vadd.f32 %v1221, %v1373
    %v1375 = vpop.f32.mrf.mxu0
    %v1376 = vpop.f32.mrf.mxu0
    %v1377 = vadd.f32 %v1224, %v1376
    %v1378 = vpop.f32.mrf.mxu0
    %1379 = vmatprep.mubr.bf16.mxu0 0
    %1380 = vmatmul.mubr.bf16.gmra.mxu0 %v346
    %v1381 = vpop.f32.mrf.mxu0
    %v1382 = vadd.f32 %v1229, %v1381
    %v1383 = vpop.f32.mrf.mxu0
    %v1384 = vpop.f32.mrf.mxu0
    %v1385 = vadd.f32 %v1232, %v1384
    %v1386 = vpop.f32.mrf.mxu0
    %1387 = vmatprep.mubr.bf16.mxu0 0
    %1388 = vmatmul.mubr.bf16.gmra.mxu0 %v349
    %v1389 = vpop.f32.mrf.mxu0
    %v1390 = vadd.f32 %v1237, %v1389
    %v1391 = vpop.f32.mrf.mxu0
    %v1392 = vpop.f32.mrf.mxu0
    %v1393 = vadd.f32 %v1240, %v1392
    %v1394 = vpop.f32.mrf.mxu0
    %1395 = vdwg.mxu0
    %v1444 = vunpack.c.l.b16 %v351
    %v1445 = vunpack.c.l.b16 %v352
    %v1446 = vunpack.c.l.b16 %v353
    %v1447 = vunpack.c.l.b16 %v354
    %v1448 = vunpack.c.l.b16 %v355
    %v1449 = vunpack.c.l.b16 %v356
    %v1450 = vunpack.c.l.b16 %v357
    %v1451 = vunpack.c.l.b16 %v358
    %v1452 = vunpack.c.l.b16 %v359
    %v1453 = vunpack.c.l.b16 %v360
    %v1454 = vunpack.c.l.b16 %v361
    %v1455 = vunpack.c.l.b16 %v362
    %v1456 = vunpack.c.l.b16 %v363
    %v1457 = vunpack.c.l.b16 %v364
    %v1458 = vunpack.c.l.b16 %v365
    %v1459 = vunpack.c.l.b16 %v366
    %v1460 = vunpack.c.l.b16 %v367
    %v1461 = vunpack.c.l.b16 %v368
    %v1462 = vunpack.c.l.b16 %v369
    %v1463 = vunpack.c.l.b16 %v370
    %v1464 = vunpack.c.l.b16 %v371
    %v1465 = vunpack.c.l.b16 %v372
    %v1466 = vunpack.c.l.b16 %v373
    %v1467 = vunpack.c.l.b16 %v374
    %v1468 = vunpack.c.l.b16 %v375
    %v1469 = vunpack.c.l.b16 %v376
    %v1470 = vunpack.c.l.b16 %v377
    %v1471 = vunpack.c.l.b16 %v378
    %v1472 = vunpack.c.l.b16 %v379
    %v1473 = vunpack.c.l.b16 %v380
    %v1474 = vunpack.c.l.b16 %v381
    %v1475 = vunpack.c.l.b16 %v382
    %v1476 = vunpack.c.l.b16 %v383
    %v1477 = vunpack.c.l.b16 %v384
    %v1478 = vunpack.c.l.b16 %v385
    %v1479 = vunpack.c.l.b16 %v386
    %v1480 = vunpack.c.l.b16 %v387
    %v1481 = vunpack.c.l.b16 %v388
    %v1482 = vunpack.c.l.b16 %v389
    %v1483 = vunpack.c.l.b16 %v390
    %v1484 = vunpack.c.l.b16 %v391
    %v1485 = vunpack.c.l.b16 %v392
    %v1486 = vunpack.c.l.b16 %v393
    %v1487 = vunpack.c.l.b16 %v394
    %v1488 = vunpack.c.l.b16 %v395
    %v1489 = vunpack.c.l.b16 %v396
    %v1490 = vunpack.c.l.b16 %v397
    %v1491 = vunpack.c.l.b16 %v398
    %v1492 = vpack.c.b16 %v1445, %v1444
    %v1493 = vpack.c.b16 %v1447, %v1446
    %v1494 = vpack.c.b16 %v1449, %v1448
    %v1495 = vpack.c.b16 %v1451, %v1450
    %v1496 = vpack.c.b16 %v1453, %v1452
    %v1497 = vpack.c.b16 %v1455, %v1454
    %v1498 = vpack.c.b16 %v1457, %v1456
    %v1499 = vpack.c.b16 %v1459, %v1458
    %v1500 = vpack.c.b16 %v1461, %v1460
    %v1501 = vpack.c.b16 %v1463, %v1462
    %v1502 = vpack.c.b16 %v1465, %v1464
    %v1503 = vpack.c.b16 %v1467, %v1466
    %v1504 = vpack.c.b16 %v1469, %v1468
    %v1505 = vpack.c.b16 %v1471, %v1470
    %v1506 = vpack.c.b16 %v1473, %v1472
    %v1507 = vpack.c.b16 %v1475, %v1474
    %v1508 = vpack.c.b16 %v1477, %v1476
    %v1509 = vpack.c.b16 %v1479, %v1478
    %v1510 = vpack.c.b16 %v1481, %v1480
    %v1511 = vpack.c.b16 %v1483, %v1482
    %v1512 = vpack.c.b16 %v1485, %v1484
    %v1513 = vpack.c.b16 %v1487, %v1486
    %v1514 = vpack.c.b16 %v1489, %v1488
    %v1515 = vpack.c.b16 %v1491, %v1490
    %1540 = vmatprep.subr.bf16.mxu0 0
    %1541 = vmatpush1.bf16.msra.mxu0 %v1499
    %1542 = vmatprep.subr.bf16.mxu0 0
    %1543 = vmatpush1.bf16.msra.mxu0 %v1498
    %1544 = vmatprep.subr.bf16.mxu0 0
    %1545 = vmatpush1.bf16.msra.mxu0 %v1497
    %1546 = vmatprep.subr.bf16.mxu0 0
    %1547 = vmatpush1.bf16.msra.mxu0 %v1496
    %1548 = vmatprep.subr.bf16.mxu0 0
    %1549 = vmatpush1.bf16.msra.mxu0 %v1495
    %1550 = vmatprep.subr.bf16.mxu0 0
    %1551 = vmatpush1.bf16.msra.mxu0 %v1494
    %1552 = vmatprep.subr.bf16.mxu0 0
    %1553 = vmatpush1.bf16.msra.mxu0 %v1493
    %1554 = vmatprep.subr.bf16.mxu0 0
    %1555 = vmatpush1.bf16.msra.mxu0 %v1492
    %1556 = vmatprep.subr.bf16.mxu0 0
    %1557 = vmatpush2.bf16.msra.mxu0 %v1507
    %1558 = vmatprep.subr.bf16.mxu0 0
    %1559 = vmatpush2.bf16.msra.mxu0 %v1506
    %1560 = vmatprep.subr.bf16.mxu0 0
    %1561 = vmatpush2.bf16.msra.mxu0 %v1505
    %1562 = vmatprep.subr.bf16.mxu0 0
    %1563 = vmatpush2.bf16.msra.mxu0 %v1504
    %1564 = vmatprep.subr.bf16.mxu0 0
    %1565 = vmatpush2.bf16.msra.mxu0 %v1503
    %1566 = vmatprep.subr.bf16.mxu0 0
    %1567 = vmatpush2.bf16.msra.mxu0 %v1502
    %1568 = vmatprep.subr.bf16.mxu0 0
    %1569 = vmatpush2.bf16.msra.mxu0 %v1501
    %1570 = vmatprep.subr.bf16.mxu0 0
    %1571 = vmatpush2.bf16.msra.mxu0 %v1500
    %1572 = vmatprep.mubr.bf16.mxu0 %v303
    %1573 = vmatmul.mubr.bf16.gmra.mxu0 %v302
    %v1574 = vpop.f32.mrf.mxu0
    %v1575 = vadd.f32 0.0, %v1574
    %v1576 = vpop.f32.mrf.mxu0
    %v1577 = vpop.f32.mrf.mxu0
    %v1578 = vadd.f32 0.0, %v1577
    %v1579 = vpop.f32.mrf.mxu0
    %1580 = vmatprep.mubr.bf16.mxu0 %v306
    %1581 = vmatmul.mubr.bf16.gmra.mxu0 %v305
    %v1582 = vpop.f32.mrf.mxu0
    %v1583 = vadd.f32 %v779, %v1582
    %v1584 = vpop.f32.mrf.mxu0
    %v1585 = vpop.f32.mrf.mxu0
    %v1586 = vadd.f32 %v782, %v1585
    %v1587 = vpop.f32.mrf.mxu0
    %1588 = vmatprep.mubr.bf16.mxu0 %v309
    %1589 = vmatmul.mubr.bf16.gmra.mxu0 %v308
    %v1590 = vpop.f32.mrf.mxu0
    %v1591 = vadd.f32 %v787, %v1590
    %v1592 = vpop.f32.mrf.mxu0
    %v1593 = vpop.f32.mrf.mxu0
    %v1594 = vadd.f32 %v790, %v1593
    %v1595 = vpop.f32.mrf.mxu0
    %1596 = vmatprep.mubr.bf16.mxu0 %v312
    %1597 = vmatmul.mubr.bf16.gmra.mxu0 %v311
    %v1598 = vpop.f32.mrf.mxu0
    %v1599 = vadd.f32 %v795, %v1598
    %v1600 = vpop.f32.mrf.mxu0
    %v1601 = vpop.f32.mrf.mxu0
    %v1602 = vadd.f32 %v798, %v1601
    %v1603 = vpop.f32.mrf.mxu0
    %1604 = vmatprep.mubr.bf16.mxu0 %v315
    %1605 = vmatmul.mubr.bf16.gmra.mxu0 %v314
    %v1606 = vpop.f32.mrf.mxu0
    %v1607 = vadd.f32 %v803, %v1606
    %v1608 = vpop.f32.mrf.mxu0
    %v1609 = vpop.f32.mrf.mxu0
    %v1610 = vadd.f32 %v806, %v1609
    %v1611 = vpop.f32.mrf.mxu0
    %1612 = vmatprep.mubr.bf16.mxu0 %v318
    %1613 = vmatmul.mubr.bf16.gmra.mxu0 %v317
    %v1614 = vpop.f32.mrf.mxu0
    %v1615 = vadd.f32 %v811, %v1614
    %v1616 = vpop.f32.mrf.mxu0
    %v1617 = vpop.f32.mrf.mxu0
    %v1618 = vadd.f32 %v814, %v1617
    %v1619 = vpop.f32.mrf.mxu0
    %1620 = vmatprep.mubr.bf16.mxu0 %v321
    %1621 = vmatmul.mubr.bf16.gmra.mxu0 %v320
    %v1622 = vpop.f32.mrf.mxu0
    %v1623 = vadd.f32 %v819, %v1622
    %v1624 = vpop.f32.mrf.mxu0
    %v1625 = vpop.f32.mrf.mxu0
    %v1626 = vadd.f32 %v822, %v1625
    %v1627 = vpop.f32.mrf.mxu0
    %1628 = vmatprep.mubr.bf16.mxu0 %v324
    %1629 = vmatmul.mubr.bf16.gmra.mxu0 %v323
    %v1630 = vpop.f32.mrf.mxu0
    %v1631 = vadd.f32 %v827, %v1630
    %v1632 = vpop.f32.mrf.mxu0
    %v1633 = vpop.f32.mrf.mxu0
    %v1634 = vadd.f32 %v830, %v1633
    %v1635 = vpop.f32.mrf.mxu0
    %1636 = vmatprep.mubr.bf16.mxu0 %v327
    %1637 = vmatmul.mubr.bf16.gmra.mxu0 %v326
    %v1638 = vpop.f32.mrf.mxu0
    %v1639 = vadd.f32 %v835, %v1638
    %v1640 = vpop.f32.mrf.mxu0
    %v1641 = vpop.f32.mrf.mxu0
    %v1642 = vadd.f32 %v838, %v1641
    %v1643 = vpop.f32.mrf.mxu0
    %1644 = vmatprep.mubr.bf16.mxu0 %v330
    %1645 = vmatmul.mubr.bf16.gmra.mxu0 %v329
    %v1646 = vpop.f32.mrf.mxu0
    %v1647 = vadd.f32 %v843, %v1646
    %v1648 = vpop.f32.mrf.mxu0
    %v1649 = vpop.f32.mrf.mxu0
    %v1650 = vadd.f32 %v846, %v1649
    %v1651 = vpop.f32.mrf.mxu0
    %1652 = vmatprep.mubr.bf16.mxu0 %v333
    %1653 = vmatmul.mubr.bf16.gmra.mxu0 %v332
    %v1654 = vpop.f32.mrf.mxu0
    %v1655 = vadd.f32 %v851, %v1654
    %v1656 = vpop.f32.mrf.mxu0
    %v1657 = vpop.f32.mrf.mxu0
    %v1658 = vadd.f32 %v854, %v1657
    %v1659 = vpop.f32.mrf.mxu0
    %1660 = vmatprep.mubr.bf16.mxu0 %v336
    %1661 = vmatmul.mubr.bf16.gmra.mxu0 %v335
    %v1662 = vpop.f32.mrf.mxu0
    %v1663 = vadd.f32 %v859, %v1662
    %v1664 = vpop.f32.mrf.mxu0
    %v1665 = vpop.f32.mrf.mxu0
    %v1666 = vadd.f32 %v862, %v1665
    %v1667 = vpop.f32.mrf.mxu0
    %1668 = vmatprep.mubr.bf16.mxu0 %v339
    %1669 = vmatmul.mubr.bf16.gmra.mxu0 %v338
    %v1670 = vpop.f32.mrf.mxu0
    %v1671 = vadd.f32 %v867, %v1670
    %v1672 = vpop.f32.mrf.mxu0
    %v1673 = vpop.f32.mrf.mxu0
    %v1674 = vadd.f32 %v870, %v1673
    %v1675 = vpop.f32.mrf.mxu0
    %1676 = vmatprep.mubr.bf16.mxu0 %v342
    %1677 = vmatmul.mubr.bf16.gmra.mxu0 %v341
    %v1678 = vpop.f32.mrf.mxu0
    %v1679 = vadd.f32 %v875, %v1678
    %v1680 = vpop.f32.mrf.mxu0
    %v1681 = vpop.f32.mrf.mxu0
    %v1682 = vadd.f32 %v878, %v1681
    %v1683 = vpop.f32.mrf.mxu0
    %1684 = vmatprep.mubr.bf16.mxu0 %v345
    %1685 = vmatmul.mubr.bf16.gmra.mxu0 %v344
    %v1686 = vpop.f32.mrf.mxu0
    %v1687 = vadd.f32 %v883, %v1686
    %v1688 = vpop.f32.mrf.mxu0
    %v1689 = vpop.f32.mrf.mxu0
    %v1690 = vadd.f32 %v886, %v1689
    %v1691 = vpop.f32.mrf.mxu0
    %1692 = vmatprep.mubr.bf16.mxu0 %v348
    %1693 = vmatmul.mubr.bf16.gmra.mxu0 %v347
    %v1694 = vpop.f32.mrf.mxu0
    %v1695 = vadd.f32 %v891, %v1694
    %v1696 = vpop.f32.mrf.mxu0
    %v1697 = vpop.f32.mrf.mxu0
    %v1698 = vadd.f32 %v894, %v1697
    %v1699 = vpop.f32.mrf.mxu0
    %1700 = vdwg.mxu0
    %1701 = vmatprep.subr.bf16.mxu0 0
    %1702 = vmatpush1.bf16.msra.mxu0 %v1515
    %1703 = vmatprep.subr.bf16.mxu0 0
    %1704 = vmatpush1.bf16.msra.mxu0 %v1514
    %1705 = vmatprep.subr.bf16.mxu0 0
    %1706 = vmatpush1.bf16.msra.mxu0 %v1513
    %1707 = vmatprep.subr.bf16.mxu0 0
    %1708 = vmatpush1.bf16.msra.mxu0 %v1512
    %1709 = vmatprep.subr.bf16.mxu0 0
    %1710 = vmatpush1.bf16.msra.mxu0 %v1511
    %1711 = vmatprep.subr.bf16.mxu0 0
    %1712 = vmatpush1.bf16.msra.mxu0 %v1510
    %1713 = vmatprep.subr.bf16.mxu0 0
    %1714 = vmatpush1.bf16.msra.mxu0 %v1509
    %1715 = vmatprep.subr.bf16.mxu0 0
    %1716 = vmatpush1.bf16.msra.mxu0 %v1508
    %1717 = vmatprep.subr.bf16.mxu0 0
    %1718 = vmatpush2.bf16.msra.mxu0 0
    %1719 = vmatprep.subr.bf16.mxu0 0
    %1720 = vmatpush2.bf16.msra.mxu0 0
    %1721 = vmatprep.subr.bf16.mxu0 0
    %1722 = vmatpush2.bf16.msra.mxu0 0
    %1723 = vmatprep.subr.bf16.mxu0 0
    %1724 = vmatpush2.bf16.msra.mxu0 0
    %1725 = vmatprep.subr.bf16.mxu0 0
    %1726 = vmatpush2.bf16.msra.mxu0 0
    %1727 = vmatprep.subr.bf16.mxu0 0
    %1728 = vmatpush2.bf16.msra.mxu0 0
    %1729 = vmatprep.subr.bf16.mxu0 0
    %1730 = vmatpush2.bf16.msra.mxu0 0
    %1731 = vmatprep.subr.bf16.mxu0 0
    %1732 = vmatpush2.bf16.msra.mxu0 0
    %1733 = vmatprep.mubr.bf16.mxu0 0
    %1734 = vmatmul.mubr.bf16.gmra.mxu0 %v304
    %v1735 = vpop.f32.mrf.mxu0
    %v1736 = vadd.f32 %v1575, %v1735
    %v1737 = vpop.f32.mrf.mxu0
    %v1738 = vpop.f32.mrf.mxu0
    %v1739 = vadd.f32 %v1578, %v1738
    %v1740 = vpop.f32.mrf.mxu0
    %1741 = vmatprep.mubr.bf16.mxu0 0
    %1742 = vmatmul.mubr.bf16.gmra.mxu0 %v307
    %v1743 = vpop.f32.mrf.mxu0
    %v1744 = vadd.f32 %v1583, %v1743
    %v1745 = vpop.f32.mrf.mxu0
    %v1746 = vpop.f32.mrf.mxu0
    %v1747 = vadd.f32 %v1586, %v1746
    %v1748 = vpop.f32.mrf.mxu0
    %1749 = vmatprep.mubr.bf16.mxu0 0
    %1750 = vmatmul.mubr.bf16.gmra.mxu0 %v310
    %v1751 = vpop.f32.mrf.mxu0
    %v1752 = vadd.f32 %v1591, %v1751
    %v1753 = vpop.f32.mrf.mxu0
    %v1754 = vpop.f32.mrf.mxu0
    %v1755 = vadd.f32 %v1594, %v1754
    %v1756 = vpop.f32.mrf.mxu0
    %1757 = vmatprep.mubr.bf16.mxu0 0
    %1758 = vmatmul.mubr.bf16.gmra.mxu0 %v313
    %v1759 = vpop.f32.mrf.mxu0
    %v1760 = vadd.f32 %v1599, %v1759
    %v1761 = vpop.f32.mrf.mxu0
    %v1762 = vpop.f32.mrf.mxu0
    %v1763 = vadd.f32 %v1602, %v1762
    %v1764 = vpop.f32.mrf.mxu0
    %1765 = vmatprep.mubr.bf16.mxu0 0
    %1766 = vmatmul.mubr.bf16.gmra.mxu0 %v316
    %v1767 = vpop.f32.mrf.mxu0
    %v1768 = vadd.f32 %v1607, %v1767
    %v1769 = vpop.f32.mrf.mxu0
    %v1770 = vpop.f32.mrf.mxu0
    %v1771 = vadd.f32 %v1610, %v1770
    %v1772 = vpop.f32.mrf.mxu0
    %1773 = vmatprep.mubr.bf16.mxu0 0
    %1774 = vmatmul.mubr.bf16.gmra.mxu0 %v319
    %v1775 = vpop.f32.mrf.mxu0
    %v1776 = vadd.f32 %v1615, %v1775
    %v1777 = vpop.f32.mrf.mxu0
    %v1778 = vpop.f32.mrf.mxu0
    %v1779 = vadd.f32 %v1618, %v1778
    %v1780 = vpop.f32.mrf.mxu0
    %1781 = vmatprep.mubr.bf16.mxu0 0
    %1782 = vmatmul.mubr.bf16.gmra.mxu0 %v322
    %v1783 = vpop.f32.mrf.mxu0
    %v1784 = vadd.f32 %v1623, %v1783
    %v1785 = vpop.f32.mrf.mxu0
    %v1786 = vpop.f32.mrf.mxu0
    %v1787 = vadd.f32 %v1626, %v1786
    %v1788 = vpop.f32.mrf.mxu0
    %1789 = vmatprep.mubr.bf16.mxu0 0
    %1790 = vmatmul.mubr.bf16.gmra.mxu0 %v325
    %v1791 = vpop.f32.mrf.mxu0
    %v1792 = vadd.f32 %v1631, %v1791
    %v1793 = vpop.f32.mrf.mxu0
    %v1794 = vpop.f32.mrf.mxu0
    %v1795 = vadd.f32 %v1634, %v1794
    %v1796 = vpop.f32.mrf.mxu0
    %1797 = vmatprep.mubr.bf16.mxu0 0
    %1798 = vmatmul.mubr.bf16.gmra.mxu0 %v328
    %v1799 = vpop.f32.mrf.mxu0
    %v1800 = vadd.f32 %v1639, %v1799
    %v1801 = vpop.f32.mrf.mxu0
    %v1802 = vpop.f32.mrf.mxu0
    %v1803 = vadd.f32 %v1642, %v1802
    %v1804 = vpop.f32.mrf.mxu0
    %1805 = vmatprep.mubr.bf16.mxu0 0
    %1806 = vmatmul.mubr.bf16.gmra.mxu0 %v331
    %v1807 = vpop.f32.mrf.mxu0
    %v1808 = vadd.f32 %v1647, %v1807
    %v1809 = vpop.f32.mrf.mxu0
    %v1810 = vpop.f32.mrf.mxu0
    %v1811 = vadd.f32 %v1650, %v1810
    %v1812 = vpop.f32.mrf.mxu0
    %1813 = vmatprep.mubr.bf16.mxu0 0
    %1814 = vmatmul.mubr.bf16.gmra.mxu0 %v334
    %v1815 = vpop.f32.mrf.mxu0
    %v1816 = vadd.f32 %v1655, %v1815
    %v1817 = vpop.f32.mrf.mxu0
    %v1818 = vpop.f32.mrf.mxu0
    %v1819 = vadd.f32 %v1658, %v1818
    %v1820 = vpop.f32.mrf.mxu0
    %1821 = vmatprep.mubr.bf16.mxu0 0
    %1822 = vmatmul.mubr.bf16.gmra.mxu0 %v337
    %v1823 = vpop.f32.mrf.mxu0
    %v1824 = vadd.f32 %v1663, %v1823
    %v1825 = vpop.f32.mrf.mxu0
    %v1826 = vpop.f32.mrf.mxu0
    %v1827 = vadd.f32 %v1666, %v1826
    %v1828 = vpop.f32.mrf.mxu0
    %1829 = vmatprep.mubr.bf16.mxu0 0
    %1830 = vmatmul.mubr.bf16.gmra.mxu0 %v340
    %v1831 = vpop.f32.mrf.mxu0
    %v1832 = vadd.f32 %v1671, %v1831
    %v1833 = vpop.f32.mrf.mxu0
    %v1834 = vpop.f32.mrf.mxu0
    %v1835 = vadd.f32 %v1674, %v1834
    %v1836 = vpop.f32.mrf.mxu0
    %1837 = vmatprep.mubr.bf16.mxu0 0
    %1838 = vmatmul.mubr.bf16.gmra.mxu0 %v343
    %v1839 = vpop.f32.mrf.mxu0
    %v1840 = vadd.f32 %v1679, %v1839
    %v1841 = vpop.f32.mrf.mxu0
    %v1842 = vpop.f32.mrf.mxu0
    %v1843 = vadd.f32 %v1682, %v1842
    %v1844 = vpop.f32.mrf.mxu0
    %1845 = vmatprep.mubr.bf16.mxu0 0
    %1846 = vmatmul.mubr.bf16.gmra.mxu0 %v346
    %v1847 = vpop.f32.mrf.mxu0
    %v1848 = vadd.f32 %v1687, %v1847
    %v1849 = vpop.f32.mrf.mxu0
    %v1850 = vpop.f32.mrf.mxu0
    %v1851 = vadd.f32 %v1690, %v1850
    %v1852 = vpop.f32.mrf.mxu0
    %1853 = vmatprep.mubr.bf16.mxu0 0
    %1854 = vmatmul.mubr.bf16.gmra.mxu0 %v349
    %v1855 = vpop.f32.mrf.mxu0
    %v1856 = vadd.f32 %v1695, %v1855
    %v1857 = vpop.f32.mrf.mxu0
    %v1858 = vpop.f32.mrf.mxu0
    %v1859 = vadd.f32 %v1698, %v1858
    %v1860 = vpop.f32.mrf.mxu0
    %1861 = vdwg.mxu0
    %v1862 = vadd.f32 %v1736, %v1278
    %v1863 = vadd.f32 %v1739, %v1281
    %v1864 = vadd.f32 %v1744, %v1286
    %v1865 = vadd.f32 %v1747, %v1289
    %v1866 = vadd.f32 %v1752, %v1294
    %v1867 = vadd.f32 %v1755, %v1297
    %v1868 = vadd.f32 %v1760, %v1302
    %v1869 = vadd.f32 %v1763, %v1305
    %v1870 = vadd.f32 %v1768, %v1310
    %v1871 = vadd.f32 %v1771, %v1313
    %v1872 = vadd.f32 %v1776, %v1318
    %v1873 = vadd.f32 %v1779, %v1321
    %v1874 = vadd.f32 %v1784, %v1326
    %v1875 = vadd.f32 %v1787, %v1329
    %v1876 = vadd.f32 %v1792, %v1334
    %v1877 = vadd.f32 %v1795, %v1337
    %v1878 = vadd.f32 %v1800, %v1342
    %v1879 = vadd.f32 %v1803, %v1345
    %v1880 = vadd.f32 %v1808, %v1350
    %v1881 = vadd.f32 %v1811, %v1353
    %v1882 = vadd.f32 %v1816, %v1358
    %v1883 = vadd.f32 %v1819, %v1361
    %v1884 = vadd.f32 %v1824, %v1366
    %v1885 = vadd.f32 %v1827, %v1369
    %v1886 = vadd.f32 %v1832, %v1374
    %v1887 = vadd.f32 %v1835, %v1377
    %v1888 = vadd.f32 %v1840, %v1382
    %v1889 = vadd.f32 %v1843, %v1385
    %v1890 = vadd.f32 %v1848, %v1390
    %v1891 = vadd.f32 %v1851, %v1393
    %v1892 = vadd.f32 %v1856, 0.0
    %v1893 = vadd.f32 %v1859, 0.0
    %v1894 = vadd.f32 %v1862, %v1863
    %v1895 = vadd.f32 %v1894, %v1864
    %v1896 = vadd.f32 %v1895, %v1865
    %v1897 = vadd.f32 %v1896, %v1866
    %v1898 = vadd.f32 %v1897, %v1867
    %v1899 = vadd.f32 %v1898, %v1868
    %v1900 = vadd.f32 %v1899, %v1869
    %v1901 = vadd.f32 %v1900, %v1870
    %v1902 = vadd.f32 %v1901, %v1871
    %v1903 = vadd.f32 %v1902, %v1872
    %v1904 = vadd.f32 %v1903, %v1873
    %v1905 = vadd.f32 %v1904, %v1874
    %v1906 = vadd.f32 %v1905, %v1875
    %v1907 = vadd.f32 %v1906, %v1876
    %v1908 = vadd.f32 %v1907, %v1877
    %v1909 = vadd.f32 %v1908, %v1878
    %v1910 = vadd.f32 %v1909, %v1879
    %v1911 = vadd.f32 %v1910, %v1880
    %v1912 = vadd.f32 %v1911, %v1881
    %v1913 = vadd.f32 %v1912, %v1882
    %v1914 = vadd.f32 %v1913, %v1883
    %v1915 = vadd.f32 %v1914, %v1884
    %v1916 = vadd.f32 %v1915, %v1885
    %v1917 = vadd.f32 %v1916, %v1886
    %v1918 = vadd.f32 %v1917, %v1887
    %v1919 = vadd.f32 %v1918, %v1888
    %v1920 = vadd.f32 %v1919, %v1889
    %v1921 = vadd.f32 %v1920, %v1890
    %v1922 = vadd.f32 %v1921, %v1891
    %v1923 = vadd.f32 %v1922, %v1892
    %v1924 = vadd.f32 %v1923, %v1893
    %v1925 = vrot.slane %v1924, 4
    %v1926 = vadd.f32 %v1924, %v1925
    %v1927 = vrot.slane %v1926, 2
    %v1928 = vadd.f32 %v1926, %v1927
    %v1929 = vrot.slane %v1928, 1
    %v1930 = vadd.f32 %v1928, %v1929
    %v1931 = vadd.f32 %v1930, 0.0
    %v1932 = vmul.f32 %v1862, %v1862
    %v1933 = vmul.f32 %v1863, %v1863
    %v1934 = vmul.f32 %v1864, %v1864
    %v1935 = vmul.f32 %v1865, %v1865
    %v1936 = vmul.f32 %v1866, %v1866
    %v1937 = vmul.f32 %v1867, %v1867
    %v1938 = vmul.f32 %v1868, %v1868
    %v1939 = vmul.f32 %v1869, %v1869
    %v1940 = vmul.f32 %v1870, %v1870
    %v1941 = vmul.f32 %v1871, %v1871
    %v1942 = vmul.f32 %v1872, %v1872
    %v1943 = vmul.f32 %v1873, %v1873
    %v1944 = vmul.f32 %v1874, %v1874
    %v1945 = vmul.f32 %v1875, %v1875
    %v1946 = vmul.f32 %v1876, %v1876
    %v1947 = vmul.f32 %v1877, %v1877
    %v1948 = vmul.f32 %v1878, %v1878
    %v1949 = vmul.f32 %v1879, %v1879
    %v1950 = vmul.f32 %v1880, %v1880
    %v1951 = vmul.f32 %v1881, %v1881
    %v1952 = vmul.f32 %v1882, %v1882
    %v1953 = vmul.f32 %v1883, %v1883
    %v1954 = vmul.f32 %v1884, %v1884
    %v1955 = vmul.f32 %v1885, %v1885
    %v1956 = vmul.f32 %v1886, %v1886
    %v1957 = vmul.f32 %v1887, %v1887
    %v1958 = vmul.f32 %v1888, %v1888
    %v1959 = vmul.f32 %v1889, %v1889
    %v1960 = vmul.f32 %v1890, %v1890
    %v1961 = vmul.f32 %v1891, %v1891
    %v1962 = vmul.f32 %v1892, %v1892
    %v1963 = vmul.f32 %v1893, %v1893
    %v1964 = vadd.f32 %v1932, %v1933
    %v1965 = vadd.f32 %v1964, %v1934
    %v1966 = vadd.f32 %v1965, %v1935
    %v1967 = vadd.f32 %v1966, %v1936
    %v1968 = vadd.f32 %v1967, %v1937
    %v1969 = vadd.f32 %v1968, %v1938
    %v1970 = vadd.f32 %v1969, %v1939
    %v1971 = vadd.f32 %v1970, %v1940
    %v1972 = vadd.f32 %v1971, %v1941
    %v1973 = vadd.f32 %v1972, %v1942
    %v1974 = vadd.f32 %v1973, %v1943
    %v1975 = vadd.f32 %v1974, %v1944
    %v1976 = vadd.f32 %v1975, %v1945
    %v1977 = vadd.f32 %v1976, %v1946
    %v1978 = vadd.f32 %v1977, %v1947
    %v1979 = vadd.f32 %v1978, %v1948
    %v1980 = vadd.f32 %v1979, %v1949
    %v1981 = vadd.f32 %v1980, %v1950
    %v1982 = vadd.f32 %v1981, %v1951
    %v1983 = vadd.f32 %v1982, %v1952
    %v1984 = vadd.f32 %v1983, %v1953
    %v1985 = vadd.f32 %v1984, %v1954
    %v1986 = vadd.f32 %v1985, %v1955
    %v1987 = vadd.f32 %v1986, %v1956
    %v1988 = vadd.f32 %v1987, %v1957
    %v1989 = vadd.f32 %v1988, %v1958
    %v1990 = vadd.f32 %v1989, %v1959
    %v1991 = vadd.f32 %v1990, %v1960
    %v1992 = vadd.f32 %v1991, %v1961
    %v1993 = vadd.f32 %v1992, %v1962
    %v1994 = vadd.f32 %v1993, %v1963
    %v1995 = vrot.slane %v1994, 4
    %v1996 = vadd.f32 %v1994, %v1995
    %v1997 = vrot.slane %v1996, 2
    %v1998 = vadd.f32 %v1996, %v1997
    %v1999 = vrot.slane %v1998, 1
    %v2000 = vadd.f32 %v1998, %v1999
    %v2001 = vadd.f32 %v2000, 0.0
    %v2002 = vpack.c.bf16 %v1863, %v1862
    %v2003 = vpack.c.bf16 %v1865, %v1864
    %v2004 = vpack.c.bf16 %v1867, %v1866
    %v2005 = vpack.c.bf16 %v1869, %v1868
    %v2006 = vpack.c.bf16 %v1871, %v1870
    %v2007 = vpack.c.bf16 %v1873, %v1872
    %v2008 = vpack.c.bf16 %v1875, %v1874
    %v2009 = vpack.c.bf16 %v1877, %v1876
    %v2010 = vpack.c.bf16 %v1879, %v1878
    %v2011 = vpack.c.bf16 %v1881, %v1880
    %v2012 = vpack.c.bf16 %v1883, %v1882
    %v2013 = vpack.c.bf16 %v1885, %v1884
    %v2014 = vpack.c.bf16 %v1887, %v1886
    %v2015 = vpack.c.bf16 %v1889, %v1888
    %v2016 = vpack.c.bf16 %v1891, %v1890
    %v2017 = vpack.c.bf16 %v1893, %v1892
    %v2034 = vunpack.c.l.b16 %v2002
    %v2035 = vunpack.c.h.b16 %v2002
    %v2036 = vunpack.c.l.b16 %v2003
    %v2037 = vunpack.c.h.b16 %v2003
    %v2038 = vunpack.c.l.b16 %v2004
    %v2039 = vunpack.c.h.b16 %v2004
    %v2040 = vunpack.c.l.b16 %v2005
    %v2041 = vunpack.c.h.b16 %v2005
    %v2042 = vunpack.c.l.b16 %v2006
    %v2043 = vunpack.c.h.b16 %v2006
    %v2044 = vunpack.c.l.b16 %v2007
    %v2045 = vunpack.c.h.b16 %v2007
    %v2046 = vunpack.c.l.b16 %v2008
    %v2047 = vunpack.c.h.b16 %v2008
    %v2048 = vunpack.c.l.b16 %v2009
    %v2049 = vunpack.c.h.b16 %v2009
    %v2050 = vunpack.c.l.b16 %v2010
    %v2051 = vunpack.c.h.b16 %v2010
    %v2052 = vunpack.c.l.b16 %v2011
    %v2053 = vunpack.c.h.b16 %v2011
    %v2054 = vunpack.c.l.b16 %v2012
    %v2055 = vunpack.c.h.b16 %v2012
    %v2056 = vunpack.c.l.b16 %v2013
    %v2057 = vunpack.c.h.b16 %v2013
    %v2058 = vunpack.c.l.b16 %v2014
    %v2059 = vunpack.c.h.b16 %v2014
    %v2060 = vunpack.c.l.b16 %v2015
    %v2061 = vunpack.c.h.b16 %v2015
    %v2062 = vunpack.c.l.b16 %v2016
    %v2063 = vunpack.c.h.b16 %v2016
    %v2064 = vunpack.c.l.b16 %v2017
    %v2065 = vunpack.c.h.b16 %v2017
    %v2066 = vpack.c.b16 %v2034, %v2034
    %v2067 = vpack.c.b16 %v2035, %v2035
    %v2068 = vpack.c.b16 %v2036, %v2036
    %v2069 = vpack.c.b16 %v2037, %v2037
    %v2070 = vpack.c.b16 %v2038, %v2038
    %v2071 = vpack.c.b16 %v2039, %v2039
    %v2072 = vpack.c.b16 %v2040, %v2040
    %v2073 = vpack.c.b16 %v2041, %v2041
    %v2074 = vpack.c.b16 %v2042, %v2042
    %v2075 = vpack.c.b16 %v2043, %v2043
    %v2076 = vpack.c.b16 %v2044, %v2044
    %v2077 = vpack.c.b16 %v2045, %v2045
    %v2078 = vpack.c.b16 %v2046, %v2046
    %v2079 = vpack.c.b16 %v2047, %v2047
    %v2080 = vpack.c.b16 %v2048, %v2048
    %v2081 = vpack.c.b16 %v2049, %v2049
    %v2082 = vpack.c.b16 %v2050, %v2050
    %v2083 = vpack.c.b16 %v2051, %v2051
    %v2084 = vpack.c.b16 %v2052, %v2052
    %v2085 = vpack.c.b16 %v2053, %v2053
    %v2086 = vpack.c.b16 %v2054, %v2054
    %v2087 = vpack.c.b16 %v2055, %v2055
    %v2088 = vpack.c.b16 %v2056, %v2056
    %v2089 = vpack.c.b16 %v2057, %v2057
    %v2090 = vpack.c.b16 %v2058, %v2058
    %v2091 = vpack.c.b16 %v2059, %v2059
    %v2092 = vpack.c.b16 %v2060, %v2060
    %v2093 = vpack.c.b16 %v2061, %v2061
    %v2094 = vpack.c.b16 %v2062, %v2062
    %v2095 = vpack.c.b16 %v2063, %v2063
    %v2096 = vpack.c.b16 %v2064, %v2064
    %v2097 = vpack.c.b16 %v2065, %v2065
    %2130 = vst [vmem:[#allocation2] sm:$0xf] %v2066
    %2131 = vst [vmem:[#allocation2 + $0x4] sm:$0xf] %v2067
    %2132 = vst [vmem:[#allocation2 + $0x8] sm:$0xf] %v2068
    %2133 = vst [vmem:[#allocation2 + $0xc] sm:$0xf] %v2069
    %2134 = vst [vmem:[#allocation2 + $0x10] sm:$0xf] %v2070
    %2135 = vst [vmem:[#allocation2 + $0x14] sm:$0xf] %v2071
    %2136 = vst [vmem:[#allocation2 + $0x18] sm:$0xf] %v2072
    %2137 = vst [vmem:[#allocation2 + $0x1c] sm:$0xf] %v2073
    %2138 = vst [vmem:[#allocation2 + $0x20] sm:$0xf] %v2074
    %2139 = vst [vmem:[#allocation2 + $0x24] sm:$0xf] %v2075
    %2140 = vst [vmem:[#allocation2 + $0x28] sm:$0xf] %v2076
    %2141 = vst [vmem:[#allocation2 + $0x2c] sm:$0xf] %v2077
    %2142 = vst [vmem:[#allocation2 + $0x30] sm:$0xf] %v2078
    %2143 = vst [vmem:[#allocation2 + $0x34] sm:$0xf] %v2079
    %2144 = vst [vmem:[#allocation2 + $0x38] sm:$0xf] %v2080
    %2145 = vst [vmem:[#allocation2 + $0x3c] sm:$0xf] %v2081
    %2146 = vst [vmem:[#allocation2 + $0x40] sm:$0xf] %v2082
    %2147 = vst [vmem:[#allocation2 + $0x44] sm:$0xf] %v2083
    %2148 = vst [vmem:[#allocation2 + $0x48] sm:$0xf] %v2084
    %2149 = vst [vmem:[#allocation2 + $0x4c] sm:$0xf] %v2085
    %2150 = vst [vmem:[#allocation2 + $0x50] sm:$0xf] %v2086
    %2151 = vst [vmem:[#allocation2 + $0x54] sm:$0xf] %v2087
    %2152 = vst [vmem:[#allocation2 + $0x58] sm:$0xf] %v2088
    %2153 = vst [vmem:[#allocation2 + $0x5c] sm:$0xf] %v2089
    %2154 = vst [vmem:[#allocation2 + $0x60] sm:$0xf] %v2090
    %2155 = vst [vmem:[#allocation2 + $0x64] sm:$0xf] %v2091
    %2156 = vst [vmem:[#allocation2 + $0x68] sm:$0xf] %v2092
    %2157 = vst [vmem:[#allocation2 + $0x6c] sm:$0xf] %v2093
    %2158 = vst [vmem:[#allocation2 + $0x70] sm:$0xf] %v2094
    %2159 = vst [vmem:[#allocation2 + $0x74] sm:$0xf] %v2095
    %2160 = vst [vmem:[#allocation2 + $0x78] sm:$0xf] %v2096
    %2161 = vst [vmem:[#allocation2 + $0x7c] sm:$0xf] %v2097
    %s2162 = scalar_lea.vmem [#allocation3], 256
    %v2163 = vld [vmem:[%s2162] sm:$0xff]
    %v2164 = vld [vmem:[%s2162 + $0x8] sm:$0xff]
    %v2165 = vld [vmem:[%s2162 + $0x10] sm:$0xff]
    %v2166 = vld [vmem:[%s2162 + $0x18] sm:$0xff]
    %v2167 = vld [vmem:[%s2162 + $0x20] sm:$0xff]
    %v2168 = vld [vmem:[%s2162 + $0x28] sm:$0xff]
    %v2169 = vld [vmem:[%s2162 + $0x30] sm:$0xff]
    %v2170 = vld [vmem:[%s2162 + $0x38] sm:$0xff]
    %v2171 = vld [vmem:[%s2162 + $0x40] sm:$0xff]
    %v2172 = vld [vmem:[%s2162 + $0x48] sm:$0xff]
    %v2173 = vld [vmem:[%s2162 + $0x50] sm:$0xff]
    %v2174 = vld [vmem:[%s2162 + $0x58] sm:$0xff]
    %v2175 = vld [vmem:[%s2162 + $0x60] sm:$0xff]
    %v2176 = vld [vmem:[%s2162 + $0x68] sm:$0xff]
    %v2177 = vld [vmem:[%s2162 + $0x70] sm:$0xff]
    %v2178 = vld [vmem:[%s2162 + $0x78] sm:$0xff]
    %v2179 = vld [vmem:[%s2162 + $0x80] sm:$0xff]
    %v2180 = vld [vmem:[%s2162 + $0x88] sm:$0xff]
    %v2181 = vld [vmem:[%s2162 + $0x90] sm:$0xff]
    %v2182 = vld [vmem:[%s2162 + $0x98] sm:$0xff]
    %v2183 = vld [vmem:[%s2162 + $0xa0] sm:$0xff]
    %v2184 = vld [vmem:[%s2162 + $0xa8] sm:$0xff]
    %v2185 = vld [vmem:[%s2162 + $0xb0] sm:$0xff]
    %v2186 = vld [vmem:[%s2162 + $0xb8] sm:$0xff]
    %v2187 = vld [vmem:[%s2162 + $0xc0] sm:$0xff]
    %v2188 = vld [vmem:[%s2162 + $0xc8] sm:$0xff]
    %v2189 = vld [vmem:[%s2162 + $0xd0] sm:$0xff]
    %v2190 = vld [vmem:[%s2162 + $0xd8] sm:$0xff]
    %v2191 = vld [vmem:[%s2162 + $0xe0] sm:$0xff]
    %v2192 = vld [vmem:[%s2162 + $0xe8] sm:$0xff]
    %v2193 = vld [vmem:[%s2162 + $0xf0] sm:$0xff]
    %v2194 = vld [vmem:[%s2162 + $0xf8] sm:$0xff]
    %v2195 = vrot.slane %v2163, 7
    %v2196 = vrot.slane %v2164, 7
    %v2197 = vrot.slane %v2165, 7
    %v2198 = vrot.slane %v2166, 7
    %v2199 = vrot.slane %v2167, 7
    %v2200 = vrot.slane %v2168, 7
    %v2201 = vrot.slane %v2169, 7
    %v2202 = vrot.slane %v2170, 7
    %v2203 = vrot.slane %v2171, 7
    %v2204 = vrot.slane %v2172, 7
    %v2205 = vrot.slane %v2173, 7
    %v2206 = vrot.slane %v2174, 7
    %v2207 = vrot.slane %v2175, 7
    %v2208 = vrot.slane %v2176, 7
    %v2209 = vrot.slane %v2177, 7
    %v2210 = vrot.slane %v2178, 7
    %v2211 = vrot.slane %v2179, 7
    %v2212 = vrot.slane %v2180, 7
    %v2213 = vrot.slane %v2181, 7
    %v2214 = vrot.slane %v2182, 7
    %v2215 = vrot.slane %v2183, 7
    %v2216 = vrot.slane %v2184, 7
    %v2217 = vrot.slane %v2185, 7
    %v2218 = vrot.slane %v2186, 7
    %v2219 = vrot.slane %v2187, 7
    %v2220 = vrot.slane %v2188, 7
    %v2221 = vrot.slane %v2189, 7
    %v2222 = vrot.slane %v2190, 7
    %v2223 = vrot.slane %v2191, 7
    %v2224 = vrot.slane %v2192, 7
    %v2225 = vrot.slane %v2193, 7
    %v2226 = vrot.slane %v2194, 7
    %v2227 = vsel %vm140, %v2225, %v2226
    %v2228 = vsel %vm140, %v2224, %v2225
    %v2229 = vsel %vm140, %v2223, %v2224
    %v2230 = vsel %vm140, %v2222, %v2223
    %v2231 = vsel %vm140, %v2221, %v2222
    %v2232 = vsel %vm140, %v2220, %v2221
    %v2233 = vsel %vm140, %v2219, %v2220
    %v2234 = vsel %vm140, %v2218, %v2219
    %v2235 = vsel %vm140, %v2217, %v2218
    %v2236 = vsel %vm140, %v2216, %v2217
    %v2237 = vsel %vm140, %v2215, %v2216
    %v2238 = vsel %vm140, %v2214, %v2215
    %v2239 = vsel %vm140, %v2213, %v2214
    %v2240 = vsel %vm140, %v2212, %v2213
    %v2241 = vsel %vm140, %v2211, %v2212
    %v2242 = vsel %vm140, %v2210, %v2211
    %v2243 = vsel %vm140, %v2209, %v2210
    %v2244 = vsel %vm140, %v2208, %v2209
    %v2245 = vsel %vm140, %v2207, %v2208
    %v2246 = vsel %vm140, %v2206, %v2207
    %v2247 = vsel %vm140, %v2205, %v2206
    %v2248 = vsel %vm140, %v2204, %v2205
    %v2249 = vsel %vm140, %v2203, %v2204
    %v2250 = vsel %vm140, %v2202, %v2203
    %v2251 = vsel %vm140, %v2201, %v2202
    %v2252 = vsel %vm140, %v2200, %v2201
    %v2253 = vsel %vm140, %v2199, %v2200
    %v2254 = vsel %vm140, %v2198, %v2199
    %v2255 = vsel %vm140, %v2197, %v2198
    %v2256 = vsel %vm140, %v2196, %v2197
    %v2257 = vsel %vm140, %v2195, %v2196
    %v2258 = vsel %vm140, %v2226, %v2195
    %v2259 = vsel %vm72, %v2258, 0.0
    %v2260 = vsel %vm73, %v2257, 0.0
    %v2261 = vsel %vm72, %v2256, 0.0
    %v2262 = vsel %vm73, %v2255, 0.0
    %v2263 = vsel %vm72, %v2254, 0.0
    %v2264 = vsel %vm73, %v2253, 0.0
    %v2265 = vsel %vm72, %v2252, 0.0
    %v2266 = vsel %vm73, %v2251, 0.0
    %v2267 = vsel %vm72, %v2250, 0.0
    %v2268 = vsel %vm73, %v2249, 0.0
    %v2269 = vsel %vm72, %v2248, 0.0
    %v2270 = vsel %vm73, %v2247, 0.0
    %v2271 = vsel %vm72, %v2246, 0.0
    %v2272 = vsel %vm73, %v2245, 0.0
    %v2273 = vsel %vm72, %v2244, 0.0
    %v2274 = vsel %vm73, %v2243, 0.0
    %v2275 = vsel %vm72, %v2242, 0.0
    %v2276 = vsel %vm73, %v2241, 0.0
    %v2277 = vsel %vm72, %v2240, 0.0
    %v2278 = vsel %vm73, %v2239, 0.0
    %v2279 = vsel %vm72, %v2238, 0.0
    %v2280 = vsel %vm73, %v2237, 0.0
    %v2281 = vsel %vm72, %v2236, 0.0
    %v2282 = vsel %vm73, %v2235, 0.0
    %v2283 = vsel %vm72, %v2234, 0.0
    %v2284 = vsel %vm73, %v2233, 0.0
    %v2285 = vsel %vm72, %v2232, 0.0
    %v2286 = vsel %vm73, %v2231, 0.0
    %v2287 = vsel %vm72, %v2230, 0.0
    %v2288 = vsel %vm73, %v2229, 0.0
    %v2289 = vsel %vm72, %v2228, 0.0
    %v2290 = vsel %vm73, %v2227, 0.0
    %v2291 = vrot.slane %v2163, 1
    %v2292 = vrot.slane %v2164, 1
    %v2293 = vrot.slane %v2165, 1
    %v2294 = vrot.slane %v2166, 1
    %v2295 = vrot.slane %v2167, 1
    %v2296 = vrot.slane %v2168, 1
    %v2297 = vrot.slane %v2169, 1
    %v2298 = vrot.slane %v2170, 1
    %v2299 = vrot.slane %v2171, 1
    %v2300 = vrot.slane %v2172, 1
    %v2301 = vrot.slane %v2173, 1
    %v2302 = vrot.slane %v2174, 1
    %v2303 = vrot.slane %v2175, 1
    %v2304 = vrot.slane %v2176, 1
    %v2305 = vrot.slane %v2177, 1
    %v2306 = vrot.slane %v2178, 1
    %v2307 = vrot.slane %v2179, 1
    %v2308 = vrot.slane %v2180, 1
    %v2309 = vrot.slane %v2181, 1
    %v2310 = vrot.slane %v2182, 1
    %v2311 = vrot.slane %v2183, 1
    %v2312 = vrot.slane %v2184, 1
    %v2313 = vrot.slane %v2185, 1
    %v2314 = vrot.slane %v2186, 1
    %v2315 = vrot.slane %v2187, 1
    %v2316 = vrot.slane %v2188, 1
    %v2317 = vrot.slane %v2189, 1
    %v2318 = vrot.slane %v2190, 1
    %v2319 = vrot.slane %v2191, 1
    %v2320 = vrot.slane %v2192, 1
    %v2321 = vrot.slane %v2193, 1
    %v2322 = vrot.slane %v2194, 1
    %v2323 = vsel %vm237, %v2321, %v2322
    %v2324 = vsel %vm237, %v2320, %v2321
    %v2325 = vsel %vm237, %v2319, %v2320
    %v2326 = vsel %vm237, %v2318, %v2319
    %v2327 = vsel %vm237, %v2317, %v2318
    %v2328 = vsel %vm237, %v2316, %v2317
    %v2329 = vsel %vm237, %v2315, %v2316
    %v2330 = vsel %vm237, %v2314, %v2315
    %v2331 = vsel %vm237, %v2313, %v2314
    %v2332 = vsel %vm237, %v2312, %v2313
    %v2333 = vsel %vm237, %v2311, %v2312
    %v2334 = vsel %vm237, %v2310, %v2311
    %v2335 = vsel %vm237, %v2309, %v2310
    %v2336 = vsel %vm237, %v2308, %v2309
    %v2337 = vsel %vm237, %v2307, %v2308
    %v2338 = vsel %vm237, %v2306, %v2307
    %v2339 = vsel %vm237, %v2305, %v2306
    %v2340 = vsel %vm237, %v2304, %v2305
    %v2341 = vsel %vm237, %v2303, %v2304
    %v2342 = vsel %vm237, %v2302, %v2303
    %v2343 = vsel %vm237, %v2301, %v2302
    %v2344 = vsel %vm237, %v2300, %v2301
    %v2345 = vsel %vm237, %v2299, %v2300
    %v2346 = vsel %vm237, %v2298, %v2299
    %v2347 = vsel %vm237, %v2297, %v2298
    %v2348 = vsel %vm237, %v2296, %v2297
    %v2349 = vsel %vm237, %v2295, %v2296
    %v2350 = vsel %vm237, %v2294, %v2295
    %v2351 = vsel %vm237, %v2293, %v2294
    %v2352 = vsel %vm237, %v2292, %v2293
    %v2353 = vsel %vm237, %v2291, %v2292
    %v2354 = vsel %vm237, %v2322, %v2291
    %v2355 = vsel %vm74, %v2353, 0.0
    %v2356 = vsel %vm75, %v2352, 0.0
    %v2357 = vsel %vm74, %v2351, 0.0
    %v2358 = vsel %vm75, %v2350, 0.0
    %v2359 = vsel %vm74, %v2349, 0.0
    %v2360 = vsel %vm75, %v2348, 0.0
    %v2361 = vsel %vm74, %v2347, 0.0
    %v2362 = vsel %vm75, %v2346, 0.0
    %v2363 = vsel %vm74, %v2345, 0.0
    %v2364 = vsel %vm75, %v2344, 0.0
    %v2365 = vsel %vm74, %v2343, 0.0
    %v2366 = vsel %vm75, %v2342, 0.0
    %v2367 = vsel %vm74, %v2341, 0.0
    %v2368 = vsel %vm75, %v2340, 0.0
    %v2369 = vsel %vm74, %v2339, 0.0
    %v2370 = vsel %vm75, %v2338, 0.0
    %v2371 = vsel %vm74, %v2337, 0.0
    %v2372 = vsel %vm75, %v2336, 0.0
    %v2373 = vsel %vm74, %v2335, 0.0
    %v2374 = vsel %vm75, %v2334, 0.0
    %v2375 = vsel %vm74, %v2333, 0.0
    %v2376 = vsel %vm75, %v2332, 0.0
    %v2377 = vsel %vm74, %v2331, 0.0
    %v2378 = vsel %vm75, %v2330, 0.0
    %v2379 = vsel %vm74, %v2329, 0.0
    %v2380 = vsel %vm75, %v2328, 0.0
    %v2381 = vsel %vm74, %v2327, 0.0
    %v2382 = vsel %vm75, %v2326, 0.0
    %v2383 = vsel %vm74, %v2325, 0.0
    %v2384 = vsel %vm75, %v2324, 0.0
    %v2385 = vsel %vm74, %v2323, 0.0
    %v2386 = vsel %vm75, %v2354, 0.0
    %v2387 = vpack.c.bf16 %v2260, %v2259
    %v2388 = vpack.c.bf16 %v2164, %v2163
    %v2389 = vpack.c.bf16 %v2356, %v2355
    %v2390 = vpack.c.bf16 %v2262, %v2261
    %v2391 = vpack.c.bf16 %v2166, %v2165
    %v2392 = vpack.c.bf16 %v2358, %v2357
    %v2393 = vpack.c.bf16 %v2264, %v2263
    %v2394 = vpack.c.bf16 %v2168, %v2167
    %v2395 = vpack.c.bf16 %v2360, %v2359
    %v2396 = vpack.c.bf16 %v2266, %v2265
    %v2397 = vpack.c.bf16 %v2170, %v2169
    %v2398 = vpack.c.bf16 %v2362, %v2361
    %v2399 = vpack.c.bf16 %v2268, %v2267
    %v2400 = vpack.c.bf16 %v2172, %v2171
    %v2401 = vpack.c.bf16 %v2364, %v2363
    %v2402 = vpack.c.bf16 %v2270, %v2269
    %v2403 = vpack.c.bf16 %v2174, %v2173
    %v2404 = vpack.c.bf16 %v2366, %v2365
    %v2405 = vpack.c.bf16 %v2272, %v2271
    %v2406 = vpack.c.bf16 %v2176, %v2175
    %v2407 = vpack.c.bf16 %v2368, %v2367
    %v2408 = vpack.c.bf16 %v2274, %v2273
    %v2409 = vpack.c.bf16 %v2178, %v2177
    %v2410 = vpack.c.bf16 %v2370, %v2369
    %v2411 = vpack.c.bf16 %v2276, %v2275
    %v2412 = vpack.c.bf16 %v2180, %v2179
    %v2413 = vpack.c.bf16 %v2372, %v2371
    %v2414 = vpack.c.bf16 %v2278, %v2277
    %v2415 = vpack.c.bf16 %v2182, %v2181
    %v2416 = vpack.c.bf16 %v2374, %v2373
    %v2417 = vpack.c.bf16 %v2280, %v2279
    %v2418 = vpack.c.bf16 %v2184, %v2183
    %v2419 = vpack.c.bf16 %v2376, %v2375
    %v2420 = vpack.c.bf16 %v2282, %v2281
    %v2421 = vpack.c.bf16 %v2186, %v2185
    %v2422 = vpack.c.bf16 %v2378, %v2377
    %v2423 = vpack.c.bf16 %v2284, %v2283
    %v2424 = vpack.c.bf16 %v2188, %v2187
    %v2425 = vpack.c.bf16 %v2380, %v2379
    %v2426 = vpack.c.bf16 %v2286, %v2285
    %v2427 = vpack.c.bf16 %v2190, %v2189
    %v2428 = vpack.c.bf16 %v2382, %v2381
    %v2429 = vpack.c.bf16 %v2288, %v2287
    %v2430 = vpack.c.bf16 %v2192, %v2191
    %v2431 = vpack.c.bf16 %v2384, %v2383
    %v2432 = vpack.c.bf16 %v2290, %v2289
    %v2433 = vpack.c.bf16 %v2194, %v2193
    %v2434 = vpack.c.bf16 %v2386, %v2385
    %v2435 = vld [vmem:[%s350] sm:$0xf]
    %v2436 = vld [vmem:[%s350 + $0x4] sm:$0xf]
    %v2437 = vld [vmem:[%s350 + $0x8] sm:$0xf]
    %v2438 = vld [vmem:[%s350 + $0xc] sm:$0xf]
    %v2439 = vld [vmem:[%s350 + $0x10] sm:$0xf]
    %v2440 = vld [vmem:[%s350 + $0x14] sm:$0xf]
    %v2441 = vld [vmem:[%s350 + $0x18] sm:$0xf]
    %v2442 = vld [vmem:[%s350 + $0x1c] sm:$0xf]
    %v2443 = vld [vmem:[%s350 + $0x20] sm:$0xf]
    %v2444 = vld [vmem:[%s350 + $0x24] sm:$0xf]
    %v2445 = vld [vmem:[%s350 + $0x28] sm:$0xf]
    %v2446 = vld [vmem:[%s350 + $0x2c] sm:$0xf]
    %v2447 = vld [vmem:[%s350 + $0x30] sm:$0xf]
    %v2448 = vld [vmem:[%s350 + $0x34] sm:$0xf]
    %v2449 = vld [vmem:[%s350 + $0x38] sm:$0xf]
    %v2450 = vld [vmem:[%s350 + $0x3c] sm:$0xf]
    %v2451 = vld [vmem:[%s350 + $0x40] sm:$0xf]
    %v2452 = vld [vmem:[%s350 + $0x44] sm:$0xf]
    %v2453 = vld [vmem:[%s350 + $0x48] sm:$0xf]
    %v2454 = vld [vmem:[%s350 + $0x4c] sm:$0xf]
    %v2455 = vld [vmem:[%s350 + $0x50] sm:$0xf]
    %v2456 = vld [vmem:[%s350 + $0x54] sm:$0xf]
    %v2457 = vld [vmem:[%s350 + $0x58] sm:$0xf]
    %v2458 = vld [vmem:[%s350 + $0x5c] sm:$0xf]
    %v2459 = vld [vmem:[%s350 + $0x60] sm:$0xf]
    %v2460 = vld [vmem:[%s350 + $0x64] sm:$0xf]
    %v2461 = vld [vmem:[%s350 + $0x68] sm:$0xf]
    %v2462 = vld [vmem:[%s350 + $0x6c] sm:$0xf]
    %v2463 = vld [vmem:[%s350 + $0x70] sm:$0xf]
    %v2464 = vld [vmem:[%s350 + $0x74] sm:$0xf]
    %v2465 = vld [vmem:[%s350 + $0x78] sm:$0xf]
    %v2466 = vld [vmem:[%s350 + $0x7c] sm:$0xf]
    %v2467 = vld [vmem:[%s350 + $0x80] sm:$0xf]
    %v2468 = vld [vmem:[%s350 + $0x84] sm:$0xf]
    %v2469 = vld [vmem:[%s350 + $0x88] sm:$0xf]
    %v2470 = vld [vmem:[%s350 + $0x8c] sm:$0xf]
    %v2471 = vld [vmem:[%s350 + $0x90] sm:$0xf]
    %v2472 = vld [vmem:[%s350 + $0x94] sm:$0xf]
    %v2473 = vld [vmem:[%s350 + $0x98] sm:$0xf]
    %v2474 = vld [vmem:[%s350 + $0x9c] sm:$0xf]
    %v2475 = vld [vmem:[%s350 + $0xa0] sm:$0xf]
    %v2476 = vld [vmem:[%s350 + $0xa4] sm:$0xf]
    %v2477 = vld [vmem:[%s350 + $0xa8] sm:$0xf]
    %v2478 = vld [vmem:[%s350 + $0xac] sm:$0xf]
    %v2479 = vld [vmem:[%s350 + $0xb0] sm:$0xf]
    %v2480 = vld [vmem:[%s350 + $0xb4] sm:$0xf]
    %v2481 = vld [vmem:[%s350 + $0xb8] sm:$0xf]
    %v2482 = vld [vmem:[%s350 + $0xbc] sm:$0xf]
    %v2483 = vld [vmem:[#allocation6] sm:$0xf]
    %v2484 = vld [vmem:[#allocation6 + $0x4] sm:$0xf]
    %v2485 = vld [vmem:[#allocation6 + $0x8] sm:$0xf]
    %v2486 = vld [vmem:[#allocation6 + $0xc] sm:$0xf]
    %v2487 = vld [vmem:[#allocation6 + $0x10] sm:$0xf]
    %v2488 = vld [vmem:[#allocation6 + $0x14] sm:$0xf]
    %v2489 = vld [vmem:[#allocation6 + $0x18] sm:$0xf]
    %v2490 = vld [vmem:[#allocation6 + $0x1c] sm:$0xf]
    %v2491 = vld [vmem:[#allocation6 + $0x20] sm:$0xf]
    %v2492 = vld [vmem:[#allocation6 + $0x24] sm:$0xf]
    %v2493 = vld [vmem:[#allocation6 + $0x28] sm:$0xf]
    %v2494 = vld [vmem:[#allocation6 + $0x2c] sm:$0xf]
    %v2495 = vld [vmem:[#allocation6 + $0x30] sm:$0xf]
    %v2496 = vld [vmem:[#allocation6 + $0x34] sm:$0xf]
    %v2497 = vld [vmem:[#allocation6 + $0x38] sm:$0xf]
    %v2498 = vld [vmem:[#allocation6 + $0x3c] sm:$0xf]
    %v2499 = vld [vmem:[#allocation6 + $0x40] sm:$0xf]
    %v2500 = vld [vmem:[#allocation6 + $0x44] sm:$0xf]
    %v2501 = vld [vmem:[#allocation6 + $0x48] sm:$0xf]
    %v2502 = vld [vmem:[#allocation6 + $0x4c] sm:$0xf]
    %v2503 = vld [vmem:[#allocation6 + $0x50] sm:$0xf]
    %v2504 = vld [vmem:[#allocation6 + $0x54] sm:$0xf]
    %v2505 = vld [vmem:[#allocation6 + $0x58] sm:$0xf]
    %v2506 = vld [vmem:[#allocation6 + $0x5c] sm:$0xf]
    %v2507 = vld [vmem:[#allocation6 + $0x60] sm:$0xf]
    %v2508 = vld [vmem:[#allocation6 + $0x64] sm:$0xf]
    %v2509 = vld [vmem:[#allocation6 + $0x68] sm:$0xf]
    %v2510 = vld [vmem:[#allocation6 + $0x6c] sm:$0xf]
    %v2511 = vld [vmem:[#allocation6 + $0x70] sm:$0xf]
    %v2512 = vld [vmem:[#allocation6 + $0x74] sm:$0xf]
    %v2513 = vld [vmem:[#allocation6 + $0x78] sm:$0xf]
    %v2514 = vld [vmem:[#allocation6 + $0x7c] sm:$0xf]
    %v2515 = vld [vmem:[#allocation6 + $0x80] sm:$0xf]
    %v2516 = vld [vmem:[#allocation6 + $0x84] sm:$0xf]
    %v2517 = vld [vmem:[#allocation6 + $0x88] sm:$0xf]
    %v2518 = vld [vmem:[#allocation6 + $0x8c] sm:$0xf]
    %v2519 = vld [vmem:[#allocation6 + $0x90] sm:$0xf]
    %v2520 = vld [vmem:[#allocation6 + $0x94] sm:$0xf]
    %v2521 = vld [vmem:[#allocation6 + $0x98] sm:$0xf]
    %v2522 = vld [vmem:[#allocation6 + $0x9c] sm:$0xf]
    %v2523 = vld [vmem:[#allocation6 + $0xa0] sm:$0xf]
    %v2524 = vld [vmem:[#allocation6 + $0xa4] sm:$0xf]
    %v2525 = vld [vmem:[#allocation6 + $0xa8] sm:$0xf]
    %v2526 = vld [vmem:[#allocation6 + $0xac] sm:$0xf]
    %v2527 = vld [vmem:[#allocation6 + $0xb0] sm:$0xf]
    %v2528 = vld [vmem:[#allocation6 + $0xb4] sm:$0xf]
    %v2529 = vld [vmem:[#allocation6 + $0xb8] sm:$0xf]
    %v2530 = vld [vmem:[#allocation6 + $0xbc] sm:$0xf]
    %v2579 = vunpack.c.l.b16 %v2483
    %v2580 = vunpack.c.l.b16 %v2484
    %v2581 = vunpack.c.l.b16 %v2485
    %v2582 = vunpack.c.l.b16 %v2486
    %v2583 = vunpack.c.l.b16 %v2487
    %v2584 = vunpack.c.l.b16 %v2488
    %v2585 = vunpack.c.l.b16 %v2489
    %v2586 = vunpack.c.l.b16 %v2490
    %v2587 = vunpack.c.l.b16 %v2491
    %v2588 = vunpack.c.l.b16 %v2492
    %v2589 = vunpack.c.l.b16 %v2493
    %v2590 = vunpack.c.l.b16 %v2494
    %v2591 = vunpack.c.l.b16 %v2495
    %v2592 = vunpack.c.l.b16 %v2496
    %v2593 = vunpack.c.l.b16 %v2497
    %v2594 = vunpack.c.l.b16 %v2498
    %v2595 = vunpack.c.l.b16 %v2499
    %v2596 = vunpack.c.l.b16 %v2500
    %v2597 = vunpack.c.l.b16 %v2501
    %v2598 = vunpack.c.l.b16 %v2502
    %v2599 = vunpack.c.l.b16 %v2503
    %v2600 = vunpack.c.l.b16 %v2504
    %v2601 = vunpack.c.l.b16 %v2505
    %v2602 = vunpack.c.l.b16 %v2506
    %v2603 = vunpack.c.l.b16 %v2507
    %v2604 = vunpack.c.l.b16 %v2508
    %v2605 = vunpack.c.l.b16 %v2509
    %v2606 = vunpack.c.l.b16 %v2510
    %v2607 = vunpack.c.l.b16 %v2511
    %v2608 = vunpack.c.l.b16 %v2512
    %v2609 = vunpack.c.l.b16 %v2513
    %v2610 = vunpack.c.l.b16 %v2514
    %v2611 = vunpack.c.l.b16 %v2515
    %v2612 = vunpack.c.l.b16 %v2516
    %v2613 = vunpack.c.l.b16 %v2517
    %v2614 = vunpack.c.l.b16 %v2518
    %v2615 = vunpack.c.l.b16 %v2519
    %v2616 = vunpack.c.l.b16 %v2520
    %v2617 = vunpack.c.l.b16 %v2521
    %v2618 = vunpack.c.l.b16 %v2522
    %v2619 = vunpack.c.l.b16 %v2523
    %v2620 = vunpack.c.l.b16 %v2524
    %v2621 = vunpack.c.l.b16 %v2525
    %v2622 = vunpack.c.l.b16 %v2526
    %v2623 = vunpack.c.l.b16 %v2527
    %v2624 = vunpack.c.l.b16 %v2528
    %v2625 = vunpack.c.l.b16 %v2529
    %v2626 = vunpack.c.l.b16 %v2530
    %v2627 = vpack.c.b16 %v2580, %v2579
    %v2628 = vpack.c.b16 %v2582, %v2581
    %v2629 = vpack.c.b16 %v2584, %v2583
    %v2630 = vpack.c.b16 %v2586, %v2585
    %v2631 = vpack.c.b16 %v2588, %v2587
    %v2632 = vpack.c.b16 %v2590, %v2589
    %v2633 = vpack.c.b16 %v2592, %v2591
    %v2634 = vpack.c.b16 %v2594, %v2593
    %v2635 = vpack.c.b16 %v2596, %v2595
    %v2636 = vpack.c.b16 %v2598, %v2597
    %v2637 = vpack.c.b16 %v2600, %v2599
    %v2638 = vpack.c.b16 %v2602, %v2601
    %v2639 = vpack.c.b16 %v2604, %v2603
    %v2640 = vpack.c.b16 %v2606, %v2605
    %v2641 = vpack.c.b16 %v2608, %v2607
    %v2642 = vpack.c.b16 %v2610, %v2609
    %v2643 = vpack.c.b16 %v2612, %v2611
    %v2644 = vpack.c.b16 %v2614, %v2613
    %v2645 = vpack.c.b16 %v2616, %v2615
    %v2646 = vpack.c.b16 %v2618, %v2617
    %v2647 = vpack.c.b16 %v2620, %v2619
    %v2648 = vpack.c.b16 %v2622, %v2621
    %v2649 = vpack.c.b16 %v2624, %v2623
    %v2650 = vpack.c.b16 %v2626, %v2625
    %2675 = vmatprep.subr.bf16.mxu0 0
    %2676 = vmatpush1.bf16.msra.mxu0 %v2634
    %2677 = vmatprep.subr.bf16.mxu0 0
    %2678 = vmatpush1.bf16.msra.mxu0 %v2633
    %2679 = vmatprep.subr.bf16.mxu0 0
    %2680 = vmatpush1.bf16.msra.mxu0 %v2632
    %2681 = vmatprep.subr.bf16.mxu0 0
    %2682 = vmatpush1.bf16.msra.mxu0 %v2631
    %2683 = vmatprep.subr.bf16.mxu0 0
    %2684 = vmatpush1.bf16.msra.mxu0 %v2630
    %2685 = vmatprep.subr.bf16.mxu0 0
    %2686 = vmatpush1.bf16.msra.mxu0 %v2629
    %2687 = vmatprep.subr.bf16.mxu0 0
    %2688 = vmatpush1.bf16.msra.mxu0 %v2628
    %2689 = vmatprep.subr.bf16.mxu0 0
    %2690 = vmatpush1.bf16.msra.mxu0 %v2627
    %2691 = vmatprep.subr.bf16.mxu0 0
    %2692 = vmatpush2.bf16.msra.mxu0 %v2642
    %2693 = vmatprep.subr.bf16.mxu0 0
    %2694 = vmatpush2.bf16.msra.mxu0 %v2641
    %2695 = vmatprep.subr.bf16.mxu0 0
    %2696 = vmatpush2.bf16.msra.mxu0 %v2640
    %2697 = vmatprep.subr.bf16.mxu0 0
    %2698 = vmatpush2.bf16.msra.mxu0 %v2639
    %2699 = vmatprep.subr.bf16.mxu0 0
    %2700 = vmatpush2.bf16.msra.mxu0 %v2638
    %2701 = vmatprep.subr.bf16.mxu0 0
    %2702 = vmatpush2.bf16.msra.mxu0 %v2637
    %2703 = vmatprep.subr.bf16.mxu0 0
    %2704 = vmatpush2.bf16.msra.mxu0 %v2636
    %2705 = vmatprep.subr.bf16.mxu0 0
    %2706 = vmatpush2.bf16.msra.mxu0 %v2635
    %2707 = vmatprep.mubr.bf16.mxu0 %v2388
    %2708 = vmatmul.mubr.bf16.gmra.mxu0 %v2387
    %v2709 = vpop.f32.mrf.mxu0
    %v2710 = vadd.f32 0.0, %v2709
    %v2711 = vpop.f32.mrf.mxu0
    %v2712 = vpop.f32.mrf.mxu0
    %v2713 = vadd.f32 0.0, %v2712
    %v2714 = vpop.f32.mrf.mxu0
    %2715 = vmatprep.mubr.bf16.mxu0 %v2391
    %2716 = vmatmul.mubr.bf16.gmra.mxu0 %v2390
    %v2717 = vpop.f32.mrf.mxu0
    %v2718 = vadd.f32 0.0, %v2717
    %v2719 = vpop.f32.mrf.mxu0
    %v2720 = vpop.f32.mrf.mxu0
    %v2721 = vadd.f32 0.0, %v2720
    %v2722 = vpop.f32.mrf.mxu0
    %2723 = vmatprep.mubr.bf16.mxu0 %v2394
    %2724 = vmatmul.mubr.bf16.gmra.mxu0 %v2393
    %v2725 = vpop.f32.mrf.mxu0
    %v2726 = vadd.f32 0.0, %v2725
    %v2727 = vpop.f32.mrf.mxu0
    %v2728 = vpop.f32.mrf.mxu0
    %v2729 = vadd.f32 0.0, %v2728
    %v2730 = vpop.f32.mrf.mxu0
    %2731 = vmatprep.mubr.bf16.mxu0 %v2397
    %2732 = vmatmul.mubr.bf16.gmra.mxu0 %v2396
    %v2733 = vpop.f32.mrf.mxu0
    %v2734 = vadd.f32 0.0, %v2733
    %v2735 = vpop.f32.mrf.mxu0
    %v2736 = vpop.f32.mrf.mxu0
    %v2737 = vadd.f32 0.0, %v2736
    %v2738 = vpop.f32.mrf.mxu0
    %2739 = vmatprep.mubr.bf16.mxu0 %v2400
    %2740 = vmatmul.mubr.bf16.gmra.mxu0 %v2399
    %v2741 = vpop.f32.mrf.mxu0
    %v2742 = vadd.f32 0.0, %v2741
    %v2743 = vpop.f32.mrf.mxu0
    %v2744 = vpop.f32.mrf.mxu0
    %v2745 = vadd.f32 0.0, %v2744
    %v2746 = vpop.f32.mrf.mxu0
    %2747 = vmatprep.mubr.bf16.mxu0 %v2403
    %2748 = vmatmul.mubr.bf16.gmra.mxu0 %v2402
    %v2749 = vpop.f32.mrf.mxu0
    %v2750 = vadd.f32 0.0, %v2749
    %v2751 = vpop.f32.mrf.mxu0
    %v2752 = vpop.f32.mrf.mxu0
    %v2753 = vadd.f32 0.0, %v2752
    %v2754 = vpop.f32.mrf.mxu0
    %2755 = vmatprep.mubr.bf16.mxu0 %v2406
    %2756 = vmatmul.mubr.bf16.gmra.mxu0 %v2405
    %v2757 = vpop.f32.mrf.mxu0
    %v2758 = vadd.f32 0.0, %v2757
    %v2759 = vpop.f32.mrf.mxu0
    %v2760 = vpop.f32.mrf.mxu0
    %v2761 = vadd.f32 0.0, %v2760
    %v2762 = vpop.f32.mrf.mxu0
    %2763 = vmatprep.mubr.bf16.mxu0 %v2409
    %2764 = vmatmul.mubr.bf16.gmra.mxu0 %v2408
    %v2765 = vpop.f32.mrf.mxu0
    %v2766 = vadd.f32 0.0, %v2765
    %v2767 = vpop.f32.mrf.mxu0
    %v2768 = vpop.f32.mrf.mxu0
    %v2769 = vadd.f32 0.0, %v2768
    %v2770 = vpop.f32.mrf.mxu0
    %2771 = vmatprep.mubr.bf16.mxu0 %v2412
    %2772 = vmatmul.mubr.bf16.gmra.mxu0 %v2411
    %v2773 = vpop.f32.mrf.mxu0
    %v2774 = vadd.f32 0.0, %v2773
    %v2775 = vpop.f32.mrf.mxu0
    %v2776 = vpop.f32.mrf.mxu0
    %v2777 = vadd.f32 0.0, %v2776
    %v2778 = vpop.f32.mrf.mxu0
    %2779 = vmatprep.mubr.bf16.mxu0 %v2415
    %2780 = vmatmul.mubr.bf16.gmra.mxu0 %v2414
    %v2781 = vpop.f32.mrf.mxu0
    %v2782 = vadd.f32 0.0, %v2781
    %v2783 = vpop.f32.mrf.mxu0
    %v2784 = vpop.f32.mrf.mxu0
    %v2785 = vadd.f32 0.0, %v2784
    %v2786 = vpop.f32.mrf.mxu0
    %2787 = vmatprep.mubr.bf16.mxu0 %v2418
    %2788 = vmatmul.mubr.bf16.gmra.mxu0 %v2417
    %v2789 = vpop.f32.mrf.mxu0
    %v2790 = vadd.f32 0.0, %v2789
    %v2791 = vpop.f32.mrf.mxu0
    %v2792 = vpop.f32.mrf.mxu0
    %v2793 = vadd.f32 0.0, %v2792
    %v2794 = vpop.f32.mrf.mxu0
    %2795 = vmatprep.mubr.bf16.mxu0 %v2421
    %2796 = vmatmul.mubr.bf16.gmra.mxu0 %v2420
    %v2797 = vpop.f32.mrf.mxu0
    %v2798 = vadd.f32 0.0, %v2797
    %v2799 = vpop.f32.mrf.mxu0
    %v2800 = vpop.f32.mrf.mxu0
    %v2801 = vadd.f32 0.0, %v2800
    %v2802 = vpop.f32.mrf.mxu0
    %2803 = vmatprep.mubr.bf16.mxu0 %v2424
    %2804 = vmatmul.mubr.bf16.gmra.mxu0 %v2423
    %v2805 = vpop.f32.mrf.mxu0
    %v2806 = vadd.f32 0.0, %v2805
    %v2807 = vpop.f32.mrf.mxu0
    %v2808 = vpop.f32.mrf.mxu0
    %v2809 = vadd.f32 0.0, %v2808
    %v2810 = vpop.f32.mrf.mxu0
    %2811 = vmatprep.mubr.bf16.mxu0 %v2427
    %2812 = vmatmul.mubr.bf16.gmra.mxu0 %v2426
    %v2813 = vpop.f32.mrf.mxu0
    %v2814 = vadd.f32 0.0, %v2813
    %v2815 = vpop.f32.mrf.mxu0
    %v2816 = vpop.f32.mrf.mxu0
    %v2817 = vadd.f32 0.0, %v2816
    %v2818 = vpop.f32.mrf.mxu0
    %2819 = vmatprep.mubr.bf16.mxu0 %v2430
    %2820 = vmatmul.mubr.bf16.gmra.mxu0 %v2429
    %v2821 = vpop.f32.mrf.mxu0
    %v2822 = vadd.f32 0.0, %v2821
    %v2823 = vpop.f32.mrf.mxu0
    %v2824 = vpop.f32.mrf.mxu0
    %v2825 = vadd.f32 0.0, %v2824
    %v2826 = vpop.f32.mrf.mxu0
    %2827 = vdwg.mxu0
    %2828 = vmatprep.subr.bf16.mxu0 0
    %2829 = vmatpush1.bf16.msra.mxu0 %v2650
    %2830 = vmatprep.subr.bf16.mxu0 0
    %2831 = vmatpush1.bf16.msra.mxu0 %v2649
    %2832 = vmatprep.subr.bf16.mxu0 0
    %2833 = vmatpush1.bf16.msra.mxu0 %v2648
    %2834 = vmatprep.subr.bf16.mxu0 0
    %2835 = vmatpush1.bf16.msra.mxu0 %v2647
    %2836 = vmatprep.subr.bf16.mxu0 0
    %2837 = vmatpush1.bf16.msra.mxu0 %v2646
    %2838 = vmatprep.subr.bf16.mxu0 0
    %2839 = vmatpush1.bf16.msra.mxu0 %v2645
    %2840 = vmatprep.subr.bf16.mxu0 0
    %2841 = vmatpush1.bf16.msra.mxu0 %v2644
    %2842 = vmatprep.subr.bf16.mxu0 0
    %2843 = vmatpush1.bf16.msra.mxu0 %v2643
    %2844 = vmatprep.subr.bf16.mxu0 0
    %2845 = vmatpush2.bf16.msra.mxu0 0
    %2846 = vmatprep.subr.bf16.mxu0 0
    %2847 = vmatpush2.bf16.msra.mxu0 0
    %2848 = vmatprep.subr.bf16.mxu0 0
    %2849 = vmatpush2.bf16.msra.mxu0 0
    %2850 = vmatprep.subr.bf16.mxu0 0
    %2851 = vmatpush2.bf16.msra.mxu0 0
    %2852 = vmatprep.subr.bf16.mxu0 0
    %2853 = vmatpush2.bf16.msra.mxu0 0
    %2854 = vmatprep.subr.bf16.mxu0 0
    %2855 = vmatpush2.bf16.msra.mxu0 0
    %2856 = vmatprep.subr.bf16.mxu0 0
    %2857 = vmatpush2.bf16.msra.mxu0 0
    %2858 = vmatprep.subr.bf16.mxu0 0
    %2859 = vmatpush2.bf16.msra.mxu0 0
    %2860 = vmatprep.mubr.bf16.mxu0 0
    %2861 = vmatmul.mubr.bf16.gmra.mxu0 %v2389
    %v2862 = vpop.f32.mrf.mxu0
    %v2863 = vadd.f32 %v2710, %v2862
    %v2864 = vpop.f32.mrf.mxu0
    %v2865 = vpop.f32.mrf.mxu0
    %v2866 = vadd.f32 %v2713, %v2865
    %v2867 = vpop.f32.mrf.mxu0
    %2868 = vmatprep.mubr.bf16.mxu0 0
    %2869 = vmatmul.mubr.bf16.gmra.mxu0 %v2392
    %v2870 = vpop.f32.mrf.mxu0
    %v2871 = vadd.f32 %v2718, %v2870
    %v2872 = vpop.f32.mrf.mxu0
    %v2873 = vpop.f32.mrf.mxu0
    %v2874 = vadd.f32 %v2721, %v2873
    %v2875 = vpop.f32.mrf.mxu0
    %2876 = vmatprep.mubr.bf16.mxu0 0
    %2877 = vmatmul.mubr.bf16.gmra.mxu0 %v2395
    %v2878 = vpop.f32.mrf.mxu0
    %v2879 = vadd.f32 %v2726, %v2878
    %v2880 = vpop.f32.mrf.mxu0
    %v2881 = vpop.f32.mrf.mxu0
    %v2882 = vadd.f32 %v2729, %v2881
    %v2883 = vpop.f32.mrf.mxu0
    %2884 = vmatprep.mubr.bf16.mxu0 0
    %2885 = vmatmul.mubr.bf16.gmra.mxu0 %v2398
    %v2886 = vpop.f32.mrf.mxu0
    %v2887 = vadd.f32 %v2734, %v2886
    %v2888 = vpop.f32.mrf.mxu0
    %v2889 = vpop.f32.mrf.mxu0
    %v2890 = vadd.f32 %v2737, %v2889
    %v2891 = vpop.f32.mrf.mxu0
    %2892 = vmatprep.mubr.bf16.mxu0 0
    %2893 = vmatmul.mubr.bf16.gmra.mxu0 %v2401
    %v2894 = vpop.f32.mrf.mxu0
    %v2895 = vadd.f32 %v2742, %v2894
    %v2896 = vpop.f32.mrf.mxu0
    %v2897 = vpop.f32.mrf.mxu0
    %v2898 = vadd.f32 %v2745, %v2897
    %v2899 = vpop.f32.mrf.mxu0
    %2900 = vmatprep.mubr.bf16.mxu0 0
    %2901 = vmatmul.mubr.bf16.gmra.mxu0 %v2404
    %v2902 = vpop.f32.mrf.mxu0
    %v2903 = vadd.f32 %v2750, %v2902
    %v2904 = vpop.f32.mrf.mxu0
    %v2905 = vpop.f32.mrf.mxu0
    %v2906 = vadd.f32 %v2753, %v2905
    %v2907 = vpop.f32.mrf.mxu0
    %2908 = vmatprep.mubr.bf16.mxu0 0
    %2909 = vmatmul.mubr.bf16.gmra.mxu0 %v2407
    %v2910 = vpop.f32.mrf.mxu0
    %v2911 = vadd.f32 %v2758, %v2910
    %v2912 = vpop.f32.mrf.mxu0
    %v2913 = vpop.f32.mrf.mxu0
    %v2914 = vadd.f32 %v2761, %v2913
    %v2915 = vpop.f32.mrf.mxu0
    %2916 = vmatprep.mubr.bf16.mxu0 0
    %2917 = vmatmul.mubr.bf16.gmra.mxu0 %v2410
    %v2918 = vpop.f32.mrf.mxu0
    %v2919 = vadd.f32 %v2766, %v2918
    %v2920 = vpop.f32.mrf.mxu0
    %v2921 = vpop.f32.mrf.mxu0
    %v2922 = vadd.f32 %v2769, %v2921
    %v2923 = vpop.f32.mrf.mxu0
    %2924 = vmatprep.mubr.bf16.mxu0 0
    %2925 = vmatmul.mubr.bf16.gmra.mxu0 %v2413
    %v2926 = vpop.f32.mrf.mxu0
    %v2927 = vadd.f32 %v2774, %v2926
    %v2928 = vpop.f32.mrf.mxu0
    %v2929 = vpop.f32.mrf.mxu0
    %v2930 = vadd.f32 %v2777, %v2929
    %v2931 = vpop.f32.mrf.mxu0
    %2932 = vmatprep.mubr.bf16.mxu0 0
    %2933 = vmatmul.mubr.bf16.gmra.mxu0 %v2416
    %v2934 = vpop.f32.mrf.mxu0
    %v2935 = vadd.f32 %v2782, %v2934
    %v2936 = vpop.f32.mrf.mxu0
    %v2937 = vpop.f32.mrf.mxu0
    %v2938 = vadd.f32 %v2785, %v2937
    %v2939 = vpop.f32.mrf.mxu0
    %2940 = vmatprep.mubr.bf16.mxu0 0
    %2941 = vmatmul.mubr.bf16.gmra.mxu0 %v2419
    %v2942 = vpop.f32.mrf.mxu0
    %v2943 = vadd.f32 %v2790, %v2942
    %v2944 = vpop.f32.mrf.mxu0
    %v2945 = vpop.f32.mrf.mxu0
    %v2946 = vadd.f32 %v2793, %v2945
    %v2947 = vpop.f32.mrf.mxu0
    %2948 = vmatprep.mubr.bf16.mxu0 0
    %2949 = vmatmul.mubr.bf16.gmra.mxu0 %v2422
    %v2950 = vpop.f32.mrf.mxu0
    %v2951 = vadd.f32 %v2798, %v2950
    %v2952 = vpop.f32.mrf.mxu0
    %v2953 = vpop.f32.mrf.mxu0
    %v2954 = vadd.f32 %v2801, %v2953
    %v2955 = vpop.f32.mrf.mxu0
    %2956 = vmatprep.mubr.bf16.mxu0 0
    %2957 = vmatmul.mubr.bf16.gmra.mxu0 %v2425
    %v2958 = vpop.f32.mrf.mxu0
    %v2959 = vadd.f32 %v2806, %v2958
    %v2960 = vpop.f32.mrf.mxu0
    %v2961 = vpop.f32.mrf.mxu0
    %v2962 = vadd.f32 %v2809, %v2961
    %v2963 = vpop.f32.mrf.mxu0
    %2964 = vmatprep.mubr.bf16.mxu0 0
    %2965 = vmatmul.mubr.bf16.gmra.mxu0 %v2428
    %v2966 = vpop.f32.mrf.mxu0
    %v2967 = vadd.f32 %v2814, %v2966
    %v2968 = vpop.f32.mrf.mxu0
    %v2969 = vpop.f32.mrf.mxu0
    %v2970 = vadd.f32 %v2817, %v2969
    %v2971 = vpop.f32.mrf.mxu0
    %2972 = vmatprep.mubr.bf16.mxu0 0
    %2973 = vmatmul.mubr.bf16.gmra.mxu0 %v2431
    %v2974 = vpop.f32.mrf.mxu0
    %v2975 = vadd.f32 %v2822, %v2974
    %v2976 = vpop.f32.mrf.mxu0
    %v2977 = vpop.f32.mrf.mxu0
    %v2978 = vadd.f32 %v2825, %v2977
    %v2979 = vpop.f32.mrf.mxu0
    %2980 = vdwg.mxu0
    %v2981 = vld [vmem:[%s897] sm:$0xf]
    %v2982 = vld [vmem:[%s897 + $0x4] sm:$0xf]
    %v2983 = vld [vmem:[%s897 + $0x8] sm:$0xf]
    %v2984 = vld [vmem:[%s897 + $0xc] sm:$0xf]
    %v2985 = vld [vmem:[%s897 + $0x10] sm:$0xf]
    %v2986 = vld [vmem:[%s897 + $0x14] sm:$0xf]
    %v2987 = vld [vmem:[%s897 + $0x18] sm:$0xf]
    %v2988 = vld [vmem:[%s897 + $0x1c] sm:$0xf]
    %v2989 = vld [vmem:[%s897 + $0x20] sm:$0xf]
    %v2990 = vld [vmem:[%s897 + $0x24] sm:$0xf]
    %v2991 = vld [vmem:[%s897 + $0x28] sm:$0xf]
    %v2992 = vld [vmem:[%s897 + $0x2c] sm:$0xf]
    %v2993 = vld [vmem:[%s897 + $0x30] sm:$0xf]
    %v2994 = vld [vmem:[%s897 + $0x34] sm:$0xf]
    %v2995 = vld [vmem:[%s897 + $0x38] sm:$0xf]
    %v2996 = vld [vmem:[%s897 + $0x3c] sm:$0xf]
    %v2997 = vld [vmem:[%s897 + $0x40] sm:$0xf]
    %v2998 = vld [vmem:[%s897 + $0x44] sm:$0xf]
    %v2999 = vld [vmem:[%s897 + $0x48] sm:$0xf]
    %v3000 = vld [vmem:[%s897 + $0x4c] sm:$0xf]
    %v3001 = vld [vmem:[%s897 + $0x50] sm:$0xf]
    %v3002 = vld [vmem:[%s897 + $0x54] sm:$0xf]
    %v3003 = vld [vmem:[%s897 + $0x58] sm:$0xf]
    %v3004 = vld [vmem:[%s897 + $0x5c] sm:$0xf]
    %v3005 = vld [vmem:[%s897 + $0x60] sm:$0xf]
    %v3006 = vld [vmem:[%s897 + $0x64] sm:$0xf]
    %v3007 = vld [vmem:[%s897 + $0x68] sm:$0xf]
    %v3008 = vld [vmem:[%s897 + $0x6c] sm:$0xf]
    %v3009 = vld [vmem:[%s897 + $0x70] sm:$0xf]
    %v3010 = vld [vmem:[%s897 + $0x74] sm:$0xf]
    %v3011 = vld [vmem:[%s897 + $0x78] sm:$0xf]
    %v3012 = vld [vmem:[%s897 + $0x7c] sm:$0xf]
    %v3013 = vld [vmem:[%s897 + $0x80] sm:$0xf]
    %v3014 = vld [vmem:[%s897 + $0x84] sm:$0xf]
    %v3015 = vld [vmem:[%s897 + $0x88] sm:$0xf]
    %v3016 = vld [vmem:[%s897 + $0x8c] sm:$0xf]
    %v3017 = vld [vmem:[%s897 + $0x90] sm:$0xf]
    %v3018 = vld [vmem:[%s897 + $0x94] sm:$0xf]
    %v3019 = vld [vmem:[%s897 + $0x98] sm:$0xf]
    %v3020 = vld [vmem:[%s897 + $0x9c] sm:$0xf]
    %v3021 = vld [vmem:[%s897 + $0xa0] sm:$0xf]
    %v3022 = vld [vmem:[%s897 + $0xa4] sm:$0xf]
    %v3023 = vld [vmem:[%s897 + $0xa8] sm:$0xf]
    %v3024 = vld [vmem:[%s897 + $0xac] sm:$0xf]
    %v3025 = vld [vmem:[%s897 + $0xb0] sm:$0xf]
    %v3026 = vld [vmem:[%s897 + $0xb4] sm:$0xf]
    %v3027 = vld [vmem:[%s897 + $0xb8] sm:$0xf]
    %v3028 = vld [vmem:[%s897 + $0xbc] sm:$0xf]
    %v3077 = vunpack.c.l.b16 %v2981
    %v3078 = vunpack.c.l.b16 %v2982
    %v3079 = vunpack.c.l.b16 %v2983
    %v3080 = vunpack.c.l.b16 %v2984
    %v3081 = vunpack.c.l.b16 %v2985
    %v3082 = vunpack.c.l.b16 %v2986
    %v3083 = vunpack.c.l.b16 %v2987
    %v3084 = vunpack.c.l.b16 %v2988
    %v3085 = vunpack.c.l.b16 %v2989
    %v3086 = vunpack.c.l.b16 %v2990
    %v3087 = vunpack.c.l.b16 %v2991
    %v3088 = vunpack.c.l.b16 %v2992
    %v3089 = vunpack.c.l.b16 %v2993
    %v3090 = vunpack.c.l.b16 %v2994
    %v3091 = vunpack.c.l.b16 %v2995
    %v3092 = vunpack.c.l.b16 %v2996
    %v3093 = vunpack.c.l.b16 %v2997
    %v3094 = vunpack.c.l.b16 %v2998
    %v3095 = vunpack.c.l.b16 %v2999
    %v3096 = vunpack.c.l.b16 %v3000
    %v3097 = vunpack.c.l.b16 %v3001
    %v3098 = vunpack.c.l.b16 %v3002
    %v3099 = vunpack.c.l.b16 %v3003
    %v3100 = vunpack.c.l.b16 %v3004
    %v3101 = vunpack.c.l.b16 %v3005
    %v3102 = vunpack.c.l.b16 %v3006
    %v3103 = vunpack.c.l.b16 %v3007
    %v3104 = vunpack.c.l.b16 %v3008
    %v3105 = vunpack.c.l.b16 %v3009
    %v3106 = vunpack.c.l.b16 %v3010
    %v3107 = vunpack.c.l.b16 %v3011
    %v3108 = vunpack.c.l.b16 %v3012
    %v3109 = vunpack.c.l.b16 %v3013
    %v3110 = vunpack.c.l.b16 %v3014
    %v3111 = vunpack.c.l.b16 %v3015
    %v3112 = vunpack.c.l.b16 %v3016
    %v3113 = vunpack.c.l.b16 %v3017
    %v3114 = vunpack.c.l.b16 %v3018
    %v3115 = vunpack.c.l.b16 %v3019
    %v3116 = vunpack.c.l.b16 %v3020
    %v3117 = vunpack.c.l.b16 %v3021
    %v3118 = vunpack.c.l.b16 %v3022
    %v3119 = vunpack.c.l.b16 %v3023
    %v3120 = vunpack.c.l.b16 %v3024
    %v3121 = vunpack.c.l.b16 %v3025
    %v3122 = vunpack.c.l.b16 %v3026
    %v3123 = vunpack.c.l.b16 %v3027
    %v3124 = vunpack.c.l.b16 %v3028
    %v3125 = vpack.c.b16 %v3078, %v3077
    %v3126 = vpack.c.b16 %v3080, %v3079
    %v3127 = vpack.c.b16 %v3082, %v3081
    %v3128 = vpack.c.b16 %v3084, %v3083
    %v3129 = vpack.c.b16 %v3086, %v3085
    %v3130 = vpack.c.b16 %v3088, %v3087
    %v3131 = vpack.c.b16 %v3090, %v3089
    %v3132 = vpack.c.b16 %v3092, %v3091
    %v3133 = vpack.c.b16 %v3094, %v3093
    %v3134 = vpack.c.b16 %v3096, %v3095
    %v3135 = vpack.c.b16 %v3098, %v3097
    %v3136 = vpack.c.b16 %v3100, %v3099
    %v3137 = vpack.c.b16 %v3102, %v3101
    %v3138 = vpack.c.b16 %v3104, %v3103
    %v3139 = vpack.c.b16 %v3106, %v3105
    %v3140 = vpack.c.b16 %v3108, %v3107
    %v3141 = vpack.c.b16 %v3110, %v3109
    %v3142 = vpack.c.b16 %v3112, %v3111
    %v3143 = vpack.c.b16 %v3114, %v3113
    %v3144 = vpack.c.b16 %v3116, %v3115
    %v3145 = vpack.c.b16 %v3118, %v3117
    %v3146 = vpack.c.b16 %v3120, %v3119
    %v3147 = vpack.c.b16 %v3122, %v3121
    %v3148 = vpack.c.b16 %v3124, %v3123
    %3173 = vmatprep.subr.bf16.mxu0 0
    %3174 = vmatpush1.bf16.msra.mxu0 %v3132
    %3175 = vmatprep.subr.bf16.mxu0 0
    %3176 = vmatpush1.bf16.msra.mxu0 %v3131
    %3177 = vmatprep.subr.bf16.mxu0 0
    %3178 = vmatpush1.bf16.msra.mxu0 %v3130
    %3179 = vmatprep.subr.bf16.mxu0 0
    %3180 = vmatpush1.bf16.msra.mxu0 %v3129
    %3181 = vmatprep.subr.bf16.mxu0 0
    %3182 = vmatpush1.bf16.msra.mxu0 %v3128
    %3183 = vmatprep.subr.bf16.mxu0 0
    %3184 = vmatpush1.bf16.msra.mxu0 %v3127
    %3185 = vmatprep.subr.bf16.mxu0 0
    %3186 = vmatpush1.bf16.msra.mxu0 %v3126
    %3187 = vmatprep.subr.bf16.mxu0 0
    %3188 = vmatpush1.bf16.msra.mxu0 %v3125
    %3189 = vmatprep.subr.bf16.mxu0 0
    %3190 = vmatpush2.bf16.msra.mxu0 %v3140
    %3191 = vmatprep.subr.bf16.mxu0 0
    %3192 = vmatpush2.bf16.msra.mxu0 %v3139
    %3193 = vmatprep.subr.bf16.mxu0 0
    %3194 = vmatpush2.bf16.msra.mxu0 %v3138
    %3195 = vmatprep.subr.bf16.mxu0 0
    %3196 = vmatpush2.bf16.msra.mxu0 %v3137
    %3197 = vmatprep.subr.bf16.mxu0 0
    %3198 = vmatpush2.bf16.msra.mxu0 %v3136
    %3199 = vmatprep.subr.bf16.mxu0 0
    %3200 = vmatpush2.bf16.msra.mxu0 %v3135
    %3201 = vmatprep.subr.bf16.mxu0 0
    %3202 = vmatpush2.bf16.msra.mxu0 %v3134
    %3203 = vmatprep.subr.bf16.mxu0 0
    %3204 = vmatpush2.bf16.msra.mxu0 %v3133
    %3205 = vmatprep.mubr.bf16.mxu0 %v2391
    %3206 = vmatmul.mubr.bf16.gmra.mxu0 %v2390
    %v3207 = vpop.f32.mrf.mxu0
    %v3208 = vadd.f32 0.0, %v3207
    %v3209 = vpop.f32.mrf.mxu0
    %v3210 = vpop.f32.mrf.mxu0
    %v3211 = vadd.f32 0.0, %v3210
    %v3212 = vpop.f32.mrf.mxu0
    %3213 = vmatprep.mubr.bf16.mxu0 %v2394
    %3214 = vmatmul.mubr.bf16.gmra.mxu0 %v2393
    %v3215 = vpop.f32.mrf.mxu0
    %v3216 = vadd.f32 0.0, %v3215
    %v3217 = vpop.f32.mrf.mxu0
    %v3218 = vpop.f32.mrf.mxu0
    %v3219 = vadd.f32 0.0, %v3218
    %v3220 = vpop.f32.mrf.mxu0
    %3221 = vmatprep.mubr.bf16.mxu0 %v2397
    %3222 = vmatmul.mubr.bf16.gmra.mxu0 %v2396
    %v3223 = vpop.f32.mrf.mxu0
    %v3224 = vadd.f32 0.0, %v3223
    %v3225 = vpop.f32.mrf.mxu0
    %v3226 = vpop.f32.mrf.mxu0
    %v3227 = vadd.f32 0.0, %v3226
    %v3228 = vpop.f32.mrf.mxu0
    %3229 = vmatprep.mubr.bf16.mxu0 %v2400
    %3230 = vmatmul.mubr.bf16.gmra.mxu0 %v2399
    %v3231 = vpop.f32.mrf.mxu0
    %v3232 = vadd.f32 0.0, %v3231
    %v3233 = vpop.f32.mrf.mxu0
    %v3234 = vpop.f32.mrf.mxu0
    %v3235 = vadd.f32 0.0, %v3234
    %v3236 = vpop.f32.mrf.mxu0
    %3237 = vmatprep.mubr.bf16.mxu0 %v2403
    %3238 = vmatmul.mubr.bf16.gmra.mxu0 %v2402
    %v3239 = vpop.f32.mrf.mxu0
    %v3240 = vadd.f32 0.0, %v3239
    %v3241 = vpop.f32.mrf.mxu0
    %v3242 = vpop.f32.mrf.mxu0
    %v3243 = vadd.f32 0.0, %v3242
    %v3244 = vpop.f32.mrf.mxu0
    %3245 = vmatprep.mubr.bf16.mxu0 %v2406
    %3246 = vmatmul.mubr.bf16.gmra.mxu0 %v2405
    %v3247 = vpop.f32.mrf.mxu0
    %v3248 = vadd.f32 0.0, %v3247
    %v3249 = vpop.f32.mrf.mxu0
    %v3250 = vpop.f32.mrf.mxu0
    %v3251 = vadd.f32 0.0, %v3250
    %v3252 = vpop.f32.mrf.mxu0
    %3253 = vmatprep.mubr.bf16.mxu0 %v2409
    %3254 = vmatmul.mubr.bf16.gmra.mxu0 %v2408
    %v3255 = vpop.f32.mrf.mxu0
    %v3256 = vadd.f32 0.0, %v3255
    %v3257 = vpop.f32.mrf.mxu0
    %v3258 = vpop.f32.mrf.mxu0
    %v3259 = vadd.f32 0.0, %v3258
    %v3260 = vpop.f32.mrf.mxu0
    %3261 = vmatprep.mubr.bf16.mxu0 %v2412
    %3262 = vmatmul.mubr.bf16.gmra.mxu0 %v2411
    %v3263 = vpop.f32.mrf.mxu0
    %v3264 = vadd.f32 0.0, %v3263
    %v3265 = vpop.f32.mrf.mxu0
    %v3266 = vpop.f32.mrf.mxu0
    %v3267 = vadd.f32 0.0, %v3266
    %v3268 = vpop.f32.mrf.mxu0
    %3269 = vmatprep.mubr.bf16.mxu0 %v2415
    %3270 = vmatmul.mubr.bf16.gmra.mxu0 %v2414
    %v3271 = vpop.f32.mrf.mxu0
    %v3272 = vadd.f32 0.0, %v3271
    %v3273 = vpop.f32.mrf.mxu0
    %v3274 = vpop.f32.mrf.mxu0
    %v3275 = vadd.f32 0.0, %v3274
    %v3276 = vpop.f32.mrf.mxu0
    %3277 = vmatprep.mubr.bf16.mxu0 %v2418
    %3278 = vmatmul.mubr.bf16.gmra.mxu0 %v2417
    %v3279 = vpop.f32.mrf.mxu0
    %v3280 = vadd.f32 0.0, %v3279
    %v3281 = vpop.f32.mrf.mxu0
    %v3282 = vpop.f32.mrf.mxu0
    %v3283 = vadd.f32 0.0, %v3282
    %v3284 = vpop.f32.mrf.mxu0
    %3285 = vmatprep.mubr.bf16.mxu0 %v2421
    %3286 = vmatmul.mubr.bf16.gmra.mxu0 %v2420
    %v3287 = vpop.f32.mrf.mxu0
    %v3288 = vadd.f32 0.0, %v3287
    %v3289 = vpop.f32.mrf.mxu0
    %v3290 = vpop.f32.mrf.mxu0
    %v3291 = vadd.f32 0.0, %v3290
    %v3292 = vpop.f32.mrf.mxu0
    %3293 = vmatprep.mubr.bf16.mxu0 %v2424
    %3294 = vmatmul.mubr.bf16.gmra.mxu0 %v2423
    %v3295 = vpop.f32.mrf.mxu0
    %v3296 = vadd.f32 0.0, %v3295
    %v3297 = vpop.f32.mrf.mxu0
    %v3298 = vpop.f32.mrf.mxu0
    %v3299 = vadd.f32 0.0, %v3298
    %v3300 = vpop.f32.mrf.mxu0
    %3301 = vmatprep.mubr.bf16.mxu0 %v2427
    %3302 = vmatmul.mubr.bf16.gmra.mxu0 %v2426
    %v3303 = vpop.f32.mrf.mxu0
    %v3304 = vadd.f32 0.0, %v3303
    %v3305 = vpop.f32.mrf.mxu0
    %v3306 = vpop.f32.mrf.mxu0
    %v3307 = vadd.f32 0.0, %v3306
    %v3308 = vpop.f32.mrf.mxu0
    %3309 = vmatprep.mubr.bf16.mxu0 %v2430
    %3310 = vmatmul.mubr.bf16.gmra.mxu0 %v2429
    %v3311 = vpop.f32.mrf.mxu0
    %v3312 = vadd.f32 0.0, %v3311
    %v3313 = vpop.f32.mrf.mxu0
    %v3314 = vpop.f32.mrf.mxu0
    %v3315 = vadd.f32 0.0, %v3314
    %v3316 = vpop.f32.mrf.mxu0
    %3317 = vmatprep.mubr.bf16.mxu0 %v2433
    %3318 = vmatmul.mubr.bf16.gmra.mxu0 %v2432
    %v3319 = vpop.f32.mrf.mxu0
    %v3320 = vadd.f32 0.0, %v3319
    %v3321 = vpop.f32.mrf.mxu0
    %v3322 = vpop.f32.mrf.mxu0
    %v3323 = vadd.f32 0.0, %v3322
    %v3324 = vpop.f32.mrf.mxu0
    %3325 = vdwg.mxu0
    %3326 = vmatprep.subr.bf16.mxu0 0
    %3327 = vmatpush1.bf16.msra.mxu0 %v3148
    %3328 = vmatprep.subr.bf16.mxu0 0
    %3329 = vmatpush1.bf16.msra.mxu0 %v3147
    %3330 = vmatprep.subr.bf16.mxu0 0
    %3331 = vmatpush1.bf16.msra.mxu0 %v3146
    %3332 = vmatprep.subr.bf16.mxu0 0
    %3333 = vmatpush1.bf16.msra.mxu0 %v3145
    %3334 = vmatprep.subr.bf16.mxu0 0
    %3335 = vmatpush1.bf16.msra.mxu0 %v3144
    %3336 = vmatprep.subr.bf16.mxu0 0
    %3337 = vmatpush1.bf16.msra.mxu0 %v3143
    %3338 = vmatprep.subr.bf16.mxu0 0
    %3339 = vmatpush1.bf16.msra.mxu0 %v3142
    %3340 = vmatprep.subr.bf16.mxu0 0
    %3341 = vmatpush1.bf16.msra.mxu0 %v3141
    %3342 = vmatprep.subr.bf16.mxu0 0
    %3343 = vmatpush2.bf16.msra.mxu0 0
    %3344 = vmatprep.subr.bf16.mxu0 0
    %3345 = vmatpush2.bf16.msra.mxu0 0
    %3346 = vmatprep.subr.bf16.mxu0 0
    %3347 = vmatpush2.bf16.msra.mxu0 0
    %3348 = vmatprep.subr.bf16.mxu0 0
    %3349 = vmatpush2.bf16.msra.mxu0 0
    %3350 = vmatprep.subr.bf16.mxu0 0
    %3351 = vmatpush2.bf16.msra.mxu0 0
    %3352 = vmatprep.subr.bf16.mxu0 0
    %3353 = vmatpush2.bf16.msra.mxu0 0
    %3354 = vmatprep.subr.bf16.mxu0 0
    %3355 = vmatpush2.bf16.msra.mxu0 0
    %3356 = vmatprep.subr.bf16.mxu0 0
    %3357 = vmatpush2.bf16.msra.mxu0 0
    %3358 = vmatprep.mubr.bf16.mxu0 0
    %3359 = vmatmul.mubr.bf16.gmra.mxu0 %v2392
    %v3360 = vpop.f32.mrf.mxu0
    %v3361 = vadd.f32 %v3208, %v3360
    %v3362 = vpop.f32.mrf.mxu0
    %v3363 = vpop.f32.mrf.mxu0
    %v3364 = vadd.f32 %v3211, %v3363
    %v3365 = vpop.f32.mrf.mxu0
    %3366 = vmatprep.mubr.bf16.mxu0 0
    %3367 = vmatmul.mubr.bf16.gmra.mxu0 %v2395
    %v3368 = vpop.f32.mrf.mxu0
    %v3369 = vadd.f32 %v3216, %v3368
    %v3370 = vpop.f32.mrf.mxu0
    %v3371 = vpop.f32.mrf.mxu0
    %v3372 = vadd.f32 %v3219, %v3371
    %v3373 = vpop.f32.mrf.mxu0
    %3374 = vmatprep.mubr.bf16.mxu0 0
    %3375 = vmatmul.mubr.bf16.gmra.mxu0 %v2398
    %v3376 = vpop.f32.mrf.mxu0
    %v3377 = vadd.f32 %v3224, %v3376
    %v3378 = vpop.f32.mrf.mxu0
    %v3379 = vpop.f32.mrf.mxu0
    %v3380 = vadd.f32 %v3227, %v3379
    %v3381 = vpop.f32.mrf.mxu0
    %3382 = vmatprep.mubr.bf16.mxu0 0
    %3383 = vmatmul.mubr.bf16.gmra.mxu0 %v2401
    %v3384 = vpop.f32.mrf.mxu0
    %v3385 = vadd.f32 %v3232, %v3384
    %v3386 = vpop.f32.mrf.mxu0
    %v3387 = vpop.f32.mrf.mxu0
    %v3388 = vadd.f32 %v3235, %v3387
    %v3389 = vpop.f32.mrf.mxu0
    %3390 = vmatprep.mubr.bf16.mxu0 0
    %3391 = vmatmul.mubr.bf16.gmra.mxu0 %v2404
    %v3392 = vpop.f32.mrf.mxu0
    %v3393 = vadd.f32 %v3240, %v3392
    %v3394 = vpop.f32.mrf.mxu0
    %v3395 = vpop.f32.mrf.mxu0
    %v3396 = vadd.f32 %v3243, %v3395
    %v3397 = vpop.f32.mrf.mxu0
    %3398 = vmatprep.mubr.bf16.mxu0 0
    %3399 = vmatmul.mubr.bf16.gmra.mxu0 %v2407
    %v3400 = vpop.f32.mrf.mxu0
    %v3401 = vadd.f32 %v3248, %v3400
    %v3402 = vpop.f32.mrf.mxu0
    %v3403 = vpop.f32.mrf.mxu0
    %v3404 = vadd.f32 %v3251, %v3403
    %v3405 = vpop.f32.mrf.mxu0
    %3406 = vmatprep.mubr.bf16.mxu0 0
    %3407 = vmatmul.mubr.bf16.gmra.mxu0 %v2410
    %v3408 = vpop.f32.mrf.mxu0
    %v3409 = vadd.f32 %v3256, %v3408
    %v3410 = vpop.f32.mrf.mxu0
    %v3411 = vpop.f32.mrf.mxu0
    %v3412 = vadd.f32 %v3259, %v3411
    %v3413 = vpop.f32.mrf.mxu0
    %3414 = vmatprep.mubr.bf16.mxu0 0
    %3415 = vmatmul.mubr.bf16.gmra.mxu0 %v2413
    %v3416 = vpop.f32.mrf.mxu0
    %v3417 = vadd.f32 %v3264, %v3416
    %v3418 = vpop.f32.mrf.mxu0
    %v3419 = vpop.f32.mrf.mxu0
    %v3420 = vadd.f32 %v3267, %v3419
    %v3421 = vpop.f32.mrf.mxu0
    %3422 = vmatprep.mubr.bf16.mxu0 0
    %3423 = vmatmul.mubr.bf16.gmra.mxu0 %v2416
    %v3424 = vpop.f32.mrf.mxu0
    %v3425 = vadd.f32 %v3272, %v3424
    %v3426 = vpop.f32.mrf.mxu0
    %v3427 = vpop.f32.mrf.mxu0
    %v3428 = vadd.f32 %v3275, %v3427
    %v3429 = vpop.f32.mrf.mxu0
    %3430 = vmatprep.mubr.bf16.mxu0 0
    %3431 = vmatmul.mubr.bf16.gmra.mxu0 %v2419
    %v3432 = vpop.f32.mrf.mxu0
    %v3433 = vadd.f32 %v3280, %v3432
    %v3434 = vpop.f32.mrf.mxu0
    %v3435 = vpop.f32.mrf.mxu0
    %v3436 = vadd.f32 %v3283, %v3435
    %v3437 = vpop.f32.mrf.mxu0
    %3438 = vmatprep.mubr.bf16.mxu0 0
    %3439 = vmatmul.mubr.bf16.gmra.mxu0 %v2422
    %v3440 = vpop.f32.mrf.mxu0
    %v3441 = vadd.f32 %v3288, %v3440
    %v3442 = vpop.f32.mrf.mxu0
    %v3443 = vpop.f32.mrf.mxu0
    %v3444 = vadd.f32 %v3291, %v3443
    %v3445 = vpop.f32.mrf.mxu0
    %3446 = vmatprep.mubr.bf16.mxu0 0
    %3447 = vmatmul.mubr.bf16.gmra.mxu0 %v2425
    %v3448 = vpop.f32.mrf.mxu0
    %v3449 = vadd.f32 %v3296, %v3448
    %v3450 = vpop.f32.mrf.mxu0
    %v3451 = vpop.f32.mrf.mxu0
    %v3452 = vadd.f32 %v3299, %v3451
    %v3453 = vpop.f32.mrf.mxu0
    %3454 = vmatprep.mubr.bf16.mxu0 0
    %3455 = vmatmul.mubr.bf16.gmra.mxu0 %v2428
    %v3456 = vpop.f32.mrf.mxu0
    %v3457 = vadd.f32 %v3304, %v3456
    %v3458 = vpop.f32.mrf.mxu0
    %v3459 = vpop.f32.mrf.mxu0
    %v3460 = vadd.f32 %v3307, %v3459
    %v3461 = vpop.f32.mrf.mxu0
    %3462 = vmatprep.mubr.bf16.mxu0 0
    %3463 = vmatmul.mubr.bf16.gmra.mxu0 %v2431
    %v3464 = vpop.f32.mrf.mxu0
    %v3465 = vadd.f32 %v3312, %v3464
    %v3466 = vpop.f32.mrf.mxu0
    %v3467 = vpop.f32.mrf.mxu0
    %v3468 = vadd.f32 %v3315, %v3467
    %v3469 = vpop.f32.mrf.mxu0
    %3470 = vmatprep.mubr.bf16.mxu0 0
    %3471 = vmatmul.mubr.bf16.gmra.mxu0 %v2434
    %v3472 = vpop.f32.mrf.mxu0
    %v3473 = vadd.f32 %v3320, %v3472
    %v3474 = vpop.f32.mrf.mxu0
    %v3475 = vpop.f32.mrf.mxu0
    %v3476 = vadd.f32 %v3323, %v3475
    %v3477 = vpop.f32.mrf.mxu0
    %3478 = vdwg.mxu0
    %v3527 = vunpack.c.l.b16 %v2435
    %v3528 = vunpack.c.l.b16 %v2436
    %v3529 = vunpack.c.l.b16 %v2437
    %v3530 = vunpack.c.l.b16 %v2438
    %v3531 = vunpack.c.l.b16 %v2439
    %v3532 = vunpack.c.l.b16 %v2440
    %v3533 = vunpack.c.l.b16 %v2441
    %v3534 = vunpack.c.l.b16 %v2442
    %v3535 = vunpack.c.l.b16 %v2443
    %v3536 = vunpack.c.l.b16 %v2444
    %v3537 = vunpack.c.l.b16 %v2445
    %v3538 = vunpack.c.l.b16 %v2446
    %v3539 = vunpack.c.l.b16 %v2447
    %v3540 = vunpack.c.l.b16 %v2448
    %v3541 = vunpack.c.l.b16 %v2449
    %v3542 = vunpack.c.l.b16 %v2450
    %v3543 = vunpack.c.l.b16 %v2451
    %v3544 = vunpack.c.l.b16 %v2452
    %v3545 = vunpack.c.l.b16 %v2453
    %v3546 = vunpack.c.l.b16 %v2454
    %v3547 = vunpack.c.l.b16 %v2455
    %v3548 = vunpack.c.l.b16 %v2456
    %v3549 = vunpack.c.l.b16 %v2457
    %v3550 = vunpack.c.l.b16 %v2458
    %v3551 = vunpack.c.l.b16 %v2459
    %v3552 = vunpack.c.l.b16 %v2460
    %v3553 = vunpack.c.l.b16 %v2461
    %v3554 = vunpack.c.l.b16 %v2462
    %v3555 = vunpack.c.l.b16 %v2463
    %v3556 = vunpack.c.l.b16 %v2464
    %v3557 = vunpack.c.l.b16 %v2465
    %v3558 = vunpack.c.l.b16 %v2466
    %v3559 = vunpack.c.l.b16 %v2467
    %v3560 = vunpack.c.l.b16 %v2468
    %v3561 = vunpack.c.l.b16 %v2469
    %v3562 = vunpack.c.l.b16 %v2470
    %v3563 = vunpack.c.l.b16 %v2471
    %v3564 = vunpack.c.l.b16 %v2472
    %v3565 = vunpack.c.l.b16 %v2473
    %v3566 = vunpack.c.l.b16 %v2474
    %v3567 = vunpack.c.l.b16 %v2475
    %v3568 = vunpack.c.l.b16 %v2476
    %v3569 = vunpack.c.l.b16 %v2477
    %v3570 = vunpack.c.l.b16 %v2478
    %v3571 = vunpack.c.l.b16 %v2479
    %v3572 = vunpack.c.l.b16 %v2480
    %v3573 = vunpack.c.l.b16 %v2481
    %v3574 = vunpack.c.l.b16 %v2482
    %v3575 = vpack.c.b16 %v3528, %v3527
    %v3576 = vpack.c.b16 %v3530, %v3529
    %v3577 = vpack.c.b16 %v3532, %v3531
    %v3578 = vpack.c.b16 %v3534, %v3533
    %v3579 = vpack.c.b16 %v3536, %v3535
    %v3580 = vpack.c.b16 %v3538, %v3537
    %v3581 = vpack.c.b16 %v3540, %v3539
    %v3582 = vpack.c.b16 %v3542, %v3541
    %v3583 = vpack.c.b16 %v3544, %v3543
    %v3584 = vpack.c.b16 %v3546, %v3545
    %v3585 = vpack.c.b16 %v3548, %v3547
    %v3586 = vpack.c.b16 %v3550, %v3549
    %v3587 = vpack.c.b16 %v3552, %v3551
    %v3588 = vpack.c.b16 %v3554, %v3553
    %v3589 = vpack.c.b16 %v3556, %v3555
    %v3590 = vpack.c.b16 %v3558, %v3557
    %v3591 = vpack.c.b16 %v3560, %v3559
    %v3592 = vpack.c.b16 %v3562, %v3561
    %v3593 = vpack.c.b16 %v3564, %v3563
    %v3594 = vpack.c.b16 %v3566, %v3565
    %v3595 = vpack.c.b16 %v3568, %v3567
    %v3596 = vpack.c.b16 %v3570, %v3569
    %v3597 = vpack.c.b16 %v3572, %v3571
    %v3598 = vpack.c.b16 %v3574, %v3573
    %3623 = vmatprep.subr.bf16.mxu0 0
    %3624 = vmatpush1.bf16.msra.mxu0 %v3582
    %3625 = vmatprep.subr.bf16.mxu0 0
    %3626 = vmatpush1.bf16.msra.mxu0 %v3581
    %3627 = vmatprep.subr.bf16.mxu0 0
    %3628 = vmatpush1.bf16.msra.mxu0 %v3580
    %3629 = vmatprep.subr.bf16.mxu0 0
    %3630 = vmatpush1.bf16.msra.mxu0 %v3579
    %3631 = vmatprep.subr.bf16.mxu0 0
    %3632 = vmatpush1.bf16.msra.mxu0 %v3578
    %3633 = vmatprep.subr.bf16.mxu0 0
    %3634 = vmatpush1.bf16.msra.mxu0 %v3577
    %3635 = vmatprep.subr.bf16.mxu0 0
    %3636 = vmatpush1.bf16.msra.mxu0 %v3576
    %3637 = vmatprep.subr.bf16.mxu0 0
    %3638 = vmatpush1.bf16.msra.mxu0 %v3575
    %3639 = vmatprep.subr.bf16.mxu0 0
    %3640 = vmatpush2.bf16.msra.mxu0 %v3590
    %3641 = vmatprep.subr.bf16.mxu0 0
    %3642 = vmatpush2.bf16.msra.mxu0 %v3589
    %3643 = vmatprep.subr.bf16.mxu0 0
    %3644 = vmatpush2.bf16.msra.mxu0 %v3588
    %3645 = vmatprep.subr.bf16.mxu0 0
    %3646 = vmatpush2.bf16.msra.mxu0 %v3587
    %3647 = vmatprep.subr.bf16.mxu0 0
    %3648 = vmatpush2.bf16.msra.mxu0 %v3586
    %3649 = vmatprep.subr.bf16.mxu0 0
    %3650 = vmatpush2.bf16.msra.mxu0 %v3585
    %3651 = vmatprep.subr.bf16.mxu0 0
    %3652 = vmatpush2.bf16.msra.mxu0 %v3584
    %3653 = vmatprep.subr.bf16.mxu0 0
    %3654 = vmatpush2.bf16.msra.mxu0 %v3583
    %3655 = vmatprep.mubr.bf16.mxu0 %v2388
    %3656 = vmatmul.mubr.bf16.gmra.mxu0 %v2387
    %v3657 = vpop.f32.mrf.mxu0
    %v3658 = vadd.f32 0.0, %v3657
    %v3659 = vpop.f32.mrf.mxu0
    %v3660 = vpop.f32.mrf.mxu0
    %v3661 = vadd.f32 0.0, %v3660
    %v3662 = vpop.f32.mrf.mxu0
    %3663 = vmatprep.mubr.bf16.mxu0 %v2391
    %3664 = vmatmul.mubr.bf16.gmra.mxu0 %v2390
    %v3665 = vpop.f32.mrf.mxu0
    %v3666 = vadd.f32 %v2863, %v3665
    %v3667 = vpop.f32.mrf.mxu0
    %v3668 = vpop.f32.mrf.mxu0
    %v3669 = vadd.f32 %v2866, %v3668
    %v3670 = vpop.f32.mrf.mxu0
    %3671 = vmatprep.mubr.bf16.mxu0 %v2394
    %3672 = vmatmul.mubr.bf16.gmra.mxu0 %v2393
    %v3673 = vpop.f32.mrf.mxu0
    %v3674 = vadd.f32 %v2871, %v3673
    %v3675 = vpop.f32.mrf.mxu0
    %v3676 = vpop.f32.mrf.mxu0
    %v3677 = vadd.f32 %v2874, %v3676
    %v3678 = vpop.f32.mrf.mxu0
    %3679 = vmatprep.mubr.bf16.mxu0 %v2397
    %3680 = vmatmul.mubr.bf16.gmra.mxu0 %v2396
    %v3681 = vpop.f32.mrf.mxu0
    %v3682 = vadd.f32 %v2879, %v3681
    %v3683 = vpop.f32.mrf.mxu0
    %v3684 = vpop.f32.mrf.mxu0
    %v3685 = vadd.f32 %v2882, %v3684
    %v3686 = vpop.f32.mrf.mxu0
    %3687 = vmatprep.mubr.bf16.mxu0 %v2400
    %3688 = vmatmul.mubr.bf16.gmra.mxu0 %v2399
    %v3689 = vpop.f32.mrf.mxu0
    %v3690 = vadd.f32 %v2887, %v3689
    %v3691 = vpop.f32.mrf.mxu0
    %v3692 = vpop.f32.mrf.mxu0
    %v3693 = vadd.f32 %v2890, %v3692
    %v3694 = vpop.f32.mrf.mxu0
    %3695 = vmatprep.mubr.bf16.mxu0 %v2403
    %3696 = vmatmul.mubr.bf16.gmra.mxu0 %v2402
    %v3697 = vpop.f32.mrf.mxu0
    %v3698 = vadd.f32 %v2895, %v3697
    %v3699 = vpop.f32.mrf.mxu0
    %v3700 = vpop.f32.mrf.mxu0
    %v3701 = vadd.f32 %v2898, %v3700
    %v3702 = vpop.f32.mrf.mxu0
    %3703 = vmatprep.mubr.bf16.mxu0 %v2406
    %3704 = vmatmul.mubr.bf16.gmra.mxu0 %v2405
    %v3705 = vpop.f32.mrf.mxu0
    %v3706 = vadd.f32 %v2903, %v3705
    %v3707 = vpop.f32.mrf.mxu0
    %v3708 = vpop.f32.mrf.mxu0
    %v3709 = vadd.f32 %v2906, %v3708
    %v3710 = vpop.f32.mrf.mxu0
    %3711 = vmatprep.mubr.bf16.mxu0 %v2409
    %3712 = vmatmul.mubr.bf16.gmra.mxu0 %v2408
    %v3713 = vpop.f32.mrf.mxu0
    %v3714 = vadd.f32 %v2911, %v3713
    %v3715 = vpop.f32.mrf.mxu0
    %v3716 = vpop.f32.mrf.mxu0
    %v3717 = vadd.f32 %v2914, %v3716
    %v3718 = vpop.f32.mrf.mxu0
    %3719 = vmatprep.mubr.bf16.mxu0 %v2412
    %3720 = vmatmul.mubr.bf16.gmra.mxu0 %v2411
    %v3721 = vpop.f32.mrf.mxu0
    %v3722 = vadd.f32 %v2919, %v3721
    %v3723 = vpop.f32.mrf.mxu0
    %v3724 = vpop.f32.mrf.mxu0
    %v3725 = vadd.f32 %v2922, %v3724
    %v3726 = vpop.f32.mrf.mxu0
    %3727 = vmatprep.mubr.bf16.mxu0 %v2415
    %3728 = vmatmul.mubr.bf16.gmra.mxu0 %v2414
    %v3729 = vpop.f32.mrf.mxu0
    %v3730 = vadd.f32 %v2927, %v3729
    %v3731 = vpop.f32.mrf.mxu0
    %v3732 = vpop.f32.mrf.mxu0
    %v3733 = vadd.f32 %v2930, %v3732
    %v3734 = vpop.f32.mrf.mxu0
    %3735 = vmatprep.mubr.bf16.mxu0 %v2418
    %3736 = vmatmul.mubr.bf16.gmra.mxu0 %v2417
    %v3737 = vpop.f32.mrf.mxu0
    %v3738 = vadd.f32 %v2935, %v3737
    %v3739 = vpop.f32.mrf.mxu0
    %v3740 = vpop.f32.mrf.mxu0
    %v3741 = vadd.f32 %v2938, %v3740
    %v3742 = vpop.f32.mrf.mxu0
    %3743 = vmatprep.mubr.bf16.mxu0 %v2421
    %3744 = vmatmul.mubr.bf16.gmra.mxu0 %v2420
    %v3745 = vpop.f32.mrf.mxu0
    %v3746 = vadd.f32 %v2943, %v3745
    %v3747 = vpop.f32.mrf.mxu0
    %v3748 = vpop.f32.mrf.mxu0
    %v3749 = vadd.f32 %v2946, %v3748
    %v3750 = vpop.f32.mrf.mxu0
    %3751 = vmatprep.mubr.bf16.mxu0 %v2424
    %3752 = vmatmul.mubr.bf16.gmra.mxu0 %v2423
    %v3753 = vpop.f32.mrf.mxu0
    %v3754 = vadd.f32 %v2951, %v3753
    %v3755 = vpop.f32.mrf.mxu0
    %v3756 = vpop.f32.mrf.mxu0
    %v3757 = vadd.f32 %v2954, %v3756
    %v3758 = vpop.f32.mrf.mxu0
    %3759 = vmatprep.mubr.bf16.mxu0 %v2427
    %3760 = vmatmul.mubr.bf16.gmra.mxu0 %v2426
    %v3761 = vpop.f32.mrf.mxu0
    %v3762 = vadd.f32 %v2959, %v3761
    %v3763 = vpop.f32.mrf.mxu0
    %v3764 = vpop.f32.mrf.mxu0
    %v3765 = vadd.f32 %v2962, %v3764
    %v3766 = vpop.f32.mrf.mxu0
    %3767 = vmatprep.mubr.bf16.mxu0 %v2430
    %3768 = vmatmul.mubr.bf16.gmra.mxu0 %v2429
    %v3769 = vpop.f32.mrf.mxu0
    %v3770 = vadd.f32 %v2967, %v3769
    %v3771 = vpop.f32.mrf.mxu0
    %v3772 = vpop.f32.mrf.mxu0
    %v3773 = vadd.f32 %v2970, %v3772
    %v3774 = vpop.f32.mrf.mxu0
    %3775 = vmatprep.mubr.bf16.mxu0 %v2433
    %3776 = vmatmul.mubr.bf16.gmra.mxu0 %v2432
    %v3777 = vpop.f32.mrf.mxu0
    %v3778 = vadd.f32 %v2975, %v3777
    %v3779 = vpop.f32.mrf.mxu0
    %v3780 = vpop.f32.mrf.mxu0
    %v3781 = vadd.f32 %v2978, %v3780
    %v3782 = vpop.f32.mrf.mxu0
    %3783 = vdwg.mxu0
    %3784 = vmatprep.subr.bf16.mxu0 0
    %3785 = vmatpush1.bf16.msra.mxu0 %v3598
    %3786 = vmatprep.subr.bf16.mxu0 0
    %3787 = vmatpush1.bf16.msra.mxu0 %v3597
    %3788 = vmatprep.subr.bf16.mxu0 0
    %3789 = vmatpush1.bf16.msra.mxu0 %v3596
    %3790 = vmatprep.subr.bf16.mxu0 0
    %3791 = vmatpush1.bf16.msra.mxu0 %v3595
    %3792 = vmatprep.subr.bf16.mxu0 0
    %3793 = vmatpush1.bf16.msra.mxu0 %v3594
    %3794 = vmatprep.subr.bf16.mxu0 0
    %3795 = vmatpush1.bf16.msra.mxu0 %v3593
    %3796 = vmatprep.subr.bf16.mxu0 0
    %3797 = vmatpush1.bf16.msra.mxu0 %v3592
    %3798 = vmatprep.subr.bf16.mxu0 0
    %3799 = vmatpush1.bf16.msra.mxu0 %v3591
    %3800 = vmatprep.subr.bf16.mxu0 0
    %3801 = vmatpush2.bf16.msra.mxu0 0
    %3802 = vmatprep.subr.bf16.mxu0 0
    %3803 = vmatpush2.bf16.msra.mxu0 0
    %3804 = vmatprep.subr.bf16.mxu0 0
    %3805 = vmatpush2.bf16.msra.mxu0 0
    %3806 = vmatprep.subr.bf16.mxu0 0
    %3807 = vmatpush2.bf16.msra.mxu0 0
    %3808 = vmatprep.subr.bf16.mxu0 0
    %3809 = vmatpush2.bf16.msra.mxu0 0
    %3810 = vmatprep.subr.bf16.mxu0 0
    %3811 = vmatpush2.bf16.msra.mxu0 0
    %3812 = vmatprep.subr.bf16.mxu0 0
    %3813 = vmatpush2.bf16.msra.mxu0 0
    %3814 = vmatprep.subr.bf16.mxu0 0
    %3815 = vmatpush2.bf16.msra.mxu0 0
    %3816 = vmatprep.mubr.bf16.mxu0 0
    %3817 = vmatmul.mubr.bf16.gmra.mxu0 %v2389
    %v3818 = vpop.f32.mrf.mxu0
    %v3819 = vadd.f32 %v3658, %v3818
    %v3820 = vpop.f32.mrf.mxu0
    %v3821 = vpop.f32.mrf.mxu0
    %v3822 = vadd.f32 %v3661, %v3821
    %v3823 = vpop.f32.mrf.mxu0
    %3824 = vmatprep.mubr.bf16.mxu0 0
    %3825 = vmatmul.mubr.bf16.gmra.mxu0 %v2392
    %v3826 = vpop.f32.mrf.mxu0
    %v3827 = vadd.f32 %v3666, %v3826
    %v3828 = vpop.f32.mrf.mxu0
    %v3829 = vpop.f32.mrf.mxu0
    %v3830 = vadd.f32 %v3669, %v3829
    %v3831 = vpop.f32.mrf.mxu0
    %3832 = vmatprep.mubr.bf16.mxu0 0
    %3833 = vmatmul.mubr.bf16.gmra.mxu0 %v2395
    %v3834 = vpop.f32.mrf.mxu0
    %v3835 = vadd.f32 %v3674, %v3834
    %v3836 = vpop.f32.mrf.mxu0
    %v3837 = vpop.f32.mrf.mxu0
    %v3838 = vadd.f32 %v3677, %v3837
    %v3839 = vpop.f32.mrf.mxu0
    %3840 = vmatprep.mubr.bf16.mxu0 0
    %3841 = vmatmul.mubr.bf16.gmra.mxu0 %v2398
    %v3842 = vpop.f32.mrf.mxu0
    %v3843 = vadd.f32 %v3682, %v3842
    %v3844 = vpop.f32.mrf.mxu0
    %v3845 = vpop.f32.mrf.mxu0
    %v3846 = vadd.f32 %v3685, %v3845
    %v3847 = vpop.f32.mrf.mxu0
    %3848 = vmatprep.mubr.bf16.mxu0 0
    %3849 = vmatmul.mubr.bf16.gmra.mxu0 %v2401
    %v3850 = vpop.f32.mrf.mxu0
    %v3851 = vadd.f32 %v3690, %v3850
    %v3852 = vpop.f32.mrf.mxu0
    %v3853 = vpop.f32.mrf.mxu0
    %v3854 = vadd.f32 %v3693, %v3853
    %v3855 = vpop.f32.mrf.mxu0
    %3856 = vmatprep.mubr.bf16.mxu0 0
    %3857 = vmatmul.mubr.bf16.gmra.mxu0 %v2404
    %v3858 = vpop.f32.mrf.mxu0
    %v3859 = vadd.f32 %v3698, %v3858
    %v3860 = vpop.f32.mrf.mxu0
    %v3861 = vpop.f32.mrf.mxu0
    %v3862 = vadd.f32 %v3701, %v3861
    %v3863 = vpop.f32.mrf.mxu0
    %3864 = vmatprep.mubr.bf16.mxu0 0
    %3865 = vmatmul.mubr.bf16.gmra.mxu0 %v2407
    %v3866 = vpop.f32.mrf.mxu0
    %v3867 = vadd.f32 %v3706, %v3866
    %v3868 = vpop.f32.mrf.mxu0
    %v3869 = vpop.f32.mrf.mxu0
    %v3870 = vadd.f32 %v3709, %v3869
    %v3871 = vpop.f32.mrf.mxu0
    %3872 = vmatprep.mubr.bf16.mxu0 0
    %3873 = vmatmul.mubr.bf16.gmra.mxu0 %v2410
    %v3874 = vpop.f32.mrf.mxu0
    %v3875 = vadd.f32 %v3714, %v3874
    %v3876 = vpop.f32.mrf.mxu0
    %v3877 = vpop.f32.mrf.mxu0
    %v3878 = vadd.f32 %v3717, %v3877
    %v3879 = vpop.f32.mrf.mxu0
    %3880 = vmatprep.mubr.bf16.mxu0 0
    %3881 = vmatmul.mubr.bf16.gmra.mxu0 %v2413
    %v3882 = vpop.f32.mrf.mxu0
    %v3883 = vadd.f32 %v3722, %v3882
    %v3884 = vpop.f32.mrf.mxu0
    %v3885 = vpop.f32.mrf.mxu0
    %v3886 = vadd.f32 %v3725, %v3885
    %v3887 = vpop.f32.mrf.mxu0
    %3888 = vmatprep.mubr.bf16.mxu0 0
    %3889 = vmatmul.mubr.bf16.gmra.mxu0 %v2416
    %v3890 = vpop.f32.mrf.mxu0
    %v3891 = vadd.f32 %v3730, %v3890
    %v3892 = vpop.f32.mrf.mxu0
    %v3893 = vpop.f32.mrf.mxu0
    %v3894 = vadd.f32 %v3733, %v3893
    %v3895 = vpop.f32.mrf.mxu0
    %3896 = vmatprep.mubr.bf16.mxu0 0
    %3897 = vmatmul.mubr.bf16.gmra.mxu0 %v2419
    %v3898 = vpop.f32.mrf.mxu0
    %v3899 = vadd.f32 %v3738, %v3898
    %v3900 = vpop.f32.mrf.mxu0
    %v3901 = vpop.f32.mrf.mxu0
    %v3902 = vadd.f32 %v3741, %v3901
    %v3903 = vpop.f32.mrf.mxu0
    %3904 = vmatprep.mubr.bf16.mxu0 0
    %3905 = vmatmul.mubr.bf16.gmra.mxu0 %v2422
    %v3906 = vpop.f32.mrf.mxu0
    %v3907 = vadd.f32 %v3746, %v3906
    %v3908 = vpop.f32.mrf.mxu0
    %v3909 = vpop.f32.mrf.mxu0
    %v3910 = vadd.f32 %v3749, %v3909
    %v3911 = vpop.f32.mrf.mxu0
    %3912 = vmatprep.mubr.bf16.mxu0 0
    %3913 = vmatmul.mubr.bf16.gmra.mxu0 %v2425
    %v3914 = vpop.f32.mrf.mxu0
    %v3915 = vadd.f32 %v3754, %v3914
    %v3916 = vpop.f32.mrf.mxu0
    %v3917 = vpop.f32.mrf.mxu0
    %v3918 = vadd.f32 %v3757, %v3917
    %v3919 = vpop.f32.mrf.mxu0
    %3920 = vmatprep.mubr.bf16.mxu0 0
    %3921 = vmatmul.mubr.bf16.gmra.mxu0 %v2428
    %v3922 = vpop.f32.mrf.mxu0
    %v3923 = vadd.f32 %v3762, %v3922
    %v3924 = vpop.f32.mrf.mxu0
    %v3925 = vpop.f32.mrf.mxu0
    %v3926 = vadd.f32 %v3765, %v3925
    %v3927 = vpop.f32.mrf.mxu0
    %3928 = vmatprep.mubr.bf16.mxu0 0
    %3929 = vmatmul.mubr.bf16.gmra.mxu0 %v2431
    %v3930 = vpop.f32.mrf.mxu0
    %v3931 = vadd.f32 %v3770, %v3930
    %v3932 = vpop.f32.mrf.mxu0
    %v3933 = vpop.f32.mrf.mxu0
    %v3934 = vadd.f32 %v3773, %v3933
    %v3935 = vpop.f32.mrf.mxu0
    %3936 = vmatprep.mubr.bf16.mxu0 0
    %3937 = vmatmul.mubr.bf16.gmra.mxu0 %v2434
    %v3938 = vpop.f32.mrf.mxu0
    %v3939 = vadd.f32 %v3778, %v3938
    %v3940 = vpop.f32.mrf.mxu0
    %v3941 = vpop.f32.mrf.mxu0
    %v3942 = vadd.f32 %v3781, %v3941
    %v3943 = vpop.f32.mrf.mxu0
    %3944 = vdwg.mxu0
    %v3945 = vadd.f32 %v3819, %v3361
    %v3946 = vadd.f32 %v3822, %v3364
    %v3947 = vadd.f32 %v3827, %v3369
    %v3948 = vadd.f32 %v3830, %v3372
    %v3949 = vadd.f32 %v3835, %v3377
    %v3950 = vadd.f32 %v3838, %v3380
    %v3951 = vadd.f32 %v3843, %v3385
    %v3952 = vadd.f32 %v3846, %v3388
    %v3953 = vadd.f32 %v3851, %v3393
    %v3954 = vadd.f32 %v3854, %v3396
    %v3955 = vadd.f32 %v3859, %v3401
    %v3956 = vadd.f32 %v3862, %v3404
    %v3957 = vadd.f32 %v3867, %v3409
    %v3958 = vadd.f32 %v3870, %v3412
    %v3959 = vadd.f32 %v3875, %v3417
    %v3960 = vadd.f32 %v3878, %v3420
    %v3961 = vadd.f32 %v3883, %v3425
    %v3962 = vadd.f32 %v3886, %v3428
    %v3963 = vadd.f32 %v3891, %v3433
    %v3964 = vadd.f32 %v3894, %v3436
    %v3965 = vadd.f32 %v3899, %v3441
    %v3966 = vadd.f32 %v3902, %v3444
    %v3967 = vadd.f32 %v3907, %v3449
    %v3968 = vadd.f32 %v3910, %v3452
    %v3969 = vadd.f32 %v3915, %v3457
    %v3970 = vadd.f32 %v3918, %v3460
    %v3971 = vadd.f32 %v3923, %v3465
    %v3972 = vadd.f32 %v3926, %v3468
    %v3973 = vadd.f32 %v3931, %v3473
    %v3974 = vadd.f32 %v3934, %v3476
    %v3975 = vadd.f32 %v3939, 0.0
    %v3976 = vadd.f32 %v3942, 0.0
    %v3977 = vadd.f32 %v3945, %v3946
    %v3978 = vadd.f32 %v3977, %v3947
    %v3979 = vadd.f32 %v3978, %v3948
    %v3980 = vadd.f32 %v3979, %v3949
    %v3981 = vadd.f32 %v3980, %v3950
    %v3982 = vadd.f32 %v3981, %v3951
    %v3983 = vadd.f32 %v3982, %v3952
    %v3984 = vadd.f32 %v3983, %v3953
    %v3985 = vadd.f32 %v3984, %v3954
    %v3986 = vadd.f32 %v3985, %v3955
    %v3987 = vadd.f32 %v3986, %v3956
    %v3988 = vadd.f32 %v3987, %v3957
    %v3989 = vadd.f32 %v3988, %v3958
    %v3990 = vadd.f32 %v3989, %v3959
    %v3991 = vadd.f32 %v3990, %v3960
    %v3992 = vadd.f32 %v3991, %v3961
    %v3993 = vadd.f32 %v3992, %v3962
    %v3994 = vadd.f32 %v3993, %v3963
    %v3995 = vadd.f32 %v3994, %v3964
    %v3996 = vadd.f32 %v3995, %v3965
    %v3997 = vadd.f32 %v3996, %v3966
    %v3998 = vadd.f32 %v3997, %v3967
    %v3999 = vadd.f32 %v3998, %v3968
    %v4000 = vadd.f32 %v3999, %v3969
    %v4001 = vadd.f32 %v4000, %v3970
    %v4002 = vadd.f32 %v4001, %v3971
    %v4003 = vadd.f32 %v4002, %v3972
    %v4004 = vadd.f32 %v4003, %v3973
    %v4005 = vadd.f32 %v4004, %v3974
    %v4006 = vadd.f32 %v4005, %v3975
    %v4007 = vadd.f32 %v4006, %v3976
    %v4008 = vrot.slane %v4007, 4
    %v4009 = vadd.f32 %v4007, %v4008
    %v4010 = vrot.slane %v4009, 2
    %v4011 = vadd.f32 %v4009, %v4010
    %v4012 = vrot.slane %v4011, 1
    %v4013 = vadd.f32 %v4011, %v4012
    %v4014 = vadd.f32 %v1931, %v4013
    %v4015 = vmul.f32 %v3945, %v3945
    %v4016 = vmul.f32 %v3946, %v3946
    %v4017 = vmul.f32 %v3947, %v3947
    %v4018 = vmul.f32 %v3948, %v3948
    %v4019 = vmul.f32 %v3949, %v3949
    %v4020 = vmul.f32 %v3950, %v3950
    %v4021 = vmul.f32 %v3951, %v3951
    %v4022 = vmul.f32 %v3952, %v3952
    %v4023 = vmul.f32 %v3953, %v3953
    %v4024 = vmul.f32 %v3954, %v3954
    %v4025 = vmul.f32 %v3955, %v3955
    %v4026 = vmul.f32 %v3956, %v3956
    %v4027 = vmul.f32 %v3957, %v3957
    %v4028 = vmul.f32 %v3958, %v3958
    %v4029 = vmul.f32 %v3959, %v3959
    %v4030 = vmul.f32 %v3960, %v3960
    %v4031 = vmul.f32 %v3961, %v3961
    %v4032 = vmul.f32 %v3962, %v3962
    %v4033 = vmul.f32 %v3963, %v3963
    %v4034 = vmul.f32 %v3964, %v3964
    %v4035 = vmul.f32 %v3965, %v3965
    %v4036 = vmul.f32 %v3966, %v3966
    %v4037 = vmul.f32 %v3967, %v3967
    %v4038 = vmul.f32 %v3968, %v3968
    %v4039 = vmul.f32 %v3969, %v3969
    %v4040 = vmul.f32 %v3970, %v3970
    %v4041 = vmul.f32 %v3971, %v3971
    %v4042 = vmul.f32 %v3972, %v3972
    %v4043 = vmul.f32 %v3973, %v3973
    %v4044 = vmul.f32 %v3974, %v3974
    %v4045 = vmul.f32 %v3975, %v3975
    %v4046 = vmul.f32 %v3976, %v3976
    %v4047 = vadd.f32 %v4015, %v4016
    %v4048 = vadd.f32 %v4047, %v4017
    %v4049 = vadd.f32 %v4048, %v4018
    %v4050 = vadd.f32 %v4049, %v4019
    %v4051 = vadd.f32 %v4050, %v4020
    %v4052 = vadd.f32 %v4051, %v4021
    %v4053 = vadd.f32 %v4052, %v4022
    %v4054 = vadd.f32 %v4053, %v4023
    %v4055 = vadd.f32 %v4054, %v4024
    %v4056 = vadd.f32 %v4055, %v4025
    %v4057 = vadd.f32 %v4056, %v4026
    %v4058 = vadd.f32 %v4057, %v4027
    %v4059 = vadd.f32 %v4058, %v4028
    %v4060 = vadd.f32 %v4059, %v4029
    %v4061 = vadd.f32 %v4060, %v4030
    %v4062 = vadd.f32 %v4061, %v4031
    %v4063 = vadd.f32 %v4062, %v4032
    %v4064 = vadd.f32 %v4063, %v4033
    %v4065 = vadd.f32 %v4064, %v4034
    %v4066 = vadd.f32 %v4065, %v4035
    %v4067 = vadd.f32 %v4066, %v4036
    %v4068 = vadd.f32 %v4067, %v4037
    %v4069 = vadd.f32 %v4068, %v4038
    %v4070 = vadd.f32 %v4069, %v4039
    %v4071 = vadd.f32 %v4070, %v4040
    %v4072 = vadd.f32 %v4071, %v4041
    %v4073 = vadd.f32 %v4072, %v4042
    %v4074 = vadd.f32 %v4073, %v4043
    %v4075 = vadd.f32 %v4074, %v4044
    %v4076 = vadd.f32 %v4075, %v4045
    %v4077 = vadd.f32 %v4076, %v4046
    %v4078 = vrot.slane %v4077, 4
    %v4079 = vadd.f32 %v4077, %v4078
    %v4080 = vrot.slane %v4079, 2
    %v4081 = vadd.f32 %v4079, %v4080
    %v4082 = vrot.slane %v4081, 1
    %v4083 = vadd.f32 %v4081, %v4082
    %v4084 = vadd.f32 %v2001, %v4083
    %v4085 = vpack.c.bf16 %v3946, %v3945
    %v4086 = vpack.c.bf16 %v3948, %v3947
    %v4087 = vpack.c.bf16 %v3950, %v3949
    %v4088 = vpack.c.bf16 %v3952, %v3951
    %v4089 = vpack.c.bf16 %v3954, %v3953
    %v4090 = vpack.c.bf16 %v3956, %v3955
    %v4091 = vpack.c.bf16 %v3958, %v3957
    %v4092 = vpack.c.bf16 %v3960, %v3959
    %v4093 = vpack.c.bf16 %v3962, %v3961
    %v4094 = vpack.c.bf16 %v3964, %v3963
    %v4095 = vpack.c.bf16 %v3966, %v3965
    %v4096 = vpack.c.bf16 %v3968, %v3967
    %v4097 = vpack.c.bf16 %v3970, %v3969
    %v4098 = vpack.c.bf16 %v3972, %v3971
    %v4099 = vpack.c.bf16 %v3974, %v3973
    %v4100 = vpack.c.bf16 %v3976, %v3975
    %v4117 = vunpack.c.l.b16 %v4085
    %v4118 = vunpack.c.h.b16 %v4085
    %v4119 = vunpack.c.l.b16 %v4086
    %v4120 = vunpack.c.h.b16 %v4086
    %v4121 = vunpack.c.l.b16 %v4087
    %v4122 = vunpack.c.h.b16 %v4087
    %v4123 = vunpack.c.l.b16 %v4088
    %v4124 = vunpack.c.h.b16 %v4088
    %v4125 = vunpack.c.l.b16 %v4089
    %v4126 = vunpack.c.h.b16 %v4089
    %v4127 = vunpack.c.l.b16 %v4090
    %v4128 = vunpack.c.h.b16 %v4090
    %v4129 = vunpack.c.l.b16 %v4091
    %v4130 = vunpack.c.h.b16 %v4091
    %v4131 = vunpack.c.l.b16 %v4092
    %v4132 = vunpack.c.h.b16 %v4092
    %v4133 = vunpack.c.l.b16 %v4093
    %v4134 = vunpack.c.h.b16 %v4093
    %v4135 = vunpack.c.l.b16 %v4094
    %v4136 = vunpack.c.h.b16 %v4094
    %v4137 = vunpack.c.l.b16 %v4095
    %v4138 = vunpack.c.h.b16 %v4095
    %v4139 = vunpack.c.l.b16 %v4096
    %v4140 = vunpack.c.h.b16 %v4096
    %v4141 = vunpack.c.l.b16 %v4097
    %v4142 = vunpack.c.h.b16 %v4097
    %v4143 = vunpack.c.l.b16 %v4098
    %v4144 = vunpack.c.h.b16 %v4098
    %v4145 = vunpack.c.l.b16 %v4099
    %v4146 = vunpack.c.h.b16 %v4099
    %v4147 = vunpack.c.l.b16 %v4100
    %v4148 = vunpack.c.h.b16 %v4100
    %v4149 = vpack.c.b16 %v4117, %v4117
    %v4150 = vpack.c.b16 %v4118, %v4118
    %v4151 = vpack.c.b16 %v4119, %v4119
    %v4152 = vpack.c.b16 %v4120, %v4120
    %v4153 = vpack.c.b16 %v4121, %v4121
    %v4154 = vpack.c.b16 %v4122, %v4122
    %v4155 = vpack.c.b16 %v4123, %v4123
    %v4156 = vpack.c.b16 %v4124, %v4124
    %v4157 = vpack.c.b16 %v4125, %v4125
    %v4158 = vpack.c.b16 %v4126, %v4126
    %v4159 = vpack.c.b16 %v4127, %v4127
    %v4160 = vpack.c.b16 %v4128, %v4128
    %v4161 = vpack.c.b16 %v4129, %v4129
    %v4162 = vpack.c.b16 %v4130, %v4130
    %v4163 = vpack.c.b16 %v4131, %v4131
    %v4164 = vpack.c.b16 %v4132, %v4132
    %v4165 = vpack.c.b16 %v4133, %v4133
    %v4166 = vpack.c.b16 %v4134, %v4134
    %v4167 = vpack.c.b16 %v4135, %v4135
    %v4168 = vpack.c.b16 %v4136, %v4136
    %v4169 = vpack.c.b16 %v4137, %v4137
    %v4170 = vpack.c.b16 %v4138, %v4138
    %v4171 = vpack.c.b16 %v4139, %v4139
    %v4172 = vpack.c.b16 %v4140, %v4140
    %v4173 = vpack.c.b16 %v4141, %v4141
    %v4174 = vpack.c.b16 %v4142, %v4142
    %v4175 = vpack.c.b16 %v4143, %v4143
    %v4176 = vpack.c.b16 %v4144, %v4144
    %v4177 = vpack.c.b16 %v4145, %v4145
    %v4178 = vpack.c.b16 %v4146, %v4146
    %v4179 = vpack.c.b16 %v4147, %v4147
    %v4180 = vpack.c.b16 %v4148, %v4148
    %s4213 = scalar_lea.vmem [#allocation2], 128
    %4214 = vst [vmem:[%s4213] sm:$0xf] %v4149
    %4215 = vst [vmem:[%s4213 + $0x4] sm:$0xf] %v4150
    %4216 = vst [vmem:[%s4213 + $0x8] sm:$0xf] %v4151
    %4217 = vst [vmem:[%s4213 + $0xc] sm:$0xf] %v4152
    %4218 = vst [vmem:[%s4213 + $0x10] sm:$0xf] %v4153
    %4219 = vst [vmem:[%s4213 + $0x14] sm:$0xf] %v4154
    %4220 = vst [vmem:[%s4213 + $0x18] sm:$0xf] %v4155
    %4221 = vst [vmem:[%s4213 + $0x1c] sm:$0xf] %v4156
    %4222 = vst [vmem:[%s4213 + $0x20] sm:$0xf] %v4157
    %4223 = vst [vmem:[%s4213 + $0x24] sm:$0xf] %v4158
    %4224 = vst [vmem:[%s4213 + $0x28] sm:$0xf] %v4159
    %4225 = vst [vmem:[%s4213 + $0x2c] sm:$0xf] %v4160
    %4226 = vst [vmem:[%s4213 + $0x30] sm:$0xf] %v4161
    %4227 = vst [vmem:[%s4213 + $0x34] sm:$0xf] %v4162
    %4228 = vst [vmem:[%s4213 + $0x38] sm:$0xf] %v4163
    %4229 = vst [vmem:[%s4213 + $0x3c] sm:$0xf] %v4164
    %4230 = vst [vmem:[%s4213 + $0x40] sm:$0xf] %v4165
    %4231 = vst [vmem:[%s4213 + $0x44] sm:$0xf] %v4166
    %4232 = vst [vmem:[%s4213 + $0x48] sm:$0xf] %v4167
    %4233 = vst [vmem:[%s4213 + $0x4c] sm:$0xf] %v4168
    %4234 = vst [vmem:[%s4213 + $0x50] sm:$0xf] %v4169
    %4235 = vst [vmem:[%s4213 + $0x54] sm:$0xf] %v4170
    %4236 = vst [vmem:[%s4213 + $0x58] sm:$0xf] %v4171
    %4237 = vst [vmem:[%s4213 + $0x5c] sm:$0xf] %v4172
    %4238 = vst [vmem:[%s4213 + $0x60] sm:$0xf] %v4173
    %4239 = vst [vmem:[%s4213 + $0x64] sm:$0xf] %v4174
    %4240 = vst [vmem:[%s4213 + $0x68] sm:$0xf] %v4175
    %4241 = vst [vmem:[%s4213 + $0x6c] sm:$0xf] %v4176
    %4242 = vst [vmem:[%s4213 + $0x70] sm:$0xf] %v4177
    %4243 = vst [vmem:[%s4213 + $0x74] sm:$0xf] %v4178
    %4244 = vst [vmem:[%s4213 + $0x78] sm:$0xf] %v4179
    %4245 = vst [vmem:[%s4213 + $0x7c] sm:$0xf] %v4180
    %v4246 = vld [vmem:[%s2] sm:$0x1]
    %v4247 = vld [vmem:[%s3] sm:$0x1]
    %v4248 = vmul.f32 %v4014, 0.001953125
    %v4249 = vmul.f32 %v4084, 0.001953125
    %v4250 = vmul.f32 %v4248, %v4248
    %v4251 = vsub.f32 %v4249, %v4250
    %v4252 = vmax.f32 %v4251, 0.0
    %v4253 = vadd.f32 %v4252, 1e-05
    %v4254 = vrsqrt.pop %v4253
    %v4255 = vmul.f32 %v4246, %v4254
    %v4256 = vmul.f32 %v4248, %v4255
    %v4257 = vsub.f32 %v4247, %v4256
    %v4258 = vld [vmem:[#allocation2] sm:$0xf]
    %v4259 = vld [vmem:[#allocation2 + $0x4] sm:$0xf]
    %v4260 = vld [vmem:[#allocation2 + $0x8] sm:$0xf]
    %v4261 = vld [vmem:[#allocation2 + $0xc] sm:$0xf]
    %v4262 = vld [vmem:[#allocation2 + $0x10] sm:$0xf]
    %v4263 = vld [vmem:[#allocation2 + $0x14] sm:$0xf]
    %v4264 = vld [vmem:[#allocation2 + $0x18] sm:$0xf]
    %v4265 = vld [vmem:[#allocation2 + $0x1c] sm:$0xf]
    %v4266 = vld [vmem:[#allocation2 + $0x20] sm:$0xf]
    %v4267 = vld [vmem:[#allocation2 + $0x24] sm:$0xf]
    %v4268 = vld [vmem:[#allocation2 + $0x28] sm:$0xf]
    %v4269 = vld [vmem:[#allocation2 + $0x2c] sm:$0xf]
    %v4270 = vld [vmem:[#allocation2 + $0x30] sm:$0xf]
    %v4271 = vld [vmem:[#allocation2 + $0x34] sm:$0xf]
    %v4272 = vld [vmem:[#allocation2 + $0x38] sm:$0xf]
    %v4273 = vld [vmem:[#allocation2 + $0x3c] sm:$0xf]
    %v4274 = vld [vmem:[#allocation2 + $0x40] sm:$0xf]
    %v4275 = vld [vmem:[#allocation2 + $0x44] sm:$0xf]
    %v4276 = vld [vmem:[#allocation2 + $0x48] sm:$0xf]
    %v4277 = vld [vmem:[#allocation2 + $0x4c] sm:$0xf]
    %v4278 = vld [vmem:[#allocation2 + $0x50] sm:$0xf]
    %v4279 = vld [vmem:[#allocation2 + $0x54] sm:$0xf]
    %v4280 = vld [vmem:[#allocation2 + $0x58] sm:$0xf]
    %v4281 = vld [vmem:[#allocation2 + $0x5c] sm:$0xf]
    %v4282 = vld [vmem:[#allocation2 + $0x60] sm:$0xf]
    %v4283 = vld [vmem:[#allocation2 + $0x64] sm:$0xf]
    %v4284 = vld [vmem:[#allocation2 + $0x68] sm:$0xf]
    %v4285 = vld [vmem:[#allocation2 + $0x6c] sm:$0xf]
    %v4286 = vld [vmem:[#allocation2 + $0x70] sm:$0xf]
    %v4287 = vld [vmem:[#allocation2 + $0x74] sm:$0xf]
    %v4288 = vld [vmem:[#allocation2 + $0x78] sm:$0xf]
    %v4289 = vld [vmem:[#allocation2 + $0x7c] sm:$0xf]
    %v4290 = vunpack.c.l.bf16 %v4258
    %v4291 = vunpack.c.l.bf16 %v4259
    %v4292 = vunpack.c.l.bf16 %v4260
    %v4293 = vunpack.c.l.bf16 %v4261
    %v4294 = vunpack.c.l.bf16 %v4262
    %v4295 = vunpack.c.l.bf16 %v4263
    %v4296 = vunpack.c.l.bf16 %v4264
    %v4297 = vunpack.c.l.bf16 %v4265
    %v4298 = vunpack.c.l.bf16 %v4266
    %v4299 = vunpack.c.l.bf16 %v4267
    %v4300 = vunpack.c.l.bf16 %v4268
    %v4301 = vunpack.c.l.bf16 %v4269
    %v4302 = vunpack.c.l.bf16 %v4270
    %v4303 = vunpack.c.l.bf16 %v4271
    %v4304 = vunpack.c.l.bf16 %v4272
    %v4305 = vunpack.c.l.bf16 %v4273
    %v4306 = vunpack.c.l.bf16 %v4274
    %v4307 = vunpack.c.l.bf16 %v4275
    %v4308 = vunpack.c.l.bf16 %v4276
    %v4309 = vunpack.c.l.bf16 %v4277
    %v4310 = vunpack.c.l.bf16 %v4278
    %v4311 = vunpack.c.l.bf16 %v4279
    %v4312 = vunpack.c.l.bf16 %v4280
    %v4313 = vunpack.c.l.bf16 %v4281
    %v4314 = vunpack.c.l.bf16 %v4282
    %v4315 = vunpack.c.l.bf16 %v4283
    %v4316 = vunpack.c.l.bf16 %v4284
    %v4317 = vunpack.c.l.bf16 %v4285
    %v4318 = vunpack.c.l.bf16 %v4286
    %v4319 = vunpack.c.l.bf16 %v4287
    %v4320 = vunpack.c.l.bf16 %v4288
    %v4321 = vunpack.c.l.bf16 %v4289
    %v4323 = vlaneseq
    %v4324 = vshrl.u32 %v4323, 7
    %v4325 = vsub.s32 0, %v4324
    %v4326 = vrot.slane %v4255, %v4325
    %v4328 = vmul.f32 %v4290, %v4326
    %v4329 = vmul.f32 %v4291, %v4326
    %v4330 = vmul.f32 %v4292, %v4326
    %v4331 = vmul.f32 %v4293, %v4326
    %v4332 = vmul.f32 %v4294, %v4326
    %v4333 = vmul.f32 %v4295, %v4326
    %v4334 = vmul.f32 %v4296, %v4326
    %v4335 = vmul.f32 %v4297, %v4326
    %v4336 = vmul.f32 %v4298, %v4326
    %v4337 = vmul.f32 %v4299, %v4326
    %v4338 = vmul.f32 %v4300, %v4326
    %v4339 = vmul.f32 %v4301, %v4326
    %v4340 = vmul.f32 %v4302, %v4326
    %v4341 = vmul.f32 %v4303, %v4326
    %v4342 = vmul.f32 %v4304, %v4326
    %v4343 = vmul.f32 %v4305, %v4326
    %v4344 = vmul.f32 %v4306, %v4326
    %v4345 = vmul.f32 %v4307, %v4326
    %v4346 = vmul.f32 %v4308, %v4326
    %v4347 = vmul.f32 %v4309, %v4326
    %v4348 = vmul.f32 %v4310, %v4326
    %v4349 = vmul.f32 %v4311, %v4326
    %v4350 = vmul.f32 %v4312, %v4326
    %v4351 = vmul.f32 %v4313, %v4326
    %v4352 = vmul.f32 %v4314, %v4326
    %v4353 = vmul.f32 %v4315, %v4326
    %v4354 = vmul.f32 %v4316, %v4326
    %v4355 = vmul.f32 %v4317, %v4326
    %v4356 = vmul.f32 %v4318, %v4326
    %v4357 = vmul.f32 %v4319, %v4326
    %v4358 = vmul.f32 %v4320, %v4326
    %v4359 = vmul.f32 %v4321, %v4326
    %v4361 = vlaneseq
    %v4362 = vshrl.u32 %v4361, 7
    %v4363 = vsub.s32 0, %v4362
    %v4364 = vrot.slane %v4257, %v4363
    %v4366 = vadd.f32 %v4328, %v4364
    %v4367 = vadd.f32 %v4329, %v4364
    %v4368 = vadd.f32 %v4330, %v4364
    %v4369 = vadd.f32 %v4331, %v4364
    %v4370 = vadd.f32 %v4332, %v4364
    %v4371 = vadd.f32 %v4333, %v4364
    %v4372 = vadd.f32 %v4334, %v4364
    %v4373 = vadd.f32 %v4335, %v4364
    %v4374 = vadd.f32 %v4336, %v4364
    %v4375 = vadd.f32 %v4337, %v4364
    %v4376 = vadd.f32 %v4338, %v4364
    %v4377 = vadd.f32 %v4339, %v4364
    %v4378 = vadd.f32 %v4340, %v4364
    %v4379 = vadd.f32 %v4341, %v4364
    %v4380 = vadd.f32 %v4342, %v4364
    %v4381 = vadd.f32 %v4343, %v4364
    %v4382 = vadd.f32 %v4344, %v4364
    %v4383 = vadd.f32 %v4345, %v4364
    %v4384 = vadd.f32 %v4346, %v4364
    %v4385 = vadd.f32 %v4347, %v4364
    %v4386 = vadd.f32 %v4348, %v4364
    %v4387 = vadd.f32 %v4349, %v4364
    %v4388 = vadd.f32 %v4350, %v4364
    %v4389 = vadd.f32 %v4351, %v4364
    %v4390 = vadd.f32 %v4352, %v4364
    %v4391 = vadd.f32 %v4353, %v4364
    %v4392 = vadd.f32 %v4354, %v4364
    %v4393 = vadd.f32 %v4355, %v4364
    %v4394 = vadd.f32 %v4356, %v4364
    %v4395 = vadd.f32 %v4357, %v4364
    %v4396 = vadd.f32 %v4358, %v4364
    %v4397 = vadd.f32 %v4359, %v4364
    %v4398 = vmax.f32 %v4366, 0.0
    %v4399 = vmax.f32 %v4367, 0.0
    %v4400 = vmax.f32 %v4368, 0.0
    %v4401 = vmax.f32 %v4369, 0.0
    %v4402 = vmax.f32 %v4370, 0.0
    %v4403 = vmax.f32 %v4371, 0.0
    %v4404 = vmax.f32 %v4372, 0.0
    %v4405 = vmax.f32 %v4373, 0.0
    %v4406 = vmax.f32 %v4374, 0.0
    %v4407 = vmax.f32 %v4375, 0.0
    %v4408 = vmax.f32 %v4376, 0.0
    %v4409 = vmax.f32 %v4377, 0.0
    %v4410 = vmax.f32 %v4378, 0.0
    %v4411 = vmax.f32 %v4379, 0.0
    %v4412 = vmax.f32 %v4380, 0.0
    %v4413 = vmax.f32 %v4381, 0.0
    %v4414 = vmax.f32 %v4382, 0.0
    %v4415 = vmax.f32 %v4383, 0.0
    %v4416 = vmax.f32 %v4384, 0.0
    %v4417 = vmax.f32 %v4385, 0.0
    %v4418 = vmax.f32 %v4386, 0.0
    %v4419 = vmax.f32 %v4387, 0.0
    %v4420 = vmax.f32 %v4388, 0.0
    %v4421 = vmax.f32 %v4389, 0.0
    %v4422 = vmax.f32 %v4390, 0.0
    %v4423 = vmax.f32 %v4391, 0.0
    %v4424 = vmax.f32 %v4392, 0.0
    %v4425 = vmax.f32 %v4393, 0.0
    %v4426 = vmax.f32 %v4394, 0.0
    %v4427 = vmax.f32 %v4395, 0.0
    %v4428 = vmax.f32 %v4396, 0.0
    %v4429 = vmax.f32 %v4397, 0.0
    %v4430 = vrot.slane %v4398, 7
    %v4431 = vrot.slane %v4399, 7
    %v4432 = vrot.slane %v4400, 7
    %v4433 = vrot.slane %v4401, 7
    %v4434 = vrot.slane %v4402, 7
    %v4435 = vrot.slane %v4403, 7
    %v4436 = vrot.slane %v4404, 7
    %v4437 = vrot.slane %v4405, 7
    %v4438 = vrot.slane %v4406, 7
    %v4439 = vrot.slane %v4407, 7
    %v4440 = vrot.slane %v4408, 7
    %v4441 = vrot.slane %v4409, 7
    %v4442 = vrot.slane %v4410, 7
    %v4443 = vrot.slane %v4411, 7
    %v4444 = vrot.slane %v4412, 7
    %v4445 = vrot.slane %v4413, 7
    %v4446 = vrot.slane %v4414, 7
    %v4447 = vrot.slane %v4415, 7
    %v4448 = vrot.slane %v4416, 7
    %v4449 = vrot.slane %v4417, 7
    %v4450 = vrot.slane %v4418, 7
    %v4451 = vrot.slane %v4419, 7
    %v4452 = vrot.slane %v4420, 7
    %v4453 = vrot.slane %v4421, 7
    %v4454 = vrot.slane %v4422, 7
    %v4455 = vrot.slane %v4423, 7
    %v4456 = vrot.slane %v4424, 7
    %v4457 = vrot.slane %v4425, 7
    %v4458 = vrot.slane %v4426, 7
    %v4459 = vrot.slane %v4427, 7
    %v4460 = vrot.slane %v4428, 7
    %v4461 = vrot.slane %v4429, 7
    %v4462 = vsel %vm140, %v4460, %v4461
    %v4463 = vsel %vm140, %v4459, %v4460
    %v4464 = vsel %vm140, %v4458, %v4459
    %v4465 = vsel %vm140, %v4457, %v4458
    %v4466 = vsel %vm140, %v4456, %v4457
    %v4467 = vsel %vm140, %v4455, %v4456
    %v4468 = vsel %vm140, %v4454, %v4455
    %v4469 = vsel %vm140, %v4453, %v4454
    %v4470 = vsel %vm140, %v4452, %v4453
    %v4471 = vsel %vm140, %v4451, %v4452
    %v4472 = vsel %vm140, %v4450, %v4451
    %v4473 = vsel %vm140, %v4449, %v4450
    %v4474 = vsel %vm140, %v4448, %v4449
    %v4475 = vsel %vm140, %v4447, %v4448
    %v4476 = vsel %vm140, %v4446, %v4447
    %v4477 = vsel %vm140, %v4445, %v4446
    %v4478 = vsel %vm140, %v4444, %v4445
    %v4479 = vsel %vm140, %v4443, %v4444
    %v4480 = vsel %vm140, %v4442, %v4443
    %v4481 = vsel %vm140, %v4441, %v4442
    %v4482 = vsel %vm140, %v4440, %v4441
    %v4483 = vsel %vm140, %v4439, %v4440
    %v4484 = vsel %vm140, %v4438, %v4439
    %v4485 = vsel %vm140, %v4437, %v4438
    %v4486 = vsel %vm140, %v4436, %v4437
    %v4487 = vsel %vm140, %v4435, %v4436
    %v4488 = vsel %vm140, %v4434, %v4435
    %v4489 = vsel %vm140, %v4433, %v4434
    %v4490 = vsel %vm140, %v4432, %v4433
    %v4491 = vsel %vm140, %v4431, %v4432
    %v4492 = vsel %vm140, %v4430, %v4431
    %v4493 = vsel %vm140, %v4461, %v4430
    %v4494 = vsel %vm72, %v4493, 0.0
    %v4495 = vsel %vm73, %v4492, 0.0
    %v4496 = vsel %vm72, %v4491, 0.0
    %v4497 = vsel %vm73, %v4490, 0.0
    %v4498 = vsel %vm72, %v4489, 0.0
    %v4499 = vsel %vm73, %v4488, 0.0
    %v4500 = vsel %vm72, %v4487, 0.0
    %v4501 = vsel %vm73, %v4486, 0.0
    %v4502 = vsel %vm72, %v4485, 0.0
    %v4503 = vsel %vm73, %v4484, 0.0
    %v4504 = vsel %vm72, %v4483, 0.0
    %v4505 = vsel %vm73, %v4482, 0.0
    %v4506 = vsel %vm72, %v4481, 0.0
    %v4507 = vsel %vm73, %v4480, 0.0
    %v4508 = vsel %vm72, %v4479, 0.0
    %v4509 = vsel %vm73, %v4478, 0.0
    %v4510 = vsel %vm72, %v4477, 0.0
    %v4511 = vsel %vm73, %v4476, 0.0
    %v4512 = vsel %vm72, %v4475, 0.0
    %v4513 = vsel %vm73, %v4474, 0.0
    %v4514 = vsel %vm72, %v4473, 0.0
    %v4515 = vsel %vm73, %v4472, 0.0
    %v4516 = vsel %vm72, %v4471, 0.0
    %v4517 = vsel %vm73, %v4470, 0.0
    %v4518 = vsel %vm72, %v4469, 0.0
    %v4519 = vsel %vm73, %v4468, 0.0
    %v4520 = vsel %vm72, %v4467, 0.0
    %v4521 = vsel %vm73, %v4466, 0.0
    %v4522 = vsel %vm72, %v4465, 0.0
    %v4523 = vsel %vm73, %v4464, 0.0
    %v4524 = vsel %vm72, %v4463, 0.0
    %v4525 = vsel %vm73, %v4462, 0.0
    %v4526 = vrot.slane %v4398, 1
    %v4527 = vrot.slane %v4399, 1
    %v4528 = vrot.slane %v4400, 1
    %v4529 = vrot.slane %v4401, 1
    %v4530 = vrot.slane %v4402, 1
    %v4531 = vrot.slane %v4403, 1
    %v4532 = vrot.slane %v4404, 1
    %v4533 = vrot.slane %v4405, 1
    %v4534 = vrot.slane %v4406, 1
    %v4535 = vrot.slane %v4407, 1
    %v4536 = vrot.slane %v4408, 1
    %v4537 = vrot.slane %v4409, 1
    %v4538 = vrot.slane %v4410, 1
    %v4539 = vrot.slane %v4411, 1
    %v4540 = vrot.slane %v4412, 1
    %v4541 = vrot.slane %v4413, 1
    %v4542 = vrot.slane %v4414, 1
    %v4543 = vrot.slane %v4415, 1
    %v4544 = vrot.slane %v4416, 1
    %v4545 = vrot.slane %v4417, 1
    %v4546 = vrot.slane %v4418, 1
    %v4547 = vrot.slane %v4419, 1
    %v4548 = vrot.slane %v4420, 1
    %v4549 = vrot.slane %v4421, 1
    %v4550 = vrot.slane %v4422, 1
    %v4551 = vrot.slane %v4423, 1
    %v4552 = vrot.slane %v4424, 1
    %v4553 = vrot.slane %v4425, 1
    %v4554 = vrot.slane %v4426, 1
    %v4555 = vrot.slane %v4427, 1
    %v4556 = vrot.slane %v4428, 1
    %v4557 = vrot.slane %v4429, 1
    %v4558 = vsel %vm237, %v4556, %v4557
    %v4559 = vsel %vm237, %v4555, %v4556
    %v4560 = vsel %vm237, %v4554, %v4555
    %v4561 = vsel %vm237, %v4553, %v4554
    %v4562 = vsel %vm237, %v4552, %v4553
    %v4563 = vsel %vm237, %v4551, %v4552
    %v4564 = vsel %vm237, %v4550, %v4551
    %v4565 = vsel %vm237, %v4549, %v4550
    %v4566 = vsel %vm237, %v4548, %v4549
    %v4567 = vsel %vm237, %v4547, %v4548
    %v4568 = vsel %vm237, %v4546, %v4547
    %v4569 = vsel %vm237, %v4545, %v4546
    %v4570 = vsel %vm237, %v4544, %v4545
    %v4571 = vsel %vm237, %v4543, %v4544
    %v4572 = vsel %vm237, %v4542, %v4543
    %v4573 = vsel %vm237, %v4541, %v4542
    %v4574 = vsel %vm237, %v4540, %v4541
    %v4575 = vsel %vm237, %v4539, %v4540
    %v4576 = vsel %vm237, %v4538, %v4539
    %v4577 = vsel %vm237, %v4537, %v4538
    %v4578 = vsel %vm237, %v4536, %v4537
    %v4579 = vsel %vm237, %v4535, %v4536
    %v4580 = vsel %vm237, %v4534, %v4535
    %v4581 = vsel %vm237, %v4533, %v4534
    %v4582 = vsel %vm237, %v4532, %v4533
    %v4583 = vsel %vm237, %v4531, %v4532
    %v4584 = vsel %vm237, %v4530, %v4531
    %v4585 = vsel %vm237, %v4529, %v4530
    %v4586 = vsel %vm237, %v4528, %v4529
    %v4587 = vsel %vm237, %v4527, %v4528
    %v4588 = vsel %vm237, %v4526, %v4527
    %v4589 = vsel %vm237, %v4557, %v4526
    %v4590 = vsel %vm74, %v4588, 0.0
    %v4591 = vsel %vm75, %v4587, 0.0
    %v4592 = vsel %vm74, %v4586, 0.0
    %v4593 = vsel %vm75, %v4585, 0.0
    %v4594 = vsel %vm74, %v4584, 0.0
    %v4595 = vsel %vm75, %v4583, 0.0
    %v4596 = vsel %vm74, %v4582, 0.0
    %v4597 = vsel %vm75, %v4581, 0.0
    %v4598 = vsel %vm74, %v4580, 0.0
    %v4599 = vsel %vm75, %v4579, 0.0
    %v4600 = vsel %vm74, %v4578, 0.0
    %v4601 = vsel %vm75, %v4577, 0.0
    %v4602 = vsel %vm74, %v4576, 0.0
    %v4603 = vsel %vm75, %v4575, 0.0
    %v4604 = vsel %vm74, %v4574, 0.0
    %v4605 = vsel %vm75, %v4573, 0.0
    %v4606 = vsel %vm74, %v4572, 0.0
    %v4607 = vsel %vm75, %v4571, 0.0
    %v4608 = vsel %vm74, %v4570, 0.0
    %v4609 = vsel %vm75, %v4569, 0.0
    %v4610 = vsel %vm74, %v4568, 0.0
    %v4611 = vsel %vm75, %v4567, 0.0
    %v4612 = vsel %vm74, %v4566, 0.0
    %v4613 = vsel %vm75, %v4565, 0.0
    %v4614 = vsel %vm74, %v4564, 0.0
    %v4615 = vsel %vm75, %v4563, 0.0
    %v4616 = vsel %vm74, %v4562, 0.0
    %v4617 = vsel %vm75, %v4561, 0.0
    %v4618 = vsel %vm74, %v4560, 0.0
    %v4619 = vsel %vm75, %v4559, 0.0
    %v4620 = vsel %vm74, %v4558, 0.0
    %v4621 = vsel %vm75, %v4589, 0.0
    %v4622 = vpack.c.bf16 %v4495, %v4494
    %v4623 = vpack.c.bf16 %v4399, %v4398
    %v4624 = vpack.c.bf16 %v4591, %v4590
    %v4625 = vpack.c.bf16 %v4497, %v4496
    %v4626 = vpack.c.bf16 %v4401, %v4400
    %v4627 = vpack.c.bf16 %v4593, %v4592
    %v4628 = vpack.c.bf16 %v4499, %v4498
    %v4629 = vpack.c.bf16 %v4403, %v4402
    %v4630 = vpack.c.bf16 %v4595, %v4594
    %v4631 = vpack.c.bf16 %v4501, %v4500
    %v4632 = vpack.c.bf16 %v4405, %v4404
    %v4633 = vpack.c.bf16 %v4597, %v4596
    %v4634 = vpack.c.bf16 %v4503, %v4502
    %v4635 = vpack.c.bf16 %v4407, %v4406
    %v4636 = vpack.c.bf16 %v4599, %v4598
    %v4637 = vpack.c.bf16 %v4505, %v4504
    %v4638 = vpack.c.bf16 %v4409, %v4408
    %v4639 = vpack.c.bf16 %v4601, %v4600
    %v4640 = vpack.c.bf16 %v4507, %v4506
    %v4641 = vpack.c.bf16 %v4411, %v4410
    %v4642 = vpack.c.bf16 %v4603, %v4602
    %v4643 = vpack.c.bf16 %v4509, %v4508
    %v4644 = vpack.c.bf16 %v4413, %v4412
    %v4645 = vpack.c.bf16 %v4605, %v4604
    %v4646 = vpack.c.bf16 %v4511, %v4510
    %v4647 = vpack.c.bf16 %v4415, %v4414
    %v4648 = vpack.c.bf16 %v4607, %v4606
    %v4649 = vpack.c.bf16 %v4513, %v4512
    %v4650 = vpack.c.bf16 %v4417, %v4416
    %v4651 = vpack.c.bf16 %v4609, %v4608
    %v4652 = vpack.c.bf16 %v4515, %v4514
    %v4653 = vpack.c.bf16 %v4419, %v4418
    %v4654 = vpack.c.bf16 %v4611, %v4610
    %v4655 = vpack.c.bf16 %v4517, %v4516
    %v4656 = vpack.c.bf16 %v4421, %v4420
    %v4657 = vpack.c.bf16 %v4613, %v4612
    %v4658 = vpack.c.bf16 %v4519, %v4518
    %v4659 = vpack.c.bf16 %v4423, %v4422
    %v4660 = vpack.c.bf16 %v4615, %v4614
    %v4661 = vpack.c.bf16 %v4521, %v4520
    %v4662 = vpack.c.bf16 %v4425, %v4424
    %v4663 = vpack.c.bf16 %v4617, %v4616
    %v4664 = vpack.c.bf16 %v4523, %v4522
    %v4665 = vpack.c.bf16 %v4427, %v4426
    %v4666 = vpack.c.bf16 %v4619, %v4618
    %v4667 = vpack.c.bf16 %v4525, %v4524
    %v4668 = vpack.c.bf16 %v4429, %v4428
    %v4669 = vpack.c.bf16 %v4621, %v4620
    %s4670 = scalar_lea.vmem [#allocation8], 192
    %v4671 = vld [vmem:[%s4670] sm:$0xf]
    %v4672 = vld [vmem:[%s4670 + $0x4] sm:$0xf]
    %v4673 = vld [vmem:[%s4670 + $0x8] sm:$0xf]
    %v4674 = vld [vmem:[%s4670 + $0xc] sm:$0xf]
    %v4675 = vld [vmem:[%s4670 + $0x10] sm:$0xf]
    %v4676 = vld [vmem:[%s4670 + $0x14] sm:$0xf]
    %v4677 = vld [vmem:[%s4670 + $0x18] sm:$0xf]
    %v4678 = vld [vmem:[%s4670 + $0x1c] sm:$0xf]
    %v4679 = vld [vmem:[%s4670 + $0x20] sm:$0xf]
    %v4680 = vld [vmem:[%s4670 + $0x24] sm:$0xf]
    %v4681 = vld [vmem:[%s4670 + $0x28] sm:$0xf]
    %v4682 = vld [vmem:[%s4670 + $0x2c] sm:$0xf]
    %v4683 = vld [vmem:[%s4670 + $0x30] sm:$0xf]
    %v4684 = vld [vmem:[%s4670 + $0x34] sm:$0xf]
    %v4685 = vld [vmem:[%s4670 + $0x38] sm:$0xf]
    %v4686 = vld [vmem:[%s4670 + $0x3c] sm:$0xf]
    %v4687 = vld [vmem:[%s4670 + $0x40] sm:$0xf]
    %v4688 = vld [vmem:[%s4670 + $0x44] sm:$0xf]
    %v4689 = vld [vmem:[%s4670 + $0x48] sm:$0xf]
    %v4690 = vld [vmem:[%s4670 + $0x4c] sm:$0xf]
    %v4691 = vld [vmem:[%s4670 + $0x50] sm:$0xf]
    %v4692 = vld [vmem:[%s4670 + $0x54] sm:$0xf]
    %v4693 = vld [vmem:[%s4670 + $0x58] sm:$0xf]
    %v4694 = vld [vmem:[%s4670 + $0x5c] sm:$0xf]
    %v4695 = vld [vmem:[%s4670 + $0x60] sm:$0xf]
    %v4696 = vld [vmem:[%s4670 + $0x64] sm:$0xf]
    %v4697 = vld [vmem:[%s4670 + $0x68] sm:$0xf]
    %v4698 = vld [vmem:[%s4670 + $0x6c] sm:$0xf]
    %v4699 = vld [vmem:[%s4670 + $0x70] sm:$0xf]
    %v4700 = vld [vmem:[%s4670 + $0x74] sm:$0xf]
    %v4701 = vld [vmem:[%s4670 + $0x78] sm:$0xf]
    %v4702 = vld [vmem:[%s4670 + $0x7c] sm:$0xf]
    %v4703 = vld [vmem:[%s4670 + $0x80] sm:$0xf]
    %v4704 = vld [vmem:[%s4670 + $0x84] sm:$0xf]
    %v4705 = vld [vmem:[%s4670 + $0x88] sm:$0xf]
    %v4706 = vld [vmem:[%s4670 + $0x8c] sm:$0xf]
    %v4707 = vld [vmem:[%s4670 + $0x90] sm:$0xf]
    %v4708 = vld [vmem:[%s4670 + $0x94] sm:$0xf]
    %v4709 = vld [vmem:[%s4670 + $0x98] sm:$0xf]
    %v4710 = vld [vmem:[%s4670 + $0x9c] sm:$0xf]
    %v4711 = vld [vmem:[%s4670 + $0xa0] sm:$0xf]
    %v4712 = vld [vmem:[%s4670 + $0xa4] sm:$0xf]
    %v4713 = vld [vmem:[%s4670 + $0xa8] sm:$0xf]
    %v4714 = vld [vmem:[%s4670 + $0xac] sm:$0xf]
    %v4715 = vld [vmem:[%s4670 + $0xb0] sm:$0xf]
    %v4716 = vld [vmem:[%s4670 + $0xb4] sm:$0xf]
    %v4717 = vld [vmem:[%s4670 + $0xb8] sm:$0xf]
    %v4718 = vld [vmem:[%s4670 + $0xbc] sm:$0xf]
    %v4719 = vld [vmem:[#allocation8] sm:$0xf]
    %v4720 = vld [vmem:[#allocation8 + $0x4] sm:$0xf]
    %v4721 = vld [vmem:[#allocation8 + $0x8] sm:$0xf]
    %v4722 = vld [vmem:[#allocation8 + $0xc] sm:$0xf]
    %v4723 = vld [vmem:[#allocation8 + $0x10] sm:$0xf]
    %v4724 = vld [vmem:[#allocation8 + $0x14] sm:$0xf]
    %v4725 = vld [vmem:[#allocation8 + $0x18] sm:$0xf]
    %v4726 = vld [vmem:[#allocation8 + $0x1c] sm:$0xf]
    %v4727 = vld [vmem:[#allocation8 + $0x20] sm:$0xf]
    %v4728 = vld [vmem:[#allocation8 + $0x24] sm:$0xf]
    %v4729 = vld [vmem:[#allocation8 + $0x28] sm:$0xf]
    %v4730 = vld [vmem:[#allocation8 + $0x2c] sm:$0xf]
    %v4731 = vld [vmem:[#allocation8 + $0x30] sm:$0xf]
    %v4732 = vld [vmem:[#allocation8 + $0x34] sm:$0xf]
    %v4733 = vld [vmem:[#allocation8 + $0x38] sm:$0xf]
    %v4734 = vld [vmem:[#allocation8 + $0x3c] sm:$0xf]
    %v4735 = vld [vmem:[#allocation8 + $0x40] sm:$0xf]
    %v4736 = vld [vmem:[#allocation8 + $0x44] sm:$0xf]
    %v4737 = vld [vmem:[#allocation8 + $0x48] sm:$0xf]
    %v4738 = vld [vmem:[#allocation8 + $0x4c] sm:$0xf]
    %v4739 = vld [vmem:[#allocation8 + $0x50] sm:$0xf]
    %v4740 = vld [vmem:[#allocation8 + $0x54] sm:$0xf]
    %v4741 = vld [vmem:[#allocation8 + $0x58] sm:$0xf]
    %v4742 = vld [vmem:[#allocation8 + $0x5c] sm:$0xf]
    %v4743 = vld [vmem:[#allocation8 + $0x60] sm:$0xf]
    %v4744 = vld [vmem:[#allocation8 + $0x64] sm:$0xf]
    %v4745 = vld [vmem:[#allocation8 + $0x68] sm:$0xf]
    %v4746 = vld [vmem:[#allocation8 + $0x6c] sm:$0xf]
    %v4747 = vld [vmem:[#allocation8 + $0x70] sm:$0xf]
    %v4748 = vld [vmem:[#allocation8 + $0x74] sm:$0xf]
    %v4749 = vld [vmem:[#allocation8 + $0x78] sm:$0xf]
    %v4750 = vld [vmem:[#allocation8 + $0x7c] sm:$0xf]
    %v4751 = vld [vmem:[#allocation8 + $0x80] sm:$0xf]
    %v4752 = vld [vmem:[#allocation8 + $0x84] sm:$0xf]
    %v4753 = vld [vmem:[#allocation8 + $0x88] sm:$0xf]
    %v4754 = vld [vmem:[#allocation8 + $0x8c] sm:$0xf]
    %v4755 = vld [vmem:[#allocation8 + $0x90] sm:$0xf]
    %v4756 = vld [vmem:[#allocation8 + $0x94] sm:$0xf]
    %v4757 = vld [vmem:[#allocation8 + $0x98] sm:$0xf]
    %v4758 = vld [vmem:[#allocation8 + $0x9c] sm:$0xf]
    %v4759 = vld [vmem:[#allocation8 + $0xa0] sm:$0xf]
    %v4760 = vld [vmem:[#allocation8 + $0xa4] sm:$0xf]
    %v4761 = vld [vmem:[#allocation8 + $0xa8] sm:$0xf]
    %v4762 = vld [vmem:[#allocation8 + $0xac] sm:$0xf]
    %v4763 = vld [vmem:[#allocation8 + $0xb0] sm:$0xf]
    %v4764 = vld [vmem:[#allocation8 + $0xb4] sm:$0xf]
    %v4765 = vld [vmem:[#allocation8 + $0xb8] sm:$0xf]
    %v4766 = vld [vmem:[#allocation8 + $0xbc] sm:$0xf]
    %v4815 = vunpack.c.l.b16 %v4719
    %v4816 = vunpack.c.l.b16 %v4720
    %v4817 = vunpack.c.l.b16 %v4721
    %v4818 = vunpack.c.l.b16 %v4722
    %v4819 = vunpack.c.l.b16 %v4723
    %v4820 = vunpack.c.l.b16 %v4724
    %v4821 = vunpack.c.l.b16 %v4725
    %v4822 = vunpack.c.l.b16 %v4726
    %v4823 = vunpack.c.l.b16 %v4727
    %v4824 = vunpack.c.l.b16 %v4728
    %v4825 = vunpack.c.l.b16 %v4729
    %v4826 = vunpack.c.l.b16 %v4730
    %v4827 = vunpack.c.l.b16 %v4731
    %v4828 = vunpack.c.l.b16 %v4732
    %v4829 = vunpack.c.l.b16 %v4733
    %v4830 = vunpack.c.l.b16 %v4734
    %v4831 = vunpack.c.l.b16 %v4735
    %v4832 = vunpack.c.l.b16 %v4736
    %v4833 = vunpack.c.l.b16 %v4737
    %v4834 = vunpack.c.l.b16 %v4738
    %v4835 = vunpack.c.l.b16 %v4739
    %v4836 = vunpack.c.l.b16 %v4740
    %v4837 = vunpack.c.l.b16 %v4741
    %v4838 = vunpack.c.l.b16 %v4742
    %v4839 = vunpack.c.l.b16 %v4743
    %v4840 = vunpack.c.l.b16 %v4744
    %v4841 = vunpack.c.l.b16 %v4745
    %v4842 = vunpack.c.l.b16 %v4746
    %v4843 = vunpack.c.l.b16 %v4747
    %v4844 = vunpack.c.l.b16 %v4748
    %v4845 = vunpack.c.l.b16 %v4749
    %v4846 = vunpack.c.l.b16 %v4750
    %v4847 = vunpack.c.l.b16 %v4751
    %v4848 = vunpack.c.l.b16 %v4752
    %v4849 = vunpack.c.l.b16 %v4753
    %v4850 = vunpack.c.l.b16 %v4754
    %v4851 = vunpack.c.l.b16 %v4755
    %v4852 = vunpack.c.l.b16 %v4756
    %v4853 = vunpack.c.l.b16 %v4757
    %v4854 = vunpack.c.l.b16 %v4758
    %v4855 = vunpack.c.l.b16 %v4759
    %v4856 = vunpack.c.l.b16 %v4760
    %v4857 = vunpack.c.l.b16 %v4761
    %v4858 = vunpack.c.l.b16 %v4762
    %v4859 = vunpack.c.l.b16 %v4763
    %v4860 = vunpack.c.l.b16 %v4764
    %v4861 = vunpack.c.l.b16 %v4765
    %v4862 = vunpack.c.l.b16 %v4766
    %v4863 = vpack.c.b16 %v4816, %v4815
    %v4864 = vpack.c.b16 %v4818, %v4817
    %v4865 = vpack.c.b16 %v4820, %v4819
    %v4866 = vpack.c.b16 %v4822, %v4821
    %v4867 = vpack.c.b16 %v4824, %v4823
    %v4868 = vpack.c.b16 %v4826, %v4825
    %v4869 = vpack.c.b16 %v4828, %v4827
    %v4870 = vpack.c.b16 %v4830, %v4829
    %v4871 = vpack.c.b16 %v4832, %v4831
    %v4872 = vpack.c.b16 %v4834, %v4833
    %v4873 = vpack.c.b16 %v4836, %v4835
    %v4874 = vpack.c.b16 %v4838, %v4837
    %v4875 = vpack.c.b16 %v4840, %v4839
    %v4876 = vpack.c.b16 %v4842, %v4841
    %v4877 = vpack.c.b16 %v4844, %v4843
    %v4878 = vpack.c.b16 %v4846, %v4845
    %v4879 = vpack.c.b16 %v4848, %v4847
    %v4880 = vpack.c.b16 %v4850, %v4849
    %v4881 = vpack.c.b16 %v4852, %v4851
    %v4882 = vpack.c.b16 %v4854, %v4853
    %v4883 = vpack.c.b16 %v4856, %v4855
    %v4884 = vpack.c.b16 %v4858, %v4857
    %v4885 = vpack.c.b16 %v4860, %v4859
    %v4886 = vpack.c.b16 %v4862, %v4861
    %4911 = vmatprep.subr.bf16.mxu0 0
    %4912 = vmatpush1.bf16.msra.mxu0 %v4870
    %4913 = vmatprep.subr.bf16.mxu0 0
    %4914 = vmatpush1.bf16.msra.mxu0 %v4869
    %4915 = vmatprep.subr.bf16.mxu0 0
    %4916 = vmatpush1.bf16.msra.mxu0 %v4868
    %4917 = vmatprep.subr.bf16.mxu0 0
    %4918 = vmatpush1.bf16.msra.mxu0 %v4867
    %4919 = vmatprep.subr.bf16.mxu0 0
    %4920 = vmatpush1.bf16.msra.mxu0 %v4866
    %4921 = vmatprep.subr.bf16.mxu0 0
    %4922 = vmatpush1.bf16.msra.mxu0 %v4865
    %4923 = vmatprep.subr.bf16.mxu0 0
    %4924 = vmatpush1.bf16.msra.mxu0 %v4864
    %4925 = vmatprep.subr.bf16.mxu0 0
    %4926 = vmatpush1.bf16.msra.mxu0 %v4863
    %4927 = vmatprep.subr.bf16.mxu0 0
    %4928 = vmatpush2.bf16.msra.mxu0 %v4878
    %4929 = vmatprep.subr.bf16.mxu0 0
    %4930 = vmatpush2.bf16.msra.mxu0 %v4877
    %4931 = vmatprep.subr.bf16.mxu0 0
    %4932 = vmatpush2.bf16.msra.mxu0 %v4876
    %4933 = vmatprep.subr.bf16.mxu0 0
    %4934 = vmatpush2.bf16.msra.mxu0 %v4875
    %4935 = vmatprep.subr.bf16.mxu0 0
    %4936 = vmatpush2.bf16.msra.mxu0 %v4874
    %4937 = vmatprep.subr.bf16.mxu0 0
    %4938 = vmatpush2.bf16.msra.mxu0 %v4873
    %4939 = vmatprep.subr.bf16.mxu0 0
    %4940 = vmatpush2.bf16.msra.mxu0 %v4872
    %4941 = vmatprep.subr.bf16.mxu0 0
    %4942 = vmatpush2.bf16.msra.mxu0 %v4871
    %4943 = vmatprep.mubr.bf16.mxu0 %v4623
    %4944 = vmatmul.mubr.bf16.gmra.mxu0 %v4622
    %v4945 = vpop.f32.mrf.mxu0
    %v4946 = vadd.f32 0.0, %v4945
    %v4947 = vpop.f32.mrf.mxu0
    %v4948 = vpop.f32.mrf.mxu0
    %v4949 = vadd.f32 0.0, %v4948
    %v4950 = vpop.f32.mrf.mxu0
    %4951 = vmatprep.mubr.bf16.mxu0 %v4626
    %4952 = vmatmul.mubr.bf16.gmra.mxu0 %v4625
    %v4953 = vpop.f32.mrf.mxu0
    %v4954 = vadd.f32 0.0, %v4953
    %v4955 = vpop.f32.mrf.mxu0
    %v4956 = vpop.f32.mrf.mxu0
    %v4957 = vadd.f32 0.0, %v4956
    %v4958 = vpop.f32.mrf.mxu0
    %4959 = vmatprep.mubr.bf16.mxu0 %v4629
    %4960 = vmatmul.mubr.bf16.gmra.mxu0 %v4628
    %v4961 = vpop.f32.mrf.mxu0
    %v4962 = vadd.f32 0.0, %v4961
    %v4963 = vpop.f32.mrf.mxu0
    %v4964 = vpop.f32.mrf.mxu0
    %v4965 = vadd.f32 0.0, %v4964
    %v4966 = vpop.f32.mrf.mxu0
    %4967 = vmatprep.mubr.bf16.mxu0 %v4632
    %4968 = vmatmul.mubr.bf16.gmra.mxu0 %v4631
    %v4969 = vpop.f32.mrf.mxu0
    %v4970 = vadd.f32 0.0, %v4969
    %v4971 = vpop.f32.mrf.mxu0
    %v4972 = vpop.f32.mrf.mxu0
    %v4973 = vadd.f32 0.0, %v4972
    %v4974 = vpop.f32.mrf.mxu0
    %4975 = vmatprep.mubr.bf16.mxu0 %v4635
    %4976 = vmatmul.mubr.bf16.gmra.mxu0 %v4634
    %v4977 = vpop.f32.mrf.mxu0
    %v4978 = vadd.f32 0.0, %v4977
    %v4979 = vpop.f32.mrf.mxu0
    %v4980 = vpop.f32.mrf.mxu0
    %v4981 = vadd.f32 0.0, %v4980
    %v4982 = vpop.f32.mrf.mxu0
    %4983 = vmatprep.mubr.bf16.mxu0 %v4638
    %4984 = vmatmul.mubr.bf16.gmra.mxu0 %v4637
    %v4985 = vpop.f32.mrf.mxu0
    %v4986 = vadd.f32 0.0, %v4985
    %v4987 = vpop.f32.mrf.mxu0
    %v4988 = vpop.f32.mrf.mxu0
    %v4989 = vadd.f32 0.0, %v4988
    %v4990 = vpop.f32.mrf.mxu0
    %4991 = vmatprep.mubr.bf16.mxu0 %v4641
    %4992 = vmatmul.mubr.bf16.gmra.mxu0 %v4640
    %v4993 = vpop.f32.mrf.mxu0
    %v4994 = vadd.f32 0.0, %v4993
    %v4995 = vpop.f32.mrf.mxu0
    %v4996 = vpop.f32.mrf.mxu0
    %v4997 = vadd.f32 0.0, %v4996
    %v4998 = vpop.f32.mrf.mxu0
    %4999 = vmatprep.mubr.bf16.mxu0 %v4644
    %5000 = vmatmul.mubr.bf16.gmra.mxu0 %v4643
    %v5001 = vpop.f32.mrf.mxu0
    %v5002 = vadd.f32 0.0, %v5001
    %v5003 = vpop.f32.mrf.mxu0
    %v5004 = vpop.f32.mrf.mxu0
    %v5005 = vadd.f32 0.0, %v5004
    %v5006 = vpop.f32.mrf.mxu0
    %5007 = vmatprep.mubr.bf16.mxu0 %v4647
    %5008 = vmatmul.mubr.bf16.gmra.mxu0 %v4646
    %v5009 = vpop.f32.mrf.mxu0
    %v5010 = vadd.f32 0.0, %v5009
    %v5011 = vpop.f32.mrf.mxu0
    %v5012 = vpop.f32.mrf.mxu0
    %v5013 = vadd.f32 0.0, %v5012
    %v5014 = vpop.f32.mrf.mxu0
    %5015 = vmatprep.mubr.bf16.mxu0 %v4650
    %5016 = vmatmul.mubr.bf16.gmra.mxu0 %v4649
    %v5017 = vpop.f32.mrf.mxu0
    %v5018 = vadd.f32 0.0, %v5017
    %v5019 = vpop.f32.mrf.mxu0
    %v5020 = vpop.f32.mrf.mxu0
    %v5021 = vadd.f32 0.0, %v5020
    %v5022 = vpop.f32.mrf.mxu0
    %5023 = vmatprep.mubr.bf16.mxu0 %v4653
    %5024 = vmatmul.mubr.bf16.gmra.mxu0 %v4652
    %v5025 = vpop.f32.mrf.mxu0
    %v5026 = vadd.f32 0.0, %v5025
    %v5027 = vpop.f32.mrf.mxu0
    %v5028 = vpop.f32.mrf.mxu0
    %v5029 = vadd.f32 0.0, %v5028
    %v5030 = vpop.f32.mrf.mxu0
    %5031 = vmatprep.mubr.bf16.mxu0 %v4656
    %5032 = vmatmul.mubr.bf16.gmra.mxu0 %v4655
    %v5033 = vpop.f32.mrf.mxu0
    %v5034 = vadd.f32 0.0, %v5033
    %v5035 = vpop.f32.mrf.mxu0
    %v5036 = vpop.f32.mrf.mxu0
    %v5037 = vadd.f32 0.0, %v5036
    %v5038 = vpop.f32.mrf.mxu0
    %5039 = vmatprep.mubr.bf16.mxu0 %v4659
    %5040 = vmatmul.mubr.bf16.gmra.mxu0 %v4658
    %v5041 = vpop.f32.mrf.mxu0
    %v5042 = vadd.f32 0.0, %v5041
    %v5043 = vpop.f32.mrf.mxu0
    %v5044 = vpop.f32.mrf.mxu0
    %v5045 = vadd.f32 0.0, %v5044
    %v5046 = vpop.f32.mrf.mxu0
    %5047 = vmatprep.mubr.bf16.mxu0 %v4662
    %5048 = vmatmul.mubr.bf16.gmra.mxu0 %v4661
    %v5049 = vpop.f32.mrf.mxu0
    %v5050 = vadd.f32 0.0, %v5049
    %v5051 = vpop.f32.mrf.mxu0
    %v5052 = vpop.f32.mrf.mxu0
    %v5053 = vadd.f32 0.0, %v5052
    %v5054 = vpop.f32.mrf.mxu0
    %5055 = vmatprep.mubr.bf16.mxu0 %v4665
    %5056 = vmatmul.mubr.bf16.gmra.mxu0 %v4664
    %v5057 = vpop.f32.mrf.mxu0
    %v5058 = vadd.f32 0.0, %v5057
    %v5059 = vpop.f32.mrf.mxu0
    %v5060 = vpop.f32.mrf.mxu0
    %v5061 = vadd.f32 0.0, %v5060
    %v5062 = vpop.f32.mrf.mxu0
    %5063 = vdwg.mxu0
    %5064 = vmatprep.subr.bf16.mxu0 0
    %5065 = vmatpush1.bf16.msra.mxu0 %v4886
    %5066 = vmatprep.subr.bf16.mxu0 0
    %5067 = vmatpush1.bf16.msra.mxu0 %v4885
    %5068 = vmatprep.subr.bf16.mxu0 0
    %5069 = vmatpush1.bf16.msra.mxu0 %v4884
    %5070 = vmatprep.subr.bf16.mxu0 0
    %5071 = vmatpush1.bf16.msra.mxu0 %v4883
    %5072 = vmatprep.subr.bf16.mxu0 0
    %5073 = vmatpush1.bf16.msra.mxu0 %v4882
    %5074 = vmatprep.subr.bf16.mxu0 0
    %5075 = vmatpush1.bf16.msra.mxu0 %v4881
    %5076 = vmatprep.subr.bf16.mxu0 0
    %5077 = vmatpush1.bf16.msra.mxu0 %v4880
    %5078 = vmatprep.subr.bf16.mxu0 0
    %5079 = vmatpush1.bf16.msra.mxu0 %v4879
    %5080 = vmatprep.subr.bf16.mxu0 0
    %5081 = vmatpush2.bf16.msra.mxu0 0
    %5082 = vmatprep.subr.bf16.mxu0 0
    %5083 = vmatpush2.bf16.msra.mxu0 0
    %5084 = vmatprep.subr.bf16.mxu0 0
    %5085 = vmatpush2.bf16.msra.mxu0 0
    %5086 = vmatprep.subr.bf16.mxu0 0
    %5087 = vmatpush2.bf16.msra.mxu0 0
    %5088 = vmatprep.subr.bf16.mxu0 0
    %5089 = vmatpush2.bf16.msra.mxu0 0
    %5090 = vmatprep.subr.bf16.mxu0 0
    %5091 = vmatpush2.bf16.msra.mxu0 0
    %5092 = vmatprep.subr.bf16.mxu0 0
    %5093 = vmatpush2.bf16.msra.mxu0 0
    %5094 = vmatprep.subr.bf16.mxu0 0
    %5095 = vmatpush2.bf16.msra.mxu0 0
    %5096 = vmatprep.mubr.bf16.mxu0 0
    %5097 = vmatmul.mubr.bf16.gmra.mxu0 %v4624
    %v5098 = vpop.f32.mrf.mxu0
    %v5099 = vadd.f32 %v4946, %v5098
    %v5100 = vpop.f32.mrf.mxu0
    %v5101 = vpop.f32.mrf.mxu0
    %v5102 = vadd.f32 %v4949, %v5101
    %v5103 = vpop.f32.mrf.mxu0
    %5104 = vmatprep.mubr.bf16.mxu0 0
    %5105 = vmatmul.mubr.bf16.gmra.mxu0 %v4627
    %v5106 = vpop.f32.mrf.mxu0
    %v5107 = vadd.f32 %v4954, %v5106
    %v5108 = vpop.f32.mrf.mxu0
    %v5109 = vpop.f32.mrf.mxu0
    %v5110 = vadd.f32 %v4957, %v5109
    %v5111 = vpop.f32.mrf.mxu0
    %5112 = vmatprep.mubr.bf16.mxu0 0
    %5113 = vmatmul.mubr.bf16.gmra.mxu0 %v4630
    %v5114 = vpop.f32.mrf.mxu0
    %v5115 = vadd.f32 %v4962, %v5114
    %v5116 = vpop.f32.mrf.mxu0
    %v5117 = vpop.f32.mrf.mxu0
    %v5118 = vadd.f32 %v4965, %v5117
    %v5119 = vpop.f32.mrf.mxu0
    %5120 = vmatprep.mubr.bf16.mxu0 0
    %5121 = vmatmul.mubr.bf16.gmra.mxu0 %v4633
    %v5122 = vpop.f32.mrf.mxu0
    %v5123 = vadd.f32 %v4970, %v5122
    %v5124 = vpop.f32.mrf.mxu0
    %v5125 = vpop.f32.mrf.mxu0
    %v5126 = vadd.f32 %v4973, %v5125
    %v5127 = vpop.f32.mrf.mxu0
    %5128 = vmatprep.mubr.bf16.mxu0 0
    %5129 = vmatmul.mubr.bf16.gmra.mxu0 %v4636
    %v5130 = vpop.f32.mrf.mxu0
    %v5131 = vadd.f32 %v4978, %v5130
    %v5132 = vpop.f32.mrf.mxu0
    %v5133 = vpop.f32.mrf.mxu0
    %v5134 = vadd.f32 %v4981, %v5133
    %v5135 = vpop.f32.mrf.mxu0
    %5136 = vmatprep.mubr.bf16.mxu0 0
    %5137 = vmatmul.mubr.bf16.gmra.mxu0 %v4639
    %v5138 = vpop.f32.mrf.mxu0
    %v5139 = vadd.f32 %v4986, %v5138
    %v5140 = vpop.f32.mrf.mxu0
    %v5141 = vpop.f32.mrf.mxu0
    %v5142 = vadd.f32 %v4989, %v5141
    %v5143 = vpop.f32.mrf.mxu0
    %5144 = vmatprep.mubr.bf16.mxu0 0
    %5145 = vmatmul.mubr.bf16.gmra.mxu0 %v4642
    %v5146 = vpop.f32.mrf.mxu0
    %v5147 = vadd.f32 %v4994, %v5146
    %v5148 = vpop.f32.mrf.mxu0
    %v5149 = vpop.f32.mrf.mxu0
    %v5150 = vadd.f32 %v4997, %v5149
    %v5151 = vpop.f32.mrf.mxu0
    %5152 = vmatprep.mubr.bf16.mxu0 0
    %5153 = vmatmul.mubr.bf16.gmra.mxu0 %v4645
    %v5154 = vpop.f32.mrf.mxu0
    %v5155 = vadd.f32 %v5002, %v5154
    %v5156 = vpop.f32.mrf.mxu0
    %v5157 = vpop.f32.mrf.mxu0
    %v5158 = vadd.f32 %v5005, %v5157
    %v5159 = vpop.f32.mrf.mxu0
    %5160 = vmatprep.mubr.bf16.mxu0 0
    %5161 = vmatmul.mubr.bf16.gmra.mxu0 %v4648
    %v5162 = vpop.f32.mrf.mxu0
    %v5163 = vadd.f32 %v5010, %v5162
    %v5164 = vpop.f32.mrf.mxu0
    %v5165 = vpop.f32.mrf.mxu0
    %v5166 = vadd.f32 %v5013, %v5165
    %v5167 = vpop.f32.mrf.mxu0
    %5168 = vmatprep.mubr.bf16.mxu0 0
    %5169 = vmatmul.mubr.bf16.gmra.mxu0 %v4651
    %v5170 = vpop.f32.mrf.mxu0
    %v5171 = vadd.f32 %v5018, %v5170
    %v5172 = vpop.f32.mrf.mxu0
    %v5173 = vpop.f32.mrf.mxu0
    %v5174 = vadd.f32 %v5021, %v5173
    %v5175 = vpop.f32.mrf.mxu0
    %5176 = vmatprep.mubr.bf16.mxu0 0
    %5177 = vmatmul.mubr.bf16.gmra.mxu0 %v4654
    %v5178 = vpop.f32.mrf.mxu0
    %v5179 = vadd.f32 %v5026, %v5178
    %v5180 = vpop.f32.mrf.mxu0
    %v5181 = vpop.f32.mrf.mxu0
    %v5182 = vadd.f32 %v5029, %v5181
    %v5183 = vpop.f32.mrf.mxu0
    %5184 = vmatprep.mubr.bf16.mxu0 0
    %5185 = vmatmul.mubr.bf16.gmra.mxu0 %v4657
    %v5186 = vpop.f32.mrf.mxu0
    %v5187 = vadd.f32 %v5034, %v5186
    %v5188 = vpop.f32.mrf.mxu0
    %v5189 = vpop.f32.mrf.mxu0
    %v5190 = vadd.f32 %v5037, %v5189
    %v5191 = vpop.f32.mrf.mxu0
    %5192 = vmatprep.mubr.bf16.mxu0 0
    %5193 = vmatmul.mubr.bf16.gmra.mxu0 %v4660
    %v5194 = vpop.f32.mrf.mxu0
    %v5195 = vadd.f32 %v5042, %v5194
    %v5196 = vpop.f32.mrf.mxu0
    %v5197 = vpop.f32.mrf.mxu0
    %v5198 = vadd.f32 %v5045, %v5197
    %v5199 = vpop.f32.mrf.mxu0
    %5200 = vmatprep.mubr.bf16.mxu0 0
    %5201 = vmatmul.mubr.bf16.gmra.mxu0 %v4663
    %v5202 = vpop.f32.mrf.mxu0
    %v5203 = vadd.f32 %v5050, %v5202
    %v5204 = vpop.f32.mrf.mxu0
    %v5205 = vpop.f32.mrf.mxu0
    %v5206 = vadd.f32 %v5053, %v5205
    %v5207 = vpop.f32.mrf.mxu0
    %5208 = vmatprep.mubr.bf16.mxu0 0
    %5209 = vmatmul.mubr.bf16.gmra.mxu0 %v4666
    %v5210 = vpop.f32.mrf.mxu0
    %v5211 = vadd.f32 %v5058, %v5210
    %v5212 = vpop.f32.mrf.mxu0
    %v5213 = vpop.f32.mrf.mxu0
    %v5214 = vadd.f32 %v5061, %v5213
    %v5215 = vpop.f32.mrf.mxu0
    %5216 = vdwg.mxu0
    %s5217 = scalar_lea.vmem [#allocation8], 384
    %v5218 = vld [vmem:[%s5217] sm:$0xf]
    %v5219 = vld [vmem:[%s5217 + $0x4] sm:$0xf]
    %v5220 = vld [vmem:[%s5217 + $0x8] sm:$0xf]
    %v5221 = vld [vmem:[%s5217 + $0xc] sm:$0xf]
    %v5222 = vld [vmem:[%s5217 + $0x10] sm:$0xf]
    %v5223 = vld [vmem:[%s5217 + $0x14] sm:$0xf]
    %v5224 = vld [vmem:[%s5217 + $0x18] sm:$0xf]
    %v5225 = vld [vmem:[%s5217 + $0x1c] sm:$0xf]
    %v5226 = vld [vmem:[%s5217 + $0x20] sm:$0xf]
    %v5227 = vld [vmem:[%s5217 + $0x24] sm:$0xf]
    %v5228 = vld [vmem:[%s5217 + $0x28] sm:$0xf]
    %v5229 = vld [vmem:[%s5217 + $0x2c] sm:$0xf]
    %v5230 = vld [vmem:[%s5217 + $0x30] sm:$0xf]
    %v5231 = vld [vmem:[%s5217 + $0x34] sm:$0xf]
    %v5232 = vld [vmem:[%s5217 + $0x38] sm:$0xf]
    %v5233 = vld [vmem:[%s5217 + $0x3c] sm:$0xf]
    %v5234 = vld [vmem:[%s5217 + $0x40] sm:$0xf]
    %v5235 = vld [vmem:[%s5217 + $0x44] sm:$0xf]
    %v5236 = vld [vmem:[%s5217 + $0x48] sm:$0xf]
    %v5237 = vld [vmem:[%s5217 + $0x4c] sm:$0xf]
    %v5238 = vld [vmem:[%s5217 + $0x50] sm:$0xf]
    %v5239 = vld [vmem:[%s5217 + $0x54] sm:$0xf]
    %v5240 = vld [vmem:[%s5217 + $0x58] sm:$0xf]
    %v5241 = vld [vmem:[%s5217 + $0x5c] sm:$0xf]
    %v5242 = vld [vmem:[%s5217 + $0x60] sm:$0xf]
    %v5243 = vld [vmem:[%s5217 + $0x64] sm:$0xf]
    %v5244 = vld [vmem:[%s5217 + $0x68] sm:$0xf]
    %v5245 = vld [vmem:[%s5217 + $0x6c] sm:$0xf]
    %v5246 = vld [vmem:[%s5217 + $0x70] sm:$0xf]
    %v5247 = vld [vmem:[%s5217 + $0x74] sm:$0xf]
    %v5248 = vld [vmem:[%s5217 + $0x78] sm:$0xf]
    %v5249 = vld [vmem:[%s5217 + $0x7c] sm:$0xf]
    %v5250 = vld [vmem:[%s5217 + $0x80] sm:$0xf]
    %v5251 = vld [vmem:[%s5217 + $0x84] sm:$0xf]
    %v5252 = vld [vmem:[%s5217 + $0x88] sm:$0xf]
    %v5253 = vld [vmem:[%s5217 + $0x8c] sm:$0xf]
    %v5254 = vld [vmem:[%s5217 + $0x90] sm:$0xf]
    %v5255 = vld [vmem:[%s5217 + $0x94] sm:$0xf]
    %v5256 = vld [vmem:[%s5217 + $0x98] sm:$0xf]
    %v5257 = vld [vmem:[%s5217 + $0x9c] sm:$0xf]
    %v5258 = vld [vmem:[%s5217 + $0xa0] sm:$0xf]
    %v5259 = vld [vmem:[%s5217 + $0xa4] sm:$0xf]
    %v5260 = vld [vmem:[%s5217 + $0xa8] sm:$0xf]
    %v5261 = vld [vmem:[%s5217 + $0xac] sm:$0xf]
    %v5262 = vld [vmem:[%s5217 + $0xb0] sm:$0xf]
    %v5263 = vld [vmem:[%s5217 + $0xb4] sm:$0xf]
    %v5264 = vld [vmem:[%s5217 + $0xb8] sm:$0xf]
    %v5265 = vld [vmem:[%s5217 + $0xbc] sm:$0xf]
    %v5314 = vunpack.c.l.b16 %v5218
    %v5315 = vunpack.c.l.b16 %v5219
    %v5316 = vunpack.c.l.b16 %v5220
    %v5317 = vunpack.c.l.b16 %v5221
    %v5318 = vunpack.c.l.b16 %v5222
    %v5319 = vunpack.c.l.b16 %v5223
    %v5320 = vunpack.c.l.b16 %v5224
    %v5321 = vunpack.c.l.b16 %v5225
    %v5322 = vunpack.c.l.b16 %v5226
    %v5323 = vunpack.c.l.b16 %v5227
    %v5324 = vunpack.c.l.b16 %v5228
    %v5325 = vunpack.c.l.b16 %v5229
    %v5326 = vunpack.c.l.b16 %v5230
    %v5327 = vunpack.c.l.b16 %v5231
    %v5328 = vunpack.c.l.b16 %v5232
    %v5329 = vunpack.c.l.b16 %v5233
    %v5330 = vunpack.c.l.b16 %v5234
    %v5331 = vunpack.c.l.b16 %v5235
    %v5332 = vunpack.c.l.b16 %v5236
    %v5333 = vunpack.c.l.b16 %v5237
    %v5334 = vunpack.c.l.b16 %v5238
    %v5335 = vunpack.c.l.b16 %v5239
    %v5336 = vunpack.c.l.b16 %v5240
    %v5337 = vunpack.c.l.b16 %v5241
    %v5338 = vunpack.c.l.b16 %v5242
    %v5339 = vunpack.c.l.b16 %v5243
    %v5340 = vunpack.c.l.b16 %v5244
    %v5341 = vunpack.c.l.b16 %v5245
    %v5342 = vunpack.c.l.b16 %v5246
    %v5343 = vunpack.c.l.b16 %v5247
    %v5344 = vunpack.c.l.b16 %v5248
    %v5345 = vunpack.c.l.b16 %v5249
    %v5346 = vunpack.c.l.b16 %v5250
    %v5347 = vunpack.c.l.b16 %v5251
    %v5348 = vunpack.c.l.b16 %v5252
    %v5349 = vunpack.c.l.b16 %v5253
    %v5350 = vunpack.c.l.b16 %v5254
    %v5351 = vunpack.c.l.b16 %v5255
    %v5352 = vunpack.c.l.b16 %v5256
    %v5353 = vunpack.c.l.b16 %v5257
    %v5354 = vunpack.c.l.b16 %v5258
    %v5355 = vunpack.c.l.b16 %v5259
    %v5356 = vunpack.c.l.b16 %v5260
    %v5357 = vunpack.c.l.b16 %v5261
    %v5358 = vunpack.c.l.b16 %v5262
    %v5359 = vunpack.c.l.b16 %v5263
    %v5360 = vunpack.c.l.b16 %v5264
    %v5361 = vunpack.c.l.b16 %v5265
    %v5362 = vpack.c.b16 %v5315, %v5314
    %v5363 = vpack.c.b16 %v5317, %v5316
    %v5364 = vpack.c.b16 %v5319, %v5318
    %v5365 = vpack.c.b16 %v5321, %v5320
    %v5366 = vpack.c.b16 %v5323, %v5322
    %v5367 = vpack.c.b16 %v5325, %v5324
    %v5368 = vpack.c.b16 %v5327, %v5326
    %v5369 = vpack.c.b16 %v5329, %v5328
    %v5370 = vpack.c.b16 %v5331, %v5330
    %v5371 = vpack.c.b16 %v5333, %v5332
    %v5372 = vpack.c.b16 %v5335, %v5334
    %v5373 = vpack.c.b16 %v5337, %v5336
    %v5374 = vpack.c.b16 %v5339, %v5338
    %v5375 = vpack.c.b16 %v5341, %v5340
    %v5376 = vpack.c.b16 %v5343, %v5342
    %v5377 = vpack.c.b16 %v5345, %v5344
    %v5378 = vpack.c.b16 %v5347, %v5346
    %v5379 = vpack.c.b16 %v5349, %v5348
    %v5380 = vpack.c.b16 %v5351, %v5350
    %v5381 = vpack.c.b16 %v5353, %v5352
    %v5382 = vpack.c.b16 %v5355, %v5354
    %v5383 = vpack.c.b16 %v5357, %v5356
    %v5384 = vpack.c.b16 %v5359, %v5358
    %v5385 = vpack.c.b16 %v5361, %v5360
    %5410 = vmatprep.subr.bf16.mxu0 0
    %5411 = vmatpush1.bf16.msra.mxu0 %v5369
    %5412 = vmatprep.subr.bf16.mxu0 0
    %5413 = vmatpush1.bf16.msra.mxu0 %v5368
    %5414 = vmatprep.subr.bf16.mxu0 0
    %5415 = vmatpush1.bf16.msra.mxu0 %v5367
    %5416 = vmatprep.subr.bf16.mxu0 0
    %5417 = vmatpush1.bf16.msra.mxu0 %v5366
    %5418 = vmatprep.subr.bf16.mxu0 0
    %5419 = vmatpush1.bf16.msra.mxu0 %v5365
    %5420 = vmatprep.subr.bf16.mxu0 0
    %5421 = vmatpush1.bf16.msra.mxu0 %v5364
    %5422 = vmatprep.subr.bf16.mxu0 0
    %5423 = vmatpush1.bf16.msra.mxu0 %v5363
    %5424 = vmatprep.subr.bf16.mxu0 0
    %5425 = vmatpush1.bf16.msra.mxu0 %v5362
    %5426 = vmatprep.subr.bf16.mxu0 0
    %5427 = vmatpush2.bf16.msra.mxu0 %v5377
    %5428 = vmatprep.subr.bf16.mxu0 0
    %5429 = vmatpush2.bf16.msra.mxu0 %v5376
    %5430 = vmatprep.subr.bf16.mxu0 0
    %5431 = vmatpush2.bf16.msra.mxu0 %v5375
    %5432 = vmatprep.subr.bf16.mxu0 0
    %5433 = vmatpush2.bf16.msra.mxu0 %v5374
    %5434 = vmatprep.subr.bf16.mxu0 0
    %5435 = vmatpush2.bf16.msra.mxu0 %v5373
    %5436 = vmatprep.subr.bf16.mxu0 0
    %5437 = vmatpush2.bf16.msra.mxu0 %v5372
    %5438 = vmatprep.subr.bf16.mxu0 0
    %5439 = vmatpush2.bf16.msra.mxu0 %v5371
    %5440 = vmatprep.subr.bf16.mxu0 0
    %5441 = vmatpush2.bf16.msra.mxu0 %v5370
    %5442 = vmatprep.mubr.bf16.mxu0 %v4626
    %5443 = vmatmul.mubr.bf16.gmra.mxu0 %v4625
    %v5444 = vpop.f32.mrf.mxu0
    %v5445 = vadd.f32 0.0, %v5444
    %v5446 = vpop.f32.mrf.mxu0
    %v5447 = vpop.f32.mrf.mxu0
    %v5448 = vadd.f32 0.0, %v5447
    %v5449 = vpop.f32.mrf.mxu0
    %5450 = vmatprep.mubr.bf16.mxu0 %v4629
    %5451 = vmatmul.mubr.bf16.gmra.mxu0 %v4628
    %v5452 = vpop.f32.mrf.mxu0
    %v5453 = vadd.f32 0.0, %v5452
    %v5454 = vpop.f32.mrf.mxu0
    %v5455 = vpop.f32.mrf.mxu0
    %v5456 = vadd.f32 0.0, %v5455
    %v5457 = vpop.f32.mrf.mxu0
    %5458 = vmatprep.mubr.bf16.mxu0 %v4632
    %5459 = vmatmul.mubr.bf16.gmra.mxu0 %v4631
    %v5460 = vpop.f32.mrf.mxu0
    %v5461 = vadd.f32 0.0, %v5460
    %v5462 = vpop.f32.mrf.mxu0
    %v5463 = vpop.f32.mrf.mxu0
    %v5464 = vadd.f32 0.0, %v5463
    %v5465 = vpop.f32.mrf.mxu0
    %5466 = vmatprep.mubr.bf16.mxu0 %v4635
    %5467 = vmatmul.mubr.bf16.gmra.mxu0 %v4634
    %v5468 = vpop.f32.mrf.mxu0
    %v5469 = vadd.f32 0.0, %v5468
    %v5470 = vpop.f32.mrf.mxu0
    %v5471 = vpop.f32.mrf.mxu0
    %v5472 = vadd.f32 0.0, %v5471
    %v5473 = vpop.f32.mrf.mxu0
    %5474 = vmatprep.mubr.bf16.mxu0 %v4638
    %5475 = vmatmul.mubr.bf16.gmra.mxu0 %v4637
    %v5476 = vpop.f32.mrf.mxu0
    %v5477 = vadd.f32 0.0, %v5476
    %v5478 = vpop.f32.mrf.mxu0
    %v5479 = vpop.f32.mrf.mxu0
    %v5480 = vadd.f32 0.0, %v5479
    %v5481 = vpop.f32.mrf.mxu0
    %5482 = vmatprep.mubr.bf16.mxu0 %v4641
    %5483 = vmatmul.mubr.bf16.gmra.mxu0 %v4640
    %v5484 = vpop.f32.mrf.mxu0
    %v5485 = vadd.f32 0.0, %v5484
    %v5486 = vpop.f32.mrf.mxu0
    %v5487 = vpop.f32.mrf.mxu0
    %v5488 = vadd.f32 0.0, %v5487
    %v5489 = vpop.f32.mrf.mxu0
    %5490 = vmatprep.mubr.bf16.mxu0 %v4644
    %5491 = vmatmul.mubr.bf16.gmra.mxu0 %v4643
    %v5492 = vpop.f32.mrf.mxu0
    %v5493 = vadd.f32 0.0, %v5492
    %v5494 = vpop.f32.mrf.mxu0
    %v5495 = vpop.f32.mrf.mxu0
    %v5496 = vadd.f32 0.0, %v5495
    %v5497 = vpop.f32.mrf.mxu0
    %5498 = vmatprep.mubr.bf16.mxu0 %v4647
    %5499 = vmatmul.mubr.bf16.gmra.mxu0 %v4646
    %v5500 = vpop.f32.mrf.mxu0
    %v5501 = vadd.f32 0.0, %v5500
    %v5502 = vpop.f32.mrf.mxu0
    %v5503 = vpop.f32.mrf.mxu0
    %v5504 = vadd.f32 0.0, %v5503
    %v5505 = vpop.f32.mrf.mxu0
    %5506 = vmatprep.mubr.bf16.mxu0 %v4650
    %5507 = vmatmul.mubr.bf16.gmra.mxu0 %v4649
    %v5508 = vpop.f32.mrf.mxu0
    %v5509 = vadd.f32 0.0, %v5508
    %v5510 = vpop.f32.mrf.mxu0
    %v5511 = vpop.f32.mrf.mxu0
    %v5512 = vadd.f32 0.0, %v5511
    %v5513 = vpop.f32.mrf.mxu0
    %5514 = vmatprep.mubr.bf16.mxu0 %v4653
    %5515 = vmatmul.mubr.bf16.gmra.mxu0 %v4652
    %v5516 = vpop.f32.mrf.mxu0
    %v5517 = vadd.f32 0.0, %v5516
    %v5518 = vpop.f32.mrf.mxu0
    %v5519 = vpop.f32.mrf.mxu0
    %v5520 = vadd.f32 0.0, %v5519
    %v5521 = vpop.f32.mrf.mxu0
    %5522 = vmatprep.mubr.bf16.mxu0 %v4656
    %5523 = vmatmul.mubr.bf16.gmra.mxu0 %v4655
    %v5524 = vpop.f32.mrf.mxu0
    %v5525 = vadd.f32 0.0, %v5524
    %v5526 = vpop.f32.mrf.mxu0
    %v5527 = vpop.f32.mrf.mxu0
    %v5528 = vadd.f32 0.0, %v5527
    %v5529 = vpop.f32.mrf.mxu0
    %5530 = vmatprep.mubr.bf16.mxu0 %v4659
    %5531 = vmatmul.mubr.bf16.gmra.mxu0 %v4658
    %v5532 = vpop.f32.mrf.mxu0
    %v5533 = vadd.f32 0.0, %v5532
    %v5534 = vpop.f32.mrf.mxu0
    %v5535 = vpop.f32.mrf.mxu0
    %v5536 = vadd.f32 0.0, %v5535
    %v5537 = vpop.f32.mrf.mxu0
    %5538 = vmatprep.mubr.bf16.mxu0 %v4662
    %5539 = vmatmul.mubr.bf16.gmra.mxu0 %v4661
    %v5540 = vpop.f32.mrf.mxu0
    %v5541 = vadd.f32 0.0, %v5540
    %v5542 = vpop.f32.mrf.mxu0
    %v5543 = vpop.f32.mrf.mxu0
    %v5544 = vadd.f32 0.0, %v5543
    %v5545 = vpop.f32.mrf.mxu0
    %5546 = vmatprep.mubr.bf16.mxu0 %v4665
    %5547 = vmatmul.mubr.bf16.gmra.mxu0 %v4664
    %v5548 = vpop.f32.mrf.mxu0
    %v5549 = vadd.f32 0.0, %v5548
    %v5550 = vpop.f32.mrf.mxu0
    %v5551 = vpop.f32.mrf.mxu0
    %v5552 = vadd.f32 0.0, %v5551
    %v5553 = vpop.f32.mrf.mxu0
    %5554 = vmatprep.mubr.bf16.mxu0 %v4668
    %5555 = vmatmul.mubr.bf16.gmra.mxu0 %v4667
    %v5556 = vpop.f32.mrf.mxu0
    %v5557 = vadd.f32 0.0, %v5556
    %v5558 = vpop.f32.mrf.mxu0
    %v5559 = vpop.f32.mrf.mxu0
    %v5560 = vadd.f32 0.0, %v5559
    %v5561 = vpop.f32.mrf.mxu0
    %5562 = vdwg.mxu0
    %5563 = vmatprep.subr.bf16.mxu0 0
    %5564 = vmatpush1.bf16.msra.mxu0 %v5385
    %5565 = vmatprep.subr.bf16.mxu0 0
    %5566 = vmatpush1.bf16.msra.mxu0 %v5384
    %5567 = vmatprep.subr.bf16.mxu0 0
    %5568 = vmatpush1.bf16.msra.mxu0 %v5383
    %5569 = vmatprep.subr.bf16.mxu0 0
    %5570 = vmatpush1.bf16.msra.mxu0 %v5382
    %5571 = vmatprep.subr.bf16.mxu0 0
    %5572 = vmatpush1.bf16.msra.mxu0 %v5381
    %5573 = vmatprep.subr.bf16.mxu0 0
    %5574 = vmatpush1.bf16.msra.mxu0 %v5380
    %5575 = vmatprep.subr.bf16.mxu0 0
    %5576 = vmatpush1.bf16.msra.mxu0 %v5379
    %5577 = vmatprep.subr.bf16.mxu0 0
    %5578 = vmatpush1.bf16.msra.mxu0 %v5378
    %5579 = vmatprep.subr.bf16.mxu0 0
    %5580 = vmatpush2.bf16.msra.mxu0 0
    %5581 = vmatprep.subr.bf16.mxu0 0
    %5582 = vmatpush2.bf16.msra.mxu0 0
    %5583 = vmatprep.subr.bf16.mxu0 0
    %5584 = vmatpush2.bf16.msra.mxu0 0
    %5585 = vmatprep.subr.bf16.mxu0 0
    %5586 = vmatpush2.bf16.msra.mxu0 0
    %5587 = vmatprep.subr.bf16.mxu0 0
    %5588 = vmatpush2.bf16.msra.mxu0 0
    %5589 = vmatprep.subr.bf16.mxu0 0
    %5590 = vmatpush2.bf16.msra.mxu0 0
    %5591 = vmatprep.subr.bf16.mxu0 0
    %5592 = vmatpush2.bf16.msra.mxu0 0
    %5593 = vmatprep.subr.bf16.mxu0 0
    %5594 = vmatpush2.bf16.msra.mxu0 0
    %5595 = vmatprep.mubr.bf16.mxu0 0
    %5596 = vmatmul.mubr.bf16.gmra.mxu0 %v4627
    %v5597 = vpop.f32.mrf.mxu0
    %v5598 = vadd.f32 %v5445, %v5597
    %v5599 = vpop.f32.mrf.mxu0
    %v5600 = vpop.f32.mrf.mxu0
    %v5601 = vadd.f32 %v5448, %v5600
    %v5602 = vpop.f32.mrf.mxu0
    %5603 = vmatprep.mubr.bf16.mxu0 0
    %5604 = vmatmul.mubr.bf16.gmra.mxu0 %v4630
    %v5605 = vpop.f32.mrf.mxu0
    %v5606 = vadd.f32 %v5453, %v5605
    %v5607 = vpop.f32.mrf.mxu0
    %v5608 = vpop.f32.mrf.mxu0
    %v5609 = vadd.f32 %v5456, %v5608
    %v5610 = vpop.f32.mrf.mxu0
    %5611 = vmatprep.mubr.bf16.mxu0 0
    %5612 = vmatmul.mubr.bf16.gmra.mxu0 %v4633
    %v5613 = vpop.f32.mrf.mxu0
    %v5614 = vadd.f32 %v5461, %v5613
    %v5615 = vpop.f32.mrf.mxu0
    %v5616 = vpop.f32.mrf.mxu0
    %v5617 = vadd.f32 %v5464, %v5616
    %v5618 = vpop.f32.mrf.mxu0
    %5619 = vmatprep.mubr.bf16.mxu0 0
    %5620 = vmatmul.mubr.bf16.gmra.mxu0 %v4636
    %v5621 = vpop.f32.mrf.mxu0
    %v5622 = vadd.f32 %v5469, %v5621
    %v5623 = vpop.f32.mrf.mxu0
    %v5624 = vpop.f32.mrf.mxu0
    %v5625 = vadd.f32 %v5472, %v5624
    %v5626 = vpop.f32.mrf.mxu0
    %5627 = vmatprep.mubr.bf16.mxu0 0
    %5628 = vmatmul.mubr.bf16.gmra.mxu0 %v4639
    %v5629 = vpop.f32.mrf.mxu0
    %v5630 = vadd.f32 %v5477, %v5629
    %v5631 = vpop.f32.mrf.mxu0
    %v5632 = vpop.f32.mrf.mxu0
    %v5633 = vadd.f32 %v5480, %v5632
    %v5634 = vpop.f32.mrf.mxu0
    %5635 = vmatprep.mubr.bf16.mxu0 0
    %5636 = vmatmul.mubr.bf16.gmra.mxu0 %v4642
    %v5637 = vpop.f32.mrf.mxu0
    %v5638 = vadd.f32 %v5485, %v5637
    %v5639 = vpop.f32.mrf.mxu0
    %v5640 = vpop.f32.mrf.mxu0
    %v5641 = vadd.f32 %v5488, %v5640
    %v5642 = vpop.f32.mrf.mxu0
    %5643 = vmatprep.mubr.bf16.mxu0 0
    %5644 = vmatmul.mubr.bf16.gmra.mxu0 %v4645
    %v5645 = vpop.f32.mrf.mxu0
    %v5646 = vadd.f32 %v5493, %v5645
    %v5647 = vpop.f32.mrf.mxu0
    %v5648 = vpop.f32.mrf.mxu0
    %v5649 = vadd.f32 %v5496, %v5648
    %v5650 = vpop.f32.mrf.mxu0
    %5651 = vmatprep.mubr.bf16.mxu0 0
    %5652 = vmatmul.mubr.bf16.gmra.mxu0 %v4648
    %v5653 = vpop.f32.mrf.mxu0
    %v5654 = vadd.f32 %v5501, %v5653
    %v5655 = vpop.f32.mrf.mxu0
    %v5656 = vpop.f32.mrf.mxu0
    %v5657 = vadd.f32 %v5504, %v5656
    %v5658 = vpop.f32.mrf.mxu0
    %5659 = vmatprep.mubr.bf16.mxu0 0
    %5660 = vmatmul.mubr.bf16.gmra.mxu0 %v4651
    %v5661 = vpop.f32.mrf.mxu0
    %v5662 = vadd.f32 %v5509, %v5661
    %v5663 = vpop.f32.mrf.mxu0
    %v5664 = vpop.f32.mrf.mxu0
    %v5665 = vadd.f32 %v5512, %v5664
    %v5666 = vpop.f32.mrf.mxu0
    %5667 = vmatprep.mubr.bf16.mxu0 0
    %5668 = vmatmul.mubr.bf16.gmra.mxu0 %v4654
    %v5669 = vpop.f32.mrf.mxu0
    %v5670 = vadd.f32 %v5517, %v5669
    %v5671 = vpop.f32.mrf.mxu0
    %v5672 = vpop.f32.mrf.mxu0
    %v5673 = vadd.f32 %v5520, %v5672
    %v5674 = vpop.f32.mrf.mxu0
    %5675 = vmatprep.mubr.bf16.mxu0 0
    %5676 = vmatmul.mubr.bf16.gmra.mxu0 %v4657
    %v5677 = vpop.f32.mrf.mxu0
    %v5678 = vadd.f32 %v5525, %v5677
    %v5679 = vpop.f32.mrf.mxu0
    %v5680 = vpop.f32.mrf.mxu0
    %v5681 = vadd.f32 %v5528, %v5680
    %v5682 = vpop.f32.mrf.mxu0
    %5683 = vmatprep.mubr.bf16.mxu0 0
    %5684 = vmatmul.mubr.bf16.gmra.mxu0 %v4660
    %v5685 = vpop.f32.mrf.mxu0
    %v5686 = vadd.f32 %v5533, %v5685
    %v5687 = vpop.f32.mrf.mxu0
    %v5688 = vpop.f32.mrf.mxu0
    %v5689 = vadd.f32 %v5536, %v5688
    %v5690 = vpop.f32.mrf.mxu0
    %5691 = vmatprep.mubr.bf16.mxu0 0
    %5692 = vmatmul.mubr.bf16.gmra.mxu0 %v4663
    %v5693 = vpop.f32.mrf.mxu0
    %v5694 = vadd.f32 %v5541, %v5693
    %v5695 = vpop.f32.mrf.mxu0
    %v5696 = vpop.f32.mrf.mxu0
    %v5697 = vadd.f32 %v5544, %v5696
    %v5698 = vpop.f32.mrf.mxu0
    %5699 = vmatprep.mubr.bf16.mxu0 0
    %5700 = vmatmul.mubr.bf16.gmra.mxu0 %v4666
    %v5701 = vpop.f32.mrf.mxu0
    %v5702 = vadd.f32 %v5549, %v5701
    %v5703 = vpop.f32.mrf.mxu0
    %v5704 = vpop.f32.mrf.mxu0
    %v5705 = vadd.f32 %v5552, %v5704
    %v5706 = vpop.f32.mrf.mxu0
    %5707 = vmatprep.mubr.bf16.mxu0 0
    %5708 = vmatmul.mubr.bf16.gmra.mxu0 %v4669
    %v5709 = vpop.f32.mrf.mxu0
    %v5710 = vadd.f32 %v5557, %v5709
    %v5711 = vpop.f32.mrf.mxu0
    %v5712 = vpop.f32.mrf.mxu0
    %v5713 = vadd.f32 %v5560, %v5712
    %v5714 = vpop.f32.mrf.mxu0
    %5715 = vdwg.mxu0
    %v5764 = vunpack.c.l.b16 %v4671
    %v5765 = vunpack.c.l.b16 %v4672
    %v5766 = vunpack.c.l.b16 %v4673
    %v5767 = vunpack.c.l.b16 %v4674
    %v5768 = vunpack.c.l.b16 %v4675
    %v5769 = vunpack.c.l.b16 %v4676
    %v5770 = vunpack.c.l.b16 %v4677
    %v5771 = vunpack.c.l.b16 %v4678
    %v5772 = vunpack.c.l.b16 %v4679
    %v5773 = vunpack.c.l.b16 %v4680
    %v5774 = vunpack.c.l.b16 %v4681
    %v5775 = vunpack.c.l.b16 %v4682
    %v5776 = vunpack.c.l.b16 %v4683
    %v5777 = vunpack.c.l.b16 %v4684
    %v5778 = vunpack.c.l.b16 %v4685
    %v5779 = vunpack.c.l.b16 %v4686
    %v5780 = vunpack.c.l.b16 %v4687
    %v5781 = vunpack.c.l.b16 %v4688
    %v5782 = vunpack.c.l.b16 %v4689
    %v5783 = vunpack.c.l.b16 %v4690
    %v5784 = vunpack.c.l.b16 %v4691
    %v5785 = vunpack.c.l.b16 %v4692
    %v5786 = vunpack.c.l.b16 %v4693
    %v5787 = vunpack.c.l.b16 %v4694
    %v5788 = vunpack.c.l.b16 %v4695
    %v5789 = vunpack.c.l.b16 %v4696
    %v5790 = vunpack.c.l.b16 %v4697
    %v5791 = vunpack.c.l.b16 %v4698
    %v5792 = vunpack.c.l.b16 %v4699
    %v5793 = vunpack.c.l.b16 %v4700
    %v5794 = vunpack.c.l.b16 %v4701
    %v5795 = vunpack.c.l.b16 %v4702
    %v5796 = vunpack.c.l.b16 %v4703
    %v5797 = vunpack.c.l.b16 %v4704
    %v5798 = vunpack.c.l.b16 %v4705
    %v5799 = vunpack.c.l.b16 %v4706
    %v5800 = vunpack.c.l.b16 %v4707
    %v5801 = vunpack.c.l.b16 %v4708
    %v5802 = vunpack.c.l.b16 %v4709
    %v5803 = vunpack.c.l.b16 %v4710
    %v5804 = vunpack.c.l.b16 %v4711
    %v5805 = vunpack.c.l.b16 %v4712
    %v5806 = vunpack.c.l.b16 %v4713
    %v5807 = vunpack.c.l.b16 %v4714
    %v5808 = vunpack.c.l.b16 %v4715
    %v5809 = vunpack.c.l.b16 %v4716
    %v5810 = vunpack.c.l.b16 %v4717
    %v5811 = vunpack.c.l.b16 %v4718
    %v5812 = vpack.c.b16 %v5765, %v5764
    %v5813 = vpack.c.b16 %v5767, %v5766
    %v5814 = vpack.c.b16 %v5769, %v5768
    %v5815 = vpack.c.b16 %v5771, %v5770
    %v5816 = vpack.c.b16 %v5773, %v5772
    %v5817 = vpack.c.b16 %v5775, %v5774
    %v5818 = vpack.c.b16 %v5777, %v5776
    %v5819 = vpack.c.b16 %v5779, %v5778
    %v5820 = vpack.c.b16 %v5781, %v5780
    %v5821 = vpack.c.b16 %v5783, %v5782
    %v5822 = vpack.c.b16 %v5785, %v5784
    %v5823 = vpack.c.b16 %v5787, %v5786
    %v5824 = vpack.c.b16 %v5789, %v5788
    %v5825 = vpack.c.b16 %v5791, %v5790
    %v5826 = vpack.c.b16 %v5793, %v5792
    %v5827 = vpack.c.b16 %v5795, %v5794
    %v5828 = vpack.c.b16 %v5797, %v5796
    %v5829 = vpack.c.b16 %v5799, %v5798
    %v5830 = vpack.c.b16 %v5801, %v5800
    %v5831 = vpack.c.b16 %v5803, %v5802
    %v5832 = vpack.c.b16 %v5805, %v5804
    %v5833 = vpack.c.b16 %v5807, %v5806
    %v5834 = vpack.c.b16 %v5809, %v5808
    %v5835 = vpack.c.b16 %v5811, %v5810
    %5860 = vmatprep.subr.bf16.mxu0 0
    %5861 = vmatpush1.bf16.msra.mxu0 %v5819
    %5862 = vmatprep.subr.bf16.mxu0 0
    %5863 = vmatpush1.bf16.msra.mxu0 %v5818
    %5864 = vmatprep.subr.bf16.mxu0 0
    %5865 = vmatpush1.bf16.msra.mxu0 %v5817
    %5866 = vmatprep.subr.bf16.mxu0 0
    %5867 = vmatpush1.bf16.msra.mxu0 %v5816
    %5868 = vmatprep.subr.bf16.mxu0 0
    %5869 = vmatpush1.bf16.msra.mxu0 %v5815
    %5870 = vmatprep.subr.bf16.mxu0 0
    %5871 = vmatpush1.bf16.msra.mxu0 %v5814
    %5872 = vmatprep.subr.bf16.mxu0 0
    %5873 = vmatpush1.bf16.msra.mxu0 %v5813
    %5874 = vmatprep.subr.bf16.mxu0 0
    %5875 = vmatpush1.bf16.msra.mxu0 %v5812
    %5876 = vmatprep.subr.bf16.mxu0 0
    %5877 = vmatpush2.bf16.msra.mxu0 %v5827
    %5878 = vmatprep.subr.bf16.mxu0 0
    %5879 = vmatpush2.bf16.msra.mxu0 %v5826
    %5880 = vmatprep.subr.bf16.mxu0 0
    %5881 = vmatpush2.bf16.msra.mxu0 %v5825
    %5882 = vmatprep.subr.bf16.mxu0 0
    %5883 = vmatpush2.bf16.msra.mxu0 %v5824
    %5884 = vmatprep.subr.bf16.mxu0 0
    %5885 = vmatpush2.bf16.msra.mxu0 %v5823
    %5886 = vmatprep.subr.bf16.mxu0 0
    %5887 = vmatpush2.bf16.msra.mxu0 %v5822
    %5888 = vmatprep.subr.bf16.mxu0 0
    %5889 = vmatpush2.bf16.msra.mxu0 %v5821
    %5890 = vmatprep.subr.bf16.mxu0 0
    %5891 = vmatpush2.bf16.msra.mxu0 %v5820
    %5892 = vmatprep.mubr.bf16.mxu0 %v4623
    %5893 = vmatmul.mubr.bf16.gmra.mxu0 %v4622
    %v5894 = vpop.f32.mrf.mxu0
    %v5895 = vadd.f32 0.0, %v5894
    %v5896 = vpop.f32.mrf.mxu0
    %v5897 = vpop.f32.mrf.mxu0
    %v5898 = vadd.f32 0.0, %v5897
    %v5899 = vpop.f32.mrf.mxu0
    %5900 = vmatprep.mubr.bf16.mxu0 %v4626
    %5901 = vmatmul.mubr.bf16.gmra.mxu0 %v4625
    %v5902 = vpop.f32.mrf.mxu0
    %v5903 = vadd.f32 %v5099, %v5902
    %v5904 = vpop.f32.mrf.mxu0
    %v5905 = vpop.f32.mrf.mxu0
    %v5906 = vadd.f32 %v5102, %v5905
    %v5907 = vpop.f32.mrf.mxu0
    %5908 = vmatprep.mubr.bf16.mxu0 %v4629
    %5909 = vmatmul.mubr.bf16.gmra.mxu0 %v4628
    %v5910 = vpop.f32.mrf.mxu0
    %v5911 = vadd.f32 %v5107, %v5910
    %v5912 = vpop.f32.mrf.mxu0
    %v5913 = vpop.f32.mrf.mxu0
    %v5914 = vadd.f32 %v5110, %v5913
    %v5915 = vpop.f32.mrf.mxu0
    %5916 = vmatprep.mubr.bf16.mxu0 %v4632
    %5917 = vmatmul.mubr.bf16.gmra.mxu0 %v4631
    %v5918 = vpop.f32.mrf.mxu0
    %v5919 = vadd.f32 %v5115, %v5918
    %v5920 = vpop.f32.mrf.mxu0
    %v5921 = vpop.f32.mrf.mxu0
    %v5922 = vadd.f32 %v5118, %v5921
    %v5923 = vpop.f32.mrf.mxu0
    %5924 = vmatprep.mubr.bf16.mxu0 %v4635
    %5925 = vmatmul.mubr.bf16.gmra.mxu0 %v4634
    %v5926 = vpop.f32.mrf.mxu0
    %v5927 = vadd.f32 %v5123, %v5926
    %v5928 = vpop.f32.mrf.mxu0
    %v5929 = vpop.f32.mrf.mxu0
    %v5930 = vadd.f32 %v5126, %v5929
    %v5931 = vpop.f32.mrf.mxu0
    %5932 = vmatprep.mubr.bf16.mxu0 %v4638
    %5933 = vmatmul.mubr.bf16.gmra.mxu0 %v4637
    %v5934 = vpop.f32.mrf.mxu0
    %v5935 = vadd.f32 %v5131, %v5934
    %v5936 = vpop.f32.mrf.mxu0
    %v5937 = vpop.f32.mrf.mxu0
    %v5938 = vadd.f32 %v5134, %v5937
    %v5939 = vpop.f32.mrf.mxu0
    %5940 = vmatprep.mubr.bf16.mxu0 %v4641
    %5941 = vmatmul.mubr.bf16.gmra.mxu0 %v4640
    %v5942 = vpop.f32.mrf.mxu0
    %v5943 = vadd.f32 %v5139, %v5942
    %v5944 = vpop.f32.mrf.mxu0
    %v5945 = vpop.f32.mrf.mxu0
    %v5946 = vadd.f32 %v5142, %v5945
    %v5947 = vpop.f32.mrf.mxu0
    %5948 = vmatprep.mubr.bf16.mxu0 %v4644
    %5949 = vmatmul.mubr.bf16.gmra.mxu0 %v4643
    %v5950 = vpop.f32.mrf.mxu0
    %v5951 = vadd.f32 %v5147, %v5950
    %v5952 = vpop.f32.mrf.mxu0
    %v5953 = vpop.f32.mrf.mxu0
    %v5954 = vadd.f32 %v5150, %v5953
    %v5955 = vpop.f32.mrf.mxu0
    %5956 = vmatprep.mubr.bf16.mxu0 %v4647
    %5957 = vmatmul.mubr.bf16.gmra.mxu0 %v4646
    %v5958 = vpop.f32.mrf.mxu0
    %v5959 = vadd.f32 %v5155, %v5958
    %v5960 = vpop.f32.mrf.mxu0
    %v5961 = vpop.f32.mrf.mxu0
    %v5962 = vadd.f32 %v5158, %v5961
    %v5963 = vpop.f32.mrf.mxu0
    %5964 = vmatprep.mubr.bf16.mxu0 %v4650
    %5965 = vmatmul.mubr.bf16.gmra.mxu0 %v4649
    %v5966 = vpop.f32.mrf.mxu0
    %v5967 = vadd.f32 %v5163, %v5966
    %v5968 = vpop.f32.mrf.mxu0
    %v5969 = vpop.f32.mrf.mxu0
    %v5970 = vadd.f32 %v5166, %v5969
    %v5971 = vpop.f32.mrf.mxu0
    %5972 = vmatprep.mubr.bf16.mxu0 %v4653
    %5973 = vmatmul.mubr.bf16.gmra.mxu0 %v4652
    %v5974 = vpop.f32.mrf.mxu0
    %v5975 = vadd.f32 %v5171, %v5974
    %v5976 = vpop.f32.mrf.mxu0
    %v5977 = vpop.f32.mrf.mxu0
    %v5978 = vadd.f32 %v5174, %v5977
    %v5979 = vpop.f32.mrf.mxu0
    %5980 = vmatprep.mubr.bf16.mxu0 %v4656
    %5981 = vmatmul.mubr.bf16.gmra.mxu0 %v4655
    %v5982 = vpop.f32.mrf.mxu0
    %v5983 = vadd.f32 %v5179, %v5982
    %v5984 = vpop.f32.mrf.mxu0
    %v5985 = vpop.f32.mrf.mxu0
    %v5986 = vadd.f32 %v5182, %v5985
    %v5987 = vpop.f32.mrf.mxu0
    %5988 = vmatprep.mubr.bf16.mxu0 %v4659
    %5989 = vmatmul.mubr.bf16.gmra.mxu0 %v4658
    %v5990 = vpop.f32.mrf.mxu0
    %v5991 = vadd.f32 %v5187, %v5990
    %v5992 = vpop.f32.mrf.mxu0
    %v5993 = vpop.f32.mrf.mxu0
    %v5994 = vadd.f32 %v5190, %v5993
    %v5995 = vpop.f32.mrf.mxu0
    %5996 = vmatprep.mubr.bf16.mxu0 %v4662
    %5997 = vmatmul.mubr.bf16.gmra.mxu0 %v4661
    %v5998 = vpop.f32.mrf.mxu0
    %v5999 = vadd.f32 %v5195, %v5998
    %v6000 = vpop.f32.mrf.mxu0
    %v6001 = vpop.f32.mrf.mxu0
    %v6002 = vadd.f32 %v5198, %v6001
    %v6003 = vpop.f32.mrf.mxu0
    %6004 = vmatprep.mubr.bf16.mxu0 %v4665
    %6005 = vmatmul.mubr.bf16.gmra.mxu0 %v4664
    %v6006 = vpop.f32.mrf.mxu0
    %v6007 = vadd.f32 %v5203, %v6006
    %v6008 = vpop.f32.mrf.mxu0
    %v6009 = vpop.f32.mrf.mxu0
    %v6010 = vadd.f32 %v5206, %v6009
    %v6011 = vpop.f32.mrf.mxu0
    %6012 = vmatprep.mubr.bf16.mxu0 %v4668
    %6013 = vmatmul.mubr.bf16.gmra.mxu0 %v4667
    %v6014 = vpop.f32.mrf.mxu0
    %v6015 = vadd.f32 %v5211, %v6014
    %v6016 = vpop.f32.mrf.mxu0
    %v6017 = vpop.f32.mrf.mxu0
    %v6018 = vadd.f32 %v5214, %v6017
    %v6019 = vpop.f32.mrf.mxu0
    %6020 = vdwg.mxu0
    %6021 = vmatprep.subr.bf16.mxu0 0
    %6022 = vmatpush1.bf16.msra.mxu0 %v5835
    %6023 = vmatprep.subr.bf16.mxu0 0
    %6024 = vmatpush1.bf16.msra.mxu0 %v5834
    %6025 = vmatprep.subr.bf16.mxu0 0
    %6026 = vmatpush1.bf16.msra.mxu0 %v5833
    %6027 = vmatprep.subr.bf16.mxu0 0
    %6028 = vmatpush1.bf16.msra.mxu0 %v5832
    %6029 = vmatprep.subr.bf16.mxu0 0
    %6030 = vmatpush1.bf16.msra.mxu0 %v5831
    %6031 = vmatprep.subr.bf16.mxu0 0
    %6032 = vmatpush1.bf16.msra.mxu0 %v5830
    %6033 = vmatprep.subr.bf16.mxu0 0
    %6034 = vmatpush1.bf16.msra.mxu0 %v5829
    %6035 = vmatprep.subr.bf16.mxu0 0
    %6036 = vmatpush1.bf16.msra.mxu0 %v5828
    %6037 = vmatprep.subr.bf16.mxu0 0
    %6038 = vmatpush2.bf16.msra.mxu0 0
    %6039 = vmatprep.subr.bf16.mxu0 0
    %6040 = vmatpush2.bf16.msra.mxu0 0
    %6041 = vmatprep.subr.bf16.mxu0 0
    %6042 = vmatpush2.bf16.msra.mxu0 0
    %6043 = vmatprep.subr.bf16.mxu0 0
    %6044 = vmatpush2.bf16.msra.mxu0 0
    %6045 = vmatprep.subr.bf16.mxu0 0
    %6046 = vmatpush2.bf16.msra.mxu0 0
    %6047 = vmatprep.subr.bf16.mxu0 0
    %6048 = vmatpush2.bf16.msra.mxu0 0
    %6049 = vmatprep.subr.bf16.mxu0 0
    %6050 = vmatpush2.bf16.msra.mxu0 0
    %6051 = vmatprep.subr.bf16.mxu0 0
    %6052 = vmatpush2.bf16.msra.mxu0 0
    %6053 = vmatprep.mubr.bf16.mxu0 0
    %6054 = vmatmul.mubr.bf16.gmra.mxu0 %v4624
    %v6055 = vpop.f32.mrf.mxu0
    %v6056 = vadd.f32 %v5895, %v6055
    %v6057 = vpop.f32.mrf.mxu0
    %v6058 = vpop.f32.mrf.mxu0
    %v6059 = vadd.f32 %v5898, %v6058
    %v6060 = vpop.f32.mrf.mxu0
    %6061 = vmatprep.mubr.bf16.mxu0 0
    %6062 = vmatmul.mubr.bf16.gmra.mxu0 %v4627
    %v6063 = vpop.f32.mrf.mxu0
    %v6064 = vadd.f32 %v5903, %v6063
    %v6065 = vpop.f32.mrf.mxu0
    %v6066 = vpop.f32.mrf.mxu0
    %v6067 = vadd.f32 %v5906, %v6066
    %v6068 = vpop.f32.mrf.mxu0
    %6069 = vmatprep.mubr.bf16.mxu0 0
    %6070 = vmatmul.mubr.bf16.gmra.mxu0 %v4630
    %v6071 = vpop.f32.mrf.mxu0
    %v6072 = vadd.f32 %v5911, %v6071
    %v6073 = vpop.f32.mrf.mxu0
    %v6074 = vpop.f32.mrf.mxu0
    %v6075 = vadd.f32 %v5914, %v6074
    %v6076 = vpop.f32.mrf.mxu0
    %6077 = vmatprep.mubr.bf16.mxu0 0
    %6078 = vmatmul.mubr.bf16.gmra.mxu0 %v4633
    %v6079 = vpop.f32.mrf.mxu0
    %v6080 = vadd.f32 %v5919, %v6079
    %v6081 = vpop.f32.mrf.mxu0
    %v6082 = vpop.f32.mrf.mxu0
    %v6083 = vadd.f32 %v5922, %v6082
    %v6084 = vpop.f32.mrf.mxu0
    %6085 = vmatprep.mubr.bf16.mxu0 0
    %6086 = vmatmul.mubr.bf16.gmra.mxu0 %v4636
    %v6087 = vpop.f32.mrf.mxu0
    %v6088 = vadd.f32 %v5927, %v6087
    %v6089 = vpop.f32.mrf.mxu0
    %v6090 = vpop.f32.mrf.mxu0
    %v6091 = vadd.f32 %v5930, %v6090
    %v6092 = vpop.f32.mrf.mxu0
    %6093 = vmatprep.mubr.bf16.mxu0 0
    %6094 = vmatmul.mubr.bf16.gmra.mxu0 %v4639
    %v6095 = vpop.f32.mrf.mxu0
    %v6096 = vadd.f32 %v5935, %v6095
    %v6097 = vpop.f32.mrf.mxu0
    %v6098 = vpop.f32.mrf.mxu0
    %v6099 = vadd.f32 %v5938, %v6098
    %v6100 = vpop.f32.mrf.mxu0
    %6101 = vmatprep.mubr.bf16.mxu0 0
    %6102 = vmatmul.mubr.bf16.gmra.mxu0 %v4642
    %v6103 = vpop.f32.mrf.mxu0
    %v6104 = vadd.f32 %v5943, %v6103
    %v6105 = vpop.f32.mrf.mxu0
    %v6106 = vpop.f32.mrf.mxu0
    %v6107 = vadd.f32 %v5946, %v6106
    %v6108 = vpop.f32.mrf.mxu0
    %6109 = vmatprep.mubr.bf16.mxu0 0
    %6110 = vmatmul.mubr.bf16.gmra.mxu0 %v4645
    %v6111 = vpop.f32.mrf.mxu0
    %v6112 = vadd.f32 %v5951, %v6111
    %v6113 = vpop.f32.mrf.mxu0
    %v6114 = vpop.f32.mrf.mxu0
    %v6115 = vadd.f32 %v5954, %v6114
    %v6116 = vpop.f32.mrf.mxu0
    %6117 = vmatprep.mubr.bf16.mxu0 0
    %6118 = vmatmul.mubr.bf16.gmra.mxu0 %v4648
    %v6119 = vpop.f32.mrf.mxu0
    %v6120 = vadd.f32 %v5959, %v6119
    %v6121 = vpop.f32.mrf.mxu0
    %v6122 = vpop.f32.mrf.mxu0
    %v6123 = vadd.f32 %v5962, %v6122
    %v6124 = vpop.f32.mrf.mxu0
    %6125 = vmatprep.mubr.bf16.mxu0 0
    %6126 = vmatmul.mubr.bf16.gmra.mxu0 %v4651
    %v6127 = vpop.f32.mrf.mxu0
    %v6128 = vadd.f32 %v5967, %v6127
    %v6129 = vpop.f32.mrf.mxu0
    %v6130 = vpop.f32.mrf.mxu0
    %v6131 = vadd.f32 %v5970, %v6130
    %v6132 = vpop.f32.mrf.mxu0
    %6133 = vmatprep.mubr.bf16.mxu0 0
    %6134 = vmatmul.mubr.bf16.gmra.mxu0 %v4654
    %v6135 = vpop.f32.mrf.mxu0
    %v6136 = vadd.f32 %v5975, %v6135
    %v6137 = vpop.f32.mrf.mxu0
    %v6138 = vpop.f32.mrf.mxu0
    %v6139 = vadd.f32 %v5978, %v6138
    %v6140 = vpop.f32.mrf.mxu0
    %6141 = vmatprep.mubr.bf16.mxu0 0
    %6142 = vmatmul.mubr.bf16.gmra.mxu0 %v4657
    %v6143 = vpop.f32.mrf.mxu0
    %v6144 = vadd.f32 %v5983, %v6143
    %v6145 = vpop.f32.mrf.mxu0
    %v6146 = vpop.f32.mrf.mxu0
    %v6147 = vadd.f32 %v5986, %v6146
    %v6148 = vpop.f32.mrf.mxu0
    %6149 = vmatprep.mubr.bf16.mxu0 0
    %6150 = vmatmul.mubr.bf16.gmra.mxu0 %v4660
    %v6151 = vpop.f32.mrf.mxu0
    %v6152 = vadd.f32 %v5991, %v6151
    %v6153 = vpop.f32.mrf.mxu0
    %v6154 = vpop.f32.mrf.mxu0
    %v6155 = vadd.f32 %v5994, %v6154
    %v6156 = vpop.f32.mrf.mxu0
    %6157 = vmatprep.mubr.bf16.mxu0 0
    %6158 = vmatmul.mubr.bf16.gmra.mxu0 %v4663
    %v6159 = vpop.f32.mrf.mxu0
    %v6160 = vadd.f32 %v5999, %v6159
    %v6161 = vpop.f32.mrf.mxu0
    %v6162 = vpop.f32.mrf.mxu0
    %v6163 = vadd.f32 %v6002, %v6162
    %v6164 = vpop.f32.mrf.mxu0
    %6165 = vmatprep.mubr.bf16.mxu0 0
    %6166 = vmatmul.mubr.bf16.gmra.mxu0 %v4666
    %v6167 = vpop.f32.mrf.mxu0
    %v6168 = vadd.f32 %v6007, %v6167
    %v6169 = vpop.f32.mrf.mxu0
    %v6170 = vpop.f32.mrf.mxu0
    %v6171 = vadd.f32 %v6010, %v6170
    %v6172 = vpop.f32.mrf.mxu0
    %6173 = vmatprep.mubr.bf16.mxu0 0
    %6174 = vmatmul.mubr.bf16.gmra.mxu0 %v4669
    %v6175 = vpop.f32.mrf.mxu0
    %v6176 = vadd.f32 %v6015, %v6175
    %v6177 = vpop.f32.mrf.mxu0
    %v6178 = vpop.f32.mrf.mxu0
    %v6179 = vadd.f32 %v6018, %v6178
    %v6180 = vpop.f32.mrf.mxu0
    %6181 = vdwg.mxu0
    %v6182 = vadd.f32 %v6056, %v5598
    %v6183 = vadd.f32 %v6059, %v5601
    %v6184 = vadd.f32 %v6064, %v5606
    %v6185 = vadd.f32 %v6067, %v5609
    %v6186 = vadd.f32 %v6072, %v5614
    %v6187 = vadd.f32 %v6075, %v5617
    %v6188 = vadd.f32 %v6080, %v5622
    %v6189 = vadd.f32 %v6083, %v5625
    %v6190 = vadd.f32 %v6088, %v5630
    %v6191 = vadd.f32 %v6091, %v5633
    %v6192 = vadd.f32 %v6096, %v5638
    %v6193 = vadd.f32 %v6099, %v5641
    %v6194 = vadd.f32 %v6104, %v5646
    %v6195 = vadd.f32 %v6107, %v5649
    %v6196 = vadd.f32 %v6112, %v5654
    %v6197 = vadd.f32 %v6115, %v5657
    %v6198 = vadd.f32 %v6120, %v5662
    %v6199 = vadd.f32 %v6123, %v5665
    %v6200 = vadd.f32 %v6128, %v5670
    %v6201 = vadd.f32 %v6131, %v5673
    %v6202 = vadd.f32 %v6136, %v5678
    %v6203 = vadd.f32 %v6139, %v5681
    %v6204 = vadd.f32 %v6144, %v5686
    %v6205 = vadd.f32 %v6147, %v5689
    %v6206 = vadd.f32 %v6152, %v5694
    %v6207 = vadd.f32 %v6155, %v5697
    %v6208 = vadd.f32 %v6160, %v5702
    %v6209 = vadd.f32 %v6163, %v5705
    %v6210 = vadd.f32 %v6168, %v5710
    %v6211 = vadd.f32 %v6171, %v5713
    %v6212 = vadd.f32 %v6176, 0.0
    %v6213 = vadd.f32 %v6179, 0.0
    %6214 = vst [vmem:[#allocation9] sm:$0xff] %v6182
    %6215 = vst [vmem:[#allocation9 + $0x8] sm:$0xff] %v6183
    %6216 = vst [vmem:[#allocation9 + $0x10] sm:$0xff] %v6184
    %6217 = vst [vmem:[#allocation9 + $0x18] sm:$0xff] %v6185
    %6218 = vst [vmem:[#allocation9 + $0x20] sm:$0xff] %v6186
    %6219 = vst [vmem:[#allocation9 + $0x28] sm:$0xff] %v6187
    %6220 = vst [vmem:[#allocation9 + $0x30] sm:$0xff] %v6188
    %6221 = vst [vmem:[#allocation9 + $0x38] sm:$0xff] %v6189
    %6222 = vst [vmem:[#allocation9 + $0x40] sm:$0xff] %v6190
    %6223 = vst [vmem:[#allocation9 + $0x48] sm:$0xff] %v6191
    %6224 = vst [vmem:[#allocation9 + $0x50] sm:$0xff] %v6192
    %6225 = vst [vmem:[#allocation9 + $0x58] sm:$0xff] %v6193
    %6226 = vst [vmem:[#allocation9 + $0x60] sm:$0xff] %v6194
    %6227 = vst [vmem:[#allocation9 + $0x68] sm:$0xff] %v6195
    %6228 = vst [vmem:[#allocation9 + $0x70] sm:$0xff] %v6196
    %6229 = vst [vmem:[#allocation9 + $0x78] sm:$0xff] %v6197
    %6230 = vst [vmem:[#allocation9 + $0x80] sm:$0xff] %v6198
    %6231 = vst [vmem:[#allocation9 + $0x88] sm:$0xff] %v6199
    %6232 = vst [vmem:[#allocation9 + $0x90] sm:$0xff] %v6200
    %6233 = vst [vmem:[#allocation9 + $0x98] sm:$0xff] %v6201
    %6234 = vst [vmem:[#allocation9 + $0xa0] sm:$0xff] %v6202
    %6235 = vst [vmem:[#allocation9 + $0xa8] sm:$0xff] %v6203
    %6236 = vst [vmem:[#allocation9 + $0xb0] sm:$0xff] %v6204
    %6237 = vst [vmem:[#allocation9 + $0xb8] sm:$0xff] %v6205
    %6238 = vst [vmem:[#allocation9 + $0xc0] sm:$0xff] %v6206
    %6239 = vst [vmem:[#allocation9 + $0xc8] sm:$0xff] %v6207
    %6240 = vst [vmem:[#allocation9 + $0xd0] sm:$0xff] %v6208
    %6241 = vst [vmem:[#allocation9 + $0xd8] sm:$0xff] %v6209
    %6242 = vst [vmem:[#allocation9 + $0xe0] sm:$0xff] %v6210
    %6243 = vst [vmem:[#allocation9 + $0xe8] sm:$0xff] %v6211
    %6244 = vst [vmem:[#allocation9 + $0xf0] sm:$0xff] %v6212
    %6245 = vst [vmem:[#allocation9 + $0xf8] sm:$0xff] %v6213
    %v6246 = vadd.f32 %v6182, %v6183
    %v6247 = vadd.f32 %v6246, %v6184
    %v6248 = vadd.f32 %v6247, %v6185
    %v6249 = vadd.f32 %v6248, %v6186
    %v6250 = vadd.f32 %v6249, %v6187
    %v6251 = vadd.f32 %v6250, %v6188
    %v6252 = vadd.f32 %v6251, %v6189
    %v6253 = vadd.f32 %v6252, %v6190
    %v6254 = vadd.f32 %v6253, %v6191
    %v6255 = vadd.f32 %v6254, %v6192
    %v6256 = vadd.f32 %v6255, %v6193
    %v6257 = vadd.f32 %v6256, %v6194
    %v6258 = vadd.f32 %v6257, %v6195
    %v6259 = vadd.f32 %v6258, %v6196
    %v6260 = vadd.f32 %v6259, %v6197
    %v6261 = vadd.f32 %v6260, %v6198
    %v6262 = vadd.f32 %v6261, %v6199
    %v6263 = vadd.f32 %v6262, %v6200
    %v6264 = vadd.f32 %v6263, %v6201
    %v6265 = vadd.f32 %v6264, %v6202
    %v6266 = vadd.f32 %v6265, %v6203
    %v6267 = vadd.f32 %v6266, %v6204
    %v6268 = vadd.f32 %v6267, %v6205
    %v6269 = vadd.f32 %v6268, %v6206
    %v6270 = vadd.f32 %v6269, %v6207
    %v6271 = vadd.f32 %v6270, %v6208
    %v6272 = vadd.f32 %v6271, %v6209
    %v6273 = vadd.f32 %v6272, %v6210
    %v6274 = vadd.f32 %v6273, %v6211
    %v6275 = vadd.f32 %v6274, %v6212
    %v6276 = vadd.f32 %v6275, %v6213
    %v6277 = vrot.slane %v6276, 4
    %v6278 = vadd.f32 %v6276, %v6277
    %v6279 = vrot.slane %v6278, 2
    %v6280 = vadd.f32 %v6278, %v6279
    %v6281 = vrot.slane %v6280, 1
    %v6282 = vadd.f32 %v6280, %v6281
    %v6283 = vadd.f32 %v6282, 0.0
    %v6284 = vmul.f32 %v6182, %v6182
    %v6285 = vmul.f32 %v6183, %v6183
    %v6286 = vmul.f32 %v6184, %v6184
    %v6287 = vmul.f32 %v6185, %v6185
    %v6288 = vmul.f32 %v6186, %v6186
    %v6289 = vmul.f32 %v6187, %v6187
    %v6290 = vmul.f32 %v6188, %v6188
    %v6291 = vmul.f32 %v6189, %v6189
    %v6292 = vmul.f32 %v6190, %v6190
    %v6293 = vmul.f32 %v6191, %v6191
    %v6294 = vmul.f32 %v6192, %v6192
    %v6295 = vmul.f32 %v6193, %v6193
    %v6296 = vmul.f32 %v6194, %v6194
    %v6297 = vmul.f32 %v6195, %v6195
    %v6298 = vmul.f32 %v6196, %v6196
    %v6299 = vmul.f32 %v6197, %v6197
    %v6300 = vmul.f32 %v6198, %v6198
    %v6301 = vmul.f32 %v6199, %v6199
    %v6302 = vmul.f32 %v6200, %v6200
    %v6303 = vmul.f32 %v6201, %v6201
    %v6304 = vmul.f32 %v6202, %v6202
    %v6305 = vmul.f32 %v6203, %v6203
    %v6306 = vmul.f32 %v6204, %v6204
    %v6307 = vmul.f32 %v6205, %v6205
    %v6308 = vmul.f32 %v6206, %v6206
    %v6309 = vmul.f32 %v6207, %v6207
    %v6310 = vmul.f32 %v6208, %v6208
    %v6311 = vmul.f32 %v6209, %v6209
    %v6312 = vmul.f32 %v6210, %v6210
    %v6313 = vmul.f32 %v6211, %v6211
    %v6314 = vmul.f32 %v6212, %v6212
    %v6315 = vmul.f32 %v6213, %v6213
    %v6316 = vadd.f32 %v6284, %v6285
    %v6317 = vadd.f32 %v6316, %v6286
    %v6318 = vadd.f32 %v6317, %v6287
    %v6319 = vadd.f32 %v6318, %v6288
    %v6320 = vadd.f32 %v6319, %v6289
    %v6321 = vadd.f32 %v6320, %v6290
    %v6322 = vadd.f32 %v6321, %v6291
    %v6323 = vadd.f32 %v6322, %v6292
    %v6324 = vadd.f32 %v6323, %v6293
    %v6325 = vadd.f32 %v6324, %v6294
    %v6326 = vadd.f32 %v6325, %v6295
    %v6327 = vadd.f32 %v6326, %v6296
    %v6328 = vadd.f32 %v6327, %v6297
    %v6329 = vadd.f32 %v6328, %v6298
    %v6330 = vadd.f32 %v6329, %v6299
    %v6331 = vadd.f32 %v6330, %v6300
    %v6332 = vadd.f32 %v6331, %v6301
    %v6333 = vadd.f32 %v6332, %v6302
    %v6334 = vadd.f32 %v6333, %v6303
    %v6335 = vadd.f32 %v6334, %v6304
    %v6336 = vadd.f32 %v6335, %v6305
    %v6337 = vadd.f32 %v6336, %v6306
    %v6338 = vadd.f32 %v6337, %v6307
    %v6339 = vadd.f32 %v6338, %v6308
    %v6340 = vadd.f32 %v6339, %v6309
    %v6341 = vadd.f32 %v6340, %v6310
    %v6342 = vadd.f32 %v6341, %v6311
    %v6343 = vadd.f32 %v6342, %v6312
    %v6344 = vadd.f32 %v6343, %v6313
    %v6345 = vadd.f32 %v6344, %v6314
    %v6346 = vadd.f32 %v6345, %v6315
    %v6347 = vrot.slane %v6346, 4
    %v6348 = vadd.f32 %v6346, %v6347
    %v6349 = vrot.slane %v6348, 2
    %v6350 = vadd.f32 %v6348, %v6349
    %v6351 = vrot.slane %v6350, 1
    %v6352 = vadd.f32 %v6350, %v6351
    %v6353 = vadd.f32 %v6352, 0.0
    %v6354 = vld [vmem:[%s4213] sm:$0xf]
    %v6355 = vld [vmem:[%s4213 + $0x4] sm:$0xf]
    %v6356 = vld [vmem:[%s4213 + $0x8] sm:$0xf]
    %v6357 = vld [vmem:[%s4213 + $0xc] sm:$0xf]
    %v6358 = vld [vmem:[%s4213 + $0x10] sm:$0xf]
    %v6359 = vld [vmem:[%s4213 + $0x14] sm:$0xf]
    %v6360 = vld [vmem:[%s4213 + $0x18] sm:$0xf]
    %v6361 = vld [vmem:[%s4213 + $0x1c] sm:$0xf]
    %v6362 = vld [vmem:[%s4213 + $0x20] sm:$0xf]
    %v6363 = vld [vmem:[%s4213 + $0x24] sm:$0xf]
    %v6364 = vld [vmem:[%s4213 + $0x28] sm:$0xf]
    %v6365 = vld [vmem:[%s4213 + $0x2c] sm:$0xf]
    %v6366 = vld [vmem:[%s4213 + $0x30] sm:$0xf]
    %v6367 = vld [vmem:[%s4213 + $0x34] sm:$0xf]
    %v6368 = vld [vmem:[%s4213 + $0x38] sm:$0xf]
    %v6369 = vld [vmem:[%s4213 + $0x3c] sm:$0xf]
    %v6370 = vld [vmem:[%s4213 + $0x40] sm:$0xf]
    %v6371 = vld [vmem:[%s4213 + $0x44] sm:$0xf]
    %v6372 = vld [vmem:[%s4213 + $0x48] sm:$0xf]
    %v6373 = vld [vmem:[%s4213 + $0x4c] sm:$0xf]
    %v6374 = vld [vmem:[%s4213 + $0x50] sm:$0xf]
    %v6375 = vld [vmem:[%s4213 + $0x54] sm:$0xf]
    %v6376 = vld [vmem:[%s4213 + $0x58] sm:$0xf]
    %v6377 = vld [vmem:[%s4213 + $0x5c] sm:$0xf]
    %v6378 = vld [vmem:[%s4213 + $0x60] sm:$0xf]
    %v6379 = vld [vmem:[%s4213 + $0x64] sm:$0xf]
    %v6380 = vld [vmem:[%s4213 + $0x68] sm:$0xf]
    %v6381 = vld [vmem:[%s4213 + $0x6c] sm:$0xf]
    %v6382 = vld [vmem:[%s4213 + $0x70] sm:$0xf]
    %v6383 = vld [vmem:[%s4213 + $0x74] sm:$0xf]
    %v6384 = vld [vmem:[%s4213 + $0x78] sm:$0xf]
    %v6385 = vld [vmem:[%s4213 + $0x7c] sm:$0xf]
    %v6386 = vunpack.c.l.bf16 %v6354
    %v6387 = vunpack.c.l.bf16 %v6355
    %v6388 = vunpack.c.l.bf16 %v6356
    %v6389 = vunpack.c.l.bf16 %v6357
    %v6390 = vunpack.c.l.bf16 %v6358
    %v6391 = vunpack.c.l.bf16 %v6359
    %v6392 = vunpack.c.l.bf16 %v6360
    %v6393 = vunpack.c.l.bf16 %v6361
    %v6394 = vunpack.c.l.bf16 %v6362
    %v6395 = vunpack.c.l.bf16 %v6363
    %v6396 = vunpack.c.l.bf16 %v6364
    %v6397 = vunpack.c.l.bf16 %v6365
    %v6398 = vunpack.c.l.bf16 %v6366
    %v6399 = vunpack.c.l.bf16 %v6367
    %v6400 = vunpack.c.l.bf16 %v6368
    %v6401 = vunpack.c.l.bf16 %v6369
    %v6402 = vunpack.c.l.bf16 %v6370
    %v6403 = vunpack.c.l.bf16 %v6371
    %v6404 = vunpack.c.l.bf16 %v6372
    %v6405 = vunpack.c.l.bf16 %v6373
    %v6406 = vunpack.c.l.bf16 %v6374
    %v6407 = vunpack.c.l.bf16 %v6375
    %v6408 = vunpack.c.l.bf16 %v6376
    %v6409 = vunpack.c.l.bf16 %v6377
    %v6410 = vunpack.c.l.bf16 %v6378
    %v6411 = vunpack.c.l.bf16 %v6379
    %v6412 = vunpack.c.l.bf16 %v6380
    %v6413 = vunpack.c.l.bf16 %v6381
    %v6414 = vunpack.c.l.bf16 %v6382
    %v6415 = vunpack.c.l.bf16 %v6383
    %v6416 = vunpack.c.l.bf16 %v6384
    %v6417 = vunpack.c.l.bf16 %v6385
    %v6418 = vmul.f32 %v6386, %v4326
    %v6419 = vmul.f32 %v6387, %v4326
    %v6420 = vmul.f32 %v6388, %v4326
    %v6421 = vmul.f32 %v6389, %v4326
    %v6422 = vmul.f32 %v6390, %v4326
    %v6423 = vmul.f32 %v6391, %v4326
    %v6424 = vmul.f32 %v6392, %v4326
    %v6425 = vmul.f32 %v6393, %v4326
    %v6426 = vmul.f32 %v6394, %v4326
    %v6427 = vmul.f32 %v6395, %v4326
    %v6428 = vmul.f32 %v6396, %v4326
    %v6429 = vmul.f32 %v6397, %v4326
    %v6430 = vmul.f32 %v6398, %v4326
    %v6431 = vmul.f32 %v6399, %v4326
    %v6432 = vmul.f32 %v6400, %v4326
    %v6433 = vmul.f32 %v6401, %v4326
    %v6434 = vmul.f32 %v6402, %v4326
    %v6435 = vmul.f32 %v6403, %v4326
    %v6436 = vmul.f32 %v6404, %v4326
    %v6437 = vmul.f32 %v6405, %v4326
    %v6438 = vmul.f32 %v6406, %v4326
    %v6439 = vmul.f32 %v6407, %v4326
    %v6440 = vmul.f32 %v6408, %v4326
    %v6441 = vmul.f32 %v6409, %v4326
    %v6442 = vmul.f32 %v6410, %v4326
    %v6443 = vmul.f32 %v6411, %v4326
    %v6444 = vmul.f32 %v6412, %v4326
    %v6445 = vmul.f32 %v6413, %v4326
    %v6446 = vmul.f32 %v6414, %v4326
    %v6447 = vmul.f32 %v6415, %v4326
    %v6448 = vmul.f32 %v6416, %v4326
    %v6449 = vmul.f32 %v6417, %v4326
    %v6450 = vadd.f32 %v6418, %v4364
    %v6451 = vadd.f32 %v6419, %v4364
    %v6452 = vadd.f32 %v6420, %v4364
    %v6453 = vadd.f32 %v6421, %v4364
    %v6454 = vadd.f32 %v6422, %v4364
    %v6455 = vadd.f32 %v6423, %v4364
    %v6456 = vadd.f32 %v6424, %v4364
    %v6457 = vadd.f32 %v6425, %v4364
    %v6458 = vadd.f32 %v6426, %v4364
    %v6459 = vadd.f32 %v6427, %v4364
    %v6460 = vadd.f32 %v6428, %v4364
    %v6461 = vadd.f32 %v6429, %v4364
    %v6462 = vadd.f32 %v6430, %v4364
    %v6463 = vadd.f32 %v6431, %v4364
    %v6464 = vadd.f32 %v6432, %v4364
    %v6465 = vadd.f32 %v6433, %v4364
    %v6466 = vadd.f32 %v6434, %v4364
    %v6467 = vadd.f32 %v6435, %v4364
    %v6468 = vadd.f32 %v6436, %v4364
    %v6469 = vadd.f32 %v6437, %v4364
    %v6470 = vadd.f32 %v6438, %v4364
    %v6471 = vadd.f32 %v6439, %v4364
    %v6472 = vadd.f32 %v6440, %v4364
    %v6473 = vadd.f32 %v6441, %v4364
    %v6474 = vadd.f32 %v6442, %v4364
    %v6475 = vadd.f32 %v6443, %v4364
    %v6476 = vadd.f32 %v6444, %v4364
    %v6477 = vadd.f32 %v6445, %v4364
    %v6478 = vadd.f32 %v6446, %v4364
    %v6479 = vadd.f32 %v6447, %v4364
    %v6480 = vadd.f32 %v6448, %v4364
    %v6481 = vadd.f32 %v6449, %v4364
    %v6482 = vmax.f32 %v6450, 0.0
    %v6483 = vmax.f32 %v6451, 0.0
    %v6484 = vmax.f32 %v6452, 0.0
    %v6485 = vmax.f32 %v6453, 0.0
    %v6486 = vmax.f32 %v6454, 0.0
    %v6487 = vmax.f32 %v6455, 0.0
    %v6488 = vmax.f32 %v6456, 0.0
    %v6489 = vmax.f32 %v6457, 0.0
    %v6490 = vmax.f32 %v6458, 0.0
    %v6491 = vmax.f32 %v6459, 0.0
    %v6492 = vmax.f32 %v6460, 0.0
    %v6493 = vmax.f32 %v6461, 0.0
    %v6494 = vmax.f32 %v6462, 0.0
    %v6495 = vmax.f32 %v6463, 0.0
    %v6496 = vmax.f32 %v6464, 0.0
    %v6497 = vmax.f32 %v6465, 0.0
    %v6498 = vmax.f32 %v6466, 0.0
    %v6499 = vmax.f32 %v6467, 0.0
    %v6500 = vmax.f32 %v6468, 0.0
    %v6501 = vmax.f32 %v6469, 0.0
    %v6502 = vmax.f32 %v6470, 0.0
    %v6503 = vmax.f32 %v6471, 0.0
    %v6504 = vmax.f32 %v6472, 0.0
    %v6505 = vmax.f32 %v6473, 0.0
    %v6506 = vmax.f32 %v6474, 0.0
    %v6507 = vmax.f32 %v6475, 0.0
    %v6508 = vmax.f32 %v6476, 0.0
    %v6509 = vmax.f32 %v6477, 0.0
    %v6510 = vmax.f32 %v6478, 0.0
    %v6511 = vmax.f32 %v6479, 0.0
    %v6512 = vmax.f32 %v6480, 0.0
    %v6513 = vmax.f32 %v6481, 0.0
    %v6514 = vrot.slane %v6482, 7
    %v6515 = vrot.slane %v6483, 7
    %v6516 = vrot.slane %v6484, 7
    %v6517 = vrot.slane %v6485, 7
    %v6518 = vrot.slane %v6486, 7
    %v6519 = vrot.slane %v6487, 7
    %v6520 = vrot.slane %v6488, 7
    %v6521 = vrot.slane %v6489, 7
    %v6522 = vrot.slane %v6490, 7
    %v6523 = vrot.slane %v6491, 7
    %v6524 = vrot.slane %v6492, 7
    %v6525 = vrot.slane %v6493, 7
    %v6526 = vrot.slane %v6494, 7
    %v6527 = vrot.slane %v6495, 7
    %v6528 = vrot.slane %v6496, 7
    %v6529 = vrot.slane %v6497, 7
    %v6530 = vrot.slane %v6498, 7
    %v6531 = vrot.slane %v6499, 7
    %v6532 = vrot.slane %v6500, 7
    %v6533 = vrot.slane %v6501, 7
    %v6534 = vrot.slane %v6502, 7
    %v6535 = vrot.slane %v6503, 7
    %v6536 = vrot.slane %v6504, 7
    %v6537 = vrot.slane %v6505, 7
    %v6538 = vrot.slane %v6506, 7
    %v6539 = vrot.slane %v6507, 7
    %v6540 = vrot.slane %v6508, 7
    %v6541 = vrot.slane %v6509, 7
    %v6542 = vrot.slane %v6510, 7
    %v6543 = vrot.slane %v6511, 7
    %v6544 = vrot.slane %v6512, 7
    %v6545 = vrot.slane %v6513, 7
    %v6546 = vsel %vm140, %v6544, %v6545
    %v6547 = vsel %vm140, %v6543, %v6544
    %v6548 = vsel %vm140, %v6542, %v6543
    %v6549 = vsel %vm140, %v6541, %v6542
    %v6550 = vsel %vm140, %v6540, %v6541
    %v6551 = vsel %vm140, %v6539, %v6540
    %v6552 = vsel %vm140, %v6538, %v6539
    %v6553 = vsel %vm140, %v6537, %v6538
    %v6554 = vsel %vm140, %v6536, %v6537
    %v6555 = vsel %vm140, %v6535, %v6536
    %v6556 = vsel %vm140, %v6534, %v6535
    %v6557 = vsel %vm140, %v6533, %v6534
    %v6558 = vsel %vm140, %v6532, %v6533
    %v6559 = vsel %vm140, %v6531, %v6532
    %v6560 = vsel %vm140, %v6530, %v6531
    %v6561 = vsel %vm140, %v6529, %v6530
    %v6562 = vsel %vm140, %v6528, %v6529
    %v6563 = vsel %vm140, %v6527, %v6528
    %v6564 = vsel %vm140, %v6526, %v6527
    %v6565 = vsel %vm140, %v6525, %v6526
    %v6566 = vsel %vm140, %v6524, %v6525
    %v6567 = vsel %vm140, %v6523, %v6524
    %v6568 = vsel %vm140, %v6522, %v6523
    %v6569 = vsel %vm140, %v6521, %v6522
    %v6570 = vsel %vm140, %v6520, %v6521
    %v6571 = vsel %vm140, %v6519, %v6520
    %v6572 = vsel %vm140, %v6518, %v6519
    %v6573 = vsel %vm140, %v6517, %v6518
    %v6574 = vsel %vm140, %v6516, %v6517
    %v6575 = vsel %vm140, %v6515, %v6516
    %v6576 = vsel %vm140, %v6514, %v6515
    %v6577 = vsel %vm140, %v6545, %v6514
    %v6578 = vsel %vm72, %v6577, 0.0
    %v6579 = vsel %vm73, %v6576, 0.0
    %v6580 = vsel %vm72, %v6575, 0.0
    %v6581 = vsel %vm73, %v6574, 0.0
    %v6582 = vsel %vm72, %v6573, 0.0
    %v6583 = vsel %vm73, %v6572, 0.0
    %v6584 = vsel %vm72, %v6571, 0.0
    %v6585 = vsel %vm73, %v6570, 0.0
    %v6586 = vsel %vm72, %v6569, 0.0
    %v6587 = vsel %vm73, %v6568, 0.0
    %v6588 = vsel %vm72, %v6567, 0.0
    %v6589 = vsel %vm73, %v6566, 0.0
    %v6590 = vsel %vm72, %v6565, 0.0
    %v6591 = vsel %vm73, %v6564, 0.0
    %v6592 = vsel %vm72, %v6563, 0.0
    %v6593 = vsel %vm73, %v6562, 0.0
    %v6594 = vsel %vm72, %v6561, 0.0
    %v6595 = vsel %vm73, %v6560, 0.0
    %v6596 = vsel %vm72, %v6559, 0.0
    %v6597 = vsel %vm73, %v6558, 0.0
    %v6598 = vsel %vm72, %v6557, 0.0
    %v6599 = vsel %vm73, %v6556, 0.0
    %v6600 = vsel %vm72, %v6555, 0.0
    %v6601 = vsel %vm73, %v6554, 0.0
    %v6602 = vsel %vm72, %v6553, 0.0
    %v6603 = vsel %vm73, %v6552, 0.0
    %v6604 = vsel %vm72, %v6551, 0.0
    %v6605 = vsel %vm73, %v6550, 0.0
    %v6606 = vsel %vm72, %v6549, 0.0
    %v6607 = vsel %vm73, %v6548, 0.0
    %v6608 = vsel %vm72, %v6547, 0.0
    %v6609 = vsel %vm73, %v6546, 0.0
    %v6610 = vrot.slane %v6482, 1
    %v6611 = vrot.slane %v6483, 1
    %v6612 = vrot.slane %v6484, 1
    %v6613 = vrot.slane %v6485, 1
    %v6614 = vrot.slane %v6486, 1
    %v6615 = vrot.slane %v6487, 1
    %v6616 = vrot.slane %v6488, 1
    %v6617 = vrot.slane %v6489, 1
    %v6618 = vrot.slane %v6490, 1
    %v6619 = vrot.slane %v6491, 1
    %v6620 = vrot.slane %v6492, 1
    %v6621 = vrot.slane %v6493, 1
    %v6622 = vrot.slane %v6494, 1
    %v6623 = vrot.slane %v6495, 1
    %v6624 = vrot.slane %v6496, 1
    %v6625 = vrot.slane %v6497, 1
    %v6626 = vrot.slane %v6498, 1
    %v6627 = vrot.slane %v6499, 1
    %v6628 = vrot.slane %v6500, 1
    %v6629 = vrot.slane %v6501, 1
    %v6630 = vrot.slane %v6502, 1
    %v6631 = vrot.slane %v6503, 1
    %v6632 = vrot.slane %v6504, 1
    %v6633 = vrot.slane %v6505, 1
    %v6634 = vrot.slane %v6506, 1
    %v6635 = vrot.slane %v6507, 1
    %v6636 = vrot.slane %v6508, 1
    %v6637 = vrot.slane %v6509, 1
    %v6638 = vrot.slane %v6510, 1
    %v6639 = vrot.slane %v6511, 1
    %v6640 = vrot.slane %v6512, 1
    %v6641 = vrot.slane %v6513, 1
    %v6642 = vsel %vm237, %v6640, %v6641
    %v6643 = vsel %vm237, %v6639, %v6640
    %v6644 = vsel %vm237, %v6638, %v6639
    %v6645 = vsel %vm237, %v6637, %v6638
    %v6646 = vsel %vm237, %v6636, %v6637
    %v6647 = vsel %vm237, %v6635, %v6636
    %v6648 = vsel %vm237, %v6634, %v6635
    %v6649 = vsel %vm237, %v6633, %v6634
    %v6650 = vsel %vm237, %v6632, %v6633
    %v6651 = vsel %vm237, %v6631, %v6632
    %v6652 = vsel %vm237, %v6630, %v6631
    %v6653 = vsel %vm237, %v6629, %v6630
    %v6654 = vsel %vm237, %v6628, %v6629
    %v6655 = vsel %vm237, %v6627, %v6628
    %v6656 = vsel %vm237, %v6626, %v6627
    %v6657 = vsel %vm237, %v6625, %v6626
    %v6658 = vsel %vm237, %v6624, %v6625
    %v6659 = vsel %vm237, %v6623, %v6624
    %v6660 = vsel %vm237, %v6622, %v6623
    %v6661 = vsel %vm237, %v6621, %v6622
    %v6662 = vsel %vm237, %v6620, %v6621
    %v6663 = vsel %vm237, %v6619, %v6620
    %v6664 = vsel %vm237, %v6618, %v6619
    %v6665 = vsel %vm237, %v6617, %v6618
    %v6666 = vsel %vm237, %v6616, %v6617
    %v6667 = vsel %vm237, %v6615, %v6616
    %v6668 = vsel %vm237, %v6614, %v6615
    %v6669 = vsel %vm237, %v6613, %v6614
    %v6670 = vsel %vm237, %v6612, %v6613
    %v6671 = vsel %vm237, %v6611, %v6612
    %v6672 = vsel %vm237, %v6610, %v6611
    %v6673 = vsel %vm237, %v6641, %v6610
    %v6674 = vsel %vm74, %v6672, 0.0
    %v6675 = vsel %vm75, %v6671, 0.0
    %v6676 = vsel %vm74, %v6670, 0.0
    %v6677 = vsel %vm75, %v6669, 0.0
    %v6678 = vsel %vm74, %v6668, 0.0
    %v6679 = vsel %vm75, %v6667, 0.0
    %v6680 = vsel %vm74, %v6666, 0.0
    %v6681 = vsel %vm75, %v6665, 0.0
    %v6682 = vsel %vm74, %v6664, 0.0
    %v6683 = vsel %vm75, %v6663, 0.0
    %v6684 = vsel %vm74, %v6662, 0.0
    %v6685 = vsel %vm75, %v6661, 0.0
    %v6686 = vsel %vm74, %v6660, 0.0
    %v6687 = vsel %vm75, %v6659, 0.0
    %v6688 = vsel %vm74, %v6658, 0.0
    %v6689 = vsel %vm75, %v6657, 0.0
    %v6690 = vsel %vm74, %v6656, 0.0
    %v6691 = vsel %vm75, %v6655, 0.0
    %v6692 = vsel %vm74, %v6654, 0.0
    %v6693 = vsel %vm75, %v6653, 0.0
    %v6694 = vsel %vm74, %v6652, 0.0
    %v6695 = vsel %vm75, %v6651, 0.0
    %v6696 = vsel %vm74, %v6650, 0.0
    %v6697 = vsel %vm75, %v6649, 0.0
    %v6698 = vsel %vm74, %v6648, 0.0
    %v6699 = vsel %vm75, %v6647, 0.0
    %v6700 = vsel %vm74, %v6646, 0.0
    %v6701 = vsel %vm75, %v6645, 0.0
    %v6702 = vsel %vm74, %v6644, 0.0
    %v6703 = vsel %vm75, %v6643, 0.0
    %v6704 = vsel %vm74, %v6642, 0.0
    %v6705 = vsel %vm75, %v6673, 0.0
    %v6706 = vpack.c.bf16 %v6579, %v6578
    %v6707 = vpack.c.bf16 %v6483, %v6482
    %v6708 = vpack.c.bf16 %v6675, %v6674
    %v6709 = vpack.c.bf16 %v6581, %v6580
    %v6710 = vpack.c.bf16 %v6485, %v6484
    %v6711 = vpack.c.bf16 %v6677, %v6676
    %v6712 = vpack.c.bf16 %v6583, %v6582
    %v6713 = vpack.c.bf16 %v6487, %v6486
    %v6714 = vpack.c.bf16 %v6679, %v6678
    %v6715 = vpack.c.bf16 %v6585, %v6584
    %v6716 = vpack.c.bf16 %v6489, %v6488
    %v6717 = vpack.c.bf16 %v6681, %v6680
    %v6718 = vpack.c.bf16 %v6587, %v6586
    %v6719 = vpack.c.bf16 %v6491, %v6490
    %v6720 = vpack.c.bf16 %v6683, %v6682
    %v6721 = vpack.c.bf16 %v6589, %v6588
    %v6722 = vpack.c.bf16 %v6493, %v6492
    %v6723 = vpack.c.bf16 %v6685, %v6684
    %v6724 = vpack.c.bf16 %v6591, %v6590
    %v6725 = vpack.c.bf16 %v6495, %v6494
    %v6726 = vpack.c.bf16 %v6687, %v6686
    %v6727 = vpack.c.bf16 %v6593, %v6592
    %v6728 = vpack.c.bf16 %v6497, %v6496
    %v6729 = vpack.c.bf16 %v6689, %v6688
    %v6730 = vpack.c.bf16 %v6595, %v6594
    %v6731 = vpack.c.bf16 %v6499, %v6498
    %v6732 = vpack.c.bf16 %v6691, %v6690
    %v6733 = vpack.c.bf16 %v6597, %v6596
    %v6734 = vpack.c.bf16 %v6501, %v6500
    %v6735 = vpack.c.bf16 %v6693, %v6692
    %v6736 = vpack.c.bf16 %v6599, %v6598
    %v6737 = vpack.c.bf16 %v6503, %v6502
    %v6738 = vpack.c.bf16 %v6695, %v6694
    %v6739 = vpack.c.bf16 %v6601, %v6600
    %v6740 = vpack.c.bf16 %v6505, %v6504
    %v6741 = vpack.c.bf16 %v6697, %v6696
    %v6742 = vpack.c.bf16 %v6603, %v6602
    %v6743 = vpack.c.bf16 %v6507, %v6506
    %v6744 = vpack.c.bf16 %v6699, %v6698
    %v6745 = vpack.c.bf16 %v6605, %v6604
    %v6746 = vpack.c.bf16 %v6509, %v6508
    %v6747 = vpack.c.bf16 %v6701, %v6700
    %v6748 = vpack.c.bf16 %v6607, %v6606
    %v6749 = vpack.c.bf16 %v6511, %v6510
    %v6750 = vpack.c.bf16 %v6703, %v6702
    %v6751 = vpack.c.bf16 %v6609, %v6608
    %v6752 = vpack.c.bf16 %v6513, %v6512
    %v6753 = vpack.c.bf16 %v6705, %v6704
    %v6754 = vld [vmem:[%s4670] sm:$0xf]
    %v6755 = vld [vmem:[%s4670 + $0x4] sm:$0xf]
    %v6756 = vld [vmem:[%s4670 + $0x8] sm:$0xf]
    %v6757 = vld [vmem:[%s4670 + $0xc] sm:$0xf]
    %v6758 = vld [vmem:[%s4670 + $0x10] sm:$0xf]
    %v6759 = vld [vmem:[%s4670 + $0x14] sm:$0xf]
    %v6760 = vld [vmem:[%s4670 + $0x18] sm:$0xf]
    %v6761 = vld [vmem:[%s4670 + $0x1c] sm:$0xf]
    %v6762 = vld [vmem:[%s4670 + $0x20] sm:$0xf]
    %v6763 = vld [vmem:[%s4670 + $0x24] sm:$0xf]
    %v6764 = vld [vmem:[%s4670 + $0x28] sm:$0xf]
    %v6765 = vld [vmem:[%s4670 + $0x2c] sm:$0xf]
    %v6766 = vld [vmem:[%s4670 + $0x30] sm:$0xf]
    %v6767 = vld [vmem:[%s4670 + $0x34] sm:$0xf]
    %v6768 = vld [vmem:[%s4670 + $0x38] sm:$0xf]
    %v6769 = vld [vmem:[%s4670 + $0x3c] sm:$0xf]
    %v6770 = vld [vmem:[%s4670 + $0x40] sm:$0xf]
    %v6771 = vld [vmem:[%s4670 + $0x44] sm:$0xf]
    %v6772 = vld [vmem:[%s4670 + $0x48] sm:$0xf]
    %v6773 = vld [vmem:[%s4670 + $0x4c] sm:$0xf]
    %v6774 = vld [vmem:[%s4670 + $0x50] sm:$0xf]
    %v6775 = vld [vmem:[%s4670 + $0x54] sm:$0xf]
    %v6776 = vld [vmem:[%s4670 + $0x58] sm:$0xf]
    %v6777 = vld [vmem:[%s4670 + $0x5c] sm:$0xf]
    %v6778 = vld [vmem:[%s4670 + $0x60] sm:$0xf]
    %v6779 = vld [vmem:[%s4670 + $0x64] sm:$0xf]
    %v6780 = vld [vmem:[%s4670 + $0x68] sm:$0xf]
    %v6781 = vld [vmem:[%s4670 + $0x6c] sm:$0xf]
    %v6782 = vld [vmem:[%s4670 + $0x70] sm:$0xf]
    %v6783 = vld [vmem:[%s4670 + $0x74] sm:$0xf]
    %v6784 = vld [vmem:[%s4670 + $0x78] sm:$0xf]
    %v6785 = vld [vmem:[%s4670 + $0x7c] sm:$0xf]
    %v6786 = vld [vmem:[%s4670 + $0x80] sm:$0xf]
    %v6787 = vld [vmem:[%s4670 + $0x84] sm:$0xf]
    %v6788 = vld [vmem:[%s4670 + $0x88] sm:$0xf]
    %v6789 = vld [vmem:[%s4670 + $0x8c] sm:$0xf]
    %v6790 = vld [vmem:[%s4670 + $0x90] sm:$0xf]
    %v6791 = vld [vmem:[%s4670 + $0x94] sm:$0xf]
    %v6792 = vld [vmem:[%s4670 + $0x98] sm:$0xf]
    %v6793 = vld [vmem:[%s4670 + $0x9c] sm:$0xf]
    %v6794 = vld [vmem:[%s4670 + $0xa0] sm:$0xf]
    %v6795 = vld [vmem:[%s4670 + $0xa4] sm:$0xf]
    %v6796 = vld [vmem:[%s4670 + $0xa8] sm:$0xf]
    %v6797 = vld [vmem:[%s4670 + $0xac] sm:$0xf]
    %v6798 = vld [vmem:[%s4670 + $0xb0] sm:$0xf]
    %v6799 = vld [vmem:[%s4670 + $0xb4] sm:$0xf]
    %v6800 = vld [vmem:[%s4670 + $0xb8] sm:$0xf]
    %v6801 = vld [vmem:[%s4670 + $0xbc] sm:$0xf]
    %v6802 = vld [vmem:[#allocation8] sm:$0xf]
    %v6803 = vld [vmem:[#allocation8 + $0x4] sm:$0xf]
    %v6804 = vld [vmem:[#allocation8 + $0x8] sm:$0xf]
    %v6805 = vld [vmem:[#allocation8 + $0xc] sm:$0xf]
    %v6806 = vld [vmem:[#allocation8 + $0x10] sm:$0xf]
    %v6807 = vld [vmem:[#allocation8 + $0x14] sm:$0xf]
    %v6808 = vld [vmem:[#allocation8 + $0x18] sm:$0xf]
    %v6809 = vld [vmem:[#allocation8 + $0x1c] sm:$0xf]
    %v6810 = vld [vmem:[#allocation8 + $0x20] sm:$0xf]
    %v6811 = vld [vmem:[#allocation8 + $0x24] sm:$0xf]
    %v6812 = vld [vmem:[#allocation8 + $0x28] sm:$0xf]
    %v6813 = vld [vmem:[#allocation8 + $0x2c] sm:$0xf]
    %v6814 = vld [vmem:[#allocation8 + $0x30] sm:$0xf]
    %v6815 = vld [vmem:[#allocation8 + $0x34] sm:$0xf]
    %v6816 = vld [vmem:[#allocation8 + $0x38] sm:$0xf]
    %v6817 = vld [vmem:[#allocation8 + $0x3c] sm:$0xf]
    %v6818 = vld [vmem:[#allocation8 + $0x40] sm:$0xf]
    %v6819 = vld [vmem:[#allocation8 + $0x44] sm:$0xf]
    %v6820 = vld [vmem:[#allocation8 + $0x48] sm:$0xf]
    %v6821 = vld [vmem:[#allocation8 + $0x4c] sm:$0xf]
    %v6822 = vld [vmem:[#allocation8 + $0x50] sm:$0xf]
    %v6823 = vld [vmem:[#allocation8 + $0x54] sm:$0xf]
    %v6824 = vld [vmem:[#allocation8 + $0x58] sm:$0xf]
    %v6825 = vld [vmem:[#allocation8 + $0x5c] sm:$0xf]
    %v6826 = vld [vmem:[#allocation8 + $0x60] sm:$0xf]
    %v6827 = vld [vmem:[#allocation8 + $0x64] sm:$0xf]
    %v6828 = vld [vmem:[#allocation8 + $0x68] sm:$0xf]
    %v6829 = vld [vmem:[#allocation8 + $0x6c] sm:$0xf]
    %v6830 = vld [vmem:[#allocation8 + $0x70] sm:$0xf]
    %v6831 = vld [vmem:[#allocation8 + $0x74] sm:$0xf]
    %v6832 = vld [vmem:[#allocation8 + $0x78] sm:$0xf]
    %v6833 = vld [vmem:[#allocation8 + $0x7c] sm:$0xf]
    %v6834 = vld [vmem:[#allocation8 + $0x80] sm:$0xf]
    %v6835 = vld [vmem:[#allocation8 + $0x84] sm:$0xf]
    %v6836 = vld [vmem:[#allocation8 + $0x88] sm:$0xf]
    %v6837 = vld [vmem:[#allocation8 + $0x8c] sm:$0xf]
    %v6838 = vld [vmem:[#allocation8 + $0x90] sm:$0xf]
    %v6839 = vld [vmem:[#allocation8 + $0x94] sm:$0xf]
    %v6840 = vld [vmem:[#allocation8 + $0x98] sm:$0xf]
    %v6841 = vld [vmem:[#allocation8 + $0x9c] sm:$0xf]
    %v6842 = vld [vmem:[#allocation8 + $0xa0] sm:$0xf]
    %v6843 = vld [vmem:[#allocation8 + $0xa4] sm:$0xf]
    %v6844 = vld [vmem:[#allocation8 + $0xa8] sm:$0xf]
    %v6845 = vld [vmem:[#allocation8 + $0xac] sm:$0xf]
    %v6846 = vld [vmem:[#allocation8 + $0xb0] sm:$0xf]
    %v6847 = vld [vmem:[#allocation8 + $0xb4] sm:$0xf]
    %v6848 = vld [vmem:[#allocation8 + $0xb8] sm:$0xf]
    %v6849 = vld [vmem:[#allocation8 + $0xbc] sm:$0xf]
    %v6898 = vunpack.c.l.b16 %v6802
    %v6899 = vunpack.c.l.b16 %v6803
    %v6900 = vunpack.c.l.b16 %v6804
    %v6901 = vunpack.c.l.b16 %v6805
    %v6902 = vunpack.c.l.b16 %v6806
    %v6903 = vunpack.c.l.b16 %v6807
    %v6904 = vunpack.c.l.b16 %v6808
    %v6905 = vunpack.c.l.b16 %v6809
    %v6906 = vunpack.c.l.b16 %v6810
    %v6907 = vunpack.c.l.b16 %v6811
    %v6908 = vunpack.c.l.b16 %v6812
    %v6909 = vunpack.c.l.b16 %v6813
    %v6910 = vunpack.c.l.b16 %v6814
    %v6911 = vunpack.c.l.b16 %v6815
    %v6912 = vunpack.c.l.b16 %v6816
    %v6913 = vunpack.c.l.b16 %v6817
    %v6914 = vunpack.c.l.b16 %v6818
    %v6915 = vunpack.c.l.b16 %v6819
    %v6916 = vunpack.c.l.b16 %v6820
    %v6917 = vunpack.c.l.b16 %v6821
    %v6918 = vunpack.c.l.b16 %v6822
    %v6919 = vunpack.c.l.b16 %v6823
    %v6920 = vunpack.c.l.b16 %v6824
    %v6921 = vunpack.c.l.b16 %v6825
    %v6922 = vunpack.c.l.b16 %v6826
    %v6923 = vunpack.c.l.b16 %v6827
    %v6924 = vunpack.c.l.b16 %v6828
    %v6925 = vunpack.c.l.b16 %v6829
    %v6926 = vunpack.c.l.b16 %v6830
    %v6927 = vunpack.c.l.b16 %v6831
    %v6928 = vunpack.c.l.b16 %v6832
    %v6929 = vunpack.c.l.b16 %v6833
    %v6930 = vunpack.c.l.b16 %v6834
    %v6931 = vunpack.c.l.b16 %v6835
    %v6932 = vunpack.c.l.b16 %v6836
    %v6933 = vunpack.c.l.b16 %v6837
    %v6934 = vunpack.c.l.b16 %v6838
    %v6935 = vunpack.c.l.b16 %v6839
    %v6936 = vunpack.c.l.b16 %v6840
    %v6937 = vunpack.c.l.b16 %v6841
    %v6938 = vunpack.c.l.b16 %v6842
    %v6939 = vunpack.c.l.b16 %v6843
    %v6940 = vunpack.c.l.b16 %v6844
    %v6941 = vunpack.c.l.b16 %v6845
    %v6942 = vunpack.c.l.b16 %v6846
    %v6943 = vunpack.c.l.b16 %v6847
    %v6944 = vunpack.c.l.b16 %v6848
    %v6945 = vunpack.c.l.b16 %v6849
    %v6946 = vpack.c.b16 %v6899, %v6898
    %v6947 = vpack.c.b16 %v6901, %v6900
    %v6948 = vpack.c.b16 %v6903, %v6902
    %v6949 = vpack.c.b16 %v6905, %v6904
    %v6950 = vpack.c.b16 %v6907, %v6906
    %v6951 = vpack.c.b16 %v6909, %v6908
    %v6952 = vpack.c.b16 %v6911, %v6910
    %v6953 = vpack.c.b16 %v6913, %v6912
    %v6954 = vpack.c.b16 %v6915, %v6914
    %v6955 = vpack.c.b16 %v6917, %v6916
    %v6956 = vpack.c.b16 %v6919, %v6918
    %v6957 = vpack.c.b16 %v6921, %v6920
    %v6958 = vpack.c.b16 %v6923, %v6922
    %v6959 = vpack.c.b16 %v6925, %v6924
    %v6960 = vpack.c.b16 %v6927, %v6926
    %v6961 = vpack.c.b16 %v6929, %v6928
    %v6962 = vpack.c.b16 %v6931, %v6930
    %v6963 = vpack.c.b16 %v6933, %v6932
    %v6964 = vpack.c.b16 %v6935, %v6934
    %v6965 = vpack.c.b16 %v6937, %v6936
    %v6966 = vpack.c.b16 %v6939, %v6938
    %v6967 = vpack.c.b16 %v6941, %v6940
    %v6968 = vpack.c.b16 %v6943, %v6942
    %v6969 = vpack.c.b16 %v6945, %v6944
    %6994 = vmatprep.subr.bf16.mxu0 0
    %6995 = vmatpush1.bf16.msra.mxu0 %v6953
    %6996 = vmatprep.subr.bf16.mxu0 0
    %6997 = vmatpush1.bf16.msra.mxu0 %v6952
    %6998 = vmatprep.subr.bf16.mxu0 0
    %6999 = vmatpush1.bf16.msra.mxu0 %v6951
    %7000 = vmatprep.subr.bf16.mxu0 0
    %7001 = vmatpush1.bf16.msra.mxu0 %v6950
    %7002 = vmatprep.subr.bf16.mxu0 0
    %7003 = vmatpush1.bf16.msra.mxu0 %v6949
    %7004 = vmatprep.subr.bf16.mxu0 0
    %7005 = vmatpush1.bf16.msra.mxu0 %v6948
    %7006 = vmatprep.subr.bf16.mxu0 0
    %7007 = vmatpush1.bf16.msra.mxu0 %v6947
    %7008 = vmatprep.subr.bf16.mxu0 0
    %7009 = vmatpush1.bf16.msra.mxu0 %v6946
    %7010 = vmatprep.subr.bf16.mxu0 0
    %7011 = vmatpush2.bf16.msra.mxu0 %v6961
    %7012 = vmatprep.subr.bf16.mxu0 0
    %7013 = vmatpush2.bf16.msra.mxu0 %v6960
    %7014 = vmatprep.subr.bf16.mxu0 0
    %7015 = vmatpush2.bf16.msra.mxu0 %v6959
    %7016 = vmatprep.subr.bf16.mxu0 0
    %7017 = vmatpush2.bf16.msra.mxu0 %v6958
    %7018 = vmatprep.subr.bf16.mxu0 0
    %7019 = vmatpush2.bf16.msra.mxu0 %v6957
    %7020 = vmatprep.subr.bf16.mxu0 0
    %7021 = vmatpush2.bf16.msra.mxu0 %v6956
    %7022 = vmatprep.subr.bf16.mxu0 0
    %7023 = vmatpush2.bf16.msra.mxu0 %v6955
    %7024 = vmatprep.subr.bf16.mxu0 0
    %7025 = vmatpush2.bf16.msra.mxu0 %v6954
    %7026 = vmatprep.mubr.bf16.mxu0 %v6707
    %7027 = vmatmul.mubr.bf16.gmra.mxu0 %v6706
    %v7028 = vpop.f32.mrf.mxu0
    %v7029 = vadd.f32 0.0, %v7028
    %v7030 = vpop.f32.mrf.mxu0
    %v7031 = vpop.f32.mrf.mxu0
    %v7032 = vadd.f32 0.0, %v7031
    %v7033 = vpop.f32.mrf.mxu0
    %7034 = vmatprep.mubr.bf16.mxu0 %v6710
    %7035 = vmatmul.mubr.bf16.gmra.mxu0 %v6709
    %v7036 = vpop.f32.mrf.mxu0
    %v7037 = vadd.f32 0.0, %v7036
    %v7038 = vpop.f32.mrf.mxu0
    %v7039 = vpop.f32.mrf.mxu0
    %v7040 = vadd.f32 0.0, %v7039
    %v7041 = vpop.f32.mrf.mxu0
    %7042 = vmatprep.mubr.bf16.mxu0 %v6713
    %7043 = vmatmul.mubr.bf16.gmra.mxu0 %v6712
    %v7044 = vpop.f32.mrf.mxu0
    %v7045 = vadd.f32 0.0, %v7044
    %v7046 = vpop.f32.mrf.mxu0
    %v7047 = vpop.f32.mrf.mxu0
    %v7048 = vadd.f32 0.0, %v7047
    %v7049 = vpop.f32.mrf.mxu0
    %7050 = vmatprep.mubr.bf16.mxu0 %v6716
    %7051 = vmatmul.mubr.bf16.gmra.mxu0 %v6715
    %v7052 = vpop.f32.mrf.mxu0
    %v7053 = vadd.f32 0.0, %v7052
    %v7054 = vpop.f32.mrf.mxu0
    %v7055 = vpop.f32.mrf.mxu0
    %v7056 = vadd.f32 0.0, %v7055
    %v7057 = vpop.f32.mrf.mxu0
    %7058 = vmatprep.mubr.bf16.mxu0 %v6719
    %7059 = vmatmul.mubr.bf16.gmra.mxu0 %v6718
    %v7060 = vpop.f32.mrf.mxu0
    %v7061 = vadd.f32 0.0, %v7060
    %v7062 = vpop.f32.mrf.mxu0
    %v7063 = vpop.f32.mrf.mxu0
    %v7064 = vadd.f32 0.0, %v7063
    %v7065 = vpop.f32.mrf.mxu0
    %7066 = vmatprep.mubr.bf16.mxu0 %v6722
    %7067 = vmatmul.mubr.bf16.gmra.mxu0 %v6721
    %v7068 = vpop.f32.mrf.mxu0
    %v7069 = vadd.f32 0.0, %v7068
    %v7070 = vpop.f32.mrf.mxu0
    %v7071 = vpop.f32.mrf.mxu0
    %v7072 = vadd.f32 0.0, %v7071
    %v7073 = vpop.f32.mrf.mxu0
    %7074 = vmatprep.mubr.bf16.mxu0 %v6725
    %7075 = vmatmul.mubr.bf16.gmra.mxu0 %v6724
    %v7076 = vpop.f32.mrf.mxu0
    %v7077 = vadd.f32 0.0, %v7076
    %v7078 = vpop.f32.mrf.mxu0
    %v7079 = vpop.f32.mrf.mxu0
    %v7080 = vadd.f32 0.0, %v7079
    %v7081 = vpop.f32.mrf.mxu0
    %7082 = vmatprep.mubr.bf16.mxu0 %v6728
    %7083 = vmatmul.mubr.bf16.gmra.mxu0 %v6727
    %v7084 = vpop.f32.mrf.mxu0
    %v7085 = vadd.f32 0.0, %v7084
    %v7086 = vpop.f32.mrf.mxu0
    %v7087 = vpop.f32.mrf.mxu0
    %v7088 = vadd.f32 0.0, %v7087
    %v7089 = vpop.f32.mrf.mxu0
    %7090 = vmatprep.mubr.bf16.mxu0 %v6731
    %7091 = vmatmul.mubr.bf16.gmra.mxu0 %v6730
    %v7092 = vpop.f32.mrf.mxu0
    %v7093 = vadd.f32 0.0, %v7092
    %v7094 = vpop.f32.mrf.mxu0
    %v7095 = vpop.f32.mrf.mxu0
    %v7096 = vadd.f32 0.0, %v7095
    %v7097 = vpop.f32.mrf.mxu0
    %7098 = vmatprep.mubr.bf16.mxu0 %v6734
    %7099 = vmatmul.mubr.bf16.gmra.mxu0 %v6733
    %v7100 = vpop.f32.mrf.mxu0
    %v7101 = vadd.f32 0.0, %v7100
    %v7102 = vpop.f32.mrf.mxu0
    %v7103 = vpop.f32.mrf.mxu0
    %v7104 = vadd.f32 0.0, %v7103
    %v7105 = vpop.f32.mrf.mxu0
    %7106 = vmatprep.mubr.bf16.mxu0 %v6737
    %7107 = vmatmul.mubr.bf16.gmra.mxu0 %v6736
    %v7108 = vpop.f32.mrf.mxu0
    %v7109 = vadd.f32 0.0, %v7108
    %v7110 = vpop.f32.mrf.mxu0
    %v7111 = vpop.f32.mrf.mxu0
    %v7112 = vadd.f32 0.0, %v7111
    %v7113 = vpop.f32.mrf.mxu0
    %7114 = vmatprep.mubr.bf16.mxu0 %v6740
    %7115 = vmatmul.mubr.bf16.gmra.mxu0 %v6739
    %v7116 = vpop.f32.mrf.mxu0
    %v7117 = vadd.f32 0.0, %v7116
    %v7118 = vpop.f32.mrf.mxu0
    %v7119 = vpop.f32.mrf.mxu0
    %v7120 = vadd.f32 0.0, %v7119
    %v7121 = vpop.f32.mrf.mxu0
    %7122 = vmatprep.mubr.bf16.mxu0 %v6743
    %7123 = vmatmul.mubr.bf16.gmra.mxu0 %v6742
    %v7124 = vpop.f32.mrf.mxu0
    %v7125 = vadd.f32 0.0, %v7124
    %v7126 = vpop.f32.mrf.mxu0
    %v7127 = vpop.f32.mrf.mxu0
    %v7128 = vadd.f32 0.0, %v7127
    %v7129 = vpop.f32.mrf.mxu0
    %7130 = vmatprep.mubr.bf16.mxu0 %v6746
    %7131 = vmatmul.mubr.bf16.gmra.mxu0 %v6745
    %v7132 = vpop.f32.mrf.mxu0
    %v7133 = vadd.f32 0.0, %v7132
    %v7134 = vpop.f32.mrf.mxu0
    %v7135 = vpop.f32.mrf.mxu0
    %v7136 = vadd.f32 0.0, %v7135
    %v7137 = vpop.f32.mrf.mxu0
    %7138 = vmatprep.mubr.bf16.mxu0 %v6749
    %7139 = vmatmul.mubr.bf16.gmra.mxu0 %v6748
    %v7140 = vpop.f32.mrf.mxu0
    %v7141 = vadd.f32 0.0, %v7140
    %v7142 = vpop.f32.mrf.mxu0
    %v7143 = vpop.f32.mrf.mxu0
    %v7144 = vadd.f32 0.0, %v7143
    %v7145 = vpop.f32.mrf.mxu0
    %7146 = vdwg.mxu0
    %7147 = vmatprep.subr.bf16.mxu0 0
    %7148 = vmatpush1.bf16.msra.mxu0 %v6969
    %7149 = vmatprep.subr.bf16.mxu0 0
    %7150 = vmatpush1.bf16.msra.mxu0 %v6968
    %7151 = vmatprep.subr.bf16.mxu0 0
    %7152 = vmatpush1.bf16.msra.mxu0 %v6967
    %7153 = vmatprep.subr.bf16.mxu0 0
    %7154 = vmatpush1.bf16.msra.mxu0 %v6966
    %7155 = vmatprep.subr.bf16.mxu0 0
    %7156 = vmatpush1.bf16.msra.mxu0 %v6965
    %7157 = vmatprep.subr.bf16.mxu0 0
    %7158 = vmatpush1.bf16.msra.mxu0 %v6964
    %7159 = vmatprep.subr.bf16.mxu0 0
    %7160 = vmatpush1.bf16.msra.mxu0 %v6963
    %7161 = vmatprep.subr.bf16.mxu0 0
    %7162 = vmatpush1.bf16.msra.mxu0 %v6962
    %7163 = vmatprep.subr.bf16.mxu0 0
    %7164 = vmatpush2.bf16.msra.mxu0 0
    %7165 = vmatprep.subr.bf16.mxu0 0
    %7166 = vmatpush2.bf16.msra.mxu0 0
    %7167 = vmatprep.subr.bf16.mxu0 0
    %7168 = vmatpush2.bf16.msra.mxu0 0
    %7169 = vmatprep.subr.bf16.mxu0 0
    %7170 = vmatpush2.bf16.msra.mxu0 0
    %7171 = vmatprep.subr.bf16.mxu0 0
    %7172 = vmatpush2.bf16.msra.mxu0 0
    %7173 = vmatprep.subr.bf16.mxu0 0
    %7174 = vmatpush2.bf16.msra.mxu0 0
    %7175 = vmatprep.subr.bf16.mxu0 0
    %7176 = vmatpush2.bf16.msra.mxu0 0
    %7177 = vmatprep.subr.bf16.mxu0 0
    %7178 = vmatpush2.bf16.msra.mxu0 0
    %7179 = vmatprep.mubr.bf16.mxu0 0
    %7180 = vmatmul.mubr.bf16.gmra.mxu0 %v6708
    %v7181 = vpop.f32.mrf.mxu0
    %v7182 = vadd.f32 %v7029, %v7181
    %v7183 = vpop.f32.mrf.mxu0
    %v7184 = vpop.f32.mrf.mxu0
    %v7185 = vadd.f32 %v7032, %v7184
    %v7186 = vpop.f32.mrf.mxu0
    %7187 = vmatprep.mubr.bf16.mxu0 0
    %7188 = vmatmul.mubr.bf16.gmra.mxu0 %v6711
    %v7189 = vpop.f32.mrf.mxu0
    %v7190 = vadd.f32 %v7037, %v7189
    %v7191 = vpop.f32.mrf.mxu0
    %v7192 = vpop.f32.mrf.mxu0
    %v7193 = vadd.f32 %v7040, %v7192
    %v7194 = vpop.f32.mrf.mxu0
    %7195 = vmatprep.mubr.bf16.mxu0 0
    %7196 = vmatmul.mubr.bf16.gmra.mxu0 %v6714
    %v7197 = vpop.f32.mrf.mxu0
    %v7198 = vadd.f32 %v7045, %v7197
    %v7199 = vpop.f32.mrf.mxu0
    %v7200 = vpop.f32.mrf.mxu0
    %v7201 = vadd.f32 %v7048, %v7200
    %v7202 = vpop.f32.mrf.mxu0
    %7203 = vmatprep.mubr.bf16.mxu0 0
    %7204 = vmatmul.mubr.bf16.gmra.mxu0 %v6717
    %v7205 = vpop.f32.mrf.mxu0
    %v7206 = vadd.f32 %v7053, %v7205
    %v7207 = vpop.f32.mrf.mxu0
    %v7208 = vpop.f32.mrf.mxu0
    %v7209 = vadd.f32 %v7056, %v7208
    %v7210 = vpop.f32.mrf.mxu0
    %7211 = vmatprep.mubr.bf16.mxu0 0
    %7212 = vmatmul.mubr.bf16.gmra.mxu0 %v6720
    %v7213 = vpop.f32.mrf.mxu0
    %v7214 = vadd.f32 %v7061, %v7213
    %v7215 = vpop.f32.mrf.mxu0
    %v7216 = vpop.f32.mrf.mxu0
    %v7217 = vadd.f32 %v7064, %v7216
    %v7218 = vpop.f32.mrf.mxu0
    %7219 = vmatprep.mubr.bf16.mxu0 0
    %7220 = vmatmul.mubr.bf16.gmra.mxu0 %v6723
    %v7221 = vpop.f32.mrf.mxu0
    %v7222 = vadd.f32 %v7069, %v7221
    %v7223 = vpop.f32.mrf.mxu0
    %v7224 = vpop.f32.mrf.mxu0
    %v7225 = vadd.f32 %v7072, %v7224
    %v7226 = vpop.f32.mrf.mxu0
    %7227 = vmatprep.mubr.bf16.mxu0 0
    %7228 = vmatmul.mubr.bf16.gmra.mxu0 %v6726
    %v7229 = vpop.f32.mrf.mxu0
    %v7230 = vadd.f32 %v7077, %v7229
    %v7231 = vpop.f32.mrf.mxu0
    %v7232 = vpop.f32.mrf.mxu0
    %v7233 = vadd.f32 %v7080, %v7232
    %v7234 = vpop.f32.mrf.mxu0
    %7235 = vmatprep.mubr.bf16.mxu0 0
    %7236 = vmatmul.mubr.bf16.gmra.mxu0 %v6729
    %v7237 = vpop.f32.mrf.mxu0
    %v7238 = vadd.f32 %v7085, %v7237
    %v7239 = vpop.f32.mrf.mxu0
    %v7240 = vpop.f32.mrf.mxu0
    %v7241 = vadd.f32 %v7088, %v7240
    %v7242 = vpop.f32.mrf.mxu0
    %7243 = vmatprep.mubr.bf16.mxu0 0
    %7244 = vmatmul.mubr.bf16.gmra.mxu0 %v6732
    %v7245 = vpop.f32.mrf.mxu0
    %v7246 = vadd.f32 %v7093, %v7245
    %v7247 = vpop.f32.mrf.mxu0
    %v7248 = vpop.f32.mrf.mxu0
    %v7249 = vadd.f32 %v7096, %v7248
    %v7250 = vpop.f32.mrf.mxu0
    %7251 = vmatprep.mubr.bf16.mxu0 0
    %7252 = vmatmul.mubr.bf16.gmra.mxu0 %v6735
    %v7253 = vpop.f32.mrf.mxu0
    %v7254 = vadd.f32 %v7101, %v7253
    %v7255 = vpop.f32.mrf.mxu0
    %v7256 = vpop.f32.mrf.mxu0
    %v7257 = vadd.f32 %v7104, %v7256
    %v7258 = vpop.f32.mrf.mxu0
    %7259 = vmatprep.mubr.bf16.mxu0 0
    %7260 = vmatmul.mubr.bf16.gmra.mxu0 %v6738
    %v7261 = vpop.f32.mrf.mxu0
    %v7262 = vadd.f32 %v7109, %v7261
    %v7263 = vpop.f32.mrf.mxu0
    %v7264 = vpop.f32.mrf.mxu0
    %v7265 = vadd.f32 %v7112, %v7264
    %v7266 = vpop.f32.mrf.mxu0
    %7267 = vmatprep.mubr.bf16.mxu0 0
    %7268 = vmatmul.mubr.bf16.gmra.mxu0 %v6741
    %v7269 = vpop.f32.mrf.mxu0
    %v7270 = vadd.f32 %v7117, %v7269
    %v7271 = vpop.f32.mrf.mxu0
    %v7272 = vpop.f32.mrf.mxu0
    %v7273 = vadd.f32 %v7120, %v7272
    %v7274 = vpop.f32.mrf.mxu0
    %7275 = vmatprep.mubr.bf16.mxu0 0
    %7276 = vmatmul.mubr.bf16.gmra.mxu0 %v6744
    %v7277 = vpop.f32.mrf.mxu0
    %v7278 = vadd.f32 %v7125, %v7277
    %v7279 = vpop.f32.mrf.mxu0
    %v7280 = vpop.f32.mrf.mxu0
    %v7281 = vadd.f32 %v7128, %v7280
    %v7282 = vpop.f32.mrf.mxu0
    %7283 = vmatprep.mubr.bf16.mxu0 0
    %7284 = vmatmul.mubr.bf16.gmra.mxu0 %v6747
    %v7285 = vpop.f32.mrf.mxu0
    %v7286 = vadd.f32 %v7133, %v7285
    %v7287 = vpop.f32.mrf.mxu0
    %v7288 = vpop.f32.mrf.mxu0
    %v7289 = vadd.f32 %v7136, %v7288
    %v7290 = vpop.f32.mrf.mxu0
    %7291 = vmatprep.mubr.bf16.mxu0 0
    %7292 = vmatmul.mubr.bf16.gmra.mxu0 %v6750
    %v7293 = vpop.f32.mrf.mxu0
    %v7294 = vadd.f32 %v7141, %v7293
    %v7295 = vpop.f32.mrf.mxu0
    %v7296 = vpop.f32.mrf.mxu0
    %v7297 = vadd.f32 %v7144, %v7296
    %v7298 = vpop.f32.mrf.mxu0
    %7299 = vdwg.mxu0
    %v7300 = vld [vmem:[%s5217] sm:$0xf]
    %v7301 = vld [vmem:[%s5217 + $0x4] sm:$0xf]
    %v7302 = vld [vmem:[%s5217 + $0x8] sm:$0xf]
    %v7303 = vld [vmem:[%s5217 + $0xc] sm:$0xf]
    %v7304 = vld [vmem:[%s5217 + $0x10] sm:$0xf]
    %v7305 = vld [vmem:[%s5217 + $0x14] sm:$0xf]
    %v7306 = vld [vmem:[%s5217 + $0x18] sm:$0xf]
    %v7307 = vld [vmem:[%s5217 + $0x1c] sm:$0xf]
    %v7308 = vld [vmem:[%s5217 + $0x20] sm:$0xf]
    %v7309 = vld [vmem:[%s5217 + $0x24] sm:$0xf]
    %v7310 = vld [vmem:[%s5217 + $0x28] sm:$0xf]
    %v7311 = vld [vmem:[%s5217 + $0x2c] sm:$0xf]
    %v7312 = vld [vmem:[%s5217 + $0x30] sm:$0xf]
    %v7313 = vld [vmem:[%s5217 + $0x34] sm:$0xf]
    %v7314 = vld [vmem:[%s5217 + $0x38] sm:$0xf]
    %v7315 = vld [vmem:[%s5217 + $0x3c] sm:$0xf]
    %v7316 = vld [vmem:[%s5217 + $0x40] sm:$0xf]
    %v7317 = vld [vmem:[%s5217 + $0x44] sm:$0xf]
    %v7318 = vld [vmem:[%s5217 + $0x48] sm:$0xf]
    %v7319 = vld [vmem:[%s5217 + $0x4c] sm:$0xf]
    %v7320 = vld [vmem:[%s5217 + $0x50] sm:$0xf]
    %v7321 = vld [vmem:[%s5217 + $0x54] sm:$0xf]
    %v7322 = vld [vmem:[%s5217 + $0x58] sm:$0xf]
    %v7323 = vld [vmem:[%s5217 + $0x5c] sm:$0xf]
    %v7324 = vld [vmem:[%s5217 + $0x60] sm:$0xf]
    %v7325 = vld [vmem:[%s5217 + $0x64] sm:$0xf]
    %v7326 = vld [vmem:[%s5217 + $0x68] sm:$0xf]
    %v7327 = vld [vmem:[%s5217 + $0x6c] sm:$0xf]
    %v7328 = vld [vmem:[%s5217 + $0x70] sm:$0xf]
    %v7329 = vld [vmem:[%s5217 + $0x74] sm:$0xf]
    %v7330 = vld [vmem:[%s5217 + $0x78] sm:$0xf]
    %v7331 = vld [vmem:[%s5217 + $0x7c] sm:$0xf]
    %v7332 = vld [vmem:[%s5217 + $0x80] sm:$0xf]
    %v7333 = vld [vmem:[%s5217 + $0x84] sm:$0xf]
    %v7334 = vld [vmem:[%s5217 + $0x88] sm:$0xf]
    %v7335 = vld [vmem:[%s5217 + $0x8c] sm:$0xf]
    %v7336 = vld [vmem:[%s5217 + $0x90] sm:$0xf]
    %v7337 = vld [vmem:[%s5217 + $0x94] sm:$0xf]
    %v7338 = vld [vmem:[%s5217 + $0x98] sm:$0xf]
    %v7339 = vld [vmem:[%s5217 + $0x9c] sm:$0xf]
    %v7340 = vld [vmem:[%s5217 + $0xa0] sm:$0xf]
    %v7341 = vld [vmem:[%s5217 + $0xa4] sm:$0xf]
    %v7342 = vld [vmem:[%s5217 + $0xa8] sm:$0xf]
    %v7343 = vld [vmem:[%s5217 + $0xac] sm:$0xf]
    %v7344 = vld [vmem:[%s5217 + $0xb0] sm:$0xf]
    %v7345 = vld [vmem:[%s5217 + $0xb4] sm:$0xf]
    %v7346 = vld [vmem:[%s5217 + $0xb8] sm:$0xf]
    %v7347 = vld [vmem:[%s5217 + $0xbc] sm:$0xf]
    %v7396 = vunpack.c.l.b16 %v7300
    %v7397 = vunpack.c.l.b16 %v7301
    %v7398 = vunpack.c.l.b16 %v7302
    %v7399 = vunpack.c.l.b16 %v7303
    %v7400 = vunpack.c.l.b16 %v7304
    %v7401 = vunpack.c.l.b16 %v7305
    %v7402 = vunpack.c.l.b16 %v7306
    %v7403 = vunpack.c.l.b16 %v7307
    %v7404 = vunpack.c.l.b16 %v7308
    %v7405 = vunpack.c.l.b16 %v7309
    %v7406 = vunpack.c.l.b16 %v7310
    %v7407 = vunpack.c.l.b16 %v7311
    %v7408 = vunpack.c.l.b16 %v7312
    %v7409 = vunpack.c.l.b16 %v7313
    %v7410 = vunpack.c.l.b16 %v7314
    %v7411 = vunpack.c.l.b16 %v7315
    %v7412 = vunpack.c.l.b16 %v7316
    %v7413 = vunpack.c.l.b16 %v7317
    %v7414 = vunpack.c.l.b16 %v7318
    %v7415 = vunpack.c.l.b16 %v7319
    %v7416 = vunpack.c.l.b16 %v7320
    %v7417 = vunpack.c.l.b16 %v7321
    %v7418 = vunpack.c.l.b16 %v7322
    %v7419 = vunpack.c.l.b16 %v7323
    %v7420 = vunpack.c.l.b16 %v7324
    %v7421 = vunpack.c.l.b16 %v7325
    %v7422 = vunpack.c.l.b16 %v7326
    %v7423 = vunpack.c.l.b16 %v7327
    %v7424 = vunpack.c.l.b16 %v7328
    %v7425 = vunpack.c.l.b16 %v7329
    %v7426 = vunpack.c.l.b16 %v7330
    %v7427 = vunpack.c.l.b16 %v7331
    %v7428 = vunpack.c.l.b16 %v7332
    %v7429 = vunpack.c.l.b16 %v7333
    %v7430 = vunpack.c.l.b16 %v7334
    %v7431 = vunpack.c.l.b16 %v7335
    %v7432 = vunpack.c.l.b16 %v7336
    %v7433 = vunpack.c.l.b16 %v7337
    %v7434 = vunpack.c.l.b16 %v7338
    %v7435 = vunpack.c.l.b16 %v7339
    %v7436 = vunpack.c.l.b16 %v7340
    %v7437 = vunpack.c.l.b16 %v7341
    %v7438 = vunpack.c.l.b16 %v7342
    %v7439 = vunpack.c.l.b16 %v7343
    %v7440 = vunpack.c.l.b16 %v7344
    %v7441 = vunpack.c.l.b16 %v7345
    %v7442 = vunpack.c.l.b16 %v7346
    %v7443 = vunpack.c.l.b16 %v7347
    %v7444 = vpack.c.b16 %v7397, %v7396
    %v7445 = vpack.c.b16 %v7399, %v7398
    %v7446 = vpack.c.b16 %v7401, %v7400
    %v7447 = vpack.c.b16 %v7403, %v7402
    %v7448 = vpack.c.b16 %v7405, %v7404
    %v7449 = vpack.c.b16 %v7407, %v7406
    %v7450 = vpack.c.b16 %v7409, %v7408
    %v7451 = vpack.c.b16 %v7411, %v7410
    %v7452 = vpack.c.b16 %v7413, %v7412
    %v7453 = vpack.c.b16 %v7415, %v7414
    %v7454 = vpack.c.b16 %v7417, %v7416
    %v7455 = vpack.c.b16 %v7419, %v7418
    %v7456 = vpack.c.b16 %v7421, %v7420
    %v7457 = vpack.c.b16 %v7423, %v7422
    %v7458 = vpack.c.b16 %v7425, %v7424
    %v7459 = vpack.c.b16 %v7427, %v7426
    %v7460 = vpack.c.b16 %v7429, %v7428
    %v7461 = vpack.c.b16 %v7431, %v7430
    %v7462 = vpack.c.b16 %v7433, %v7432
    %v7463 = vpack.c.b16 %v7435, %v7434
    %v7464 = vpack.c.b16 %v7437, %v7436
    %v7465 = vpack.c.b16 %v7439, %v7438
    %v7466 = vpack.c.b16 %v7441, %v7440
    %v7467 = vpack.c.b16 %v7443, %v7442
    %7492 = vmatprep.subr.bf16.mxu0 0
    %7493 = vmatpush1.bf16.msra.mxu0 %v7451
    %7494 = vmatprep.subr.bf16.mxu0 0
    %7495 = vmatpush1.bf16.msra.mxu0 %v7450
    %7496 = vmatprep.subr.bf16.mxu0 0
    %7497 = vmatpush1.bf16.msra.mxu0 %v7449
    %7498 = vmatprep.subr.bf16.mxu0 0
    %7499 = vmatpush1.bf16.msra.mxu0 %v7448
    %7500 = vmatprep.subr.bf16.mxu0 0
    %7501 = vmatpush1.bf16.msra.mxu0 %v7447
    %7502 = vmatprep.subr.bf16.mxu0 0
    %7503 = vmatpush1.bf16.msra.mxu0 %v7446
    %7504 = vmatprep.subr.bf16.mxu0 0
    %7505 = vmatpush1.bf16.msra.mxu0 %v7445
    %7506 = vmatprep.subr.bf16.mxu0 0
    %7507 = vmatpush1.bf16.msra.mxu0 %v7444
    %7508 = vmatprep.subr.bf16.mxu0 0
    %7509 = vmatpush2.bf16.msra.mxu0 %v7459
    %7510 = vmatprep.subr.bf16.mxu0 0
    %7511 = vmatpush2.bf16.msra.mxu0 %v7458
    %7512 = vmatprep.subr.bf16.mxu0 0
    %7513 = vmatpush2.bf16.msra.mxu0 %v7457
    %7514 = vmatprep.subr.bf16.mxu0 0
    %7515 = vmatpush2.bf16.msra.mxu0 %v7456
    %7516 = vmatprep.subr.bf16.mxu0 0
    %7517 = vmatpush2.bf16.msra.mxu0 %v7455
    %7518 = vmatprep.subr.bf16.mxu0 0
    %7519 = vmatpush2.bf16.msra.mxu0 %v7454
    %7520 = vmatprep.subr.bf16.mxu0 0
    %7521 = vmatpush2.bf16.msra.mxu0 %v7453
    %7522 = vmatprep.subr.bf16.mxu0 0
    %7523 = vmatpush2.bf16.msra.mxu0 %v7452
    %7524 = vmatprep.mubr.bf16.mxu0 %v6710
    %7525 = vmatmul.mubr.bf16.gmra.mxu0 %v6709
    %v7526 = vpop.f32.mrf.mxu0
    %v7527 = vadd.f32 0.0, %v7526
    %v7528 = vpop.f32.mrf.mxu0
    %v7529 = vpop.f32.mrf.mxu0
    %v7530 = vadd.f32 0.0, %v7529
    %v7531 = vpop.f32.mrf.mxu0
    %7532 = vmatprep.mubr.bf16.mxu0 %v6713
    %7533 = vmatmul.mubr.bf16.gmra.mxu0 %v6712
    %v7534 = vpop.f32.mrf.mxu0
    %v7535 = vadd.f32 0.0, %v7534
    %v7536 = vpop.f32.mrf.mxu0
    %v7537 = vpop.f32.mrf.mxu0
    %v7538 = vadd.f32 0.0, %v7537
    %v7539 = vpop.f32.mrf.mxu0
    %7540 = vmatprep.mubr.bf16.mxu0 %v6716
    %7541 = vmatmul.mubr.bf16.gmra.mxu0 %v6715
    %v7542 = vpop.f32.mrf.mxu0
    %v7543 = vadd.f32 0.0, %v7542
    %v7544 = vpop.f32.mrf.mxu0
    %v7545 = vpop.f32.mrf.mxu0
    %v7546 = vadd.f32 0.0, %v7545
    %v7547 = vpop.f32.mrf.mxu0
    %7548 = vmatprep.mubr.bf16.mxu0 %v6719
    %7549 = vmatmul.mubr.bf16.gmra.mxu0 %v6718
    %v7550 = vpop.f32.mrf.mxu0
    %v7551 = vadd.f32 0.0, %v7550
    %v7552 = vpop.f32.mrf.mxu0
    %v7553 = vpop.f32.mrf.mxu0
    %v7554 = vadd.f32 0.0, %v7553
    %v7555 = vpop.f32.mrf.mxu0
    %7556 = vmatprep.mubr.bf16.mxu0 %v6722
    %7557 = vmatmul.mubr.bf16.gmra.mxu0 %v6721
    %v7558 = vpop.f32.mrf.mxu0
    %v7559 = vadd.f32 0.0, %v7558
    %v7560 = vpop.f32.mrf.mxu0
    %v7561 = vpop.f32.mrf.mxu0
    %v7562 = vadd.f32 0.0, %v7561
    %v7563 = vpop.f32.mrf.mxu0
    %7564 = vmatprep.mubr.bf16.mxu0 %v6725
    %7565 = vmatmul.mubr.bf16.gmra.mxu0 %v6724
    %v7566 = vpop.f32.mrf.mxu0
    %v7567 = vadd.f32 0.0, %v7566
    %v7568 = vpop.f32.mrf.mxu0
    %v7569 = vpop.f32.mrf.mxu0
    %v7570 = vadd.f32 0.0, %v7569
    %v7571 = vpop.f32.mrf.mxu0
    %7572 = vmatprep.mubr.bf16.mxu0 %v6728
    %7573 = vmatmul.mubr.bf16.gmra.mxu0 %v6727
    %v7574 = vpop.f32.mrf.mxu0
    %v7575 = vadd.f32 0.0, %v7574
    %v7576 = vpop.f32.mrf.mxu0
    %v7577 = vpop.f32.mrf.mxu0
    %v7578 = vadd.f32 0.0, %v7577
    %v7579 = vpop.f32.mrf.mxu0
    %7580 = vmatprep.mubr.bf16.mxu0 %v6731
    %7581 = vmatmul.mubr.bf16.gmra.mxu0 %v6730
    %v7582 = vpop.f32.mrf.mxu0
    %v7583 = vadd.f32 0.0, %v7582
    %v7584 = vpop.f32.mrf.mxu0
    %v7585 = vpop.f32.mrf.mxu0
    %v7586 = vadd.f32 0.0, %v7585
    %v7587 = vpop.f32.mrf.mxu0
    %7588 = vmatprep.mubr.bf16.mxu0 %v6734
    %7589 = vmatmul.mubr.bf16.gmra.mxu0 %v6733
    %v7590 = vpop.f32.mrf.mxu0
    %v7591 = vadd.f32 0.0, %v7590
    %v7592 = vpop.f32.mrf.mxu0
    %v7593 = vpop.f32.mrf.mxu0
    %v7594 = vadd.f32 0.0, %v7593
    %v7595 = vpop.f32.mrf.mxu0
    %7596 = vmatprep.mubr.bf16.mxu0 %v6737
    %7597 = vmatmul.mubr.bf16.gmra.mxu0 %v6736
    %v7598 = vpop.f32.mrf.mxu0
    %v7599 = vadd.f32 0.0, %v7598
    %v7600 = vpop.f32.mrf.mxu0
    %v7601 = vpop.f32.mrf.mxu0
    %v7602 = vadd.f32 0.0, %v7601
    %v7603 = vpop.f32.mrf.mxu0
    %7604 = vmatprep.mubr.bf16.mxu0 %v6740
    %7605 = vmatmul.mubr.bf16.gmra.mxu0 %v6739
    %v7606 = vpop.f32.mrf.mxu0
    %v7607 = vadd.f32 0.0, %v7606
    %v7608 = vpop.f32.mrf.mxu0
    %v7609 = vpop.f32.mrf.mxu0
    %v7610 = vadd.f32 0.0, %v7609
    %v7611 = vpop.f32.mrf.mxu0
    %7612 = vmatprep.mubr.bf16.mxu0 %v6743
    %7613 = vmatmul.mubr.bf16.gmra.mxu0 %v6742
    %v7614 = vpop.f32.mrf.mxu0
    %v7615 = vadd.f32 0.0, %v7614
    %v7616 = vpop.f32.mrf.mxu0
    %v7617 = vpop.f32.mrf.mxu0
    %v7618 = vadd.f32 0.0, %v7617
    %v7619 = vpop.f32.mrf.mxu0
    %7620 = vmatprep.mubr.bf16.mxu0 %v6746
    %7621 = vmatmul.mubr.bf16.gmra.mxu0 %v6745
    %v7622 = vpop.f32.mrf.mxu0
    %v7623 = vadd.f32 0.0, %v7622
    %v7624 = vpop.f32.mrf.mxu0
    %v7625 = vpop.f32.mrf.mxu0
    %v7626 = vadd.f32 0.0, %v7625
    %v7627 = vpop.f32.mrf.mxu0
    %7628 = vmatprep.mubr.bf16.mxu0 %v6749
    %7629 = vmatmul.mubr.bf16.gmra.mxu0 %v6748
    %v7630 = vpop.f32.mrf.mxu0
    %v7631 = vadd.f32 0.0, %v7630
    %v7632 = vpop.f32.mrf.mxu0
    %v7633 = vpop.f32.mrf.mxu0
    %v7634 = vadd.f32 0.0, %v7633
    %v7635 = vpop.f32.mrf.mxu0
    %7636 = vmatprep.mubr.bf16.mxu0 %v6752
    %7637 = vmatmul.mubr.bf16.gmra.mxu0 %v6751
    %v7638 = vpop.f32.mrf.mxu0
    %v7639 = vadd.f32 0.0, %v7638
    %v7640 = vpop.f32.mrf.mxu0
    %v7641 = vpop.f32.mrf.mxu0
    %v7642 = vadd.f32 0.0, %v7641
    %v7643 = vpop.f32.mrf.mxu0
    %7644 = vdwg.mxu0
    %7645 = vmatprep.subr.bf16.mxu0 0
    %7646 = vmatpush1.bf16.msra.mxu0 %v7467
    %7647 = vmatprep.subr.bf16.mxu0 0
    %7648 = vmatpush1.bf16.msra.mxu0 %v7466
    %7649 = vmatprep.subr.bf16.mxu0 0
    %7650 = vmatpush1.bf16.msra.mxu0 %v7465
    %7651 = vmatprep.subr.bf16.mxu0 0
    %7652 = vmatpush1.bf16.msra.mxu0 %v7464
    %7653 = vmatprep.subr.bf16.mxu0 0
    %7654 = vmatpush1.bf16.msra.mxu0 %v7463
    %7655 = vmatprep.subr.bf16.mxu0 0
    %7656 = vmatpush1.bf16.msra.mxu0 %v7462
    %7657 = vmatprep.subr.bf16.mxu0 0
    %7658 = vmatpush1.bf16.msra.mxu0 %v7461
    %7659 = vmatprep.subr.bf16.mxu0 0
    %7660 = vmatpush1.bf16.msra.mxu0 %v7460
    %7661 = vmatprep.subr.bf16.mxu0 0
    %7662 = vmatpush2.bf16.msra.mxu0 0
    %7663 = vmatprep.subr.bf16.mxu0 0
    %7664 = vmatpush2.bf16.msra.mxu0 0
    %7665 = vmatprep.subr.bf16.mxu0 0
    %7666 = vmatpush2.bf16.msra.mxu0 0
    %7667 = vmatprep.subr.bf16.mxu0 0
    %7668 = vmatpush2.bf16.msra.mxu0 0
    %7669 = vmatprep.subr.bf16.mxu0 0
    %7670 = vmatpush2.bf16.msra.mxu0 0
    %7671 = vmatprep.subr.bf16.mxu0 0
    %7672 = vmatpush2.bf16.msra.mxu0 0
    %7673 = vmatprep.subr.bf16.mxu0 0
    %7674 = vmatpush2.bf16.msra.mxu0 0
    %7675 = vmatprep.subr.bf16.mxu0 0
    %7676 = vmatpush2.bf16.msra.mxu0 0
    %7677 = vmatprep.mubr.bf16.mxu0 0
    %7678 = vmatmul.mubr.bf16.gmra.mxu0 %v6711
    %v7679 = vpop.f32.mrf.mxu0
    %v7680 = vadd.f32 %v7527, %v7679
    %v7681 = vpop.f32.mrf.mxu0
    %v7682 = vpop.f32.mrf.mxu0
    %v7683 = vadd.f32 %v7530, %v7682
    %v7684 = vpop.f32.mrf.mxu0
    %7685 = vmatprep.mubr.bf16.mxu0 0
    %7686 = vmatmul.mubr.bf16.gmra.mxu0 %v6714
    %v7687 = vpop.f32.mrf.mxu0
    %v7688 = vadd.f32 %v7535, %v7687
    %v7689 = vpop.f32.mrf.mxu0
    %v7690 = vpop.f32.mrf.mxu0
    %v7691 = vadd.f32 %v7538, %v7690
    %v7692 = vpop.f32.mrf.mxu0
    %7693 = vmatprep.mubr.bf16.mxu0 0
    %7694 = vmatmul.mubr.bf16.gmra.mxu0 %v6717
    %v7695 = vpop.f32.mrf.mxu0
    %v7696 = vadd.f32 %v7543, %v7695
    %v7697 = vpop.f32.mrf.mxu0
    %v7698 = vpop.f32.mrf.mxu0
    %v7699 = vadd.f32 %v7546, %v7698
    %v7700 = vpop.f32.mrf.mxu0
    %7701 = vmatprep.mubr.bf16.mxu0 0
    %7702 = vmatmul.mubr.bf16.gmra.mxu0 %v6720
    %v7703 = vpop.f32.mrf.mxu0
    %v7704 = vadd.f32 %v7551, %v7703
    %v7705 = vpop.f32.mrf.mxu0
    %v7706 = vpop.f32.mrf.mxu0
    %v7707 = vadd.f32 %v7554, %v7706
    %v7708 = vpop.f32.mrf.mxu0
    %7709 = vmatprep.mubr.bf16.mxu0 0
    %7710 = vmatmul.mubr.bf16.gmra.mxu0 %v6723
    %v7711 = vpop.f32.mrf.mxu0
    %v7712 = vadd.f32 %v7559, %v7711
    %v7713 = vpop.f32.mrf.mxu0
    %v7714 = vpop.f32.mrf.mxu0
    %v7715 = vadd.f32 %v7562, %v7714
    %v7716 = vpop.f32.mrf.mxu0
    %7717 = vmatprep.mubr.bf16.mxu0 0
    %7718 = vmatmul.mubr.bf16.gmra.mxu0 %v6726
    %v7719 = vpop.f32.mrf.mxu0
    %v7720 = vadd.f32 %v7567, %v7719
    %v7721 = vpop.f32.mrf.mxu0
    %v7722 = vpop.f32.mrf.mxu0
    %v7723 = vadd.f32 %v7570, %v7722
    %v7724 = vpop.f32.mrf.mxu0
    %7725 = vmatprep.mubr.bf16.mxu0 0
    %7726 = vmatmul.mubr.bf16.gmra.mxu0 %v6729
    %v7727 = vpop.f32.mrf.mxu0
    %v7728 = vadd.f32 %v7575, %v7727
    %v7729 = vpop.f32.mrf.mxu0
    %v7730 = vpop.f32.mrf.mxu0
    %v7731 = vadd.f32 %v7578, %v7730
    %v7732 = vpop.f32.mrf.mxu0
    %7733 = vmatprep.mubr.bf16.mxu0 0
    %7734 = vmatmul.mubr.bf16.gmra.mxu0 %v6732
    %v7735 = vpop.f32.mrf.mxu0
    %v7736 = vadd.f32 %v7583, %v7735
    %v7737 = vpop.f32.mrf.mxu0
    %v7738 = vpop.f32.mrf.mxu0
    %v7739 = vadd.f32 %v7586, %v7738
    %v7740 = vpop.f32.mrf.mxu0
    %7741 = vmatprep.mubr.bf16.mxu0 0
    %7742 = vmatmul.mubr.bf16.gmra.mxu0 %v6735
    %v7743 = vpop.f32.mrf.mxu0
    %v7744 = vadd.f32 %v7591, %v7743
    %v7745 = vpop.f32.mrf.mxu0
    %v7746 = vpop.f32.mrf.mxu0
    %v7747 = vadd.f32 %v7594, %v7746
    %v7748 = vpop.f32.mrf.mxu0
    %7749 = vmatprep.mubr.bf16.mxu0 0
    %7750 = vmatmul.mubr.bf16.gmra.mxu0 %v6738
    %v7751 = vpop.f32.mrf.mxu0
    %v7752 = vadd.f32 %v7599, %v7751
    %v7753 = vpop.f32.mrf.mxu0
    %v7754 = vpop.f32.mrf.mxu0
    %v7755 = vadd.f32 %v7602, %v7754
    %v7756 = vpop.f32.mrf.mxu0
    %7757 = vmatprep.mubr.bf16.mxu0 0
    %7758 = vmatmul.mubr.bf16.gmra.mxu0 %v6741
    %v7759 = vpop.f32.mrf.mxu0
    %v7760 = vadd.f32 %v7607, %v7759
    %v7761 = vpop.f32.mrf.mxu0
    %v7762 = vpop.f32.mrf.mxu0
    %v7763 = vadd.f32 %v7610, %v7762
    %v7764 = vpop.f32.mrf.mxu0
    %7765 = vmatprep.mubr.bf16.mxu0 0
    %7766 = vmatmul.mubr.bf16.gmra.mxu0 %v6744
    %v7767 = vpop.f32.mrf.mxu0
    %v7768 = vadd.f32 %v7615, %v7767
    %v7769 = vpop.f32.mrf.mxu0
    %v7770 = vpop.f32.mrf.mxu0
    %v7771 = vadd.f32 %v7618, %v7770
    %v7772 = vpop.f32.mrf.mxu0
    %7773 = vmatprep.mubr.bf16.mxu0 0
    %7774 = vmatmul.mubr.bf16.gmra.mxu0 %v6747
    %v7775 = vpop.f32.mrf.mxu0
    %v7776 = vadd.f32 %v7623, %v7775
    %v7777 = vpop.f32.mrf.mxu0
    %v7778 = vpop.f32.mrf.mxu0
    %v7779 = vadd.f32 %v7626, %v7778
    %v7780 = vpop.f32.mrf.mxu0
    %7781 = vmatprep.mubr.bf16.mxu0 0
    %7782 = vmatmul.mubr.bf16.gmra.mxu0 %v6750
    %v7783 = vpop.f32.mrf.mxu0
    %v7784 = vadd.f32 %v7631, %v7783
    %v7785 = vpop.f32.mrf.mxu0
    %v7786 = vpop.f32.mrf.mxu0
    %v7787 = vadd.f32 %v7634, %v7786
    %v7788 = vpop.f32.mrf.mxu0
    %7789 = vmatprep.mubr.bf16.mxu0 0
    %7790 = vmatmul.mubr.bf16.gmra.mxu0 %v6753
    %v7791 = vpop.f32.mrf.mxu0
    %v7792 = vadd.f32 %v7639, %v7791
    %v7793 = vpop.f32.mrf.mxu0
    %v7794 = vpop.f32.mrf.mxu0
    %v7795 = vadd.f32 %v7642, %v7794
    %v7796 = vpop.f32.mrf.mxu0
    %7797 = vdwg.mxu0
    %v7846 = vunpack.c.l.b16 %v6754
    %v7847 = vunpack.c.l.b16 %v6755
    %v7848 = vunpack.c.l.b16 %v6756
    %v7849 = vunpack.c.l.b16 %v6757
    %v7850 = vunpack.c.l.b16 %v6758
    %v7851 = vunpack.c.l.b16 %v6759
    %v7852 = vunpack.c.l.b16 %v6760
    %v7853 = vunpack.c.l.b16 %v6761
    %v7854 = vunpack.c.l.b16 %v6762
    %v7855 = vunpack.c.l.b16 %v6763
    %v7856 = vunpack.c.l.b16 %v6764
    %v7857 = vunpack.c.l.b16 %v6765
    %v7858 = vunpack.c.l.b16 %v6766
    %v7859 = vunpack.c.l.b16 %v6767
    %v7860 = vunpack.c.l.b16 %v6768
    %v7861 = vunpack.c.l.b16 %v6769
    %v7862 = vunpack.c.l.b16 %v6770
    %v7863 = vunpack.c.l.b16 %v6771
    %v7864 = vunpack.c.l.b16 %v6772
    %v7865 = vunpack.c.l.b16 %v6773
    %v7866 = vunpack.c.l.b16 %v6774
    %v7867 = vunpack.c.l.b16 %v6775
    %v7868 = vunpack.c.l.b16 %v6776
    %v7869 = vunpack.c.l.b16 %v6777
    %v7870 = vunpack.c.l.b16 %v6778
    %v7871 = vunpack.c.l.b16 %v6779
    %v7872 = vunpack.c.l.b16 %v6780
    %v7873 = vunpack.c.l.b16 %v6781
    %v7874 = vunpack.c.l.b16 %v6782
    %v7875 = vunpack.c.l.b16 %v6783
    %v7876 = vunpack.c.l.b16 %v6784
    %v7877 = vunpack.c.l.b16 %v6785
    %v7878 = vunpack.c.l.b16 %v6786
    %v7879 = vunpack.c.l.b16 %v6787
    %v7880 = vunpack.c.l.b16 %v6788
    %v7881 = vunpack.c.l.b16 %v6789
    %v7882 = vunpack.c.l.b16 %v6790
    %v7883 = vunpack.c.l.b16 %v6791
    %v7884 = vunpack.c.l.b16 %v6792
    %v7885 = vunpack.c.l.b16 %v6793
    %v7886 = vunpack.c.l.b16 %v6794
    %v7887 = vunpack.c.l.b16 %v6795
    %v7888 = vunpack.c.l.b16 %v6796
    %v7889 = vunpack.c.l.b16 %v6797
    %v7890 = vunpack.c.l.b16 %v6798
    %v7891 = vunpack.c.l.b16 %v6799
    %v7892 = vunpack.c.l.b16 %v6800
    %v7893 = vunpack.c.l.b16 %v6801
    %v7894 = vpack.c.b16 %v7847, %v7846
    %v7895 = vpack.c.b16 %v7849, %v7848
    %v7896 = vpack.c.b16 %v7851, %v7850
    %v7897 = vpack.c.b16 %v7853, %v7852
    %v7898 = vpack.c.b16 %v7855, %v7854
    %v7899 = vpack.c.b16 %v7857, %v7856
    %v7900 = vpack.c.b16 %v7859, %v7858
    %v7901 = vpack.c.b16 %v7861, %v7860
    %v7902 = vpack.c.b16 %v7863, %v7862
    %v7903 = vpack.c.b16 %v7865, %v7864
    %v7904 = vpack.c.b16 %v7867, %v7866
    %v7905 = vpack.c.b16 %v7869, %v7868
    %v7906 = vpack.c.b16 %v7871, %v7870
    %v7907 = vpack.c.b16 %v7873, %v7872
    %v7908 = vpack.c.b16 %v7875, %v7874
    %v7909 = vpack.c.b16 %v7877, %v7876
    %v7910 = vpack.c.b16 %v7879, %v7878
    %v7911 = vpack.c.b16 %v7881, %v7880
    %v7912 = vpack.c.b16 %v7883, %v7882
    %v7913 = vpack.c.b16 %v7885, %v7884
    %v7914 = vpack.c.b16 %v7887, %v7886
    %v7915 = vpack.c.b16 %v7889, %v7888
    %v7916 = vpack.c.b16 %v7891, %v7890
    %v7917 = vpack.c.b16 %v7893, %v7892
    %7942 = vmatprep.subr.bf16.mxu0 0
    %7943 = vmatpush1.bf16.msra.mxu0 %v7901
    %7944 = vmatprep.subr.bf16.mxu0 0
    %7945 = vmatpush1.bf16.msra.mxu0 %v7900
    %7946 = vmatprep.subr.bf16.mxu0 0
    %7947 = vmatpush1.bf16.msra.mxu0 %v7899
    %7948 = vmatprep.subr.bf16.mxu0 0
    %7949 = vmatpush1.bf16.msra.mxu0 %v7898
    %7950 = vmatprep.subr.bf16.mxu0 0
    %7951 = vmatpush1.bf16.msra.mxu0 %v7897
    %7952 = vmatprep.subr.bf16.mxu0 0
    %7953 = vmatpush1.bf16.msra.mxu0 %v7896
    %7954 = vmatprep.subr.bf16.mxu0 0
    %7955 = vmatpush1.bf16.msra.mxu0 %v7895
    %7956 = vmatprep.subr.bf16.mxu0 0
    %7957 = vmatpush1.bf16.msra.mxu0 %v7894
    %7958 = vmatprep.subr.bf16.mxu0 0
    %7959 = vmatpush2.bf16.msra.mxu0 %v7909
    %7960 = vmatprep.subr.bf16.mxu0 0
    %7961 = vmatpush2.bf16.msra.mxu0 %v7908
    %7962 = vmatprep.subr.bf16.mxu0 0
    %7963 = vmatpush2.bf16.msra.mxu0 %v7907
    %7964 = vmatprep.subr.bf16.mxu0 0
    %7965 = vmatpush2.bf16.msra.mxu0 %v7906
    %7966 = vmatprep.subr.bf16.mxu0 0
    %7967 = vmatpush2.bf16.msra.mxu0 %v7905
    %7968 = vmatprep.subr.bf16.mxu0 0
    %7969 = vmatpush2.bf16.msra.mxu0 %v7904
    %7970 = vmatprep.subr.bf16.mxu0 0
    %7971 = vmatpush2.bf16.msra.mxu0 %v7903
    %7972 = vmatprep.subr.bf16.mxu0 0
    %7973 = vmatpush2.bf16.msra.mxu0 %v7902
    %7974 = vmatprep.mubr.bf16.mxu0 %v6707
    %7975 = vmatmul.mubr.bf16.gmra.mxu0 %v6706
    %v7976 = vpop.f32.mrf.mxu0
    %v7977 = vadd.f32 0.0, %v7976
    %v7978 = vpop.f32.mrf.mxu0
    %v7979 = vpop.f32.mrf.mxu0
    %v7980 = vadd.f32 0.0, %v7979
    %v7981 = vpop.f32.mrf.mxu0
    %7982 = vmatprep.mubr.bf16.mxu0 %v6710
    %7983 = vmatmul.mubr.bf16.gmra.mxu0 %v6709
    %v7984 = vpop.f32.mrf.mxu0
    %v7985 = vadd.f32 %v7182, %v7984
    %v7986 = vpop.f32.mrf.mxu0
    %v7987 = vpop.f32.mrf.mxu0
    %v7988 = vadd.f32 %v7185, %v7987
    %v7989 = vpop.f32.mrf.mxu0
    %7990 = vmatprep.mubr.bf16.mxu0 %v6713
    %7991 = vmatmul.mubr.bf16.gmra.mxu0 %v6712
    %v7992 = vpop.f32.mrf.mxu0
    %v7993 = vadd.f32 %v7190, %v7992
    %v7994 = vpop.f32.mrf.mxu0
    %v7995 = vpop.f32.mrf.mxu0
    %v7996 = vadd.f32 %v7193, %v7995
    %v7997 = vpop.f32.mrf.mxu0
    %7998 = vmatprep.mubr.bf16.mxu0 %v6716
    %7999 = vmatmul.mubr.bf16.gmra.mxu0 %v6715
    %v8000 = vpop.f32.mrf.mxu0
    %v8001 = vadd.f32 %v7198, %v8000
    %v8002 = vpop.f32.mrf.mxu0
    %v8003 = vpop.f32.mrf.mxu0
    %v8004 = vadd.f32 %v7201, %v8003
    %v8005 = vpop.f32.mrf.mxu0
    %8006 = vmatprep.mubr.bf16.mxu0 %v6719
    %8007 = vmatmul.mubr.bf16.gmra.mxu0 %v6718
    %v8008 = vpop.f32.mrf.mxu0
    %v8009 = vadd.f32 %v7206, %v8008
    %v8010 = vpop.f32.mrf.mxu0
    %v8011 = vpop.f32.mrf.mxu0
    %v8012 = vadd.f32 %v7209, %v8011
    %v8013 = vpop.f32.mrf.mxu0
    %8014 = vmatprep.mubr.bf16.mxu0 %v6722
    %8015 = vmatmul.mubr.bf16.gmra.mxu0 %v6721
    %v8016 = vpop.f32.mrf.mxu0
    %v8017 = vadd.f32 %v7214, %v8016
    %v8018 = vpop.f32.mrf.mxu0
    %v8019 = vpop.f32.mrf.mxu0
    %v8020 = vadd.f32 %v7217, %v8019
    %v8021 = vpop.f32.mrf.mxu0
    %8022 = vmatprep.mubr.bf16.mxu0 %v6725
    %8023 = vmatmul.mubr.bf16.gmra.mxu0 %v6724
    %v8024 = vpop.f32.mrf.mxu0
    %v8025 = vadd.f32 %v7222, %v8024
    %v8026 = vpop.f32.mrf.mxu0
    %v8027 = vpop.f32.mrf.mxu0
    %v8028 = vadd.f32 %v7225, %v8027
    %v8029 = vpop.f32.mrf.mxu0
    %8030 = vmatprep.mubr.bf16.mxu0 %v6728
    %8031 = vmatmul.mubr.bf16.gmra.mxu0 %v6727
    %v8032 = vpop.f32.mrf.mxu0
    %v8033 = vadd.f32 %v7230, %v8032
    %v8034 = vpop.f32.mrf.mxu0
    %v8035 = vpop.f32.mrf.mxu0
    %v8036 = vadd.f32 %v7233, %v8035
    %v8037 = vpop.f32.mrf.mxu0
    %8038 = vmatprep.mubr.bf16.mxu0 %v6731
    %8039 = vmatmul.mubr.bf16.gmra.mxu0 %v6730
    %v8040 = vpop.f32.mrf.mxu0
    %v8041 = vadd.f32 %v7238, %v8040
    %v8042 = vpop.f32.mrf.mxu0
    %v8043 = vpop.f32.mrf.mxu0
    %v8044 = vadd.f32 %v7241, %v8043
    %v8045 = vpop.f32.mrf.mxu0
    %8046 = vmatprep.mubr.bf16.mxu0 %v6734
    %8047 = vmatmul.mubr.bf16.gmra.mxu0 %v6733
    %v8048 = vpop.f32.mrf.mxu0
    %v8049 = vadd.f32 %v7246, %v8048
    %v8050 = vpop.f32.mrf.mxu0
    %v8051 = vpop.f32.mrf.mxu0
    %v8052 = vadd.f32 %v7249, %v8051
    %v8053 = vpop.f32.mrf.mxu0
    %8054 = vmatprep.mubr.bf16.mxu0 %v6737
    %8055 = vmatmul.mubr.bf16.gmra.mxu0 %v6736
    %v8056 = vpop.f32.mrf.mxu0
    %v8057 = vadd.f32 %v7254, %v8056
    %v8058 = vpop.f32.mrf.mxu0
    %v8059 = vpop.f32.mrf.mxu0
    %v8060 = vadd.f32 %v7257, %v8059
    %v8061 = vpop.f32.mrf.mxu0
    %8062 = vmatprep.mubr.bf16.mxu0 %v6740
    %8063 = vmatmul.mubr.bf16.gmra.mxu0 %v6739
    %v8064 = vpop.f32.mrf.mxu0
    %v8065 = vadd.f32 %v7262, %v8064
    %v8066 = vpop.f32.mrf.mxu0
    %v8067 = vpop.f32.mrf.mxu0
    %v8068 = vadd.f32 %v7265, %v8067
    %v8069 = vpop.f32.mrf.mxu0
    %8070 = vmatprep.mubr.bf16.mxu0 %v6743
    %8071 = vmatmul.mubr.bf16.gmra.mxu0 %v6742
    %v8072 = vpop.f32.mrf.mxu0
    %v8073 = vadd.f32 %v7270, %v8072
    %v8074 = vpop.f32.mrf.mxu0
    %v8075 = vpop.f32.mrf.mxu0
    %v8076 = vadd.f32 %v7273, %v8075
    %v8077 = vpop.f32.mrf.mxu0
    %8078 = vmatprep.mubr.bf16.mxu0 %v6746
    %8079 = vmatmul.mubr.bf16.gmra.mxu0 %v6745
    %v8080 = vpop.f32.mrf.mxu0
    %v8081 = vadd.f32 %v7278, %v8080
    %v8082 = vpop.f32.mrf.mxu0
    %v8083 = vpop.f32.mrf.mxu0
    %v8084 = vadd.f32 %v7281, %v8083
    %v8085 = vpop.f32.mrf.mxu0
    %8086 = vmatprep.mubr.bf16.mxu0 %v6749
    %8087 = vmatmul.mubr.bf16.gmra.mxu0 %v6748
    %v8088 = vpop.f32.mrf.mxu0
    %v8089 = vadd.f32 %v7286, %v8088
    %v8090 = vpop.f32.mrf.mxu0
    %v8091 = vpop.f32.mrf.mxu0
    %v8092 = vadd.f32 %v7289, %v8091
    %v8093 = vpop.f32.mrf.mxu0
    %8094 = vmatprep.mubr.bf16.mxu0 %v6752
    %8095 = vmatmul.mubr.bf16.gmra.mxu0 %v6751
    %v8096 = vpop.f32.mrf.mxu0
    %v8097 = vadd.f32 %v7294, %v8096
    %v8098 = vpop.f32.mrf.mxu0
    %v8099 = vpop.f32.mrf.mxu0
    %v8100 = vadd.f32 %v7297, %v8099
    %v8101 = vpop.f32.mrf.mxu0
    %8102 = vdwg.mxu0
    %8103 = vmatprep.subr.bf16.mxu0 0
    %8104 = vmatpush1.bf16.msra.mxu0 %v7917
    %8105 = vmatprep.subr.bf16.mxu0 0
    %8106 = vmatpush1.bf16.msra.mxu0 %v7916
    %8107 = vmatprep.subr.bf16.mxu0 0
    %8108 = vmatpush1.bf16.msra.mxu0 %v7915
    %8109 = vmatprep.subr.bf16.mxu0 0
    %8110 = vmatpush1.bf16.msra.mxu0 %v7914
    %8111 = vmatprep.subr.bf16.mxu0 0
    %8112 = vmatpush1.bf16.msra.mxu0 %v7913
    %8113 = vmatprep.subr.bf16.mxu0 0
    %8114 = vmatpush1.bf16.msra.mxu0 %v7912
    %8115 = vmatprep.subr.bf16.mxu0 0
    %8116 = vmatpush1.bf16.msra.mxu0 %v7911
    %8117 = vmatprep.subr.bf16.mxu0 0
    %8118 = vmatpush1.bf16.msra.mxu0 %v7910
    %8119 = vmatprep.subr.bf16.mxu0 0
    %8120 = vmatpush2.bf16.msra.mxu0 0
    %8121 = vmatprep.subr.bf16.mxu0 0
    %8122 = vmatpush2.bf16.msra.mxu0 0
    %8123 = vmatprep.subr.bf16.mxu0 0
    %8124 = vmatpush2.bf16.msra.mxu0 0
    %8125 = vmatprep.subr.bf16.mxu0 0
    %8126 = vmatpush2.bf16.msra.mxu0 0
    %8127 = vmatprep.subr.bf16.mxu0 0
    %8128 = vmatpush2.bf16.msra.mxu0 0
    %8129 = vmatprep.subr.bf16.mxu0 0
    %8130 = vmatpush2.bf16.msra.mxu0 0
    %8131 = vmatprep.subr.bf16.mxu0 0
    %8132 = vmatpush2.bf16.msra.mxu0 0
    %8133 = vmatprep.subr.bf16.mxu0 0
    %8134 = vmatpush2.bf16.msra.mxu0 0
    %8135 = vmatprep.mubr.bf16.mxu0 0
    %8136 = vmatmul.mubr.bf16.gmra.mxu0 %v6708
    %v8137 = vpop.f32.mrf.mxu0
    %v8138 = vadd.f32 %v7977, %v8137
    %v8139 = vpop.f32.mrf.mxu0
    %v8140 = vpop.f32.mrf.mxu0
    %v8141 = vadd.f32 %v7980, %v8140
    %v8142 = vpop.f32.mrf.mxu0
    %8143 = vmatprep.mubr.bf16.mxu0 0
    %8144 = vmatmul.mubr.bf16.gmra.mxu0 %v6711
    %v8145 = vpop.f32.mrf.mxu0
    %v8146 = vadd.f32 %v7985, %v8145
    %v8147 = vpop.f32.mrf.mxu0
    %v8148 = vpop.f32.mrf.mxu0
    %v8149 = vadd.f32 %v7988, %v8148
    %v8150 = vpop.f32.mrf.mxu0
    %8151 = vmatprep.mubr.bf16.mxu0 0
    %8152 = vmatmul.mubr.bf16.gmra.mxu0 %v6714
    %v8153 = vpop.f32.mrf.mxu0
    %v8154 = vadd.f32 %v7993, %v8153
    %v8155 = vpop.f32.mrf.mxu0
    %v8156 = vpop.f32.mrf.mxu0
    %v8157 = vadd.f32 %v7996, %v8156
    %v8158 = vpop.f32.mrf.mxu0
    %8159 = vmatprep.mubr.bf16.mxu0 0
    %8160 = vmatmul.mubr.bf16.gmra.mxu0 %v6717
    %v8161 = vpop.f32.mrf.mxu0
    %v8162 = vadd.f32 %v8001, %v8161
    %v8163 = vpop.f32.mrf.mxu0
    %v8164 = vpop.f32.mrf.mxu0
    %v8165 = vadd.f32 %v8004, %v8164
    %v8166 = vpop.f32.mrf.mxu0
    %8167 = vmatprep.mubr.bf16.mxu0 0
    %8168 = vmatmul.mubr.bf16.gmra.mxu0 %v6720
    %v8169 = vpop.f32.mrf.mxu0
    %v8170 = vadd.f32 %v8009, %v8169
    %v8171 = vpop.f32.mrf.mxu0
    %v8172 = vpop.f32.mrf.mxu0
    %v8173 = vadd.f32 %v8012, %v8172
    %v8174 = vpop.f32.mrf.mxu0
    %8175 = vmatprep.mubr.bf16.mxu0 0
    %8176 = vmatmul.mubr.bf16.gmra.mxu0 %v6723
    %v8177 = vpop.f32.mrf.mxu0
    %v8178 = vadd.f32 %v8017, %v8177
    %v8179 = vpop.f32.mrf.mxu0
    %v8180 = vpop.f32.mrf.mxu0
    %v8181 = vadd.f32 %v8020, %v8180
    %v8182 = vpop.f32.mrf.mxu0
    %8183 = vmatprep.mubr.bf16.mxu0 0
    %8184 = vmatmul.mubr.bf16.gmra.mxu0 %v6726
    %v8185 = vpop.f32.mrf.mxu0
    %v8186 = vadd.f32 %v8025, %v8185
    %v8187 = vpop.f32.mrf.mxu0
    %v8188 = vpop.f32.mrf.mxu0
    %v8189 = vadd.f32 %v8028, %v8188
    %v8190 = vpop.f32.mrf.mxu0
    %8191 = vmatprep.mubr.bf16.mxu0 0
    %8192 = vmatmul.mubr.bf16.gmra.mxu0 %v6729
    %v8193 = vpop.f32.mrf.mxu0
    %v8194 = vadd.f32 %v8033, %v8193
    %v8195 = vpop.f32.mrf.mxu0
    %v8196 = vpop.f32.mrf.mxu0
    %v8197 = vadd.f32 %v8036, %v8196
    %v8198 = vpop.f32.mrf.mxu0
    %8199 = vmatprep.mubr.bf16.mxu0 0
    %8200 = vmatmul.mubr.bf16.gmra.mxu0 %v6732
    %v8201 = vpop.f32.mrf.mxu0
    %v8202 = vadd.f32 %v8041, %v8201
    %v8203 = vpop.f32.mrf.mxu0
    %v8204 = vpop.f32.mrf.mxu0
    %v8205 = vadd.f32 %v8044, %v8204
    %v8206 = vpop.f32.mrf.mxu0
    %8207 = vmatprep.mubr.bf16.mxu0 0
    %8208 = vmatmul.mubr.bf16.gmra.mxu0 %v6735
    %v8209 = vpop.f32.mrf.mxu0
    %v8210 = vadd.f32 %v8049, %v8209
    %v8211 = vpop.f32.mrf.mxu0
    %v8212 = vpop.f32.mrf.mxu0
    %v8213 = vadd.f32 %v8052, %v8212
    %v8214 = vpop.f32.mrf.mxu0
    %8215 = vmatprep.mubr.bf16.mxu0 0
    %8216 = vmatmul.mubr.bf16.gmra.mxu0 %v6738
    %v8217 = vpop.f32.mrf.mxu0
    %v8218 = vadd.f32 %v8057, %v8217
    %v8219 = vpop.f32.mrf.mxu0
    %v8220 = vpop.f32.mrf.mxu0
    %v8221 = vadd.f32 %v8060, %v8220
    %v8222 = vpop.f32.mrf.mxu0
    %8223 = vmatprep.mubr.bf16.mxu0 0
    %8224 = vmatmul.mubr.bf16.gmra.mxu0 %v6741
    %v8225 = vpop.f32.mrf.mxu0
    %v8226 = vadd.f32 %v8065, %v8225
    %v8227 = vpop.f32.mrf.mxu0
    %v8228 = vpop.f32.mrf.mxu0
    %v8229 = vadd.f32 %v8068, %v8228
    %v8230 = vpop.f32.mrf.mxu0
    %8231 = vmatprep.mubr.bf16.mxu0 0
    %8232 = vmatmul.mubr.bf16.gmra.mxu0 %v6744
    %v8233 = vpop.f32.mrf.mxu0
    %v8234 = vadd.f32 %v8073, %v8233
    %v8235 = vpop.f32.mrf.mxu0
    %v8236 = vpop.f32.mrf.mxu0
    %v8237 = vadd.f32 %v8076, %v8236
    %v8238 = vpop.f32.mrf.mxu0
    %8239 = vmatprep.mubr.bf16.mxu0 0
    %8240 = vmatmul.mubr.bf16.gmra.mxu0 %v6747
    %v8241 = vpop.f32.mrf.mxu0
    %v8242 = vadd.f32 %v8081, %v8241
    %v8243 = vpop.f32.mrf.mxu0
    %v8244 = vpop.f32.mrf.mxu0
    %v8245 = vadd.f32 %v8084, %v8244
    %v8246 = vpop.f32.mrf.mxu0
    %8247 = vmatprep.mubr.bf16.mxu0 0
    %8248 = vmatmul.mubr.bf16.gmra.mxu0 %v6750
    %v8249 = vpop.f32.mrf.mxu0
    %v8250 = vadd.f32 %v8089, %v8249
    %v8251 = vpop.f32.mrf.mxu0
    %v8252 = vpop.f32.mrf.mxu0
    %v8253 = vadd.f32 %v8092, %v8252
    %v8254 = vpop.f32.mrf.mxu0
    %8255 = vmatprep.mubr.bf16.mxu0 0
    %8256 = vmatmul.mubr.bf16.gmra.mxu0 %v6753
    %v8257 = vpop.f32.mrf.mxu0
    %v8258 = vadd.f32 %v8097, %v8257
    %v8259 = vpop.f32.mrf.mxu0
    %v8260 = vpop.f32.mrf.mxu0
    %v8261 = vadd.f32 %v8100, %v8260
    %v8262 = vpop.f32.mrf.mxu0
    %8263 = vdwg.mxu0
    %v8264 = vadd.f32 %v8138, %v7680
    %v8265 = vadd.f32 %v8141, %v7683
    %v8266 = vadd.f32 %v8146, %v7688
    %v8267 = vadd.f32 %v8149, %v7691
    %v8268 = vadd.f32 %v8154, %v7696
    %v8269 = vadd.f32 %v8157, %v7699
    %v8270 = vadd.f32 %v8162, %v7704
    %v8271 = vadd.f32 %v8165, %v7707
    %v8272 = vadd.f32 %v8170, %v7712
    %v8273 = vadd.f32 %v8173, %v7715
    %v8274 = vadd.f32 %v8178, %v7720
    %v8275 = vadd.f32 %v8181, %v7723
    %v8276 = vadd.f32 %v8186, %v7728
    %v8277 = vadd.f32 %v8189, %v7731
    %v8278 = vadd.f32 %v8194, %v7736
    %v8279 = vadd.f32 %v8197, %v7739
    %v8280 = vadd.f32 %v8202, %v7744
    %v8281 = vadd.f32 %v8205, %v7747
    %v8282 = vadd.f32 %v8210, %v7752
    %v8283 = vadd.f32 %v8213, %v7755
    %v8284 = vadd.f32 %v8218, %v7760
    %v8285 = vadd.f32 %v8221, %v7763
    %v8286 = vadd.f32 %v8226, %v7768
    %v8287 = vadd.f32 %v8229, %v7771
    %v8288 = vadd.f32 %v8234, %v7776
    %v8289 = vadd.f32 %v8237, %v7779
    %v8290 = vadd.f32 %v8242, %v7784
    %v8291 = vadd.f32 %v8245, %v7787
    %v8292 = vadd.f32 %v8250, %v7792
    %v8293 = vadd.f32 %v8253, %v7795
    %v8294 = vadd.f32 %v8258, 0.0
    %v8295 = vadd.f32 %v8261, 0.0
    %s8296 = scalar_lea.vmem [#allocation9], 256
    %8297 = vst [vmem:[%s8296] sm:$0xff] %v8264
    %8298 = vst [vmem:[%s8296 + $0x8] sm:$0xff] %v8265
    %8299 = vst [vmem:[%s8296 + $0x10] sm:$0xff] %v8266
    %8300 = vst [vmem:[%s8296 + $0x18] sm:$0xff] %v8267
    %8301 = vst [vmem:[%s8296 + $0x20] sm:$0xff] %v8268
    %8302 = vst [vmem:[%s8296 + $0x28] sm:$0xff] %v8269
    %8303 = vst [vmem:[%s8296 + $0x30] sm:$0xff] %v8270
    %8304 = vst [vmem:[%s8296 + $0x38] sm:$0xff] %v8271
    %8305 = vst [vmem:[%s8296 + $0x40] sm:$0xff] %v8272
    %8306 = vst [vmem:[%s8296 + $0x48] sm:$0xff] %v8273
    %8307 = vst [vmem:[%s8296 + $0x50] sm:$0xff] %v8274
    %8308 = vst [vmem:[%s8296 + $0x58] sm:$0xff] %v8275
    %8309 = vst [vmem:[%s8296 + $0x60] sm:$0xff] %v8276
    %8310 = vst [vmem:[%s8296 + $0x68] sm:$0xff] %v8277
    %8311 = vst [vmem:[%s8296 + $0x70] sm:$0xff] %v8278
    %8312 = vst [vmem:[%s8296 + $0x78] sm:$0xff] %v8279
    %8313 = vst [vmem:[%s8296 + $0x80] sm:$0xff] %v8280
    %8314 = vst [vmem:[%s8296 + $0x88] sm:$0xff] %v8281
    %8315 = vst [vmem:[%s8296 + $0x90] sm:$0xff] %v8282
    %8316 = vst [vmem:[%s8296 + $0x98] sm:$0xff] %v8283
    %8317 = vst [vmem:[%s8296 + $0xa0] sm:$0xff] %v8284
    %8318 = vst [vmem:[%s8296 + $0xa8] sm:$0xff] %v8285
    %8319 = vst [vmem:[%s8296 + $0xb0] sm:$0xff] %v8286
    %8320 = vst [vmem:[%s8296 + $0xb8] sm:$0xff] %v8287
    %8321 = vst [vmem:[%s8296 + $0xc0] sm:$0xff] %v8288
    %8322 = vst [vmem:[%s8296 + $0xc8] sm:$0xff] %v8289
    %8323 = vst [vmem:[%s8296 + $0xd0] sm:$0xff] %v8290
    %8324 = vst [vmem:[%s8296 + $0xd8] sm:$0xff] %v8291
    %8325 = vst [vmem:[%s8296 + $0xe0] sm:$0xff] %v8292
    %8326 = vst [vmem:[%s8296 + $0xe8] sm:$0xff] %v8293
    %8327 = vst [vmem:[%s8296 + $0xf0] sm:$0xff] %v8294
    %8328 = vst [vmem:[%s8296 + $0xf8] sm:$0xff] %v8295
    %v8329 = vadd.f32 %v8264, %v8265
    %v8330 = vadd.f32 %v8329, %v8266
    %v8331 = vadd.f32 %v8330, %v8267
    %v8332 = vadd.f32 %v8331, %v8268
    %v8333 = vadd.f32 %v8332, %v8269
    %v8334 = vadd.f32 %v8333, %v8270
    %v8335 = vadd.f32 %v8334, %v8271
    %v8336 = vadd.f32 %v8335, %v8272
    %v8337 = vadd.f32 %v8336, %v8273
    %v8338 = vadd.f32 %v8337, %v8274
    %v8339 = vadd.f32 %v8338, %v8275
    %v8340 = vadd.f32 %v8339, %v8276
    %v8341 = vadd.f32 %v8340, %v8277
    %v8342 = vadd.f32 %v8341, %v8278
    %v8343 = vadd.f32 %v8342, %v8279
    %v8344 = vadd.f32 %v8343, %v8280
    %v8345 = vadd.f32 %v8344, %v8281
    %v8346 = vadd.f32 %v8345, %v8282
    %v8347 = vadd.f32 %v8346, %v8283
    %v8348 = vadd.f32 %v8347, %v8284
    %v8349 = vadd.f32 %v8348, %v8285
    %v8350 = vadd.f32 %v8349, %v8286
    %v8351 = vadd.f32 %v8350, %v8287
    %v8352 = vadd.f32 %v8351, %v8288
    %v8353 = vadd.f32 %v8352, %v8289
    %v8354 = vadd.f32 %v8353, %v8290
    %v8355 = vadd.f32 %v8354, %v8291
    %v8356 = vadd.f32 %v8355, %v8292
    %v8357 = vadd.f32 %v8356, %v8293
    %v8358 = vadd.f32 %v8357, %v8294
    %v8359 = vadd.f32 %v8358, %v8295
    %v8360 = vrot.slane %v8359, 4
    %v8361 = vadd.f32 %v8359, %v8360
    %v8362 = vrot.slane %v8361, 2
    %v8363 = vadd.f32 %v8361, %v8362
    %v8364 = vrot.slane %v8363, 1
    %v8365 = vadd.f32 %v8363, %v8364
    %v8366 = vadd.f32 %v6283, %v8365
    %v8367 = vmul.f32 %v8264, %v8264
    %v8368 = vmul.f32 %v8265, %v8265
    %v8369 = vmul.f32 %v8266, %v8266
    %v8370 = vmul.f32 %v8267, %v8267
    %v8371 = vmul.f32 %v8268, %v8268
    %v8372 = vmul.f32 %v8269, %v8269
    %v8373 = vmul.f32 %v8270, %v8270
    %v8374 = vmul.f32 %v8271, %v8271
    %v8375 = vmul.f32 %v8272, %v8272
    %v8376 = vmul.f32 %v8273, %v8273
    %v8377 = vmul.f32 %v8274, %v8274
    %v8378 = vmul.f32 %v8275, %v8275
    %v8379 = vmul.f32 %v8276, %v8276
    %v8380 = vmul.f32 %v8277, %v8277
    %v8381 = vmul.f32 %v8278, %v8278
    %v8382 = vmul.f32 %v8279, %v8279
    %v8383 = vmul.f32 %v8280, %v8280
    %v8384 = vmul.f32 %v8281, %v8281
    %v8385 = vmul.f32 %v8282, %v8282
    %v8386 = vmul.f32 %v8283, %v8283
    %v8387 = vmul.f32 %v8284, %v8284
    %v8388 = vmul.f32 %v8285, %v8285
    %v8389 = vmul.f32 %v8286, %v8286
    %v8390 = vmul.f32 %v8287, %v8287
    %v8391 = vmul.f32 %v8288, %v8288
    %v8392 = vmul.f32 %v8289, %v8289
    %v8393 = vmul.f32 %v8290, %v8290
    %v8394 = vmul.f32 %v8291, %v8291
    %v8395 = vmul.f32 %v8292, %v8292
    %v8396 = vmul.f32 %v8293, %v8293
    %v8397 = vmul.f32 %v8294, %v8294
    %v8398 = vmul.f32 %v8295, %v8295
    %v8399 = vadd.f32 %v8367, %v8368
    %v8400 = vadd.f32 %v8399, %v8369
    %v8401 = vadd.f32 %v8400, %v8370
    %v8402 = vadd.f32 %v8401, %v8371
    %v8403 = vadd.f32 %v8402, %v8372
    %v8404 = vadd.f32 %v8403, %v8373
    %v8405 = vadd.f32 %v8404, %v8374
    %v8406 = vadd.f32 %v8405, %v8375
    %v8407 = vadd.f32 %v8406, %v8376
    %v8408 = vadd.f32 %v8407, %v8377
    %v8409 = vadd.f32 %v8408, %v8378
    %v8410 = vadd.f32 %v8409, %v8379
    %v8411 = vadd.f32 %v8410, %v8380
    %v8412 = vadd.f32 %v8411, %v8381
    %v8413 = vadd.f32 %v8412, %v8382
    %v8414 = vadd.f32 %v8413, %v8383
    %v8415 = vadd.f32 %v8414, %v8384
    %v8416 = vadd.f32 %v8415, %v8385
    %v8417 = vadd.f32 %v8416, %v8386
    %v8418 = vadd.f32 %v8417, %v8387
    %v8419 = vadd.f32 %v8418, %v8388
    %v8420 = vadd.f32 %v8419, %v8389
    %v8421 = vadd.f32 %v8420, %v8390
    %v8422 = vadd.f32 %v8421, %v8391
    %v8423 = vadd.f32 %v8422, %v8392
    %v8424 = vadd.f32 %v8423, %v8393
    %v8425 = vadd.f32 %v8424, %v8394
    %v8426 = vadd.f32 %v8425, %v8395
    %v8427 = vadd.f32 %v8426, %v8396
    %v8428 = vadd.f32 %v8427, %v8397
    %v8429 = vadd.f32 %v8428, %v8398
    %v8430 = vrot.slane %v8429, 4
    %v8431 = vadd.f32 %v8429, %v8430
    %v8432 = vrot.slane %v8431, 2
    %v8433 = vadd.f32 %v8431, %v8432
    %v8434 = vrot.slane %v8433, 1
    %v8435 = vadd.f32 %v8433, %v8434
    %v8436 = vadd.f32 %v6353, %v8435
    %v8437 = vld [vmem:[%s5] sm:$0x1]
    %v8438 = vld [vmem:[%s6] sm:$0x1]
    %v8439 = vmul.f32 %v8366, 0.001953125
    %v8440 = vmul.f32 %v8436, 0.001953125
    %v8441 = vmul.f32 %v8439, %v8439
    %v8442 = vsub.f32 %v8440, %v8441
    %v8443 = vmax.f32 %v8442, 0.0
    %v8444 = vadd.f32 %v8443, 1e-05
    %v8445 = vrsqrt.pop %v8444
    %v8446 = vmul.f32 %v8437, %v8445
    %v8447 = vmul.f32 %v8439, %v8446
    %v8448 = vsub.f32 %v8438, %v8447
    %v8449 = vld [vmem:[#allocation9] sm:$0xff]
    %v8450 = vld [vmem:[#allocation9 + $0x8] sm:$0xff]
    %v8451 = vld [vmem:[#allocation9 + $0x10] sm:$0xff]
    %v8452 = vld [vmem:[#allocation9 + $0x18] sm:$0xff]
    %v8453 = vld [vmem:[#allocation9 + $0x20] sm:$0xff]
    %v8454 = vld [vmem:[#allocation9 + $0x28] sm:$0xff]
    %v8455 = vld [vmem:[#allocation9 + $0x30] sm:$0xff]
    %v8456 = vld [vmem:[#allocation9 + $0x38] sm:$0xff]
    %v8457 = vld [vmem:[#allocation9 + $0x40] sm:$0xff]
    %v8458 = vld [vmem:[#allocation9 + $0x48] sm:$0xff]
    %v8459 = vld [vmem:[#allocation9 + $0x50] sm:$0xff]
    %v8460 = vld [vmem:[#allocation9 + $0x58] sm:$0xff]
    %v8461 = vld [vmem:[#allocation9 + $0x60] sm:$0xff]
    %v8462 = vld [vmem:[#allocation9 + $0x68] sm:$0xff]
    %v8463 = vld [vmem:[#allocation9 + $0x70] sm:$0xff]
    %v8464 = vld [vmem:[#allocation9 + $0x78] sm:$0xff]
    %v8465 = vld [vmem:[#allocation9 + $0x80] sm:$0xff]
    %v8466 = vld [vmem:[#allocation9 + $0x88] sm:$0xff]
    %v8467 = vld [vmem:[#allocation9 + $0x90] sm:$0xff]
    %v8468 = vld [vmem:[#allocation9 + $0x98] sm:$0xff]
    %v8469 = vld [vmem:[#allocation9 + $0xa0] sm:$0xff]
    %v8470 = vld [vmem:[#allocation9 + $0xa8] sm:$0xff]
    %v8471 = vld [vmem:[#allocation9 + $0xb0] sm:$0xff]
    %v8472 = vld [vmem:[#allocation9 + $0xb8] sm:$0xff]
    %v8473 = vld [vmem:[#allocation9 + $0xc0] sm:$0xff]
    %v8474 = vld [vmem:[#allocation9 + $0xc8] sm:$0xff]
    %v8475 = vld [vmem:[#allocation9 + $0xd0] sm:$0xff]
    %v8476 = vld [vmem:[#allocation9 + $0xd8] sm:$0xff]
    %v8477 = vld [vmem:[#allocation9 + $0xe0] sm:$0xff]
    %v8478 = vld [vmem:[#allocation9 + $0xe8] sm:$0xff]
    %v8479 = vld [vmem:[#allocation9 + $0xf0] sm:$0xff]
    %v8480 = vld [vmem:[#allocation9 + $0xf8] sm:$0xff]
    %v8482 = vlaneseq
    %v8483 = vshrl.u32 %v8482, 7
    %v8484 = vsub.s32 0, %v8483
    %v8485 = vrot.slane %v8446, %v8484
    %v8487 = vmul.f32 %v8449, %v8485
    %v8488 = vmul.f32 %v8450, %v8485
    %v8489 = vmul.f32 %v8451, %v8485
    %v8490 = vmul.f32 %v8452, %v8485
    %v8491 = vmul.f32 %v8453, %v8485
    %v8492 = vmul.f32 %v8454, %v8485
    %v8493 = vmul.f32 %v8455, %v8485
    %v8494 = vmul.f32 %v8456, %v8485
    %v8495 = vmul.f32 %v8457, %v8485
    %v8496 = vmul.f32 %v8458, %v8485
    %v8497 = vmul.f32 %v8459, %v8485
    %v8498 = vmul.f32 %v8460, %v8485
    %v8499 = vmul.f32 %v8461, %v8485
    %v8500 = vmul.f32 %v8462, %v8485
    %v8501 = vmul.f32 %v8463, %v8485
    %v8502 = vmul.f32 %v8464, %v8485
    %v8503 = vmul.f32 %v8465, %v8485
    %v8504 = vmul.f32 %v8466, %v8485
    %v8505 = vmul.f32 %v8467, %v8485
    %v8506 = vmul.f32 %v8468, %v8485
    %v8507 = vmul.f32 %v8469, %v8485
    %v8508 = vmul.f32 %v8470, %v8485
    %v8509 = vmul.f32 %v8471, %v8485
    %v8510 = vmul.f32 %v8472, %v8485
    %v8511 = vmul.f32 %v8473, %v8485
    %v8512 = vmul.f32 %v8474, %v8485
    %v8513 = vmul.f32 %v8475, %v8485
    %v8514 = vmul.f32 %v8476, %v8485
    %v8515 = vmul.f32 %v8477, %v8485
    %v8516 = vmul.f32 %v8478, %v8485
    %v8517 = vmul.f32 %v8479, %v8485
    %v8518 = vmul.f32 %v8480, %v8485
    %v8520 = vlaneseq
    %v8521 = vshrl.u32 %v8520, 7
    %v8522 = vsub.s32 0, %v8521
    %v8523 = vrot.slane %v8448, %v8522
    %v8525 = vadd.f32 %v8487, %v8523
    %v8526 = vadd.f32 %v8488, %v8523
    %v8527 = vadd.f32 %v8489, %v8523
    %v8528 = vadd.f32 %v8490, %v8523
    %v8529 = vadd.f32 %v8491, %v8523
    %v8530 = vadd.f32 %v8492, %v8523
    %v8531 = vadd.f32 %v8493, %v8523
    %v8532 = vadd.f32 %v8494, %v8523
    %v8533 = vadd.f32 %v8495, %v8523
    %v8534 = vadd.f32 %v8496, %v8523
    %v8535 = vadd.f32 %v8497, %v8523
    %v8536 = vadd.f32 %v8498, %v8523
    %v8537 = vadd.f32 %v8499, %v8523
    %v8538 = vadd.f32 %v8500, %v8523
    %v8539 = vadd.f32 %v8501, %v8523
    %v8540 = vadd.f32 %v8502, %v8523
    %v8541 = vadd.f32 %v8503, %v8523
    %v8542 = vadd.f32 %v8504, %v8523
    %v8543 = vadd.f32 %v8505, %v8523
    %v8544 = vadd.f32 %v8506, %v8523
    %v8545 = vadd.f32 %v8507, %v8523
    %v8546 = vadd.f32 %v8508, %v8523
    %v8547 = vadd.f32 %v8509, %v8523
    %v8548 = vadd.f32 %v8510, %v8523
    %v8549 = vadd.f32 %v8511, %v8523
    %v8550 = vadd.f32 %v8512, %v8523
    %v8551 = vadd.f32 %v8513, %v8523
    %v8552 = vadd.f32 %v8514, %v8523
    %v8553 = vadd.f32 %v8515, %v8523
    %v8554 = vadd.f32 %v8516, %v8523
    %v8555 = vadd.f32 %v8517, %v8523
    %v8556 = vadd.f32 %v8518, %v8523
    %v8557 = vmax.f32 %v8525, 0.0
    %v8558 = vmax.f32 %v8526, 0.0
    %v8559 = vmax.f32 %v8527, 0.0
    %v8560 = vmax.f32 %v8528, 0.0
    %v8561 = vmax.f32 %v8529, 0.0
    %v8562 = vmax.f32 %v8530, 0.0
    %v8563 = vmax.f32 %v8531, 0.0
    %v8564 = vmax.f32 %v8532, 0.0
    %v8565 = vmax.f32 %v8533, 0.0
    %v8566 = vmax.f32 %v8534, 0.0
    %v8567 = vmax.f32 %v8535, 0.0
    %v8568 = vmax.f32 %v8536, 0.0
    %v8569 = vmax.f32 %v8537, 0.0
    %v8570 = vmax.f32 %v8538, 0.0
    %v8571 = vmax.f32 %v8539, 0.0
    %v8572 = vmax.f32 %v8540, 0.0
    %v8573 = vmax.f32 %v8541, 0.0
    %v8574 = vmax.f32 %v8542, 0.0
    %v8575 = vmax.f32 %v8543, 0.0
    %v8576 = vmax.f32 %v8544, 0.0
    %v8577 = vmax.f32 %v8545, 0.0
    %v8578 = vmax.f32 %v8546, 0.0
    %v8579 = vmax.f32 %v8547, 0.0
    %v8580 = vmax.f32 %v8548, 0.0
    %v8581 = vmax.f32 %v8549, 0.0
    %v8582 = vmax.f32 %v8550, 0.0
    %v8583 = vmax.f32 %v8551, 0.0
    %v8584 = vmax.f32 %v8552, 0.0
    %v8585 = vmax.f32 %v8553, 0.0
    %v8586 = vmax.f32 %v8554, 0.0
    %v8587 = vmax.f32 %v8555, 0.0
    %v8588 = vmax.f32 %v8556, 0.0
    %8589 = vst [vmem:[#allocation9] sm:$0xff] %v8557
    %8590 = vst [vmem:[#allocation9 + $0x8] sm:$0xff] %v8558
    %8591 = vst [vmem:[#allocation9 + $0x10] sm:$0xff] %v8559
    %8592 = vst [vmem:[#allocation9 + $0x18] sm:$0xff] %v8560
    %8593 = vst [vmem:[#allocation9 + $0x20] sm:$0xff] %v8561
    %8594 = vst [vmem:[#allocation9 + $0x28] sm:$0xff] %v8562
    %8595 = vst [vmem:[#allocation9 + $0x30] sm:$0xff] %v8563
    %8596 = vst [vmem:[#allocation9 + $0x38] sm:$0xff] %v8564
    %8597 = vst [vmem:[#allocation9 + $0x40] sm:$0xff] %v8565
    %8598 = vst [vmem:[#allocation9 + $0x48] sm:$0xff] %v8566
    %8599 = vst [vmem:[#allocation9 + $0x50] sm:$0xff] %v8567
    %8600 = vst [vmem:[#allocation9 + $0x58] sm:$0xff] %v8568
    %8601 = vst [vmem:[#allocation9 + $0x60] sm:$0xff] %v8569
    %8602 = vst [vmem:[#allocation9 + $0x68] sm:$0xff] %v8570
    %8603 = vst [vmem:[#allocation9 + $0x70] sm:$0xff] %v8571
    %8604 = vst [vmem:[#allocation9 + $0x78] sm:$0xff] %v8572
    %8605 = vst [vmem:[#allocation9 + $0x80] sm:$0xff] %v8573
    %8606 = vst [vmem:[#allocation9 + $0x88] sm:$0xff] %v8574
    %8607 = vst [vmem:[#allocation9 + $0x90] sm:$0xff] %v8575
    %8608 = vst [vmem:[#allocation9 + $0x98] sm:$0xff] %v8576
    %8609 = vst [vmem:[#allocation9 + $0xa0] sm:$0xff] %v8577
    %8610 = vst [vmem:[#allocation9 + $0xa8] sm:$0xff] %v8578
    %8611 = vst [vmem:[#allocation9 + $0xb0] sm:$0xff] %v8579
    %8612 = vst [vmem:[#allocation9 + $0xb8] sm:$0xff] %v8580
    %8613 = vst [vmem:[#allocation9 + $0xc0] sm:$0xff] %v8581
    %8614 = vst [vmem:[#allocation9 + $0xc8] sm:$0xff] %v8582
    %8615 = vst [vmem:[#allocation9 + $0xd0] sm:$0xff] %v8583
    %8616 = vst [vmem:[#allocation9 + $0xd8] sm:$0xff] %v8584
    %8617 = vst [vmem:[#allocation9 + $0xe0] sm:$0xff] %v8585
    %8618 = vst [vmem:[#allocation9 + $0xe8] sm:$0xff] %v8586
    %8619 = vst [vmem:[#allocation9 + $0xf0] sm:$0xff] %v8587
    %8620 = vst [vmem:[#allocation9 + $0xf8] sm:$0xff] %v8588
    %v8621 = vld [vmem:[%s8296] sm:$0xff]
    %v8622 = vld [vmem:[%s8296 + $0x8] sm:$0xff]
    %v8623 = vld [vmem:[%s8296 + $0x10] sm:$0xff]
    %v8624 = vld [vmem:[%s8296 + $0x18] sm:$0xff]
    %v8625 = vld [vmem:[%s8296 + $0x20] sm:$0xff]
    %v8626 = vld [vmem:[%s8296 + $0x28] sm:$0xff]
    %v8627 = vld [vmem:[%s8296 + $0x30] sm:$0xff]
    %v8628 = vld [vmem:[%s8296 + $0x38] sm:$0xff]
    %v8629 = vld [vmem:[%s8296 + $0x40] sm:$0xff]
    %v8630 = vld [vmem:[%s8296 + $0x48] sm:$0xff]
    %v8631 = vld [vmem:[%s8296 + $0x50] sm:$0xff]
    %v8632 = vld [vmem:[%s8296 + $0x58] sm:$0xff]
    %v8633 = vld [vmem:[%s8296 + $0x60] sm:$0xff]
    %v8634 = vld [vmem:[%s8296 + $0x68] sm:$0xff]
    %v8635 = vld [vmem:[%s8296 + $0x70] sm:$0xff]
    %v8636 = vld [vmem:[%s8296 + $0x78] sm:$0xff]
    %v8637 = vld [vmem:[%s8296 + $0x80] sm:$0xff]
    %v8638 = vld [vmem:[%s8296 + $0x88] sm:$0xff]
    %v8639 = vld [vmem:[%s8296 + $0x90] sm:$0xff]
    %v8640 = vld [vmem:[%s8296 + $0x98] sm:$0xff]
    %v8641 = vld [vmem:[%s8296 + $0xa0] sm:$0xff]
    %v8642 = vld [vmem:[%s8296 + $0xa8] sm:$0xff]
    %v8643 = vld [vmem:[%s8296 + $0xb0] sm:$0xff]
    %v8644 = vld [vmem:[%s8296 + $0xb8] sm:$0xff]
    %v8645 = vld [vmem:[%s8296 + $0xc0] sm:$0xff]
    %v8646 = vld [vmem:[%s8296 + $0xc8] sm:$0xff]
    %v8647 = vld [vmem:[%s8296 + $0xd0] sm:$0xff]
    %v8648 = vld [vmem:[%s8296 + $0xd8] sm:$0xff]
    %v8649 = vld [vmem:[%s8296 + $0xe0] sm:$0xff]
    %v8650 = vld [vmem:[%s8296 + $0xe8] sm:$0xff]
    %v8651 = vld [vmem:[%s8296 + $0xf0] sm:$0xff]
    %v8652 = vld [vmem:[%s8296 + $0xf8] sm:$0xff]
    %v8653 = vmul.f32 %v8621, %v8485
    %v8654 = vmul.f32 %v8622, %v8485
    %v8655 = vmul.f32 %v8623, %v8485
    %v8656 = vmul.f32 %v8624, %v8485
    %v8657 = vmul.f32 %v8625, %v8485
    %v8658 = vmul.f32 %v8626, %v8485
    %v8659 = vmul.f32 %v8627, %v8485
    %v8660 = vmul.f32 %v8628, %v8485
    %v8661 = vmul.f32 %v8629, %v8485
    %v8662 = vmul.f32 %v8630, %v8485
    %v8663 = vmul.f32 %v8631, %v8485
    %v8664 = vmul.f32 %v8632, %v8485
    %v8665 = vmul.f32 %v8633, %v8485
    %v8666 = vmul.f32 %v8634, %v8485
    %v8667 = vmul.f32 %v8635, %v8485
    %v8668 = vmul.f32 %v8636, %v8485
    %v8669 = vmul.f32 %v8637, %v8485
    %v8670 = vmul.f32 %v8638, %v8485
    %v8671 = vmul.f32 %v8639, %v8485
    %v8672 = vmul.f32 %v8640, %v8485
    %v8673 = vmul.f32 %v8641, %v8485
    %v8674 = vmul.f32 %v8642, %v8485
    %v8675 = vmul.f32 %v8643, %v8485
    %v8676 = vmul.f32 %v8644, %v8485
    %v8677 = vmul.f32 %v8645, %v8485
    %v8678 = vmul.f32 %v8646, %v8485
    %v8679 = vmul.f32 %v8647, %v8485
    %v8680 = vmul.f32 %v8648, %v8485
    %v8681 = vmul.f32 %v8649, %v8485
    %v8682 = vmul.f32 %v8650, %v8485
    %v8683 = vmul.f32 %v8651, %v8485
    %v8684 = vmul.f32 %v8652, %v8485
    %v8685 = vadd.f32 %v8653, %v8523
    %v8686 = vadd.f32 %v8654, %v8523
    %v8687 = vadd.f32 %v8655, %v8523
    %v8688 = vadd.f32 %v8656, %v8523
    %v8689 = vadd.f32 %v8657, %v8523
    %v8690 = vadd.f32 %v8658, %v8523
    %v8691 = vadd.f32 %v8659, %v8523
    %v8692 = vadd.f32 %v8660, %v8523
    %v8693 = vadd.f32 %v8661, %v8523
    %v8694 = vadd.f32 %v8662, %v8523
    %v8695 = vadd.f32 %v8663, %v8523
    %v8696 = vadd.f32 %v8664, %v8523
    %v8697 = vadd.f32 %v8665, %v8523
    %v8698 = vadd.f32 %v8666, %v8523
    %v8699 = vadd.f32 %v8667, %v8523
    %v8700 = vadd.f32 %v8668, %v8523
    %v8701 = vadd.f32 %v8669, %v8523
    %v8702 = vadd.f32 %v8670, %v8523
    %v8703 = vadd.f32 %v8671, %v8523
    %v8704 = vadd.f32 %v8672, %v8523
    %v8705 = vadd.f32 %v8673, %v8523
    %v8706 = vadd.f32 %v8674, %v8523
    %v8707 = vadd.f32 %v8675, %v8523
    %v8708 = vadd.f32 %v8676, %v8523
    %v8709 = vadd.f32 %v8677, %v8523
    %v8710 = vadd.f32 %v8678, %v8523
    %v8711 = vadd.f32 %v8679, %v8523
    %v8712 = vadd.f32 %v8680, %v8523
    %v8713 = vadd.f32 %v8681, %v8523
    %v8714 = vadd.f32 %v8682, %v8523
    %v8715 = vadd.f32 %v8683, %v8523
    %v8716 = vadd.f32 %v8684, %v8523
    %v8717 = vmax.f32 %v8685, 0.0
    %v8718 = vmax.f32 %v8686, 0.0
    %v8719 = vmax.f32 %v8687, 0.0
    %v8720 = vmax.f32 %v8688, 0.0
    %v8721 = vmax.f32 %v8689, 0.0
    %v8722 = vmax.f32 %v8690, 0.0
    %v8723 = vmax.f32 %v8691, 0.0
    %v8724 = vmax.f32 %v8692, 0.0
    %v8725 = vmax.f32 %v8693, 0.0
    %v8726 = vmax.f32 %v8694, 0.0
    %v8727 = vmax.f32 %v8695, 0.0
    %v8728 = vmax.f32 %v8696, 0.0
    %v8729 = vmax.f32 %v8697, 0.0
    %v8730 = vmax.f32 %v8698, 0.0
    %v8731 = vmax.f32 %v8699, 0.0
    %v8732 = vmax.f32 %v8700, 0.0
    %v8733 = vmax.f32 %v8701, 0.0
    %v8734 = vmax.f32 %v8702, 0.0
    %v8735 = vmax.f32 %v8703, 0.0
    %v8736 = vmax.f32 %v8704, 0.0
    %v8737 = vmax.f32 %v8705, 0.0
    %v8738 = vmax.f32 %v8706, 0.0
    %v8739 = vmax.f32 %v8707, 0.0
    %v8740 = vmax.f32 %v8708, 0.0
    %v8741 = vmax.f32 %v8709, 0.0
    %v8742 = vmax.f32 %v8710, 0.0
    %v8743 = vmax.f32 %v8711, 0.0
    %v8744 = vmax.f32 %v8712, 0.0
    %v8745 = vmax.f32 %v8713, 0.0
    %v8746 = vmax.f32 %v8714, 0.0
    %v8747 = vmax.f32 %v8715, 0.0
    %v8748 = vmax.f32 %v8716, 0.0
    %8749 = vst [vmem:[%s8296] sm:$0xff] %v8717
    %8750 = vst [vmem:[%s8296 + $0x8] sm:$0xff] %v8718
    %8751 = vst [vmem:[%s8296 + $0x10] sm:$0xff] %v8719
    %8752 = vst [vmem:[%s8296 + $0x18] sm:$0xff] %v8720
    %8753 = vst [vmem:[%s8296 + $0x20] sm:$0xff] %v8721
    %8754 = vst [vmem:[%s8296 + $0x28] sm:$0xff] %v8722
    %8755 = vst [vmem:[%s8296 + $0x30] sm:$0xff] %v8723
    %8756 = vst [vmem:[%s8296 + $0x38] sm:$0xff] %v8724
    %8757 = vst [vmem:[%s8296 + $0x40] sm:$0xff] %v8725
    %8758 = vst [vmem:[%s8296 + $0x48] sm:$0xff] %v8726
    %8759 = vst [vmem:[%s8296 + $0x50] sm:$0xff] %v8727
    %8760 = vst [vmem:[%s8296 + $0x58] sm:$0xff] %v8728
    %8761 = vst [vmem:[%s8296 + $0x60] sm:$0xff] %v8729
    %8762 = vst [vmem:[%s8296 + $0x68] sm:$0xff] %v8730
    %8763 = vst [vmem:[%s8296 + $0x70] sm:$0xff] %v8731
    %8764 = vst [vmem:[%s8296 + $0x78] sm:$0xff] %v8732
    %8765 = vst [vmem:[%s8296 + $0x80] sm:$0xff] %v8733
    %8766 = vst [vmem:[%s8296 + $0x88] sm:$0xff] %v8734
    %8767 = vst [vmem:[%s8296 + $0x90] sm:$0xff] %v8735
    %8768 = vst [vmem:[%s8296 + $0x98] sm:$0xff] %v8736
    %8769 = vst [vmem:[%s8296 + $0xa0] sm:$0xff] %v8737
    %8770 = vst [vmem:[%s8296 + $0xa8] sm:$0xff] %v8738
    %8771 = vst [vmem:[%s8296 + $0xb0] sm:$0xff] %v8739
    %8772 = vst [vmem:[%s8296 + $0xb8] sm:$0xff] %v8740
    %8773 = vst [vmem:[%s8296 + $0xc0] sm:$0xff] %v8741
    %8774 = vst [vmem:[%s8296 + $0xc8] sm:$0xff] %v8742
    %8775 = vst [vmem:[%s8296 + $0xd0] sm:$0xff] %v8743
    %8776 = vst [vmem:[%s8296 + $0xd8] sm:$0xff] %v8744
    %8777 = vst [vmem:[%s8296 + $0xe0] sm:$0xff] %v8745
    %8778 = vst [vmem:[%s8296 + $0xe8] sm:$0xff] %v8746
    %8779 = vst [vmem:[%s8296 + $0xf0] sm:$0xff] %v8747
    %8780 = vst [vmem:[%s8296 + $0xf8] sm:$0xff] %v8748
    // Predicated region
    $region42: #{tpu_custom_call.1} parent=1 // pred_check
      _
    $region43: #{tpu_custom_call.1} parent=1 // pred_check_branch
      %8782 = sbr.rel (0) target = $region45
    $region44: #{tpu_custom_call.1} parent=1 // pred_region
      %s8784 = ssub.s32 8192, 8192
      %8785 = vsyncadd [#allocation5], %s8784
      %s8786 = sshll.u32 [#allocation9], 4
      %s8787 = int_to_ptr.vmem [resolvable:$true] %s8786
      %8792 = dma.vmem_to_hbm [thread:$0]  %s8787, 8192, %s7, [#allocation5], 128, 128, 8
    $region45: #{tpu_custom_call.1} parent=1 // pred_fallthru
      _
    // Predicated region
    $region46: #{tpu_custom_call.1} parent=1 // pred_check
      _
    $region47: #{tpu_custom_call.1} parent=1 // pred_check_branch
      %8794 = sbr.rel (0) target = $region49
    $region48: #{tpu_custom_call.1} parent=1 // pred_region
      %8795 = dma.done [#allocation5], 8192
    $region49: #{tpu_custom_call.1} parent=1 // pred_fallthru
      _
    %8796 = vsyncpa [#allocation4], 1
    %8797 = vsyncpa [#allocation7], 1
    %8798 = vsyncpa [#allocation5], 1

</llo_original>
